<compile_context>
chip_gen: v7x
topology: tpu7x:2x2x1
jax: 0.10.0
libtpu: 0.0.40
codegen_flags: <defaults>
</compile_context>

<pallas_src>
import functools

import jax
import jax.numpy as jnp
from jax.experimental import pallas as pl
from jax.experimental.pallas import tpu as pltpu

# ----------------------------------------------------------------------------
# Scaled-down Whisper configuration (synthetic weights, deterministic init).
# TODO(synk): real HF Whisper loads pretrained weights / WhisperProcessor
#             (30 s pad, d_model=384+, 4+ layers); length/width/depth are
#             scaled down but every forward stage is kept.
SAMPLE_RATE = 16000
HOP_LENGTH = 160
N_FFT = 400
N_FREQ = N_FFT // 2 + 1            # 201
N_FREQ_PAD = 256                   # lane-padded freq bins
N_MELS = 80
N_MELS_PAD = 128                   # lane-padded mel bins
D_MODEL = 64
N_HEADS = 4
D_HEAD = D_MODEL // N_HEADS
N_LAYERS = 2
CHUNK_SECONDS = 0.4
LENGTH = int(SAMPLE_RATE * CHUNK_SECONDS)      # pad_or_trim target (6400)
T_MEL = LENGTH // HOP_LENGTH                   # 40 mel frames
N_CTX = (T_MEL - 1) // 2 + 1                   # 20 frames after stride-2 conv
FRAME_ROWS = 48                                # ceil((LENGTH+N_FFT)/HOP) -> mult of 8
TAP_STRIDE = 24                                # sublane-aligned conv2 tap group stride
LN_EPS = 1e-5


# ----------------------------------------------------------------------------
# In-kernel exact GELU (erf via Abramowitz–Stegun, |err| < 1.5e-7) — matches
# torch.nn.functional.gelu (approximate='none') to float32 precision.
def _gelu_exact(x):
    z = x * 0.7071067811865476
    a = jnp.abs(z)
    t = 1.0 / (1.0 + 0.3275911 * a)
    poly = t * (0.254829592 + t * (-0.284496736 + t * (1.421413741
               + t * (-1.453152027 + t * 1.061405429))))
    erf_abs = 1.0 - poly * jnp.exp(-a * a)
    erf = jnp.where(z >= 0.0, erf_abs, -erf_abs)
    return 0.5 * x * (1.0 + erf)


def _layernorm_v(x, w, b):
    mu = jnp.mean(x, axis=-1, keepdims=True)
    c = x - mu
    var = jnp.mean(c * c, axis=-1, keepdims=True)
    return c * jax.lax.rsqrt(var + LN_EPS) * w + b


# ----------------------------------------------------------------------------
# BlockSpec helpers.  index_maps take (grid idx, *scalar-prefetch refs).
def _full_spec(shape):
    nd = len(shape)
    return pl.BlockSpec(tuple(shape), lambda b, ilen: (0,) * nd)


def _batch_spec(shape):
    nd = len(shape)
    return pl.BlockSpec((1,) + tuple(shape[1:]),
                        lambda b, ilen: (b,) + (0,) * (nd - 1))


# ----------------------------------------------------------------------------
# The single fused kernel: log-mel -> conv stem -> encoder -> masked mean.
def _whisper_fused_kernel(ilen_ref, audio_ref, dft_ref, melT_ref,
                          w1_ref, convb_ref, sel2_ref, w2_ref, pos_ref,
                          ln_ref, qkvw_ref, qkvb_ref, outw_ref, ob2_ref,
                          fc1w_ref, fc1b_ref, fc2w_ref, lnp_ref,
                          o_ref, *, n_layers, n_heads, d_head, score_scale):
    b = pl.program_id(0)

    # ---------------- log-mel spectrogram ----------------
    # audio is laid out as hop-sized rows; frame t = rows (t, t+1, t+2).  The
    # window is folded into the DFT matrix; the DFT is split per hop chunk so
    # the STFT is 3 deep matmuls with no lane concatenation.
    A = audio_ref[0]                                           # (FRAME_ROWS, HOP)
    a0 = A[0:T_MEL, :]
    a1 = A[1:T_MEL + 1, :]
    a2 = A[2:T_MEL + 2, :]
    re_im = (jnp.dot(a0, dft_ref[0], preferred_element_type=jnp.float32)
             + jnp.dot(a1, dft_ref[1], preferred_element_type=jnp.float32)
             + jnp.dot(a2, dft_ref[2], preferred_element_type=jnp.float32))
    re = re_im[:, :N_FREQ_PAD]                                 # (T_MEL, 256)
    im = re_im[:, N_FREQ_PAD:]
    power = re * re + im * im
    mel = jnp.dot(power, melT_ref[...], preferred_element_type=jnp.float32)  # (T_MEL, 128)
    log_spec = jnp.log10(jnp.maximum(mel, 1e-10))
    # per-sample dynamic-range clamp (per-sample WhisperProcessor semantics);
    # padded mel columns hold -10 and never win the max.
    log_spec = jnp.maximum(log_spec, jnp.max(log_spec) - 8.0)
    m = (log_spec + 4.0) / 4.0                                 # padded cols killed by zero W1 rows

    # ---------------- conv stem ----------------
    convb = convb_ref[...]                                     # (2, D)
    # conv1 (k3, s1, p1) + GELU: shifted-input matmuls, zero boundary rows.
    zrow = jnp.zeros((1, N_MELS_PAD), jnp.float32)
    m_prev = jnp.concatenate([zrow, m[:T_MEL - 1, :]], axis=0)
    m_next = jnp.concatenate([m[1:, :], zrow], axis=0)
    h = (jnp.dot(m_prev, w1_ref[0], preferred_element_type=jnp.float32)
         + jnp.dot(m, w1_ref[1], preferred_element_type=jnp.float32)
         + jnp.dot(m_next, w1_ref[2], preferred_element_type=jnp.float32))
    h = _gelu_exact(h + convb[0:1, :])                         # (T_MEL, D)
    # conv2 (k3, s2, p1) + GELU: one stacked stride-2 selection matmul, tap
    # groups at sublane-aligned offsets, then 3 per-tap weight matmuls.
    taps = jnp.dot(sel2_ref[...], h, preferred_element_type=jnp.float32)  # (3*TAP_STRIDE, D)
    x2 = (jnp.dot(taps[0:N_CTX], w2_ref[0], preferred_element_type=jnp.float32)
          + jnp.dot(taps[TAP_STRIDE:TAP_STRIDE + N_CTX], w2_ref[1],
                    preferred_element_type=jnp.float32)
          + jnp.dot(taps[2 * TAP_STRIDE:2 * TAP_STRIDE + N_CTX], w2_ref[2],
                    preferred_element_type=jnp.float32))
    x = _gelu_exact(x2 + convb[1:2, :]) + pos_ref[...]         # (N_CTX, D)

    # ---------------- transformer encoder ----------------
    for l in range(n_layers):
        ln = ln_ref[l]                                         # (4, D)
        xa = _layernorm_v(x, ln[0:1, :], ln[1:2, :])
        qkv = (jnp.dot(xa, qkvw_ref[l], preferred_element_type=jnp.float32)
               + qkvb_ref[l])                                  # (N_CTX, 3D)
        att = jnp.zeros_like(x)
        for hh in range(n_heads):
            lo = hh * d_head
            q = qkv[:, lo:lo + d_head]
            k = qkv[:, D_MODEL + lo:D_MODEL + lo + d_head]
            v = qkv[:, 2 * D_MODEL + lo:2 * D_MODEL + lo + d_head]
            s = jax.lax.dot_general(q, k, (((1,), (1,)), ((), ())),
                                    preferred_element_type=jnp.float32) * score_scale
            s = s - jnp.max(s, axis=-1, keepdims=True)
            p = jnp.exp(s)
            p = p / jnp.sum(p, axis=-1, keepdims=True)         # exact softmax
            oh = jnp.dot(p, v, preferred_element_type=jnp.float32)          # (N_CTX, Dh)
            att = att + jnp.dot(oh, outw_ref[l, hh], preferred_element_type=jnp.float32)
        ob2 = ob2_ref[l]                                       # (2, D): [out_b; fc2_b]
        x = x + att + ob2[0:1, :]
        xm = _layernorm_v(x, ln[2:3, :], ln[3:4, :])
        h1 = _gelu_exact(jnp.dot(xm, fc1w_ref[l], preferred_element_type=jnp.float32)
                         + fc1b_ref[l])
        x = x + jnp.dot(h1, fc2w_ref[l], preferred_element_type=jnp.float32) + ob2[1:2, :]

    # ---------------- ln_post + masked mean pooling ----------------
    lnp = lnp_ref[...]
    x = _layernorm_v(x, lnp[0:1, :], lnp[1:2, :])
    last_valid = (ilen_ref[b].astype(jnp.float32) * (50.0 / 16000.0)).astype(jnp.int32)
    idx = jax.lax.broadcasted_iota(jnp.int32, (1, N_CTX), 1)
    mask = (idx <= last_valid).astype(jnp.float32)             # (1, N_CTX)
    num = jnp.dot(mask, x, preferred_element_type=jnp.float32)  # (1, D)
    den = jnp.maximum(jnp.sum(mask), 1.0)
    o_ref[0] = num / den


def pallas_whisper_forward(prepped, audio_rows, ilen):
    B = audio_rows.shape[0]
    w = prepped
    args = (audio_rows, w["dft"], w["melT"], w["w1"], w["convb"], w["sel2"],
            w["w2"], w["pos"], w["ln"], w["qkvw"], w["qkvb"], w["outw"],
            w["ob2"], w["fc1w"], w["fc1b"], w["fc2w"], w["lnp"])
    in_specs = [_batch_spec(audio_rows.shape)] + [_full_spec(a.shape) for a in args[1:]]
    grid_spec = pltpu.PrefetchScalarGridSpec(
        num_scalar_prefetch=1,
        grid=(B,),
        in_specs=in_specs,
        out_specs=_batch_spec((B, 1, D_MODEL)),
    )
    out = pl.pallas_call(
        functools.partial(_whisper_fused_kernel, n_layers=N_LAYERS,
                          n_heads=N_HEADS, d_head=D_HEAD,
                          score_scale=float(D_HEAD) ** -0.5),
        out_shape=jax.ShapeDtypeStruct((B, 1, D_MODEL), jnp.float32),
        grid_spec=grid_spec,
        compiler_params=pltpu.CompilerParams(dimension_semantics=("parallel",)),
    )(ilen, *args)
    return out[:, 0, :]


# ----------------------------------------------------------------------------
# Host-side glue (pad_or_trim, hop-row layout, mel filterbank, pos emb).
def pad_or_trim(audio, length):
    L = audio.shape[-1]
    if L > length:
        return audio[..., :length]
    if L < length:
        return jnp.pad(audio, ((0, 0), (0, length - L)))
    return audio


def audio_to_hop_rows(audio):
    # reflect-pad (STFT centering) then lay samples out as hop-sized rows so
    # the kernel builds overlapping frames from cheap sublane slices.
    pad = N_FFT // 2
    x = jnp.pad(audio, ((0, 0), (pad, pad)), mode="reflect")
    total = FRAME_ROWS * HOP_LENGTH
    x = jnp.pad(x, ((0, 0), (0, total - x.shape[1])))
    return x.reshape(audio.shape[0], FRAME_ROWS, HOP_LENGTH)


def mel_filterbank(sr, n_fft, n_mels):
    # TODO(synk): real Whisper/HF loads librosa slaney-norm mel filters; a
    # deterministic HTK-style triangular filterbank is built in-script instead.
    n_freq = n_fft // 2 + 1
    fftfreqs = jnp.arange(n_freq, dtype=jnp.float32) * (sr / n_fft)
    hz_to_mel = lambda f: 2595.0 * jnp.log10(1.0 + f / 700.0)
    mel_to_hz = lambda m: 700.0 * (10.0 ** (m / 2595.0) - 1.0)
    mpts = jnp.linspace(hz_to_mel(0.0), hz_to_mel(sr / 2.0), n_mels + 2)
    fpts = mel_to_hz(mpts)
    lower, center, upper = fpts[:-2, None], fpts[1:-1, None], fpts[2:, None]
    up = (fftfreqs[None, :] - lower) / (center - lower)
    down = (upper - fftfreqs[None, :]) / (upper - center)
    return jnp.maximum(0.0, jnp.minimum(up, down)).astype(jnp.float32)  # (n_mels, n_freq)


def sinusoids(length, channels, max_timescale=10000.0):
    inc = jnp.log(max_timescale) / (channels // 2 - 1)
    inv = jnp.exp(-inc * jnp.arange(channels // 2, dtype=jnp.float32))
    scaled = jnp.arange(length, dtype=jnp.float32)[:, None] * inv[None, :]
    return jnp.concatenate([jnp.sin(scaled), jnp.cos(scaled)], axis=1)


# ----------------------------------------------------------------------------
# Deterministic synthetic parameters (shapes follow the Whisper AudioEncoder).
def init_params(key):
    keys = jax.random.split(key, 8 + N_LAYERS)
    nrm = lambda k, s: 0.02 * jax.random.normal(k, s, jnp.float32)
    ones = lambda: jnp.ones((D_MODEL,), jnp.float32)
    zeros = lambda: jnp.zeros((D_MODEL,), jnp.float32)
    p = {
        "conv1_w": nrm(keys[0], (D_MODEL, N_MELS, 3)),
        "conv1_b": nrm(keys[1], (D_MODEL,)),
        "conv2_w": nrm(keys[2], (D_MODEL, D_MODEL, 3)),
        "conv2_b": nrm(keys[3], (D_MODEL,)),
        "ln_post_w": ones(), "ln_post_b": zeros(),
        "pos_emb": sinusoids(N_CTX, D_MODEL),
        "blocks": [],
    }
    for l in range(N_LAYERS):
        ks = jax.random.split(keys[8 + l], 11)
        p["blocks"].append({
            "attn_ln_w": ones(), "attn_ln_b": zeros(),
            "q_w": nrm(ks[0], (D_MODEL, D_MODEL)), "q_b": nrm(ks[1], (D_MODEL,)),
            "k_w": nrm(ks[2], (D_MODEL, D_MODEL)),            # no k bias (whisper)
            "v_w": nrm(ks[3], (D_MODEL, D_MODEL)), "v_b": nrm(ks[4], (D_MODEL,)),
            "out_w": nrm(ks[5], (D_MODEL, D_MODEL)), "out_b": nrm(ks[6], (D_MODEL,)),
            "mlp_ln_w": ones(), "mlp_ln_b": zeros(),
            "fc1_w": nrm(ks[7], (D_MODEL, 4 * D_MODEL)), "fc1_b": nrm(ks[8], (4 * D_MODEL,)),
            "fc2_w": nrm(ks[9], (4 * D_MODEL, D_MODEL)), "fc2_b": nrm(ks[10], (D_MODEL,)),
        })
    return p


# One-time host-side restructuring into kernel-friendly stacked / lane-padded
# layouts (no per-call pad / slice / transpose glue in the hot path).
def prepare_for_kernels(params, mel_fb):
    # Windowed DFT matrix: window folded in, freq bins zero-padded 201->256,
    # [cos|sin] concatenated along lanes, split into 3 hop-sized row chunks.
    n = jnp.arange(N_FFT, dtype=jnp.float32)[:, None]
    kf = jnp.arange(N_FREQ, dtype=jnp.float32)[None, :]
    ang = 2.0 * jnp.pi * n * kf / N_FFT
    window = (0.5 - 0.5 * jnp.cos(
        2.0 * jnp.pi * jnp.arange(N_FFT, dtype=jnp.float32) / N_FFT))[:, None]
    pad_f = N_FREQ_PAD - N_FREQ
    coswin = jnp.pad(jnp.cos(ang) * window, ((0, 0), (0, pad_f)))
    sinwin = jnp.pad(jnp.sin(ang) * window, ((0, 0), (0, pad_f)))
    dft_full = jnp.concatenate([coswin, sinwin], axis=1)            # (N_FFT, 512)
    dft = jnp.zeros((3, HOP_LENGTH, 2 * N_FREQ_PAD), jnp.float32)
    dft = dft.at[0].set(dft_full[0:HOP_LENGTH])
    dft = dft.at[1].set(dft_full[HOP_LENGTH:2 * HOP_LENGTH])
    dft = dft.at[2, :N_FFT - 2 * HOP_LENGTH].set(dft_full[2 * HOP_LENGTH:])
    melT = jnp.pad(mel_fb.T, ((0, pad_f), (0, N_MELS_PAD - N_MELS)))  # (256, 128)

    # conv1 tap weights (3, n_mels_pad, D); padded mel-channel rows are zero.
    w1 = jnp.transpose(params["conv1_w"], (2, 1, 0))                 # (3, 80, D)
    w1 = jnp.pad(w1, ((0, 0), (0, N_MELS_PAD - N_MELS), (0, 0)))
    # conv2 tap weights + stacked stride-2 row-selection matrix; each of the 3
    # tap groups lives at a sublane-aligned TAP_STRIDE offset.
    w2 = jnp.transpose(params["conv2_w"], (2, 1, 0))                 # (3, D, D)
    rows = jnp.arange(N_CTX)[:, None]
    cols = jnp.arange(T_MEL)[None, :]
    sel2 = jnp.zeros((3 * TAP_STRIDE, T_MEL), jnp.float32)
    for k in range(3):
        tgt = rows * 2 + (k - 1)
        blk = ((cols == tgt) & (tgt >= 0) & (tgt < T_MEL)).astype(jnp.float32)
        sel2 = sel2.at[k * TAP_STRIDE:k * TAP_STRIDE + N_CTX].set(blk)
    convb = jnp.stack([params["conv1_b"], params["conv2_b"]])        # (2, D)

    L, H, Dh = N_LAYERS, N_HEADS, D_HEAD
    st = lambda name: jnp.stack([blk[name] for blk in params["blocks"]])
    ln = jnp.stack([st("attn_ln_w"), st("attn_ln_b"),
                    st("mlp_ln_w"), st("mlp_ln_b")], axis=1)         # (L, 4, D)
    qkvw = jnp.concatenate([st("q_w"), st("k_w"), st("v_w")], axis=2)  # (L, D, 3D)
    qkvb = jnp.concatenate([st("q_b"), jnp.zeros((L, D_MODEL), jnp.float32),
                            st("v_b")], axis=1)[:, None, :]          # (L, 1, 3D)
    outw = st("out_w").reshape(L, H, Dh, D_MODEL)                    # (L, H, Dh, D)
    ob2 = jnp.stack([st("out_b"), st("fc2_b")], axis=1)              # (L, 2, D)
    lnp = jnp.stack([params["ln_post_w"], params["ln_post_b"]])      # (2, D)
    return dict(dft=dft, melT=melT, w1=w1, convb=convb, sel2=sel2, w2=w2,
                pos=params["pos_emb"], ln=ln, qkvw=qkvw, qkvb=qkvb, outw=outw,
                ob2=ob2, fc1w=st("fc1_w"), fc1b=st("fc1_b")[:, None, :],
                fc2w=st("fc2_w"), lnp=lnp)


# ----------------------------------------------------------------------------
# HF_Whisper_Wrapper.forward
def whisper_wrapper_forward(prepped, audio, input_length=None):
    audio = pad_or_trim(audio.astype(jnp.float32), LENGTH)
    B = audio.shape[0]
    rows = audio_to_hop_rows(audio)                                  # (B, 48, 160)
    if input_length is None:
        ilen = jnp.full((B,), LENGTH, jnp.int32)                     # -> plain mean over time
    else:
        ilen = input_length.astype(jnp.int32)
    return pallas_whisper_forward(prepped, rows, ilen)               # (B, D)


# ----------------------------------------------------------------------------
if __name__ == "__main__":
    key = jax.random.PRNGKey(0)
    k_audio, k_params = jax.random.split(key)

    # raw waveform input (B, L_in) + per-example lengths in samples
    audio = jax.random.normal(k_audio, (2, 5000), jnp.float32)
    input_length = jnp.array([5000, 3000], jnp.int32)

    params = init_params(k_params)
    mel_fb = mel_filterbank(SAMPLE_RATE, N_FFT, N_MELS)
    prepped = prepare_for_kernels(params, mel_fb)                    # one-time prep

    fwd = jax.jit(whisper_wrapper_forward)
    emb = fwd(prepped, audio, input_length)
    emb = jax.block_until_ready(emb)

    assert emb.shape == (2, D_MODEL), emb.shape
    assert bool(jnp.all(jnp.isfinite(emb)))
    print("KERNEL_OK")
</pallas_src>

<mosaic_0001>
module attributes {stable_mosaic.version = 11 : i64} {
  func.func @_whisper_fused_kernel(%arg0: i32, %arg1: memref<2xi32, #tpu.memory_space<smem>>, %arg2: memref<1x48x160xf32, #tpu.memory_space<vmem>>, %arg3: memref<3x160x512xf32, #tpu.memory_space<vmem>>, %arg4: memref<256x128xf32, #tpu.memory_space<vmem>>, %arg5: memref<3x128x64xf32, #tpu.memory_space<vmem>>, %arg6: memref<2x64xf32, #tpu.memory_space<vmem>>, %arg7: memref<72x40xf32, #tpu.memory_space<vmem>>, %arg8: memref<3x64x64xf32, #tpu.memory_space<vmem>>, %arg9: memref<20x64xf32, #tpu.memory_space<vmem>>, %arg10: memref<2x4x64xf32, #tpu.memory_space<vmem>>, %arg11: memref<2x64x192xf32, #tpu.memory_space<vmem>>, %arg12: memref<2x1x192xf32, #tpu.memory_space<vmem>>, %arg13: memref<2x4x16x64xf32, #tpu.memory_space<vmem>>, %arg14: memref<2x2x64xf32, #tpu.memory_space<vmem>>, %arg15: memref<2x64x256xf32, #tpu.memory_space<vmem>>, %arg16: memref<2x1x256xf32, #tpu.memory_space<vmem>>, %arg17: memref<2x256x64xf32, #tpu.memory_space<vmem>>, %arg18: memref<2x64xf32, #tpu.memory_space<vmem>>, %arg19: memref<1x1x64xf32, #tpu.memory_space<vmem>>) attributes {dimension_semantics = [#tpu.dimension_semantics<parallel>], iteration_bounds = array<i64: 2>, scalar_prefetch = 1 : i64, scratch_operands = 0 : i64, tpu.core_type = #tpu.core_type<tc>, window_params = [{transform_indices = @transform_0, window_bounds = array<i64: 1, 48, 160>}, {pipeline_mode = #tpu.pipeline_mode<synchronous>, transform_indices = @transform_1, window_bounds = array<i64: 3, 160, 512>}, {pipeline_mode = #tpu.pipeline_mode<synchronous>, transform_indices = @transform_2, window_bounds = array<i64: 256, 128>}, {pipeline_mode = #tpu.pipeline_mode<synchronous>, transform_indices = @transform_3, window_bounds = array<i64: 3, 128, 64>}, {pipeline_mode = #tpu.pipeline_mode<synchronous>, transform_indices = @transform_4, window_bounds = array<i64: 2, 64>}, {pipeline_mode = #tpu.pipeline_mode<synchronous>, transform_indices = @transform_5, window_bounds = array<i64: 72, 40>}, {pipeline_mode = #tpu.pipeline_mode<synchronous>, transform_indices = @transform_6, window_bounds = array<i64: 3, 64, 64>}, {pipeline_mode = #tpu.pipeline_mode<synchronous>, transform_indices = @transform_7, window_bounds = array<i64: 20, 64>}, {pipeline_mode = #tpu.pipeline_mode<synchronous>, transform_indices = @transform_8, window_bounds = array<i64: 2, 4, 64>}, {pipeline_mode = #tpu.pipeline_mode<synchronous>, transform_indices = @transform_9, window_bounds = array<i64: 2, 64, 192>}, {pipeline_mode = #tpu.pipeline_mode<synchronous>, transform_indices = @transform_10, window_bounds = array<i64: 2, 1, 192>}, {pipeline_mode = #tpu.pipeline_mode<synchronous>, transform_indices = @transform_11, window_bounds = array<i64: 2, 4, 16, 64>}, {pipeline_mode = #tpu.pipeline_mode<synchronous>, transform_indices = @transform_12, window_bounds = array<i64: 2, 2, 64>}, {pipeline_mode = #tpu.pipeline_mode<synchronous>, transform_indices = @transform_13, window_bounds = array<i64: 2, 64, 256>}, {pipeline_mode = #tpu.pipeline_mode<synchronous>, transform_indices = @transform_14, window_bounds = array<i64: 2, 1, 256>}, {pipeline_mode = #tpu.pipeline_mode<synchronous>, transform_indices = @transform_15, window_bounds = array<i64: 2, 256, 64>}, {pipeline_mode = #tpu.pipeline_mode<synchronous>, transform_indices = @transform_16, window_bounds = array<i64: 2, 64>}, {transform_indices = @transform_17, window_bounds = array<i64: 1, 1, 64>}]} {
    %c0 = arith.constant 0 : index
    %c0_0 = arith.constant 0 : index
    %c0_1 = arith.constant 0 : index
    %0 = vector.load %arg2[%c0, %c0_0, %c0_1] : memref<1x48x160xf32, #tpu.memory_space<vmem>>, vector<1x48x160xf32>
    %1 = vector.shape_cast %0 : vector<1x48x160xf32> to vector<48x160xf32>
    %2 = vector.extract_strided_slice %1 {offsets = [0, 0], sizes = [40, 160], strides = [1, 1]} : vector<48x160xf32> to vector<40x160xf32>
    %3 = vector.extract_strided_slice %1 {offsets = [1, 0], sizes = [40, 160], strides = [1, 1]} : vector<48x160xf32> to vector<40x160xf32>
    %4 = vector.extract_strided_slice %1 {offsets = [2, 0], sizes = [40, 160], strides = [1, 1]} : vector<48x160xf32> to vector<40x160xf32>
    %c0_2 = arith.constant 0 : index
    %c0_3 = arith.constant 0 : index
    %c0_4 = arith.constant 0 : index
    %5 = vector.load %arg3[%c0_2, %c0_3, %c0_4] : memref<3x160x512xf32, #tpu.memory_space<vmem>>, vector<1x160x512xf32>
    %6 = vector.shape_cast %5 : vector<1x160x512xf32> to vector<160x512xf32>
    %cst = arith.constant dense<0.000000e+00> : vector<40x512xf32>
    %7 = tpu.matmul %2, %6, %cst {dimension_numbers = #tpu.dot_dimension_numbers<[1], [0], [0], [1], [0, 0, 1, 1], [], []>} : vector<40x160xf32>, vector<160x512xf32>, vector<40x512xf32> -> vector<40x512xf32>
    %c1 = arith.constant 1 : index
    %c0_5 = arith.constant 0 : index
    %c0_6 = arith.constant 0 : index
    %8 = vector.load %arg3[%c1, %c0_5, %c0_6] : memref<3x160x512xf32, #tpu.memory_space<vmem>>, vector<1x160x512xf32>
    %9 = vector.shape_cast %8 : vector<1x160x512xf32> to vector<160x512xf32>
    %cst_7 = arith.constant dense<0.000000e+00> : vector<40x512xf32>
    %10 = tpu.matmul %3, %9, %cst_7 {dimension_numbers = #tpu.dot_dimension_numbers<[1], [0], [0], [1], [0, 0, 1, 1], [], []>} : vector<40x160xf32>, vector<160x512xf32>, vector<40x512xf32> -> vector<40x512xf32>
    %11 = arith.addf %7, %10 : vector<40x512xf32>
    %c2 = arith.constant 2 : index
    %c0_8 = arith.constant 0 : index
    %c0_9 = arith.constant 0 : index
    %12 = vector.load %arg3[%c2, %c0_8, %c0_9] : memref<3x160x512xf32, #tpu.memory_space<vmem>>, vector<1x160x512xf32>
    %13 = vector.shape_cast %12 : vector<1x160x512xf32> to vector<160x512xf32>
    %cst_10 = arith.constant dense<0.000000e+00> : vector<40x512xf32>
    %14 = tpu.matmul %4, %13, %cst_10 {dimension_numbers = #tpu.dot_dimension_numbers<[1], [0], [0], [1], [0, 0, 1, 1], [], []>} : vector<40x160xf32>, vector<160x512xf32>, vector<40x512xf32> -> vector<40x512xf32>
    %15 = arith.addf %11, %14 : vector<40x512xf32>
    %16 = vector.extract_strided_slice %15 {offsets = [0, 0], sizes = [40, 256], strides = [1, 1]} : vector<40x512xf32> to vector<40x256xf32>
    %17 = vector.extract_strided_slice %15 {offsets = [0, 256], sizes = [40, 256], strides = [1, 1]} : vector<40x512xf32> to vector<40x256xf32>
    %18 = arith.mulf %16, %16 : vector<40x256xf32>
    %19 = arith.mulf %17, %17 : vector<40x256xf32>
    %20 = arith.addf %18, %19 : vector<40x256xf32>
    %c0_11 = arith.constant 0 : index
    %c0_12 = arith.constant 0 : index
    %21 = vector.load %arg4[%c0_11, %c0_12] : memref<256x128xf32, #tpu.memory_space<vmem>>, vector<256x128xf32>
    %cst_13 = arith.constant dense<0.000000e+00> : vector<40x128xf32>
    %22 = tpu.matmul %20, %21, %cst_13 {dimension_numbers = #tpu.dot_dimension_numbers<[1], [0], [0], [1], [0, 0, 1, 1], [], []>} : vector<40x256xf32>, vector<256x128xf32>, vector<40x128xf32> -> vector<40x128xf32>
    %cst_14 = arith.constant 1.000000e-10 : f32
    %23 = vector.broadcast %cst_14 : f32 to vector<40x128xf32>
    %24 = arith.maximumf %22, %23 : vector<40x128xf32>
    %25 = math.log %24 : vector<40x128xf32>
    %cst_15 = arith.constant 0.434294492 : f32
    %26 = vector.broadcast %cst_15 : f32 to vector<40x128xf32>
    %27 = arith.mulf %25, %26 : vector<40x128xf32>
    %28 = vector.shape_cast %27 : vector<40x128xf32> to vector<1x40x128xf32>
    %cst_16 = arith.constant dense<0xFF800000> : vector<1xf32>
    %29 = vector.multi_reduction <maximumf>, %28, %cst_16 [1, 2] : vector<1x40x128xf32> to vector<1xf32>
    %30 = vector.shape_cast %29 : vector<1xf32> to vector<1x1x1xf32>
    %31 = vector.extract %30[0, 0, 0] : f32 from vector<1x1x1xf32>
    %cst_17 = arith.constant 8.000000e+00 : f32
    %32 = arith.subf %31, %cst_17 : f32
    %33 = vector.broadcast %32 : f32 to vector<40x128xf32>
    %34 = arith.maximumf %27, %33 : vector<40x128xf32>
    %cst_18 = arith.constant 4.000000e+00 : f32
    %35 = vector.broadcast %cst_18 : f32 to vector<40x128xf32>
    %36 = arith.addf %34, %35 : vector<40x128xf32>
    %cst_19 = arith.constant 4.000000e+00 : f32
    %37 = vector.broadcast %cst_19 : f32 to vector<40x128xf32>
    %38 = arith.divf %36, %37 : vector<40x128xf32>
    %c0_20 = arith.constant 0 : index
    %c0_21 = arith.constant 0 : index
    %39 = vector.load %arg6[%c0_20, %c0_21] : memref<2x64xf32, #tpu.memory_space<vmem>>, vector<2x64xf32>
    %cst_22 = arith.constant 0.000000e+00 : f32
    %40 = vector.broadcast %cst_22 : f32 to vector<1x128xf32>
    %41 = vector.extract_strided_slice %38 {offsets = [0, 0], sizes = [39, 128], strides = [1, 1]} : vector<40x128xf32> to vector<39x128xf32>
    %42 = tpu.concatenate %40, %41 in 0 : vector<1x128xf32>, vector<39x128xf32> -> vector<40x128xf32>
    %43 = vector.extract_strided_slice %38 {offsets = [1, 0], sizes = [39, 128], strides = [1, 1]} : vector<40x128xf32> to vector<39x128xf32>
    %44 = tpu.concatenate %43, %40 in 0 : vector<39x128xf32>, vector<1x128xf32> -> vector<40x128xf32>
    %c0_23 = arith.constant 0 : index
    %c0_24 = arith.constant 0 : index
    %c0_25 = arith.constant 0 : index
    %45 = vector.load %arg5[%c0_23, %c0_24, %c0_25] : memref<3x128x64xf32, #tpu.memory_space<vmem>>, vector<1x128x64xf32>
    %46 = vector.shape_cast %45 : vector<1x128x64xf32> to vector<128x64xf32>
    %cst_26 = arith.constant dense<0.000000e+00> : vector<40x64xf32>
    %47 = tpu.matmul %42, %46, %cst_26 {dimension_numbers = #tpu.dot_dimension_numbers<[1], [0], [0], [1], [0, 0, 1, 1], [], []>} : vector<40x128xf32>, vector<128x64xf32>, vector<40x64xf32> -> vector<40x64xf32>
    %c1_27 = arith.constant 1 : index
    %c0_28 = arith.constant 0 : index
    %c0_29 = arith.constant 0 : index
    %48 = vector.load %arg5[%c1_27, %c0_28, %c0_29] : memref<3x128x64xf32, #tpu.memory_space<vmem>>, vector<1x128x64xf32>
    %49 = vector.shape_cast %48 : vector<1x128x64xf32> to vector<128x64xf32>
    %cst_30 = arith.constant dense<0.000000e+00> : vector<40x64xf32>
    %50 = tpu.matmul %38, %49, %cst_30 {dimension_numbers = #tpu.dot_dimension_numbers<[1], [0], [0], [1], [0, 0, 1, 1], [], []>} : vector<40x128xf32>, vector<128x64xf32>, vector<40x64xf32> -> vector<40x64xf32>
    %51 = arith.addf %47, %50 : vector<40x64xf32>
    %c2_31 = arith.constant 2 : index
    %c0_32 = arith.constant 0 : index
    %c0_33 = arith.constant 0 : index
    %52 = vector.load %arg5[%c2_31, %c0_32, %c0_33] : memref<3x128x64xf32, #tpu.memory_space<vmem>>, vector<1x128x64xf32>
    %53 = vector.shape_cast %52 : vector<1x128x64xf32> to vector<128x64xf32>
    %cst_34 = arith.constant dense<0.000000e+00> : vector<40x64xf32>
    %54 = tpu.matmul %44, %53, %cst_34 {dimension_numbers = #tpu.dot_dimension_numbers<[1], [0], [0], [1], [0, 0, 1, 1], [], []>} : vector<40x128xf32>, vector<128x64xf32>, vector<40x64xf32> -> vector<40x64xf32>
    %55 = arith.addf %51, %54 : vector<40x64xf32>
    %56 = vector.extract_strided_slice %39 {offsets = [0, 0], sizes = [1, 64], strides = [1, 1]} : vector<2x64xf32> to vector<1x64xf32>
    %57 = vector.broadcast %56 : vector<1x64xf32> to vector<40x64xf32>
    %58 = arith.addf %55, %57 : vector<40x64xf32>
    %cst_35 = arith.constant 0.707106769 : f32
    %59 = vector.broadcast %cst_35 : f32 to vector<40x64xf32>
    %60 = arith.mulf %58, %59 : vector<40x64xf32>
    %61 = math.absf %60 : vector<40x64xf32>
    %cst_36 = arith.constant 0.327591091 : f32
    %62 = vector.broadcast %cst_36 : f32 to vector<40x64xf32>
    %63 = arith.mulf %62, %61 : vector<40x64xf32>
    %cst_37 = arith.constant 1.000000e+00 : f32
    %64 = vector.broadcast %cst_37 : f32 to vector<40x64xf32>
    %65 = arith.addf %64, %63 : vector<40x64xf32>
    %cst_38 = arith.constant 1.000000e+00 : f32
    %66 = vector.broadcast %cst_38 : f32 to vector<40x64xf32>
    %67 = arith.divf %66, %65 : vector<40x64xf32>
    %cst_39 = arith.constant 1.06140542 : f32
    %68 = vector.broadcast %cst_39 : f32 to vector<40x64xf32>
    %69 = arith.mulf %67, %68 : vector<40x64xf32>
    %cst_40 = arith.constant -1.45315206 : f32
    %70 = vector.broadcast %cst_40 : f32 to vector<40x64xf32>
    %71 = arith.addf %70, %69 : vector<40x64xf32>
    %72 = arith.mulf %67, %71 : vector<40x64xf32>
    %cst_41 = arith.constant 1.42141378 : f32
    %73 = vector.broadcast %cst_41 : f32 to vector<40x64xf32>
    %74 = arith.addf %73, %72 : vector<40x64xf32>
    %75 = arith.mulf %67, %74 : vector<40x64xf32>
    %cst_42 = arith.constant -0.284496725 : f32
    %76 = vector.broadcast %cst_42 : f32 to vector<40x64xf32>
    %77 = arith.addf %76, %75 : vector<40x64xf32>
    %78 = arith.mulf %67, %77 : vector<40x64xf32>
    %cst_43 = arith.constant 0.254829586 : f32
    %79 = vector.broadcast %cst_43 : f32 to vector<40x64xf32>
    %80 = arith.addf %79, %78 : vector<40x64xf32>
    %81 = arith.mulf %67, %80 : vector<40x64xf32>
    %cst_44 = arith.constant 0.000000e+00 : f32
    %82 = vector.broadcast %cst_44 : f32 to vector<40x64xf32>
    %83 = arith.subf %82, %61 : vector<40x64xf32>
    %84 = arith.mulf %83, %61 : vector<40x64xf32>
    %85 = math.exp %84 : vector<40x64xf32>
    %86 = arith.mulf %81, %85 : vector<40x64xf32>
    %cst_45 = arith.constant 1.000000e+00 : f32
    %87 = vector.broadcast %cst_45 : f32 to vector<40x64xf32>
    %88 = arith.subf %87, %86 : vector<40x64xf32>
    %cst_46 = arith.constant 0.000000e+00 : f32
    %89 = vector.broadcast %cst_46 : f32 to vector<40x64xf32>
    %90 = arith.cmpf oge, %60, %89 : vector<40x64xf32>
    %cst_47 = arith.constant 0.000000e+00 : f32
    %91 = vector.broadcast %cst_47 : f32 to vector<40x64xf32>
    %92 = arith.subf %91, %88 : vector<40x64xf32>
    %93 = arith.select %90, %88, %92 : vector<40x64xi1>, vector<40x64xf32>
    %cst_48 = arith.constant 5.000000e-01 : f32
    %94 = vector.broadcast %cst_48 : f32 to vector<40x64xf32>
    %95 = arith.mulf %94, %58 : vector<40x64xf32>
    %cst_49 = arith.constant 1.000000e+00 : f32
    %96 = vector.broadcast %cst_49 : f32 to vector<40x64xf32>
    %97 = arith.addf %96, %93 : vector<40x64xf32>
    %98 = arith.mulf %95, %97 : vector<40x64xf32>
    %c0_50 = arith.constant 0 : index
    %c0_51 = arith.constant 0 : index
    %99 = vector.load %arg7[%c0_50, %c0_51] : memref<72x40xf32, #tpu.memory_space<vmem>>, vector<72x40xf32>
    %cst_52 = arith.constant dense<0.000000e+00> : vector<72x64xf32>
    %100 = tpu.matmul %99, %98, %cst_52 {dimension_numbers = #tpu.dot_dimension_numbers<[1], [0], [0], [1], [0, 0, 1, 1], [], []>} : vector<72x40xf32>, vector<40x64xf32>, vector<72x64xf32> -> vector<72x64xf32>
    %101 = vector.extract_strided_slice %100 {offsets = [0, 0], sizes = [20, 64], strides = [1, 1]} : vector<72x64xf32> to vector<20x64xf32>
    %c0_53 = arith.constant 0 : index
    %c0_54 = arith.constant 0 : index
    %c0_55 = arith.constant 0 : index
    %102 = vector.load %arg8[%c0_53, %c0_54, %c0_55] : memref<3x64x64xf32, #tpu.memory_space<vmem>>, vector<1x64x64xf32>
    %103 = vector.shape_cast %102 : vector<1x64x64xf32> to vector<64x64xf32>
    %cst_56 = arith.constant dense<0.000000e+00> : vector<20x64xf32>
    %104 = tpu.matmul %101, %103, %cst_56 {dimension_numbers = #tpu.dot_dimension_numbers<[1], [0], [0], [1], [0, 0, 1, 1], [], []>} : vector<20x64xf32>, vector<64x64xf32>, vector<20x64xf32> -> vector<20x64xf32>
    %105 = vector.extract_strided_slice %100 {offsets = [24, 0], sizes = [20, 64], strides = [1, 1]} : vector<72x64xf32> to vector<20x64xf32>
    %c1_57 = arith.constant 1 : index
    %c0_58 = arith.constant 0 : index
    %c0_59 = arith.constant 0 : index
    %106 = vector.load %arg8[%c1_57, %c0_58, %c0_59] : memref<3x64x64xf32, #tpu.memory_space<vmem>>, vector<1x64x64xf32>
    %107 = vector.shape_cast %106 : vector<1x64x64xf32> to vector<64x64xf32>
    %cst_60 = arith.constant dense<0.000000e+00> : vector<20x64xf32>
    %108 = tpu.matmul %105, %107, %cst_60 {dimension_numbers = #tpu.dot_dimension_numbers<[1], [0], [0], [1], [0, 0, 1, 1], [], []>} : vector<20x64xf32>, vector<64x64xf32>, vector<20x64xf32> -> vector<20x64xf32>
    %109 = arith.addf %104, %108 : vector<20x64xf32>
    %110 = vector.extract_strided_slice %100 {offsets = [48, 0], sizes = [20, 64], strides = [1, 1]} : vector<72x64xf32> to vector<20x64xf32>
    %c2_61 = arith.constant 2 : index
    %c0_62 = arith.constant 0 : index
    %c0_63 = arith.constant 0 : index
    %111 = vector.load %arg8[%c2_61, %c0_62, %c0_63] : memref<3x64x64xf32, #tpu.memory_space<vmem>>, vector<1x64x64xf32>
    %112 = vector.shape_cast %111 : vector<1x64x64xf32> to vector<64x64xf32>
    %cst_64 = arith.constant dense<0.000000e+00> : vector<20x64xf32>
    %113 = tpu.matmul %110, %112, %cst_64 {dimension_numbers = #tpu.dot_dimension_numbers<[1], [0], [0], [1], [0, 0, 1, 1], [], []>} : vector<20x64xf32>, vector<64x64xf32>, vector<20x64xf32> -> vector<20x64xf32>
    %114 = arith.addf %109, %113 : vector<20x64xf32>
    %115 = vector.extract_strided_slice %39 {offsets = [1, 0], sizes = [1, 64], strides = [1, 1]} : vector<2x64xf32> to vector<1x64xf32>
    %116 = vector.broadcast %115 : vector<1x64xf32> to vector<20x64xf32>
    %117 = arith.addf %114, %116 : vector<20x64xf32>
    %cst_65 = arith.constant 0.707106769 : f32
    %118 = vector.broadcast %cst_65 : f32 to vector<20x64xf32>
    %119 = arith.mulf %117, %118 : vector<20x64xf32>
    %120 = math.absf %119 : vector<20x64xf32>
    %cst_66 = arith.constant 0.327591091 : f32
    %121 = vector.broadcast %cst_66 : f32 to vector<20x64xf32>
    %122 = arith.mulf %121, %120 : vector<20x64xf32>
    %cst_67 = arith.constant 1.000000e+00 : f32
    %123 = vector.broadcast %cst_67 : f32 to vector<20x64xf32>
    %124 = arith.addf %123, %122 : vector<20x64xf32>
    %cst_68 = arith.constant 1.000000e+00 : f32
    %125 = vector.broadcast %cst_68 : f32 to vector<20x64xf32>
    %126 = arith.divf %125, %124 : vector<20x64xf32>
    %cst_69 = arith.constant 1.06140542 : f32
    %127 = vector.broadcast %cst_69 : f32 to vector<20x64xf32>
    %128 = arith.mulf %126, %127 : vector<20x64xf32>
    %cst_70 = arith.constant -1.45315206 : f32
    %129 = vector.broadcast %cst_70 : f32 to vector<20x64xf32>
    %130 = arith.addf %129, %128 : vector<20x64xf32>
    %131 = arith.mulf %126, %130 : vector<20x64xf32>
    %cst_71 = arith.constant 1.42141378 : f32
    %132 = vector.broadcast %cst_71 : f32 to vector<20x64xf32>
    %133 = arith.addf %132, %131 : vector<20x64xf32>
    %134 = arith.mulf %126, %133 : vector<20x64xf32>
    %cst_72 = arith.constant -0.284496725 : f32
    %135 = vector.broadcast %cst_72 : f32 to vector<20x64xf32>
    %136 = arith.addf %135, %134 : vector<20x64xf32>
    %137 = arith.mulf %126, %136 : vector<20x64xf32>
    %cst_73 = arith.constant 0.254829586 : f32
    %138 = vector.broadcast %cst_73 : f32 to vector<20x64xf32>
    %139 = arith.addf %138, %137 : vector<20x64xf32>
    %140 = arith.mulf %126, %139 : vector<20x64xf32>
    %cst_74 = arith.constant 0.000000e+00 : f32
    %141 = vector.broadcast %cst_74 : f32 to vector<20x64xf32>
    %142 = arith.subf %141, %120 : vector<20x64xf32>
    %143 = arith.mulf %142, %120 : vector<20x64xf32>
    %144 = math.exp %143 : vector<20x64xf32>
    %145 = arith.mulf %140, %144 : vector<20x64xf32>
    %cst_75 = arith.constant 1.000000e+00 : f32
    %146 = vector.broadcast %cst_75 : f32 to vector<20x64xf32>
    %147 = arith.subf %146, %145 : vector<20x64xf32>
    %cst_76 = arith.constant 0.000000e+00 : f32
    %148 = vector.broadcast %cst_76 : f32 to vector<20x64xf32>
    %149 = arith.cmpf oge, %119, %148 : vector<20x64xf32>
    %cst_77 = arith.constant 0.000000e+00 : f32
    %150 = vector.broadcast %cst_77 : f32 to vector<20x64xf32>
    %151 = arith.subf %150, %147 : vector<20x64xf32>
    %152 = arith.select %149, %147, %151 : vector<20x64xi1>, vector<20x64xf32>
    %cst_78 = arith.constant 5.000000e-01 : f32
    %153 = vector.broadcast %cst_78 : f32 to vector<20x64xf32>
    %154 = arith.mulf %153, %117 : vector<20x64xf32>
    %cst_79 = arith.constant 1.000000e+00 : f32
    %155 = vector.broadcast %cst_79 : f32 to vector<20x64xf32>
    %156 = arith.addf %155, %152 : vector<20x64xf32>
    %157 = arith.mulf %154, %156 : vector<20x64xf32>
    %c0_80 = arith.constant 0 : index
    %c0_81 = arith.constant 0 : index
    %158 = vector.load %arg9[%c0_80, %c0_81] : memref<20x64xf32, #tpu.memory_space<vmem>>, vector<20x64xf32>
    %159 = arith.addf %157, %158 : vector<20x64xf32>
    %c0_82 = arith.constant 0 : index
    %c0_83 = arith.constant 0 : index
    %c0_84 = arith.constant 0 : index
    %160 = vector.load %arg10[%c0_82, %c0_83, %c0_84] : memref<2x4x64xf32, #tpu.memory_space<vmem>>, vector<1x4x64xf32>
    %161 = vector.shape_cast %160 : vector<1x4x64xf32> to vector<4x64xf32>
    %162 = vector.extract_strided_slice %161 {offsets = [0, 0], sizes = [1, 64], strides = [1, 1]} : vector<4x64xf32> to vector<1x64xf32>
    %163 = vector.extract_strided_slice %161 {offsets = [1, 0], sizes = [1, 64], strides = [1, 1]} : vector<4x64xf32> to vector<1x64xf32>
    %cst_85 = arith.constant dense<0.000000e+00> : vector<20xf32>
    %164 = vector.multi_reduction <add>, %159, %cst_85 [1] : vector<20x64xf32> to vector<20xf32>
    %165 = vector.shape_cast %164 : vector<20xf32> to vector<20x1xf32>
    %cst_86 = arith.constant 6.400000e+01 : f32
    %166 = vector.broadcast %cst_86 : f32 to vector<20x1xf32>
    %167 = arith.divf %165, %166 : vector<20x1xf32>
    %168 = vector.broadcast %167 : vector<20x1xf32> to vector<20x64xf32>
    %169 = arith.subf %159, %168 : vector<20x64xf32>
    %170 = arith.mulf %169, %169 : vector<20x64xf32>
    %cst_87 = arith.constant dense<0.000000e+00> : vector<20xf32>
    %171 = vector.multi_reduction <add>, %170, %cst_87 [1] : vector<20x64xf32> to vector<20xf32>
    %172 = vector.shape_cast %171 : vector<20xf32> to vector<20x1xf32>
    %cst_88 = arith.constant 6.400000e+01 : f32
    %173 = vector.broadcast %cst_88 : f32 to vector<20x1xf32>
    %174 = arith.divf %172, %173 : vector<20x1xf32>
    %cst_89 = arith.constant 9.99999974E-6 : f32
    %175 = vector.broadcast %cst_89 : f32 to vector<20x1xf32>
    %176 = arith.addf %174, %175 : vector<20x1xf32>
    %177 = math.rsqrt %176 : vector<20x1xf32>
    %178 = vector.broadcast %177 : vector<20x1xf32> to vector<20x64xf32>
    %179 = arith.mulf %169, %178 : vector<20x64xf32>
    %180 = vector.broadcast %162 : vector<1x64xf32> to vector<20x64xf32>
    %181 = arith.mulf %179, %180 : vector<20x64xf32>
    %182 = vector.broadcast %163 : vector<1x64xf32> to vector<20x64xf32>
    %183 = arith.addf %181, %182 : vector<20x64xf32>
    %c0_90 = arith.constant 0 : index
    %c0_91 = arith.constant 0 : index
    %c0_92 = arith.constant 0 : index
    %184 = vector.load %arg11[%c0_90, %c0_91, %c0_92] : memref<2x64x192xf32, #tpu.memory_space<vmem>>, vector<1x64x192xf32>
    %185 = vector.shape_cast %184 : vector<1x64x192xf32> to vector<64x192xf32>
    %cst_93 = arith.constant dense<0.000000e+00> : vector<20x192xf32>
    %186 = tpu.matmul %183, %185, %cst_93 {dimension_numbers = #tpu.dot_dimension_numbers<[1], [0], [0], [1], [0, 0, 1, 1], [], []>} : vector<20x64xf32>, vector<64x192xf32>, vector<20x192xf32> -> vector<20x192xf32>
    %c0_94 = arith.constant 0 : index
    %c0_95 = arith.constant 0 : index
    %c0_96 = arith.constant 0 : index
    %187 = vector.load %arg12[%c0_94, %c0_95, %c0_96] : memref<2x1x192xf32, #tpu.memory_space<vmem>>, vector<1x1x192xf32>
    %188 = vector.shape_cast %187 : vector<1x1x192xf32> to vector<1x192xf32>
    %189 = vector.broadcast %188 : vector<1x192xf32> to vector<20x192xf32>
    %190 = arith.addf %186, %189 : vector<20x192xf32>
    %cst_97 = arith.constant 0.000000e+00 : f32
    %191 = vector.broadcast %cst_97 : f32 to vector<20x64xf32>
    %192 = vector.extract_strided_slice %190 {offsets = [0, 0], sizes = [20, 16], strides = [1, 1]} : vector<20x192xf32> to vector<20x16xf32>
    %193 = vector.extract_strided_slice %190 {offsets = [0, 64], sizes = [20, 16], strides = [1, 1]} : vector<20x192xf32> to vector<20x16xf32>
    %194 = vector.extract_strided_slice %190 {offsets = [0, 128], sizes = [20, 16], strides = [1, 1]} : vector<20x192xf32> to vector<20x16xf32>
    %cst_98 = arith.constant dense<0.000000e+00> : vector<20x20xf32>
    %195 = tpu.matmul %192, %193, %cst_98 {dimension_numbers = #tpu.dot_dimension_numbers<[1], [1], [0], [0], [0, 0, 1, 0], [], []>} : vector<20x16xf32>, vector<20x16xf32>, vector<20x20xf32> -> vector<20x20xf32>
    %cst_99 = arith.constant 2.500000e-01 : f32
    %196 = vector.broadcast %cst_99 : f32 to vector<20x20xf32>
    %197 = arith.mulf %195, %196 : vector<20x20xf32>
    %cst_100 = arith.constant dense<0xFF800000> : vector<20xf32>
    %198 = vector.multi_reduction <maximumf>, %197, %cst_100 [1] : vector<20x20xf32> to vector<20xf32>
    %199 = vector.shape_cast %198 : vector<20xf32> to vector<20x1xf32>
    %200 = vector.broadcast %199 : vector<20x1xf32> to vector<20x20xf32>
    %201 = arith.subf %197, %200 : vector<20x20xf32>
    %202 = math.exp %201 : vector<20x20xf32>
    %cst_101 = arith.constant dense<0.000000e+00> : vector<20xf32>
    %203 = vector.multi_reduction <add>, %202, %cst_101 [1] : vector<20x20xf32> to vector<20xf32>
    %204 = vector.shape_cast %203 : vector<20xf32> to vector<20x1xf32>
    %205 = vector.broadcast %204 : vector<20x1xf32> to vector<20x20xf32>
    %206 = arith.divf %202, %205 : vector<20x20xf32>
    %cst_102 = arith.constant dense<0.000000e+00> : vector<20x16xf32>
    %207 = tpu.matmul %206, %194, %cst_102 {dimension_numbers = #tpu.dot_dimension_numbers<[1], [0], [0], [1], [0, 0, 1, 1], [], []>} : vector<20x20xf32>, vector<20x16xf32>, vector<20x16xf32> -> vector<20x16xf32>
    %c0_103 = arith.constant 0 : index
    %c0_104 = arith.constant 0 : index
    %c0_105 = arith.constant 0 : index
    %c0_106 = arith.constant 0 : index
    %208 = vector.load %arg13[%c0_103, %c0_104, %c0_105, %c0_106] : memref<2x4x16x64xf32, #tpu.memory_space<vmem>>, vector<1x1x16x64xf32>
    %209 = vector.shape_cast %208 : vector<1x1x16x64xf32> to vector<16x64xf32>
    %cst_107 = arith.constant dense<0.000000e+00> : vector<20x64xf32>
    %210 = tpu.matmul %207, %209, %cst_107 {dimension_numbers = #tpu.dot_dimension_numbers<[1], [0], [0], [1], [0, 0, 1, 1], [], []>} : vector<20x16xf32>, vector<16x64xf32>, vector<20x64xf32> -> vector<20x64xf32>
    %211 = arith.addf %191, %210 : vector<20x64xf32>
    %212 = vector.extract_strided_slice %190 {offsets = [0, 16], sizes = [20, 16], strides = [1, 1]} : vector<20x192xf32> to vector<20x16xf32>
    %213 = vector.extract_strided_slice %190 {offsets = [0, 80], sizes = [20, 16], strides = [1, 1]} : vector<20x192xf32> to vector<20x16xf32>
    %214 = vector.extract_strided_slice %190 {offsets = [0, 144], sizes = [20, 16], strides = [1, 1]} : vector<20x192xf32> to vector<20x16xf32>
    %cst_108 = arith.constant dense<0.000000e+00> : vector<20x20xf32>
    %215 = tpu.matmul %212, %213, %cst_108 {dimension_numbers = #tpu.dot_dimension_numbers<[1], [1], [0], [0], [0, 0, 1, 0], [], []>} : vector<20x16xf32>, vector<20x16xf32>, vector<20x20xf32> -> vector<20x20xf32>
    %cst_109 = arith.constant 2.500000e-01 : f32
    %216 = vector.broadcast %cst_109 : f32 to vector<20x20xf32>
    %217 = arith.mulf %215, %216 : vector<20x20xf32>
    %cst_110 = arith.constant dense<0xFF800000> : vector<20xf32>
    %218 = vector.multi_reduction <maximumf>, %217, %cst_110 [1] : vector<20x20xf32> to vector<20xf32>
    %219 = vector.shape_cast %218 : vector<20xf32> to vector<20x1xf32>
    %220 = vector.broadcast %219 : vector<20x1xf32> to vector<20x20xf32>
    %221 = arith.subf %217, %220 : vector<20x20xf32>
    %222 = math.exp %221 : vector<20x20xf32>
    %cst_111 = arith.constant dense<0.000000e+00> : vector<20xf32>
    %223 = vector.multi_reduction <add>, %222, %cst_111 [1] : vector<20x20xf32> to vector<20xf32>
    %224 = vector.shape_cast %223 : vector<20xf32> to vector<20x1xf32>
    %225 = vector.broadcast %224 : vector<20x1xf32> to vector<20x20xf32>
    %226 = arith.divf %222, %225 : vector<20x20xf32>
    %cst_112 = arith.constant dense<0.000000e+00> : vector<20x16xf32>
    %227 = tpu.matmul %226, %214, %cst_112 {dimension_numbers = #tpu.dot_dimension_numbers<[1], [0], [0], [1], [0, 0, 1, 1], [], []>} : vector<20x20xf32>, vector<20x16xf32>, vector<20x16xf32> -> vector<20x16xf32>
    %c0_113 = arith.constant 0 : index
    %c1_114 = arith.constant 1 : index
    %c0_115 = arith.constant 0 : index
    %c0_116 = arith.constant 0 : index
    %228 = vector.load %arg13[%c0_113, %c1_114, %c0_115, %c0_116] : memref<2x4x16x64xf32, #tpu.memory_space<vmem>>, vector<1x1x16x64xf32>
    %229 = vector.shape_cast %228 : vector<1x1x16x64xf32> to vector<16x64xf32>
    %cst_117 = arith.constant dense<0.000000e+00> : vector<20x64xf32>
    %230 = tpu.matmul %227, %229, %cst_117 {dimension_numbers = #tpu.dot_dimension_numbers<[1], [0], [0], [1], [0, 0, 1, 1], [], []>} : vector<20x16xf32>, vector<16x64xf32>, vector<20x64xf32> -> vector<20x64xf32>
    %231 = arith.addf %211, %230 : vector<20x64xf32>
    %232 = vector.extract_strided_slice %190 {offsets = [0, 32], sizes = [20, 16], strides = [1, 1]} : vector<20x192xf32> to vector<20x16xf32>
    %233 = vector.extract_strided_slice %190 {offsets = [0, 96], sizes = [20, 16], strides = [1, 1]} : vector<20x192xf32> to vector<20x16xf32>
    %234 = vector.extract_strided_slice %190 {offsets = [0, 160], sizes = [20, 16], strides = [1, 1]} : vector<20x192xf32> to vector<20x16xf32>
    %cst_118 = arith.constant dense<0.000000e+00> : vector<20x20xf32>
    %235 = tpu.matmul %232, %233, %cst_118 {dimension_numbers = #tpu.dot_dimension_numbers<[1], [1], [0], [0], [0, 0, 1, 0], [], []>} : vector<20x16xf32>, vector<20x16xf32>, vector<20x20xf32> -> vector<20x20xf32>
    %cst_119 = arith.constant 2.500000e-01 : f32
    %236 = vector.broadcast %cst_119 : f32 to vector<20x20xf32>
    %237 = arith.mulf %235, %236 : vector<20x20xf32>
    %cst_120 = arith.constant dense<0xFF800000> : vector<20xf32>
    %238 = vector.multi_reduction <maximumf>, %237, %cst_120 [1] : vector<20x20xf32> to vector<20xf32>
    %239 = vector.shape_cast %238 : vector<20xf32> to vector<20x1xf32>
    %240 = vector.broadcast %239 : vector<20x1xf32> to vector<20x20xf32>
    %241 = arith.subf %237, %240 : vector<20x20xf32>
    %242 = math.exp %241 : vector<20x20xf32>
    %cst_121 = arith.constant dense<0.000000e+00> : vector<20xf32>
    %243 = vector.multi_reduction <add>, %242, %cst_121 [1] : vector<20x20xf32> to vector<20xf32>
    %244 = vector.shape_cast %243 : vector<20xf32> to vector<20x1xf32>
    %245 = vector.broadcast %244 : vector<20x1xf32> to vector<20x20xf32>
    %246 = arith.divf %242, %245 : vector<20x20xf32>
    %cst_122 = arith.constant dense<0.000000e+00> : vector<20x16xf32>
    %247 = tpu.matmul %246, %234, %cst_122 {dimension_numbers = #tpu.dot_dimension_numbers<[1], [0], [0], [1], [0, 0, 1, 1], [], []>} : vector<20x20xf32>, vector<20x16xf32>, vector<20x16xf32> -> vector<20x16xf32>
    %c0_123 = arith.constant 0 : index
    %c2_124 = arith.constant 2 : index
    %c0_125 = arith.constant 0 : index
    %c0_126 = arith.constant 0 : index
    %248 = vector.load %arg13[%c0_123, %c2_124, %c0_125, %c0_126] : memref<2x4x16x64xf32, #tpu.memory_space<vmem>>, vector<1x1x16x64xf32>
    %249 = vector.shape_cast %248 : vector<1x1x16x64xf32> to vector<16x64xf32>
    %cst_127 = arith.constant dense<0.000000e+00> : vector<20x64xf32>
    %250 = tpu.matmul %247, %249, %cst_127 {dimension_numbers = #tpu.dot_dimension_numbers<[1], [0], [0], [1], [0, 0, 1, 1], [], []>} : vector<20x16xf32>, vector<16x64xf32>, vector<20x64xf32> -> vector<20x64xf32>
    %251 = arith.addf %231, %250 : vector<20x64xf32>
    %252 = vector.extract_strided_slice %190 {offsets = [0, 48], sizes = [20, 16], strides = [1, 1]} : vector<20x192xf32> to vector<20x16xf32>
    %253 = vector.extract_strided_slice %190 {offsets = [0, 112], sizes = [20, 16], strides = [1, 1]} : vector<20x192xf32> to vector<20x16xf32>
    %254 = vector.extract_strided_slice %190 {offsets = [0, 176], sizes = [20, 16], strides = [1, 1]} : vector<20x192xf32> to vector<20x16xf32>
    %cst_128 = arith.constant dense<0.000000e+00> : vector<20x20xf32>
    %255 = tpu.matmul %252, %253, %cst_128 {dimension_numbers = #tpu.dot_dimension_numbers<[1], [1], [0], [0], [0, 0, 1, 0], [], []>} : vector<20x16xf32>, vector<20x16xf32>, vector<20x20xf32> -> vector<20x20xf32>
    %cst_129 = arith.constant 2.500000e-01 : f32
    %256 = vector.broadcast %cst_129 : f32 to vector<20x20xf32>
    %257 = arith.mulf %255, %256 : vector<20x20xf32>
    %cst_130 = arith.constant dense<0xFF800000> : vector<20xf32>
    %258 = vector.multi_reduction <maximumf>, %257, %cst_130 [1] : vector<20x20xf32> to vector<20xf32>
    %259 = vector.shape_cast %258 : vector<20xf32> to vector<20x1xf32>
    %260 = vector.broadcast %259 : vector<20x1xf32> to vector<20x20xf32>
    %261 = arith.subf %257, %260 : vector<20x20xf32>
    %262 = math.exp %261 : vector<20x20xf32>
    %cst_131 = arith.constant dense<0.000000e+00> : vector<20xf32>
    %263 = vector.multi_reduction <add>, %262, %cst_131 [1] : vector<20x20xf32> to vector<20xf32>
    %264 = vector.shape_cast %263 : vector<20xf32> to vector<20x1xf32>
    %265 = vector.broadcast %264 : vector<20x1xf32> to vector<20x20xf32>
    %266 = arith.divf %262, %265 : vector<20x20xf32>
    %cst_132 = arith.constant dense<0.000000e+00> : vector<20x16xf32>
    %267 = tpu.matmul %266, %254, %cst_132 {dimension_numbers = #tpu.dot_dimension_numbers<[1], [0], [0], [1], [0, 0, 1, 1], [], []>} : vector<20x20xf32>, vector<20x16xf32>, vector<20x16xf32> -> vector<20x16xf32>
    %c0_133 = arith.constant 0 : index
    %c3 = arith.constant 3 : index
    %c0_134 = arith.constant 0 : index
    %c0_135 = arith.constant 0 : index
    %268 = vector.load %arg13[%c0_133, %c3, %c0_134, %c0_135] : memref<2x4x16x64xf32, #tpu.memory_space<vmem>>, vector<1x1x16x64xf32>
    %269 = vector.shape_cast %268 : vector<1x1x16x64xf32> to vector<16x64xf32>
    %cst_136 = arith.constant dense<0.000000e+00> : vector<20x64xf32>
    %270 = tpu.matmul %267, %269, %cst_136 {dimension_numbers = #tpu.dot_dimension_numbers<[1], [0], [0], [1], [0, 0, 1, 1], [], []>} : vector<20x16xf32>, vector<16x64xf32>, vector<20x64xf32> -> vector<20x64xf32>
    %271 = arith.addf %251, %270 : vector<20x64xf32>
    %c0_137 = arith.constant 0 : index
    %c0_138 = arith.constant 0 : index
    %c0_139 = arith.constant 0 : index
    %272 = vector.load %arg14[%c0_137, %c0_138, %c0_139] : memref<2x2x64xf32, #tpu.memory_space<vmem>>, vector<1x2x64xf32>
    %273 = vector.shape_cast %272 : vector<1x2x64xf32> to vector<2x64xf32>
    %274 = arith.addf %159, %271 : vector<20x64xf32>
    %275 = vector.extract_strided_slice %273 {offsets = [0, 0], sizes = [1, 64], strides = [1, 1]} : vector<2x64xf32> to vector<1x64xf32>
    %276 = vector.broadcast %275 : vector<1x64xf32> to vector<20x64xf32>
    %277 = arith.addf %274, %276 : vector<20x64xf32>
    %278 = vector.extract_strided_slice %161 {offsets = [2, 0], sizes = [1, 64], strides = [1, 1]} : vector<4x64xf32> to vector<1x64xf32>
    %279 = vector.extract_strided_slice %161 {offsets = [3, 0], sizes = [1, 64], strides = [1, 1]} : vector<4x64xf32> to vector<1x64xf32>
    %cst_140 = arith.constant dense<0.000000e+00> : vector<20xf32>
    %280 = vector.multi_reduction <add>, %277, %cst_140 [1] : vector<20x64xf32> to vector<20xf32>
    %281 = vector.shape_cast %280 : vector<20xf32> to vector<20x1xf32>
    %cst_141 = arith.constant 6.400000e+01 : f32
    %282 = vector.broadcast %cst_141 : f32 to vector<20x1xf32>
    %283 = arith.divf %281, %282 : vector<20x1xf32>
    %284 = vector.broadcast %283 : vector<20x1xf32> to vector<20x64xf32>
    %285 = arith.subf %277, %284 : vector<20x64xf32>
    %286 = arith.mulf %285, %285 : vector<20x64xf32>
    %cst_142 = arith.constant dense<0.000000e+00> : vector<20xf32>
    %287 = vector.multi_reduction <add>, %286, %cst_142 [1] : vector<20x64xf32> to vector<20xf32>
    %288 = vector.shape_cast %287 : vector<20xf32> to vector<20x1xf32>
    %cst_143 = arith.constant 6.400000e+01 : f32
    %289 = vector.broadcast %cst_143 : f32 to vector<20x1xf32>
    %290 = arith.divf %288, %289 : vector<20x1xf32>
    %cst_144 = arith.constant 9.99999974E-6 : f32
    %291 = vector.broadcast %cst_144 : f32 to vector<20x1xf32>
    %292 = arith.addf %290, %291 : vector<20x1xf32>
    %293 = math.rsqrt %292 : vector<20x1xf32>
    %294 = vector.broadcast %293 : vector<20x1xf32> to vector<20x64xf32>
    %295 = arith.mulf %285, %294 : vector<20x64xf32>
    %296 = vector.broadcast %278 : vector<1x64xf32> to vector<20x64xf32>
    %297 = arith.mulf %295, %296 : vector<20x64xf32>
    %298 = vector.broadcast %279 : vector<1x64xf32> to vector<20x64xf32>
    %299 = arith.addf %297, %298 : vector<20x64xf32>
    %c0_145 = arith.constant 0 : index
    %c0_146 = arith.constant 0 : index
    %c0_147 = arith.constant 0 : index
    %300 = vector.load %arg15[%c0_145, %c0_146, %c0_147] : memref<2x64x256xf32, #tpu.memory_space<vmem>>, vector<1x64x256xf32>
    %301 = vector.shape_cast %300 : vector<1x64x256xf32> to vector<64x256xf32>
    %cst_148 = arith.constant dense<0.000000e+00> : vector<20x256xf32>
    %302 = tpu.matmul %299, %301, %cst_148 {dimension_numbers = #tpu.dot_dimension_numbers<[1], [0], [0], [1], [0, 0, 1, 1], [], []>} : vector<20x64xf32>, vector<64x256xf32>, vector<20x256xf32> -> vector<20x256xf32>
    %c0_149 = arith.constant 0 : index
    %c0_150 = arith.constant 0 : index
    %c0_151 = arith.constant 0 : index
    %303 = vector.load %arg16[%c0_149, %c0_150, %c0_151] : memref<2x1x256xf32, #tpu.memory_space<vmem>>, vector<1x1x256xf32>
    %304 = vector.shape_cast %303 : vector<1x1x256xf32> to vector<1x256xf32>
    %305 = vector.broadcast %304 : vector<1x256xf32> to vector<20x256xf32>
    %306 = arith.addf %302, %305 : vector<20x256xf32>
    %cst_152 = arith.constant 0.707106769 : f32
    %307 = vector.broadcast %cst_152 : f32 to vector<20x256xf32>
    %308 = arith.mulf %306, %307 : vector<20x256xf32>
    %309 = math.absf %308 : vector<20x256xf32>
    %cst_153 = arith.constant 0.327591091 : f32
    %310 = vector.broadcast %cst_153 : f32 to vector<20x256xf32>
    %311 = arith.mulf %310, %309 : vector<20x256xf32>
    %cst_154 = arith.constant 1.000000e+00 : f32
    %312 = vector.broadcast %cst_154 : f32 to vector<20x256xf32>
    %313 = arith.addf %312, %311 : vector<20x256xf32>
    %cst_155 = arith.constant 1.000000e+00 : f32
    %314 = vector.broadcast %cst_155 : f32 to vector<20x256xf32>
    %315 = arith.divf %314, %313 : vector<20x256xf32>
    %cst_156 = arith.constant 1.06140542 : f32
    %316 = vector.broadcast %cst_156 : f32 to vector<20x256xf32>
    %317 = arith.mulf %315, %316 : vector<20x256xf32>
    %cst_157 = arith.constant -1.45315206 : f32
    %318 = vector.broadcast %cst_157 : f32 to vector<20x256xf32>
    %319 = arith.addf %318, %317 : vector<20x256xf32>
    %320 = arith.mulf %315, %319 : vector<20x256xf32>
    %cst_158 = arith.constant 1.42141378 : f32
    %321 = vector.broadcast %cst_158 : f32 to vector<20x256xf32>
    %322 = arith.addf %321, %320 : vector<20x256xf32>
    %323 = arith.mulf %315, %322 : vector<20x256xf32>
    %cst_159 = arith.constant -0.284496725 : f32
    %324 = vector.broadcast %cst_159 : f32 to vector<20x256xf32>
    %325 = arith.addf %324, %323 : vector<20x256xf32>
    %326 = arith.mulf %315, %325 : vector<20x256xf32>
    %cst_160 = arith.constant 0.254829586 : f32
    %327 = vector.broadcast %cst_160 : f32 to vector<20x256xf32>
    %328 = arith.addf %327, %326 : vector<20x256xf32>
    %329 = arith.mulf %315, %328 : vector<20x256xf32>
    %cst_161 = arith.constant 0.000000e+00 : f32
    %330 = vector.broadcast %cst_161 : f32 to vector<20x256xf32>
    %331 = arith.subf %330, %309 : vector<20x256xf32>
    %332 = arith.mulf %331, %309 : vector<20x256xf32>
    %333 = math.exp %332 : vector<20x256xf32>
    %334 = arith.mulf %329, %333 : vector<20x256xf32>
    %cst_162 = arith.constant 1.000000e+00 : f32
    %335 = vector.broadcast %cst_162 : f32 to vector<20x256xf32>
    %336 = arith.subf %335, %334 : vector<20x256xf32>
    %cst_163 = arith.constant 0.000000e+00 : f32
    %337 = vector.broadcast %cst_163 : f32 to vector<20x256xf32>
    %338 = arith.cmpf oge, %308, %337 : vector<20x256xf32>
    %cst_164 = arith.constant 0.000000e+00 : f32
    %339 = vector.broadcast %cst_164 : f32 to vector<20x256xf32>
    %340 = arith.subf %339, %336 : vector<20x256xf32>
    %341 = arith.select %338, %336, %340 : vector<20x256xi1>, vector<20x256xf32>
    %cst_165 = arith.constant 5.000000e-01 : f32
    %342 = vector.broadcast %cst_165 : f32 to vector<20x256xf32>
    %343 = arith.mulf %342, %306 : vector<20x256xf32>
    %cst_166 = arith.constant 1.000000e+00 : f32
    %344 = vector.broadcast %cst_166 : f32 to vector<20x256xf32>
    %345 = arith.addf %344, %341 : vector<20x256xf32>
    %346 = arith.mulf %343, %345 : vector<20x256xf32>
    %c0_167 = arith.constant 0 : index
    %c0_168 = arith.constant 0 : index
    %c0_169 = arith.constant 0 : index
    %347 = vector.load %arg17[%c0_167, %c0_168, %c0_169] : memref<2x256x64xf32, #tpu.memory_space<vmem>>, vector<1x256x64xf32>
    %348 = vector.shape_cast %347 : vector<1x256x64xf32> to vector<256x64xf32>
    %cst_170 = arith.constant dense<0.000000e+00> : vector<20x64xf32>
    %349 = tpu.matmul %346, %348, %cst_170 {dimension_numbers = #tpu.dot_dimension_numbers<[1], [0], [0], [1], [0, 0, 1, 1], [], []>} : vector<20x256xf32>, vector<256x64xf32>, vector<20x64xf32> -> vector<20x64xf32>
    %350 = arith.addf %277, %349 : vector<20x64xf32>
    %351 = vector.extract_strided_slice %273 {offsets = [1, 0], sizes = [1, 64], strides = [1, 1]} : vector<2x64xf32> to vector<1x64xf32>
    %352 = vector.broadcast %351 : vector<1x64xf32> to vector<20x64xf32>
    %353 = arith.addf %350, %352 : vector<20x64xf32>
    %c1_171 = arith.constant 1 : index
    %c0_172 = arith.constant 0 : index
    %c0_173 = arith.constant 0 : index
    %354 = vector.load %arg10[%c1_171, %c0_172, %c0_173] : memref<2x4x64xf32, #tpu.memory_space<vmem>>, vector<1x4x64xf32>
    %355 = vector.shape_cast %354 : vector<1x4x64xf32> to vector<4x64xf32>
    %356 = vector.extract_strided_slice %355 {offsets = [0, 0], sizes = [1, 64], strides = [1, 1]} : vector<4x64xf32> to vector<1x64xf32>
    %357 = vector.extract_strided_slice %355 {offsets = [1, 0], sizes = [1, 64], strides = [1, 1]} : vector<4x64xf32> to vector<1x64xf32>
    %cst_174 = arith.constant dense<0.000000e+00> : vector<20xf32>
    %358 = vector.multi_reduction <add>, %353, %cst_174 [1] : vector<20x64xf32> to vector<20xf32>
    %359 = vector.shape_cast %358 : vector<20xf32> to vector<20x1xf32>
    %cst_175 = arith.constant 6.400000e+01 : f32
    %360 = vector.broadcast %cst_175 : f32 to vector<20x1xf32>
    %361 = arith.divf %359, %360 : vector<20x1xf32>
    %362 = vector.broadcast %361 : vector<20x1xf32> to vector<20x64xf32>
    %363 = arith.subf %353, %362 : vector<20x64xf32>
    %364 = arith.mulf %363, %363 : vector<20x64xf32>
    %cst_176 = arith.constant dense<0.000000e+00> : vector<20xf32>
    %365 = vector.multi_reduction <add>, %364, %cst_176 [1] : vector<20x64xf32> to vector<20xf32>
    %366 = vector.shape_cast %365 : vector<20xf32> to vector<20x1xf32>
    %cst_177 = arith.constant 6.400000e+01 : f32
    %367 = vector.broadcast %cst_177 : f32 to vector<20x1xf32>
    %368 = arith.divf %366, %367 : vector<20x1xf32>
    %cst_178 = arith.constant 9.99999974E-6 : f32
    %369 = vector.broadcast %cst_178 : f32 to vector<20x1xf32>
    %370 = arith.addf %368, %369 : vector<20x1xf32>
    %371 = math.rsqrt %370 : vector<20x1xf32>
    %372 = vector.broadcast %371 : vector<20x1xf32> to vector<20x64xf32>
    %373 = arith.mulf %363, %372 : vector<20x64xf32>
    %374 = vector.broadcast %356 : vector<1x64xf32> to vector<20x64xf32>
    %375 = arith.mulf %373, %374 : vector<20x64xf32>
    %376 = vector.broadcast %357 : vector<1x64xf32> to vector<20x64xf32>
    %377 = arith.addf %375, %376 : vector<20x64xf32>
    %c1_179 = arith.constant 1 : index
    %c0_180 = arith.constant 0 : index
    %c0_181 = arith.constant 0 : index
    %378 = vector.load %arg11[%c1_179, %c0_180, %c0_181] : memref<2x64x192xf32, #tpu.memory_space<vmem>>, vector<1x64x192xf32>
    %379 = vector.shape_cast %378 : vector<1x64x192xf32> to vector<64x192xf32>
    %cst_182 = arith.constant dense<0.000000e+00> : vector<20x192xf32>
    %380 = tpu.matmul %377, %379, %cst_182 {dimension_numbers = #tpu.dot_dimension_numbers<[1], [0], [0], [1], [0, 0, 1, 1], [], []>} : vector<20x64xf32>, vector<64x192xf32>, vector<20x192xf32> -> vector<20x192xf32>
    %c1_183 = arith.constant 1 : index
    %c0_184 = arith.constant 0 : index
    %c0_185 = arith.constant 0 : index
    %381 = vector.load %arg12[%c1_183, %c0_184, %c0_185] : memref<2x1x192xf32, #tpu.memory_space<vmem>>, vector<1x1x192xf32>
    %382 = vector.shape_cast %381 : vector<1x1x192xf32> to vector<1x192xf32>
    %383 = vector.broadcast %382 : vector<1x192xf32> to vector<20x192xf32>
    %384 = arith.addf %380, %383 : vector<20x192xf32>
    %cst_186 = arith.constant 0.000000e+00 : f32
    %385 = vector.broadcast %cst_186 : f32 to vector<20x64xf32>
    %386 = vector.extract_strided_slice %384 {offsets = [0, 0], sizes = [20, 16], strides = [1, 1]} : vector<20x192xf32> to vector<20x16xf32>
    %387 = vector.extract_strided_slice %384 {offsets = [0, 64], sizes = [20, 16], strides = [1, 1]} : vector<20x192xf32> to vector<20x16xf32>
    %388 = vector.extract_strided_slice %384 {offsets = [0, 128], sizes = [20, 16], strides = [1, 1]} : vector<20x192xf32> to vector<20x16xf32>
    %cst_187 = arith.constant dense<0.000000e+00> : vector<20x20xf32>
    %389 = tpu.matmul %386, %387, %cst_187 {dimension_numbers = #tpu.dot_dimension_numbers<[1], [1], [0], [0], [0, 0, 1, 0], [], []>} : vector<20x16xf32>, vector<20x16xf32>, vector<20x20xf32> -> vector<20x20xf32>
    %cst_188 = arith.constant 2.500000e-01 : f32
    %390 = vector.broadcast %cst_188 : f32 to vector<20x20xf32>
    %391 = arith.mulf %389, %390 : vector<20x20xf32>
    %cst_189 = arith.constant dense<0xFF800000> : vector<20xf32>
    %392 = vector.multi_reduction <maximumf>, %391, %cst_189 [1] : vector<20x20xf32> to vector<20xf32>
    %393 = vector.shape_cast %392 : vector<20xf32> to vector<20x1xf32>
    %394 = vector.broadcast %393 : vector<20x1xf32> to vector<20x20xf32>
    %395 = arith.subf %391, %394 : vector<20x20xf32>
    %396 = math.exp %395 : vector<20x20xf32>
    %cst_190 = arith.constant dense<0.000000e+00> : vector<20xf32>
    %397 = vector.multi_reduction <add>, %396, %cst_190 [1] : vector<20x20xf32> to vector<20xf32>
    %398 = vector.shape_cast %397 : vector<20xf32> to vector<20x1xf32>
    %399 = vector.broadcast %398 : vector<20x1xf32> to vector<20x20xf32>
    %400 = arith.divf %396, %399 : vector<20x20xf32>
    %cst_191 = arith.constant dense<0.000000e+00> : vector<20x16xf32>
    %401 = tpu.matmul %400, %388, %cst_191 {dimension_numbers = #tpu.dot_dimension_numbers<[1], [0], [0], [1], [0, 0, 1, 1], [], []>} : vector<20x20xf32>, vector<20x16xf32>, vector<20x16xf32> -> vector<20x16xf32>
    %c1_192 = arith.constant 1 : index
    %c0_193 = arith.constant 0 : index
    %c0_194 = arith.constant 0 : index
    %c0_195 = arith.constant 0 : index
    %402 = vector.load %arg13[%c1_192, %c0_193, %c0_194, %c0_195] : memref<2x4x16x64xf32, #tpu.memory_space<vmem>>, vector<1x1x16x64xf32>
    %403 = vector.shape_cast %402 : vector<1x1x16x64xf32> to vector<16x64xf32>
    %cst_196 = arith.constant dense<0.000000e+00> : vector<20x64xf32>
    %404 = tpu.matmul %401, %403, %cst_196 {dimension_numbers = #tpu.dot_dimension_numbers<[1], [0], [0], [1], [0, 0, 1, 1], [], []>} : vector<20x16xf32>, vector<16x64xf32>, vector<20x64xf32> -> vector<20x64xf32>
    %405 = arith.addf %385, %404 : vector<20x64xf32>
    %406 = vector.extract_strided_slice %384 {offsets = [0, 16], sizes = [20, 16], strides = [1, 1]} : vector<20x192xf32> to vector<20x16xf32>
    %407 = vector.extract_strided_slice %384 {offsets = [0, 80], sizes = [20, 16], strides = [1, 1]} : vector<20x192xf32> to vector<20x16xf32>
    %408 = vector.extract_strided_slice %384 {offsets = [0, 144], sizes = [20, 16], strides = [1, 1]} : vector<20x192xf32> to vector<20x16xf32>
    %cst_197 = arith.constant dense<0.000000e+00> : vector<20x20xf32>
    %409 = tpu.matmul %406, %407, %cst_197 {dimension_numbers = #tpu.dot_dimension_numbers<[1], [1], [0], [0], [0, 0, 1, 0], [], []>} : vector<20x16xf32>, vector<20x16xf32>, vector<20x20xf32> -> vector<20x20xf32>
    %cst_198 = arith.constant 2.500000e-01 : f32
    %410 = vector.broadcast %cst_198 : f32 to vector<20x20xf32>
    %411 = arith.mulf %409, %410 : vector<20x20xf32>
    %cst_199 = arith.constant dense<0xFF800000> : vector<20xf32>
    %412 = vector.multi_reduction <maximumf>, %411, %cst_199 [1] : vector<20x20xf32> to vector<20xf32>
    %413 = vector.shape_cast %412 : vector<20xf32> to vector<20x1xf32>
    %414 = vector.broadcast %413 : vector<20x1xf32> to vector<20x20xf32>
    %415 = arith.subf %411, %414 : vector<20x20xf32>
    %416 = math.exp %415 : vector<20x20xf32>
    %cst_200 = arith.constant dense<0.000000e+00> : vector<20xf32>
    %417 = vector.multi_reduction <add>, %416, %cst_200 [1] : vector<20x20xf32> to vector<20xf32>
    %418 = vector.shape_cast %417 : vector<20xf32> to vector<20x1xf32>
    %419 = vector.broadcast %418 : vector<20x1xf32> to vector<20x20xf32>
    %420 = arith.divf %416, %419 : vector<20x20xf32>
    %cst_201 = arith.constant dense<0.000000e+00> : vector<20x16xf32>
    %421 = tpu.matmul %420, %408, %cst_201 {dimension_numbers = #tpu.dot_dimension_numbers<[1], [0], [0], [1], [0, 0, 1, 1], [], []>} : vector<20x20xf32>, vector<20x16xf32>, vector<20x16xf32> -> vector<20x16xf32>
    %c1_202 = arith.constant 1 : index
    %c1_203 = arith.constant 1 : index
    %c0_204 = arith.constant 0 : index
    %c0_205 = arith.constant 0 : index
    %422 = vector.load %arg13[%c1_202, %c1_203, %c0_204, %c0_205] : memref<2x4x16x64xf32, #tpu.memory_space<vmem>>, vector<1x1x16x64xf32>
    %423 = vector.shape_cast %422 : vector<1x1x16x64xf32> to vector<16x64xf32>
    %cst_206 = arith.constant dense<0.000000e+00> : vector<20x64xf32>
    %424 = tpu.matmul %421, %423, %cst_206 {dimension_numbers = #tpu.dot_dimension_numbers<[1], [0], [0], [1], [0, 0, 1, 1], [], []>} : vector<20x16xf32>, vector<16x64xf32>, vector<20x64xf32> -> vector<20x64xf32>
    %425 = arith.addf %405, %424 : vector<20x64xf32>
    %426 = vector.extract_strided_slice %384 {offsets = [0, 32], sizes = [20, 16], strides = [1, 1]} : vector<20x192xf32> to vector<20x16xf32>
    %427 = vector.extract_strided_slice %384 {offsets = [0, 96], sizes = [20, 16], strides = [1, 1]} : vector<20x192xf32> to vector<20x16xf32>
    %428 = vector.extract_strided_slice %384 {offsets = [0, 160], sizes = [20, 16], strides = [1, 1]} : vector<20x192xf32> to vector<20x16xf32>
    %cst_207 = arith.constant dense<0.000000e+00> : vector<20x20xf32>
    %429 = tpu.matmul %426, %427, %cst_207 {dimension_numbers = #tpu.dot_dimension_numbers<[1], [1], [0], [0], [0, 0, 1, 0], [], []>} : vector<20x16xf32>, vector<20x16xf32>, vector<20x20xf32> -> vector<20x20xf32>
    %cst_208 = arith.constant 2.500000e-01 : f32
    %430 = vector.broadcast %cst_208 : f32 to vector<20x20xf32>
    %431 = arith.mulf %429, %430 : vector<20x20xf32>
    %cst_209 = arith.constant dense<0xFF800000> : vector<20xf32>
    %432 = vector.multi_reduction <maximumf>, %431, %cst_209 [1] : vector<20x20xf32> to vector<20xf32>
    %433 = vector.shape_cast %432 : vector<20xf32> to vector<20x1xf32>
    %434 = vector.broadcast %433 : vector<20x1xf32> to vector<20x20xf32>
    %435 = arith.subf %431, %434 : vector<20x20xf32>
    %436 = math.exp %435 : vector<20x20xf32>
    %cst_210 = arith.constant dense<0.000000e+00> : vector<20xf32>
    %437 = vector.multi_reduction <add>, %436, %cst_210 [1] : vector<20x20xf32> to vector<20xf32>
    %438 = vector.shape_cast %437 : vector<20xf32> to vector<20x1xf32>
    %439 = vector.broadcast %438 : vector<20x1xf32> to vector<20x20xf32>
    %440 = arith.divf %436, %439 : vector<20x20xf32>
    %cst_211 = arith.constant dense<0.000000e+00> : vector<20x16xf32>
    %441 = tpu.matmul %440, %428, %cst_211 {dimension_numbers = #tpu.dot_dimension_numbers<[1], [0], [0], [1], [0, 0, 1, 1], [], []>} : vector<20x20xf32>, vector<20x16xf32>, vector<20x16xf32> -> vector<20x16xf32>
    %c1_212 = arith.constant 1 : index
    %c2_213 = arith.constant 2 : index
    %c0_214 = arith.constant 0 : index
    %c0_215 = arith.constant 0 : index
    %442 = vector.load %arg13[%c1_212, %c2_213, %c0_214, %c0_215] : memref<2x4x16x64xf32, #tpu.memory_space<vmem>>, vector<1x1x16x64xf32>
    %443 = vector.shape_cast %442 : vector<1x1x16x64xf32> to vector<16x64xf32>
    %cst_216 = arith.constant dense<0.000000e+00> : vector<20x64xf32>
    %444 = tpu.matmul %441, %443, %cst_216 {dimension_numbers = #tpu.dot_dimension_numbers<[1], [0], [0], [1], [0, 0, 1, 1], [], []>} : vector<20x16xf32>, vector<16x64xf32>, vector<20x64xf32> -> vector<20x64xf32>
    %445 = arith.addf %425, %444 : vector<20x64xf32>
    %446 = vector.extract_strided_slice %384 {offsets = [0, 48], sizes = [20, 16], strides = [1, 1]} : vector<20x192xf32> to vector<20x16xf32>
    %447 = vector.extract_strided_slice %384 {offsets = [0, 112], sizes = [20, 16], strides = [1, 1]} : vector<20x192xf32> to vector<20x16xf32>
    %448 = vector.extract_strided_slice %384 {offsets = [0, 176], sizes = [20, 16], strides = [1, 1]} : vector<20x192xf32> to vector<20x16xf32>
    %cst_217 = arith.constant dense<0.000000e+00> : vector<20x20xf32>
    %449 = tpu.matmul %446, %447, %cst_217 {dimension_numbers = #tpu.dot_dimension_numbers<[1], [1], [0], [0], [0, 0, 1, 0], [], []>} : vector<20x16xf32>, vector<20x16xf32>, vector<20x20xf32> -> vector<20x20xf32>
    %cst_218 = arith.constant 2.500000e-01 : f32
    %450 = vector.broadcast %cst_218 : f32 to vector<20x20xf32>
    %451 = arith.mulf %449, %450 : vector<20x20xf32>
    %cst_219 = arith.constant dense<0xFF800000> : vector<20xf32>
    %452 = vector.multi_reduction <maximumf>, %451, %cst_219 [1] : vector<20x20xf32> to vector<20xf32>
    %453 = vector.shape_cast %452 : vector<20xf32> to vector<20x1xf32>
    %454 = vector.broadcast %453 : vector<20x1xf32> to vector<20x20xf32>
    %455 = arith.subf %451, %454 : vector<20x20xf32>
    %456 = math.exp %455 : vector<20x20xf32>
    %cst_220 = arith.constant dense<0.000000e+00> : vector<20xf32>
    %457 = vector.multi_reduction <add>, %456, %cst_220 [1] : vector<20x20xf32> to vector<20xf32>
    %458 = vector.shape_cast %457 : vector<20xf32> to vector<20x1xf32>
    %459 = vector.broadcast %458 : vector<20x1xf32> to vector<20x20xf32>
    %460 = arith.divf %456, %459 : vector<20x20xf32>
    %cst_221 = arith.constant dense<0.000000e+00> : vector<20x16xf32>
    %461 = tpu.matmul %460, %448, %cst_221 {dimension_numbers = #tpu.dot_dimension_numbers<[1], [0], [0], [1], [0, 0, 1, 1], [], []>} : vector<20x20xf32>, vector<20x16xf32>, vector<20x16xf32> -> vector<20x16xf32>
    %c1_222 = arith.constant 1 : index
    %c3_223 = arith.constant 3 : index
    %c0_224 = arith.constant 0 : index
    %c0_225 = arith.constant 0 : index
    %462 = vector.load %arg13[%c1_222, %c3_223, %c0_224, %c0_225] : memref<2x4x16x64xf32, #tpu.memory_space<vmem>>, vector<1x1x16x64xf32>
    %463 = vector.shape_cast %462 : vector<1x1x16x64xf32> to vector<16x64xf32>
    %cst_226 = arith.constant dense<0.000000e+00> : vector<20x64xf32>
    %464 = tpu.matmul %461, %463, %cst_226 {dimension_numbers = #tpu.dot_dimension_numbers<[1], [0], [0], [1], [0, 0, 1, 1], [], []>} : vector<20x16xf32>, vector<16x64xf32>, vector<20x64xf32> -> vector<20x64xf32>
    %465 = arith.addf %445, %464 : vector<20x64xf32>
    %c1_227 = arith.constant 1 : index
    %c0_228 = arith.constant 0 : index
    %c0_229 = arith.constant 0 : index
    %466 = vector.load %arg14[%c1_227, %c0_228, %c0_229] : memref<2x2x64xf32, #tpu.memory_space<vmem>>, vector<1x2x64xf32>
    %467 = vector.shape_cast %466 : vector<1x2x64xf32> to vector<2x64xf32>
    %468 = arith.addf %353, %465 : vector<20x64xf32>
    %469 = vector.extract_strided_slice %467 {offsets = [0, 0], sizes = [1, 64], strides = [1, 1]} : vector<2x64xf32> to vector<1x64xf32>
    %470 = vector.broadcast %469 : vector<1x64xf32> to vector<20x64xf32>
    %471 = arith.addf %468, %470 : vector<20x64xf32>
    %472 = vector.extract_strided_slice %355 {offsets = [2, 0], sizes = [1, 64], strides = [1, 1]} : vector<4x64xf32> to vector<1x64xf32>
    %473 = vector.extract_strided_slice %355 {offsets = [3, 0], sizes = [1, 64], strides = [1, 1]} : vector<4x64xf32> to vector<1x64xf32>
    %cst_230 = arith.constant dense<0.000000e+00> : vector<20xf32>
    %474 = vector.multi_reduction <add>, %471, %cst_230 [1] : vector<20x64xf32> to vector<20xf32>
    %475 = vector.shape_cast %474 : vector<20xf32> to vector<20x1xf32>
    %cst_231 = arith.constant 6.400000e+01 : f32
    %476 = vector.broadcast %cst_231 : f32 to vector<20x1xf32>
    %477 = arith.divf %475, %476 : vector<20x1xf32>
    %478 = vector.broadcast %477 : vector<20x1xf32> to vector<20x64xf32>
    %479 = arith.subf %471, %478 : vector<20x64xf32>
    %480 = arith.mulf %479, %479 : vector<20x64xf32>
    %cst_232 = arith.constant dense<0.000000e+00> : vector<20xf32>
    %481 = vector.multi_reduction <add>, %480, %cst_232 [1] : vector<20x64xf32> to vector<20xf32>
    %482 = vector.shape_cast %481 : vector<20xf32> to vector<20x1xf32>
    %cst_233 = arith.constant 6.400000e+01 : f32
    %483 = vector.broadcast %cst_233 : f32 to vector<20x1xf32>
    %484 = arith.divf %482, %483 : vector<20x1xf32>
    %cst_234 = arith.constant 9.99999974E-6 : f32
    %485 = vector.broadcast %cst_234 : f32 to vector<20x1xf32>
    %486 = arith.addf %484, %485 : vector<20x1xf32>
    %487 = math.rsqrt %486 : vector<20x1xf32>
    %488 = vector.broadcast %487 : vector<20x1xf32> to vector<20x64xf32>
    %489 = arith.mulf %479, %488 : vector<20x64xf32>
    %490 = vector.broadcast %472 : vector<1x64xf32> to vector<20x64xf32>
    %491 = arith.mulf %489, %490 : vector<20x64xf32>
    %492 = vector.broadcast %473 : vector<1x64xf32> to vector<20x64xf32>
    %493 = arith.addf %491, %492 : vector<20x64xf32>
    %c1_235 = arith.constant 1 : index
    %c0_236 = arith.constant 0 : index
    %c0_237 = arith.constant 0 : index
    %494 = vector.load %arg15[%c1_235, %c0_236, %c0_237] : memref<2x64x256xf32, #tpu.memory_space<vmem>>, vector<1x64x256xf32>
    %495 = vector.shape_cast %494 : vector<1x64x256xf32> to vector<64x256xf32>
    %cst_238 = arith.constant dense<0.000000e+00> : vector<20x256xf32>
    %496 = tpu.matmul %493, %495, %cst_238 {dimension_numbers = #tpu.dot_dimension_numbers<[1], [0], [0], [1], [0, 0, 1, 1], [], []>} : vector<20x64xf32>, vector<64x256xf32>, vector<20x256xf32> -> vector<20x256xf32>
    %c1_239 = arith.constant 1 : index
    %c0_240 = arith.constant 0 : index
    %c0_241 = arith.constant 0 : index
    %497 = vector.load %arg16[%c1_239, %c0_240, %c0_241] : memref<2x1x256xf32, #tpu.memory_space<vmem>>, vector<1x1x256xf32>
    %498 = vector.shape_cast %497 : vector<1x1x256xf32> to vector<1x256xf32>
    %499 = vector.broadcast %498 : vector<1x256xf32> to vector<20x256xf32>
    %500 = arith.addf %496, %499 : vector<20x256xf32>
    %cst_242 = arith.constant 0.707106769 : f32
    %501 = vector.broadcast %cst_242 : f32 to vector<20x256xf32>
    %502 = arith.mulf %500, %501 : vector<20x256xf32>
    %503 = math.absf %502 : vector<20x256xf32>
    %cst_243 = arith.constant 0.327591091 : f32
    %504 = vector.broadcast %cst_243 : f32 to vector<20x256xf32>
    %505 = arith.mulf %504, %503 : vector<20x256xf32>
    %cst_244 = arith.constant 1.000000e+00 : f32
    %506 = vector.broadcast %cst_244 : f32 to vector<20x256xf32>
    %507 = arith.addf %506, %505 : vector<20x256xf32>
    %cst_245 = arith.constant 1.000000e+00 : f32
    %508 = vector.broadcast %cst_245 : f32 to vector<20x256xf32>
    %509 = arith.divf %508, %507 : vector<20x256xf32>
    %cst_246 = arith.constant 1.06140542 : f32
    %510 = vector.broadcast %cst_246 : f32 to vector<20x256xf32>
    %511 = arith.mulf %509, %510 : vector<20x256xf32>
    %cst_247 = arith.constant -1.45315206 : f32
    %512 = vector.broadcast %cst_247 : f32 to vector<20x256xf32>
    %513 = arith.addf %512, %511 : vector<20x256xf32>
    %514 = arith.mulf %509, %513 : vector<20x256xf32>
    %cst_248 = arith.constant 1.42141378 : f32
    %515 = vector.broadcast %cst_248 : f32 to vector<20x256xf32>
    %516 = arith.addf %515, %514 : vector<20x256xf32>
    %517 = arith.mulf %509, %516 : vector<20x256xf32>
    %cst_249 = arith.constant -0.284496725 : f32
    %518 = vector.broadcast %cst_249 : f32 to vector<20x256xf32>
    %519 = arith.addf %518, %517 : vector<20x256xf32>
    %520 = arith.mulf %509, %519 : vector<20x256xf32>
    %cst_250 = arith.constant 0.254829586 : f32
    %521 = vector.broadcast %cst_250 : f32 to vector<20x256xf32>
    %522 = arith.addf %521, %520 : vector<20x256xf32>
    %523 = arith.mulf %509, %522 : vector<20x256xf32>
    %cst_251 = arith.constant 0.000000e+00 : f32
    %524 = vector.broadcast %cst_251 : f32 to vector<20x256xf32>
    %525 = arith.subf %524, %503 : vector<20x256xf32>
    %526 = arith.mulf %525, %503 : vector<20x256xf32>
    %527 = math.exp %526 : vector<20x256xf32>
    %528 = arith.mulf %523, %527 : vector<20x256xf32>
    %cst_252 = arith.constant 1.000000e+00 : f32
    %529 = vector.broadcast %cst_252 : f32 to vector<20x256xf32>
    %530 = arith.subf %529, %528 : vector<20x256xf32>
    %cst_253 = arith.constant 0.000000e+00 : f32
    %531 = vector.broadcast %cst_253 : f32 to vector<20x256xf32>
    %532 = arith.cmpf oge, %502, %531 : vector<20x256xf32>
    %cst_254 = arith.constant 0.000000e+00 : f32
    %533 = vector.broadcast %cst_254 : f32 to vector<20x256xf32>
    %534 = arith.subf %533, %530 : vector<20x256xf32>
    %535 = arith.select %532, %530, %534 : vector<20x256xi1>, vector<20x256xf32>
    %cst_255 = arith.constant 5.000000e-01 : f32
    %536 = vector.broadcast %cst_255 : f32 to vector<20x256xf32>
    %537 = arith.mulf %536, %500 : vector<20x256xf32>
    %cst_256 = arith.constant 1.000000e+00 : f32
    %538 = vector.broadcast %cst_256 : f32 to vector<20x256xf32>
    %539 = arith.addf %538, %535 : vector<20x256xf32>
    %540 = arith.mulf %537, %539 : vector<20x256xf32>
    %c1_257 = arith.constant 1 : index
    %c0_258 = arith.constant 0 : index
    %c0_259 = arith.constant 0 : index
    %541 = vector.load %arg17[%c1_257, %c0_258, %c0_259] : memref<2x256x64xf32, #tpu.memory_space<vmem>>, vector<1x256x64xf32>
    %542 = vector.shape_cast %541 : vector<1x256x64xf32> to vector<256x64xf32>
    %cst_260 = arith.constant dense<0.000000e+00> : vector<20x64xf32>
    %543 = tpu.matmul %540, %542, %cst_260 {dimension_numbers = #tpu.dot_dimension_numbers<[1], [0], [0], [1], [0, 0, 1, 1], [], []>} : vector<20x256xf32>, vector<256x64xf32>, vector<20x64xf32> -> vector<20x64xf32>
    %544 = arith.addf %471, %543 : vector<20x64xf32>
    %545 = vector.extract_strided_slice %467 {offsets = [1, 0], sizes = [1, 64], strides = [1, 1]} : vector<2x64xf32> to vector<1x64xf32>
    %546 = vector.broadcast %545 : vector<1x64xf32> to vector<20x64xf32>
    %547 = arith.addf %544, %546 : vector<20x64xf32>
    %c0_261 = arith.constant 0 : index
    %c0_262 = arith.constant 0 : index
    %548 = vector.load %arg18[%c0_261, %c0_262] : memref<2x64xf32, #tpu.memory_space<vmem>>, vector<2x64xf32>
    %549 = vector.extract_strided_slice %548 {offsets = [0, 0], sizes = [1, 64], strides = [1, 1]} : vector<2x64xf32> to vector<1x64xf32>
    %550 = vector.extract_strided_slice %548 {offsets = [1, 0], sizes = [1, 64], strides = [1, 1]} : vector<2x64xf32> to vector<1x64xf32>
    %cst_263 = arith.constant dense<0.000000e+00> : vector<20xf32>
    %551 = vector.multi_reduction <add>, %547, %cst_263 [1] : vector<20x64xf32> to vector<20xf32>
    %552 = vector.shape_cast %551 : vector<20xf32> to vector<20x1xf32>
    %cst_264 = arith.constant 6.400000e+01 : f32
    %553 = vector.broadcast %cst_264 : f32 to vector<20x1xf32>
    %554 = arith.divf %552, %553 : vector<20x1xf32>
    %555 = vector.broadcast %554 : vector<20x1xf32> to vector<20x64xf32>
    %556 = arith.subf %547, %555 : vector<20x64xf32>
    %557 = arith.mulf %556, %556 : vector<20x64xf32>
    %cst_265 = arith.constant dense<0.000000e+00> : vector<20xf32>
    %558 = vector.multi_reduction <add>, %557, %cst_265 [1] : vector<20x64xf32> to vector<20xf32>
    %559 = vector.shape_cast %558 : vector<20xf32> to vector<20x1xf32>
    %cst_266 = arith.constant 6.400000e+01 : f32
    %560 = vector.broadcast %cst_266 : f32 to vector<20x1xf32>
    %561 = arith.divf %559, %560 : vector<20x1xf32>
    %cst_267 = arith.constant 9.99999974E-6 : f32
    %562 = vector.broadcast %cst_267 : f32 to vector<20x1xf32>
    %563 = arith.addf %561, %562 : vector<20x1xf32>
    %564 = math.rsqrt %563 : vector<20x1xf32>
    %565 = vector.broadcast %564 : vector<20x1xf32> to vector<20x64xf32>
    %566 = arith.mulf %556, %565 : vector<20x64xf32>
    %567 = vector.broadcast %549 : vector<1x64xf32> to vector<20x64xf32>
    %568 = arith.mulf %566, %567 : vector<20x64xf32>
    %569 = vector.broadcast %550 : vector<1x64xf32> to vector<20x64xf32>
    %570 = arith.addf %568, %569 : vector<20x64xf32>
    %571 = arith.index_cast %arg0 : i32 to index
    %572 = memref.load %arg1[%571] : memref<2xi32, #tpu.memory_space<smem>>
    %573 = arith.sitofp %572 : i32 to f32
    %cst_268 = arith.constant 3.125000e-03 : f32
    %574 = arith.mulf %573, %cst_268 : f32
    %575 = arith.fptosi %574 : f32 to i32
    %576 = tpu.iota {dimensions = array<i32: 1>} : vector<1x20xi32>
    %577 = vector.broadcast %575 : i32 to vector<1x20xi32>
    %578 = arith.cmpi sle, %576, %577 : vector<1x20xi32>
    %579 = arith.extui %578 : vector<1x20xi1> to vector<1x20xi32>
    %580 = arith.sitofp %579 : vector<1x20xi32> to vector<1x20xf32>
    %cst_269 = arith.constant dense<0.000000e+00> : vector<1x64xf32>
    %581 = tpu.matmul %580, %570, %cst_269 {dimension_numbers = #tpu.dot_dimension_numbers<[1], [0], [0], [1], [0, 0, 1, 1], [], []>} : vector<1x20xf32>, vector<20x64xf32>, vector<1x64xf32> -> vector<1x64xf32>
    %582 = vector.shape_cast %580 : vector<1x20xf32> to vector<1x1x20xf32>
    %cst_270 = arith.constant dense<0.000000e+00> : vector<1xf32>
    %583 = vector.multi_reduction <add>, %582, %cst_270 [1, 2] : vector<1x1x20xf32> to vector<1xf32>
    %584 = vector.shape_cast %583 : vector<1xf32> to vector<1x1x1xf32>
    %585 = vector.extract %584[0, 0, 0] : f32 from vector<1x1x1xf32>
    %cst_271 = arith.constant 1.000000e+00 : f32
    %586 = arith.maximumf %585, %cst_271 : f32
    %587 = vector.broadcast %586 : f32 to vector<1x64xf32>
    %588 = arith.divf %581, %587 : vector<1x64xf32>
    %c0_272 = arith.constant 0 : index
    %c0_273 = arith.constant 0 : index
    %c0_274 = arith.constant 0 : index
    %589 = vector.load %arg19[%c0_272, %c0_273, %c0_274] : memref<1x1x64xf32, #tpu.memory_space<vmem>>, vector<1x1x64xf32>
    %590 = vector.shape_cast %589 : vector<1x1x64xf32> to vector<1x64xf32>
    %591 = vector.shape_cast %588 : vector<1x64xf32> to vector<1x1x64xf32>
    tpu.vector_store %arg19[%c0_272, %c0_273, %c0_274], %591 {strides = array<i32>} : memref<1x1x64xf32, #tpu.memory_space<vmem>>, vector<1x1x64xf32>,
    return
  }
  func.func @transform_0(%arg0: i32, %arg1: memref<2xi32, #tpu.memory_space<smem>>) -> (i32, i32, i32) {
    %c0_i32 = arith.constant 0 : i32
    %c0_i32_0 = arith.constant 0 : i32
    %c0_i32_1 = arith.constant 0 : i32
    return %arg0, %c0_i32, %c0_i32_0 : i32, i32, i32
  }
  func.func @transform_1(%arg0: i32, %arg1: memref<2xi32, #tpu.memory_space<smem>>) -> (i32, i32, i32) {
    %c0_i32 = arith.constant 0 : i32
    %c0_i32_0 = arith.constant 0 : i32
    %c0_i32_1 = arith.constant 0 : i32
    %c0_i32_2 = arith.constant 0 : i32
    return %c0_i32, %c0_i32_0, %c0_i32_1 : i32, i32, i32
  }
  func.func @transform_2(%arg0: i32, %arg1: memref<2xi32, #tpu.memory_space<smem>>) -> (i32, i32) {
    %c0_i32 = arith.constant 0 : i32
    %c0_i32_0 = arith.constant 0 : i32
    %c0_i32_1 = arith.constant 0 : i32
    return %c0_i32, %c0_i32_0 : i32, i32
  }
  func.func @transform_3(%arg0: i32, %arg1: memref<2xi32, #tpu.memory_space<smem>>) -> (i32, i32, i32) {
    %c0_i32 = arith.constant 0 : i32
    %c0_i32_0 = arith.constant 0 : i32
    %c0_i32_1 = arith.constant 0 : i32
    %c0_i32_2 = arith.constant 0 : i32
    return %c0_i32, %c0_i32_0, %c0_i32_1 : i32, i32, i32
  }
  func.func @transform_4(%arg0: i32, %arg1: memref<2xi32, #tpu.memory_space<smem>>) -> (i32, i32) {
    %c0_i32 = arith.constant 0 : i32
    %c0_i32_0 = arith.constant 0 : i32
    %c0_i32_1 = arith.constant 0 : i32
    return %c0_i32, %c0_i32_0 : i32, i32
  }
  func.func @transform_5(%arg0: i32, %arg1: memref<2xi32, #tpu.memory_space<smem>>) -> (i32, i32) {
    %c0_i32 = arith.constant 0 : i32
    %c0_i32_0 = arith.constant 0 : i32
    %c0_i32_1 = arith.constant 0 : i32
    return %c0_i32, %c0_i32_0 : i32, i32
  }
  func.func @transform_6(%arg0: i32, %arg1: memref<2xi32, #tpu.memory_space<smem>>) -> (i32, i32, i32) {
    %c0_i32 = arith.constant 0 : i32
    %c0_i32_0 = arith.constant 0 : i32
    %c0_i32_1 = arith.constant 0 : i32
    %c0_i32_2 = arith.constant 0 : i32
    return %c0_i32, %c0_i32_0, %c0_i32_1 : i32, i32, i32
  }
  func.func @transform_7(%arg0: i32, %arg1: memref<2xi32, #tpu.memory_space<smem>>) -> (i32, i32) {
    %c0_i32 = arith.constant 0 : i32
    %c0_i32_0 = arith.constant 0 : i32
    %c0_i32_1 = arith.constant 0 : i32
    return %c0_i32, %c0_i32_0 : i32, i32
  }
  func.func @transform_8(%arg0: i32, %arg1: memref<2xi32, #tpu.memory_space<smem>>) -> (i32, i32, i32) {
    %c0_i32 = arith.constant 0 : i32
    %c0_i32_0 = arith.constant 0 : i32
    %c0_i32_1 = arith.constant 0 : i32
    %c0_i32_2 = arith.constant 0 : i32
    return %c0_i32, %c0_i32_0, %c0_i32_1 : i32, i32, i32
  }
  func.func @transform_9(%arg0: i32, %arg1: memref<2xi32, #tpu.memory_space<smem>>) -> (i32, i32, i32) {
    %c0_i32 = arith.constant 0 : i32
    %c0_i32_0 = arith.constant 0 : i32
    %c0_i32_1 = arith.constant 0 : i32
    %c0_i32_2 = arith.constant 0 : i32
    return %c0_i32, %c0_i32_0, %c0_i32_1 : i32, i32, i32
  }
  func.func @transform_10(%arg0: i32, %arg1: memref<2xi32, #tpu.memory_space<smem>>) -> (i32, i32, i32) {
    %c0_i32 = arith.constant 0 : i32
    %c0_i32_0 = arith.constant 0 : i32
    %c0_i32_1 = arith.constant 0 : i32
    %c0_i32_2 = arith.constant 0 : i32
    return %c0_i32, %c0_i32_0, %c0_i32_1 : i32, i32, i32
  }
  func.func @transform_11(%arg0: i32, %arg1: memref<2xi32, #tpu.memory_space<smem>>) -> (i32, i32, i32, i32) {
    %c0_i32 = arith.constant 0 : i32
    %c0_i32_0 = arith.constant 0 : i32
    %c0_i32_1 = arith.constant 0 : i32
    %c0_i32_2 = arith.constant 0 : i32
    %c0_i32_3 = arith.constant 0 : i32
    return %c0_i32, %c0_i32_0, %c0_i32_1, %c0_i32_2 : i32, i32, i32, i32
  }
  func.func @transform_12(%arg0: i32, %arg1: memref<2xi32, #tpu.memory_space<smem>>) -> (i32, i32, i32) {
    %c0_i32 = arith.constant 0 : i32
    %c0_i32_0 = arith.constant 0 : i32
    %c0_i32_1 = arith.constant 0 : i32
    %c0_i32_2 = arith.constant 0 : i32
    return %c0_i32, %c0_i32_0, %c0_i32_1 : i32, i32, i32
  }
  func.func @transform_13(%arg0: i32, %arg1: memref<2xi32, #tpu.memory_space<smem>>) -> (i32, i32, i32) {
    %c0_i32 = arith.constant 0 : i32
    %c0_i32_0 = arith.constant 0 : i32
    %c0_i32_1 = arith.constant 0 : i32
    %c0_i32_2 = arith.constant 0 : i32
    return %c0_i32, %c0_i32_0, %c0_i32_1 : i32, i32, i32
  }
  func.func @transform_14(%arg0: i32, %arg1: memref<2xi32, #tpu.memory_space<smem>>) -> (i32, i32, i32) {
    %c0_i32 = arith.constant 0 : i32
    %c0_i32_0 = arith.constant 0 : i32
    %c0_i32_1 = arith.constant 0 : i32
    %c0_i32_2 = arith.constant 0 : i32
    return %c0_i32, %c0_i32_0, %c0_i32_1 : i32, i32, i32
  }
  func.func @transform_15(%arg0: i32, %arg1: memref<2xi32, #tpu.memory_space<smem>>) -> (i32, i32, i32) {
    %c0_i32 = arith.constant 0 : i32
    %c0_i32_0 = arith.constant 0 : i32
    %c0_i32_1 = arith.constant 0 : i32
    %c0_i32_2 = arith.constant 0 : i32
    return %c0_i32, %c0_i32_0, %c0_i32_1 : i32, i32, i32
  }
  func.func @transform_16(%arg0: i32, %arg1: memref<2xi32, #tpu.memory_space<smem>>) -> (i32, i32) {
    %c0_i32 = arith.constant 0 : i32
    %c0_i32_0 = arith.constant 0 : i32
    %c0_i32_1 = arith.constant 0 : i32
    return %c0_i32, %c0_i32_0 : i32, i32
  }
  func.func @transform_17(%arg0: i32, %arg1: memref<2xi32, #tpu.memory_space<smem>>) -> (i32, i32, i32) {
    %c0_i32 = arith.constant 0 : i32
    %c0_i32_0 = arith.constant 0 : i32
    %c0_i32_1 = arith.constant 0 : i32
    return %arg0, %c0_i32, %c0_i32_0 : i32, i32, i32
  }
}

</mosaic_0001>

<llo_original>
// kernel: reverse
$region0: #{reverse}
  %s0 = inlined_call_operand.vmem [shape: f32[2,256], index: 0, kind: input, shape index: {}]
  %s1 = inlined_call_operand.vmem [shape: f32[2,256], index: 1, kind: output, shape index: {}]
  %v2 = vlaneseq
  %v3 = vsub.s32 127, %v2
  %4 = vset.pattern.permute.xlu0 %v3
  $region1: #{reverse} parent=0
    #allocation0 [shape = 'u8[4096]{0}', space=vmem, size = 0x1000, scoped, tag = 'operand span for operand 0']
    #allocation1 [shape = 'u8[2048]{0}', space=vmem, size = 0x800, scoped, tag = 'packed  for operand 0']
    #allocation2 [shape = 'u8[4096]{0}', space=vmem, size = 0x1000, scoped, tag = 'operand span for operand 1']
    #allocation3 [shape = 'u8[2048]{0}', space=vmem, size = 0x800, scoped, tag = 'packed  for operand 1']
    loop: start=0, step=1, limit=4
    $region2: #{reverse} parent=1 // loop_pre_header
      _
    $region3: #{reverse} parent=1 // loop_header
      %s6 = sphi 0, %s10
      %p7 = scmp.ge.s32.totalorder %s6, 4
      %s13 = sphi 0, %s25
      %s14 = sphi 0, %s21
      %s15 = sphi 0, %s13
      %s16 = sphi 0, %s14
      %s17 = sphi 0, %s15
      %s18 = sphi 0, %s16
    $region4: #{reverse} parent=1 // loop_header_branch
      %9 = sbr.rel (%p7) target = $region8
    $region5: #{reverse} parent=1 // loop_body
      %s11 = ssub.s32 %s6, 1
      %s12 = ssub.s32 %s6, 2
      %s19 = sadd.s32 1, %s14
      %p20 = scmp.ge.s32.totalorder %s19, 2
      %s21 = scalar_select %p20, 0, %s19
      %s22 = sadd.s32 1, %s13
      %s23 = scalar_select %p20, %s22, %s13
      %p24 = scmp.ge.s32.totalorder %s23, 1
      %s25 = scalar_select %p24, 0, %s23
      %p26 = scmp.le.s32.totalorder 1, %s6
      %p27 = scmp.lt.s32.totalorder %s6, 3
      %p28 = pnand %p26, %p27
      %p29 = pneg %p28
      // Predicated region
      $region9: #{reverse} parent=5 // pred_check
        _
      $region10: #{reverse} parent=5 // pred_check_branch
        %31 = sbr.rel (%p28) target = $region12
      $region11: #{reverse} parent=5 // pred_region
        %s32 = ssub.s32 %s6, 1
      $region12: #{reverse} parent=5 // pred_fallthru
        _
      %p33 = scmp.lt.s32.totalorder %s6, 2
      // Predicated region
      $region13: #{reverse} parent=5 // pred_check
        %p34 = pneg %p33
      $region14: #{reverse} parent=5 // pred_check_branch
        %36 = sbr.rel (%p34) target = $region16
      $region15: #{reverse} parent=5 // pred_region
        %s37 = sand.u32 %s6, 1
        %s38 = sand.u32 %s6, 1
        %s39 = smul.addr %s38, 2
        %s40 = scalar_lea.vmem [#allocation1], %s39
        %s41 = ssub.s32 1, %s14
        %s42 = smul.addr %s13, 2
        %s43 = sadd.s32 %s41, %s42
        %s44 = smul.addr %s43, 2
        %s45 = scalar_lea.vmem %s0, %s44
        // Predicated region
        $region17: #{reverse} parent=15 // pred_check
          _
        $region18: #{reverse} parent=15 // pred_check_branch
          %47 = sbr.rel (0) target = $region20
        $region19: #{reverse} parent=15 // pred_region
          // Predicated region
          $region21: #{reverse} parent=19 // pred_check
            _
          $region22: #{reverse} parent=19 // pred_check_branch
            %49 = sbr.rel target = $region24
          $region23: #{reverse} parent=19 // pred_region
            // Predicated region
            $region36: #{reverse} parent=23 // pred_check
              _
            $region37: #{reverse} parent=23 // pred_check_branch
              %64 = sbr.rel (0) target = $region39
            $region38: #{reverse} parent=23 // pred_region
              loop: start=0, step=1, limit=1
              $region40: #{reverse} parent=38 // loop_pre_header
                _
              $region41: #{reverse} parent=38 // loop_header
                %s67 = sphi 0, %s71
                %p68 = scmp.ge.s32.totalorder %s67, 1
                %s72 = sphi %s45, %s45
                %s73 = sphi %s40, %s40
              $region42: #{reverse} parent=38 // loop_header_branch
                %70 = sbr.rel (%p68) target = $region46
              $region43: #{reverse} parent=38 // loop_body
                %v74 = vld [vmem:[%s72] sm:$0x3]
                %75 = vst [vmem:[%s73] sm:$0x3] %v74
              $region44: #{reverse} parent=38 // loop_footer
                %s71 = sadd.s32 1, %s67
              $region45: #{reverse} parent=38 // loop_footer_branch
                %66 = sbr.rel target = $region41
              $region46: #{reverse} parent=38 // loop_exit
                _
            $region39: #{reverse} parent=23 // pred_fallthru
              _
          $region24: #{reverse} parent=19 // pred_fallthru
            _
          // Predicated region
          $region25: #{reverse} parent=19 // pred_check
            _
          $region26: #{reverse} parent=19 // pred_check_branch
            %51 = sbr.rel (0) target = $region28
          $region27: #{reverse} parent=19 // pred_region
            loop: start=0, step=1, limit=1
            $region29: #{reverse} parent=27 // loop_pre_header
              _
            $region30: #{reverse} parent=27 // loop_header
              %s54 = sphi 0, %s58
              %p55 = scmp.ge.s32.totalorder %s54, 1
              %s59 = sphi %s45, %s45
              %s60 = sphi %s40, %s40
            $region31: #{reverse} parent=27 // loop_header_branch
              %57 = sbr.rel (%p55) target = $region35
            $region32: #{reverse} parent=27 // loop_body
              %v61 = vld [vmem:[%s59] sm:$0x3]
              %62 = vst [vmem:[%s60] sm:$0x3] %v61
            $region33: #{reverse} parent=27 // loop_footer
              %s58 = sadd.s32 1, %s54
            $region34: #{reverse} parent=27 // loop_footer_branch
              %53 = sbr.rel target = $region30
            $region35: #{reverse} parent=27 // loop_exit
              _
          $region28: #{reverse} parent=19 // pred_fallthru
            _
        $region20: #{reverse} parent=15 // pred_fallthru
          _
        %76 = vnop
      $region16: #{reverse} parent=5 // pred_fallthru
        _
      %p77 = scmp.le.s32.totalorder 1, %s6
      %p78 = scmp.lt.s32.totalorder %s6, 3
      %p79 = pnand %p77, %p78
      %p80 = pneg %p79
      // Predicated region
      $region47: #{reverse} parent=5 // pred_check
        _
      $region48: #{reverse} parent=5 // pred_check_branch
        %82 = sbr.rel (%p79) target = $region50
      $region49: #{reverse} parent=5 // pred_region
        %s83 = ssub.s32 %s6, 1
        %s84 = sand.u32 %s11, 1
        %s85 = sand.u32 %s11, 1
        %s86 = smul.addr %s85, 2
        %s87 = scalar_lea.vmem [#allocation1], %s86
        %s88 = sand.u32 %s11, 1
        %s89 = sand.u32 %s11, 1
        %s90 = smul.addr %s89, 2
        %s91 = scalar_lea.vmem [#allocation1], %s90
        %s92 = sand.u32 %s11, 1
        %s93 = sand.u32 %s11, 1
        %s94 = smul.addr %s93, 2
        %s95 = scalar_lea.vmem [#allocation3], %s94
        %s97 = sshllo.u32 0, 2
        %v98 = vld [vmem:[%s91] sm:%s97]
        %99 = vst [vmem:[#allocation0] sm:%s97] %v98
        %s100 = ssub.s32 1, %s16
        %v101 = vld [vmem:[#allocation0] sm:$0xff]
        %102 = vperm.xlu0 %4, %v101
        %v103 = vpop.permute.xlu0 %102
        %104 = vst [vmem:[#allocation2] sm:$0xff] %v103
        %s106 = sshllo.u32 0, 2
        %v108 = vld [vmem:[#allocation2] sm:%s106]
        %s109 = sshllo.u32 0, 2
        %110 = vst [vmem:[%s95] sm:%s109] %v108
        %s111 = sand.u32 %s11, 1
        %s112 = sand.u32 %s11, 1
        %s113 = smul.addr %s112, 2
        %s114 = scalar_lea.vmem [#allocation3], %s113
        %s115 = smul.addr %s15, 2
        %s116 = sadd.s32 %s16, %s115
        %s117 = smul.addr %s116, 2
        %s118 = scalar_lea.vmem %s1, %s117
        // Predicated region
        $region51: #{reverse} parent=49 // pred_check
          _
        $region52: #{reverse} parent=49 // pred_check_branch
          %120 = sbr.rel (0) target = $region54
        $region53: #{reverse} parent=49 // pred_region
          // Predicated region
          $region55: #{reverse} parent=53 // pred_check
            _
          $region56: #{reverse} parent=53 // pred_check_branch
            %122 = sbr.rel target = $region58
          $region57: #{reverse} parent=53 // pred_region
            // Predicated region
            $region70: #{reverse} parent=57 // pred_check
              _
            $region71: #{reverse} parent=57 // pred_check_branch
              %137 = sbr.rel (0) target = $region73
            $region72: #{reverse} parent=57 // pred_region
              loop: start=0, step=1, limit=1
              $region74: #{reverse} parent=72 // loop_pre_header
                _
              $region75: #{reverse} parent=72 // loop_header
                %s140 = sphi 0, %s144
                %p141 = scmp.ge.s32.totalorder %s140, 1
                %s145 = sphi %s114, %s114
                %s146 = sphi %s118, %s118
              $region76: #{reverse} parent=72 // loop_header_branch
                %143 = sbr.rel (%p141) target = $region80
              $region77: #{reverse} parent=72 // loop_body
                %v147 = vld [vmem:[%s145] sm:$0x3]
                %148 = vst [vmem:[%s146] sm:$0x3] %v147
              $region78: #{reverse} parent=72 // loop_footer
                %s144 = sadd.s32 1, %s140
              $region79: #{reverse} parent=72 // loop_footer_branch
                %139 = sbr.rel target = $region75
              $region80: #{reverse} parent=72 // loop_exit
                _
            $region73: #{reverse} parent=57 // pred_fallthru
              _
          $region58: #{reverse} parent=53 // pred_fallthru
            _
          // Predicated region
          $region59: #{reverse} parent=53 // pred_check
            _
          $region60: #{reverse} parent=53 // pred_check_branch
            %124 = sbr.rel (0) target = $region62
          $region61: #{reverse} parent=53 // pred_region
            loop: start=0, step=1, limit=1
            $region63: #{reverse} parent=61 // loop_pre_header
              _
            $region64: #{reverse} parent=61 // loop_header
              %s127 = sphi 0, %s131
              %p128 = scmp.ge.s32.totalorder %s127, 1
              %s132 = sphi %s114, %s114
              %s133 = sphi %s118, %s118
            $region65: #{reverse} parent=61 // loop_header_branch
              %130 = sbr.rel (%p128) target = $region69
            $region66: #{reverse} parent=61 // loop_body
              %v134 = vld [vmem:[%s132] sm:$0x3]
              %135 = vst [vmem:[%s133] sm:$0x3] %v134
            $region67: #{reverse} parent=61 // loop_footer
              %s131 = sadd.s32 1, %s127
            $region68: #{reverse} parent=61 // loop_footer_branch
              %126 = sbr.rel target = $region64
            $region69: #{reverse} parent=61 // loop_exit
              _
          $region62: #{reverse} parent=53 // pred_fallthru
            _
        $region54: #{reverse} parent=49 // pred_fallthru
          _
        %149 = vnop
      $region50: #{reverse} parent=5 // pred_fallthru
        _
      %p150 = scmp.le.s32.totalorder 2, %s6
      // Predicated region
      $region81: #{reverse} parent=5 // pred_check
        %p151 = pneg %p150
      $region82: #{reverse} parent=5 // pred_check_branch
        %153 = sbr.rel (%p151) target = $region84
      $region83: #{reverse} parent=5 // pred_region
        %s154 = ssub.s32 %s6, 2
        %s155 = sand.u32 %s12, 1
        %s156 = sand.u32 %s12, 1
        %s157 = smul.addr %s156, 2
        %s158 = scalar_lea.vmem [#allocation3], %s157
      $region84: #{reverse} parent=5 // pred_fallthru
        _
    $region6: #{reverse} parent=1 // loop_footer
      %s10 = sadd.s32 1, %s6
    $region7: #{reverse} parent=1 // loop_footer_branch
      %5 = sbr.rel target = $region3
    $region8: #{reverse} parent=1 // loop_exit
      _

// kernel: whisper_wrapper_forward.1
$region0: #{whisper_wrapper_forward.1}
  #allocation0 [shape = 'u32[]', space=smem, size = 0x4, offset = 0x4, fixed_abs, tag = 'smem constant byte address 0x4 - core index']
  #allocation1 [shape = 'u32[144,128]{1,0:T(1,128)}', space=vmem, size = 0x12000, scoped, tag = 'internal scratch']
  #allocation2 [shape = 's32[1]{0}', space=sflag, size = 0x4, scoped, tag = 'scoped memory for whisper_wrapper_forward.1']
  #allocation3 [shape = 'u8[512]{0}', space=smem, size = 0x200, scoped, tag = 'prefetched SMEM operand 0']
  %s0 = inlined_call_operand.vmem [shape: s32[2], index: 0, kind: input, shape index: {}]
  %s1 = inlined_call_operand.vmem [shape: f32[2,48,160], index: 1, kind: input, shape index: {}]
  %s2 = inlined_call_operand.vmem [shape: f32[3,160,512], index: 2, kind: input, shape index: {}]
  %s3 = inlined_call_operand.vmem [shape: f32[256,128], index: 3, kind: input, shape index: {}]
  %s4 = inlined_call_operand.vmem [shape: f32[3,128,64], index: 4, kind: input, shape index: {}]
  %s5 = inlined_call_operand.vmem [shape: f32[2,64], index: 5, kind: input, shape index: {}]
  %s6 = inlined_call_operand.vmem [shape: f32[72,40], index: 6, kind: input, shape index: {}]
  %s7 = inlined_call_operand.hbm [shape: f32[3,64,64], index: 7, kind: input, shape index: {}]
  %s8 = inlined_call_operand.hbm [shape: f32[20,64], index: 8, kind: input, shape index: {}]
  %s9 = inlined_call_operand.hbm [shape: f32[2,4,64], index: 9, kind: input, shape index: {}]
  %s10 = inlined_call_operand.hbm [shape: f32[2,64,192], index: 10, kind: input, shape index: {}]
  %s11 = inlined_call_operand.hbm [shape: f32[2,1,192], index: 11, kind: input, shape index: {}]
  %s12 = inlined_call_operand.hbm [shape: f32[2,4,16,64], index: 12, kind: input, shape index: {}]
  %s13 = inlined_call_operand.hbm [shape: f32[2,2,64], index: 13, kind: input, shape index: {}]
  %s14 = inlined_call_operand.hbm [shape: f32[2,64,256], index: 14, kind: input, shape index: {}]
  %s15 = inlined_call_operand.hbm [shape: f32[2,1,256], index: 15, kind: input, shape index: {}]
  %s16 = inlined_call_operand.vmem [shape: f32[2,256,64], index: 16, kind: input, shape index: {}]
  %s17 = inlined_call_operand.hbm [shape: f32[2,64], index: 17, kind: input, shape index: {}]
  %s18 = inlined_call_operand.hbm [shape: f32[2,1,64], index: 18, kind: output, shape index: {}]
  %s19 = sld [smem:[#allocation0]]
  $region141: #{whisper_wrapper_forward.1} parent=0
    _
  %s21 = ssub.s32 1, %s19
  %s22 = scalar_select 0, %s21, %s19
  %s23 = sshll.u32 %s0, 4
  %s24 = int_to_ptr.vmem [resolvable:$true] %s23
  %26 = dma.vmem_to_smem %s24, 16, [#allocation3], [#allocation2]
  %27 = dma.done [#allocation2], 16
  %28 = sfence
  $region1: #{whisper_wrapper_forward.1} parent=0
    #allocation4 [shape = 'u8[98304]{0}', space=vmem, size = 0x18000, scoped, tag = 'input window, operand 7, single buffered']
    #allocation5 [shape = 's32[2]{0}', space=sflag, size = 0x8, scoped, tag = 'scoped memory for whisper_wrapper_forward.1']
    #allocation6 [shape = 's32[2]{0}', space=sflag, size = 0x8, scoped, tag = 'scoped memory for whisper_wrapper_forward.1']
    #allocation7 [shape = 'u8[12288]{0}', space=vmem, size = 0x3000, scoped, tag = 'input window, operand 8, single buffered']
    #allocation8 [shape = 's32[1]{0}', space=sflag, size = 0x4, scoped, tag = 'scoped memory for whisper_wrapper_forward.1']
    #allocation9 [shape = 'u8[4096]{0}', space=vmem, size = 0x1000, scoped, tag = 'input window, operand 9, single buffered']
    #allocation10 [shape = 'u8[131072]{0}', space=vmem, size = 0x20000, scoped, tag = 'input window, operand 10, single buffered']
    #allocation11 [shape = 's32[1]{0}', space=sflag, size = 0x4, scoped, tag = 'scoped memory for whisper_wrapper_forward.1']
    #allocation12 [shape = 'u8[2048]{0}', space=vmem, size = 0x800, scoped, tag = 'input window, operand 11, single buffered']
    #allocation13 [shape = 'u8[65536]{0}', space=vmem, size = 0x10000, scoped, tag = 'input window, operand 12, single buffered']
    #allocation14 [shape = 's32[1]{0}', space=sflag, size = 0x4, scoped, tag = 'scoped memory for whisper_wrapper_forward.1']
    #allocation15 [shape = 'u8[2048]{0}', space=vmem, size = 0x800, scoped, tag = 'input window, operand 13, single buffered']
    #allocation16 [shape = 'u8[131072]{0}', space=vmem, size = 0x20000, scoped, tag = 'input window, operand 14, single buffered']
    #allocation17 [shape = 's32[1]{0}', space=sflag, size = 0x4, scoped, tag = 'scoped memory for whisper_wrapper_forward.1']
    #allocation18 [shape = 'u8[2048]{0}', space=vmem, size = 0x800, scoped, tag = 'input window, operand 15, single buffered']
    #allocation19 [shape = 'u8[1024]{0}', space=vmem, size = 0x400, scoped, tag = 'input window, operand 17, single buffered']
    #allocation20 [shape = 's32[1]{0}', space=sflag, size = 0x4, scoped, tag = 'scoped memory for whisper_wrapper_forward.1']
    #allocation21 [shape = 'u8[1024]{0}', space=vmem, size = 0x400, scoped, tag = 'output window, operand 0']
    %29 = vsyncpa [#allocation5], 0
    %30 = vsyncpa [#allocation8], 0
    %31 = vsyncpa [#allocation11], 0
    %32 = vsyncpa [#allocation14], 0
    %33 = vsyncpa [#allocation17], 0
    %34 = vsyncpa [#allocation20], 0
    %35 = vsyncpa [#allocation6], 0
    %s36 = scalar_lea.sflag [#allocation6], 1
    %37 = vsyncpa %s36, 0
    loop: start=0, step=1, limit=4
    $region2: #{whisper_wrapper_forward.1} parent=1 // loop_pre_header
      _
    $region3: #{whisper_wrapper_forward.1} parent=1 // loop_header
      %s39 = sphi 0, %s43
      %p40 = scmp.ge.s32.totalorder %s39, 4
      %s49 = sphi 0, %s51
      %s52 = sphi 0, %s49
      %s53 = sphi 0, %s52
      %s69 = sphi 0, %s53
      %s73 = sphi 0, %s73
      %s75 = sphi 0, %s73
      %s76 = sphi 0, %s75
      %s90 = sphi 0, %s76
      %s94 = sphi 0, %s94
      %s96 = sphi 0, %s94
      %s97 = sphi 0, %s96
      %s111 = sphi 0, %s97
      %s115 = sphi 0, %s115
      %s117 = sphi 0, %s115
      %s118 = sphi 0, %s117
      %s132 = sphi 0, %s118
      %s136 = sphi 0, %s136
      %s138 = sphi 0, %s136
      %s139 = sphi 0, %s138
      %s153 = sphi 0, %s139
      %s157 = sphi 0, %s157
      %s159 = sphi 0, %s157
      %s160 = sphi 0, %s159
      %s174 = sphi 0, %s160
      %s178 = sphi 0, %s178
      %s180 = sphi 0, %s178
      %s181 = sphi 0, %s180
      %s195 = sphi 0, %s181
      %s199 = sphi 0, %s199
      %s201 = sphi 0, %s199
      %s202 = sphi 0, %s201
      %s216 = sphi 0, %s202
      %s220 = sphi 0, %s220
      %s222 = sphi 0, %s220
      %s223 = sphi 0, %s222
      %s237 = sphi 0, %s223
      %s241 = sphi 0, %s241
      %s243 = sphi 0, %s241
      %s244 = sphi 0, %s243
      %s258 = sphi 0, %s244
      %s262 = sphi 0, %s262
      %s264 = sphi 0, %s262
      %s265 = sphi 0, %s264
      %s279 = sphi 0, %s265
      %s283 = sphi 0, %s283
      %s285 = sphi 0, %s283
      %s286 = sphi 0, %s285
      %s300 = sphi 0, %s286
      %s304 = sphi 0, %s304
      %s306 = sphi 0, %s304
      %s307 = sphi 0, %s306
      %s321 = sphi 0, %s307
      %s325 = sphi 0, %s325
      %s327 = sphi 0, %s325
      %s328 = sphi 0, %s327
      %s342 = sphi 0, %s328
      %s346 = sphi 0, %s346
      %s348 = sphi 0, %s346
      %s349 = sphi 0, %s348
      %s363 = sphi 0, %s349
      %s367 = sphi 0, %s367
      %s369 = sphi 0, %s367
      %s370 = sphi 0, %s369
      %s384 = sphi 0, %s370
      %s388 = sphi 0, %s388
      %s390 = sphi 0, %s388
      %s391 = sphi 0, %s390
      %s405 = sphi 0, %s391
      %s411 = sphi 0, %s413
      %s414 = sphi 0, %s411
      %s415 = sphi 0, %s414
      %s431 = sphi 0, %s415
    $region4: #{whisper_wrapper_forward.1} parent=1 // loop_header_branch
      %42 = sbr.rel (%p40) target = $region8
    $region5: #{whisper_wrapper_forward.1} parent=1 // loop_body
      %s44 = ssub.s32 %s39, 1
      %s45 = ssub.s32 %s39, 2
      %s46 = sadd.s32 %s39, 1
      %s47 = ssub.s32 %s39, %s46
      %p48 = scmp.eq.s32.totalorder %s47, 0
      %s50 = sadd.s32 %s49, 1
      %s51 = scalar_select %p48, %s49, %s50
      %p54 = pneg %p48
      %p55 = scmp.eq.s32.totalorder %s39, 1
      %p56 = por %p54, %p55
      %p57 = scmp.ne.s32.totalorder %s49, %s52
      %p58 = scmp.eq.s32.totalorder %s39, 0
      %p59 = por %p57, %p58
      %p60 = scmp.ne.s32.totalorder %s49, %s52
      %p61 = scmp.eq.s32.totalorder %s44, 1
      %p62 = por %p60, %p61
      %p63 = scmp.ne.s32.totalorder %s52, %s53
      %p64 = scmp.eq.s32.totalorder %s44, 0
      %p65 = por %p63, %p64
      %p66 = scmp.ne.s32.totalorder %s52, %s53
      %p67 = scmp.eq.s32.totalorder %s45, 1
      %p68 = por %p66, %p67
      %p70 = scmp.ne.s32.totalorder %s53, %s69
      %p71 = scmp.eq.s32.totalorder %s45, 0
      %p72 = por %p70, %p71
      %s74 = sadd.s32 %s73, 1
      %p77 = scmp.eq.s32.totalorder %s39, 1
      %p78 = scmp.ne.s32.totalorder %s73, %s75
      %p79 = scmp.eq.s32.totalorder %s39, 0
      %p80 = por %p78, %p79
      %p81 = scmp.ne.s32.totalorder %s73, %s75
      %p82 = scmp.eq.s32.totalorder %s44, 1
      %p83 = por %p81, %p82
      %p84 = scmp.ne.s32.totalorder %s75, %s76
      %p85 = scmp.eq.s32.totalorder %s44, 0
      %p86 = por %p84, %p85
      %p87 = scmp.ne.s32.totalorder %s75, %s76
      %p88 = scmp.eq.s32.totalorder %s45, 1
      %p89 = por %p87, %p88
      %p91 = scmp.ne.s32.totalorder %s76, %s90
      %p92 = scmp.eq.s32.totalorder %s45, 0
      %p93 = por %p91, %p92
      %s95 = sadd.s32 %s94, 1
      %p98 = scmp.eq.s32.totalorder %s39, 1
      %p99 = scmp.ne.s32.totalorder %s94, %s96
      %p100 = scmp.eq.s32.totalorder %s39, 0
      %p101 = por %p99, %p100
      %p102 = scmp.ne.s32.totalorder %s94, %s96
      %p103 = scmp.eq.s32.totalorder %s44, 1
      %p104 = por %p102, %p103
      %p105 = scmp.ne.s32.totalorder %s96, %s97
      %p106 = scmp.eq.s32.totalorder %s44, 0
      %p107 = por %p105, %p106
      %p108 = scmp.ne.s32.totalorder %s96, %s97
      %p109 = scmp.eq.s32.totalorder %s45, 1
      %p110 = por %p108, %p109
      %p112 = scmp.ne.s32.totalorder %s97, %s111
      %p113 = scmp.eq.s32.totalorder %s45, 0
      %p114 = por %p112, %p113
      %s116 = sadd.s32 %s115, 1
      %p119 = scmp.eq.s32.totalorder %s39, 1
      %p120 = scmp.ne.s32.totalorder %s115, %s117
      %p121 = scmp.eq.s32.totalorder %s39, 0
      %p122 = por %p120, %p121
      %p123 = scmp.ne.s32.totalorder %s115, %s117
      %p124 = scmp.eq.s32.totalorder %s44, 1
      %p125 = por %p123, %p124
      %p126 = scmp.ne.s32.totalorder %s117, %s118
      %p127 = scmp.eq.s32.totalorder %s44, 0
      %p128 = por %p126, %p127
      %p129 = scmp.ne.s32.totalorder %s117, %s118
      %p130 = scmp.eq.s32.totalorder %s45, 1
      %p131 = por %p129, %p130
      %p133 = scmp.ne.s32.totalorder %s118, %s132
      %p134 = scmp.eq.s32.totalorder %s45, 0
      %p135 = por %p133, %p134
      %s137 = sadd.s32 %s136, 1
      %p140 = scmp.eq.s32.totalorder %s39, 1
      %p141 = scmp.ne.s32.totalorder %s136, %s138
      %p142 = scmp.eq.s32.totalorder %s39, 0
      %p143 = por %p141, %p142
      %p144 = scmp.ne.s32.totalorder %s136, %s138
      %p145 = scmp.eq.s32.totalorder %s44, 1
      %p146 = por %p144, %p145
      %p147 = scmp.ne.s32.totalorder %s138, %s139
      %p148 = scmp.eq.s32.totalorder %s44, 0
      %p149 = por %p147, %p148
      %p150 = scmp.ne.s32.totalorder %s138, %s139
      %p151 = scmp.eq.s32.totalorder %s45, 1
      %p152 = por %p150, %p151
      %p154 = scmp.ne.s32.totalorder %s139, %s153
      %p155 = scmp.eq.s32.totalorder %s45, 0
      %p156 = por %p154, %p155
      %s158 = sadd.s32 %s157, 1
      %p161 = scmp.eq.s32.totalorder %s39, 1
      %p162 = scmp.ne.s32.totalorder %s157, %s159
      %p163 = scmp.eq.s32.totalorder %s39, 0
      %p164 = por %p162, %p163
      %p165 = scmp.ne.s32.totalorder %s157, %s159
      %p166 = scmp.eq.s32.totalorder %s44, 1
      %p167 = por %p165, %p166
      %p168 = scmp.ne.s32.totalorder %s159, %s160
      %p169 = scmp.eq.s32.totalorder %s44, 0
      %p170 = por %p168, %p169
      %p171 = scmp.ne.s32.totalorder %s159, %s160
      %p172 = scmp.eq.s32.totalorder %s45, 1
      %p173 = por %p171, %p172
      %p175 = scmp.ne.s32.totalorder %s160, %s174
      %p176 = scmp.eq.s32.totalorder %s45, 0
      %p177 = por %p175, %p176
      %s179 = sadd.s32 %s178, 1
      %p182 = scmp.eq.s32.totalorder %s39, 1
      %p183 = scmp.ne.s32.totalorder %s178, %s180
      %p184 = scmp.eq.s32.totalorder %s39, 0
      %p185 = por %p183, %p184
      %p186 = scmp.ne.s32.totalorder %s178, %s180
      %p187 = scmp.eq.s32.totalorder %s44, 1
      %p188 = por %p186, %p187
      %p189 = scmp.ne.s32.totalorder %s180, %s181
      %p190 = scmp.eq.s32.totalorder %s44, 0
      %p191 = por %p189, %p190
      %p192 = scmp.ne.s32.totalorder %s180, %s181
      %p193 = scmp.eq.s32.totalorder %s45, 1
      %p194 = por %p192, %p193
      %p196 = scmp.ne.s32.totalorder %s181, %s195
      %p197 = scmp.eq.s32.totalorder %s45, 0
      %p198 = por %p196, %p197
      %s200 = sadd.s32 %s199, 1
      %p203 = scmp.eq.s32.totalorder %s39, 1
      %p204 = scmp.ne.s32.totalorder %s199, %s201
      %p205 = scmp.eq.s32.totalorder %s39, 0
      %p206 = por %p204, %p205
      %p207 = scmp.ne.s32.totalorder %s199, %s201
      %p208 = scmp.eq.s32.totalorder %s44, 1
      %p209 = por %p207, %p208
      %p210 = scmp.ne.s32.totalorder %s201, %s202
      %p211 = scmp.eq.s32.totalorder %s44, 0
      %p212 = por %p210, %p211
      %p213 = scmp.ne.s32.totalorder %s201, %s202
      %p214 = scmp.eq.s32.totalorder %s45, 1
      %p215 = por %p213, %p214
      %p217 = scmp.ne.s32.totalorder %s202, %s216
      %p218 = scmp.eq.s32.totalorder %s45, 0
      %p219 = por %p217, %p218
      %s221 = sadd.s32 %s220, 1
      %p224 = scmp.eq.s32.totalorder %s39, 1
      %p225 = scmp.ne.s32.totalorder %s220, %s222
      %p226 = scmp.eq.s32.totalorder %s39, 0
      %p227 = por %p225, %p226
      %p228 = scmp.ne.s32.totalorder %s220, %s222
      %p229 = scmp.eq.s32.totalorder %s44, 1
      %p230 = por %p228, %p229
      %p231 = scmp.ne.s32.totalorder %s222, %s223
      %p232 = scmp.eq.s32.totalorder %s44, 0
      %p233 = por %p231, %p232
      %p234 = scmp.ne.s32.totalorder %s222, %s223
      %p235 = scmp.eq.s32.totalorder %s45, 1
      %p236 = por %p234, %p235
      %p238 = scmp.ne.s32.totalorder %s223, %s237
      %p239 = scmp.eq.s32.totalorder %s45, 0
      %p240 = por %p238, %p239
      %s242 = sadd.s32 %s241, 1
      %p245 = scmp.eq.s32.totalorder %s39, 1
      %p246 = scmp.ne.s32.totalorder %s241, %s243
      %p247 = scmp.eq.s32.totalorder %s39, 0
      %p248 = por %p246, %p247
      %p249 = scmp.ne.s32.totalorder %s241, %s243
      %p250 = scmp.eq.s32.totalorder %s44, 1
      %p251 = por %p249, %p250
      %p252 = scmp.ne.s32.totalorder %s243, %s244
      %p253 = scmp.eq.s32.totalorder %s44, 0
      %p254 = por %p252, %p253
      %p255 = scmp.ne.s32.totalorder %s243, %s244
      %p256 = scmp.eq.s32.totalorder %s45, 1
      %p257 = por %p255, %p256
      %p259 = scmp.ne.s32.totalorder %s244, %s258
      %p260 = scmp.eq.s32.totalorder %s45, 0
      %p261 = por %p259, %p260
      %s263 = sadd.s32 %s262, 1
      %p266 = scmp.eq.s32.totalorder %s39, 1
      %p267 = scmp.ne.s32.totalorder %s262, %s264
      %p268 = scmp.eq.s32.totalorder %s39, 0
      %p269 = por %p267, %p268
      %p270 = scmp.ne.s32.totalorder %s262, %s264
      %p271 = scmp.eq.s32.totalorder %s44, 1
      %p272 = por %p270, %p271
      %p273 = scmp.ne.s32.totalorder %s264, %s265
      %p274 = scmp.eq.s32.totalorder %s44, 0
      %p275 = por %p273, %p274
      %p276 = scmp.ne.s32.totalorder %s264, %s265
      %p277 = scmp.eq.s32.totalorder %s45, 1
      %p278 = por %p276, %p277
      %p280 = scmp.ne.s32.totalorder %s265, %s279
      %p281 = scmp.eq.s32.totalorder %s45, 0
      %p282 = por %p280, %p281
      %s284 = sadd.s32 %s283, 1
      %p287 = scmp.eq.s32.totalorder %s39, 1
      %p288 = scmp.ne.s32.totalorder %s283, %s285
      %p289 = scmp.eq.s32.totalorder %s39, 0
      %p290 = por %p288, %p289
      %p291 = scmp.ne.s32.totalorder %s283, %s285
      %p292 = scmp.eq.s32.totalorder %s44, 1
      %p293 = por %p291, %p292
      %p294 = scmp.ne.s32.totalorder %s285, %s286
      %p295 = scmp.eq.s32.totalorder %s44, 0
      %p296 = por %p294, %p295
      %p297 = scmp.ne.s32.totalorder %s285, %s286
      %p298 = scmp.eq.s32.totalorder %s45, 1
      %p299 = por %p297, %p298
      %p301 = scmp.ne.s32.totalorder %s286, %s300
      %p302 = scmp.eq.s32.totalorder %s45, 0
      %p303 = por %p301, %p302
      %s305 = sadd.s32 %s304, 1
      %p308 = scmp.eq.s32.totalorder %s39, 1
      %p309 = scmp.ne.s32.totalorder %s304, %s306
      %p310 = scmp.eq.s32.totalorder %s39, 0
      %p311 = por %p309, %p310
      %p312 = scmp.ne.s32.totalorder %s304, %s306
      %p313 = scmp.eq.s32.totalorder %s44, 1
      %p314 = por %p312, %p313
      %p315 = scmp.ne.s32.totalorder %s306, %s307
      %p316 = scmp.eq.s32.totalorder %s44, 0
      %p317 = por %p315, %p316
      %p318 = scmp.ne.s32.totalorder %s306, %s307
      %p319 = scmp.eq.s32.totalorder %s45, 1
      %p320 = por %p318, %p319
      %p322 = scmp.ne.s32.totalorder %s307, %s321
      %p323 = scmp.eq.s32.totalorder %s45, 0
      %p324 = por %p322, %p323
      %s326 = sadd.s32 %s325, 1
      %p329 = scmp.eq.s32.totalorder %s39, 1
      %p330 = scmp.ne.s32.totalorder %s325, %s327
      %p331 = scmp.eq.s32.totalorder %s39, 0
      %p332 = por %p330, %p331
      %p333 = scmp.ne.s32.totalorder %s325, %s327
      %p334 = scmp.eq.s32.totalorder %s44, 1
      %p335 = por %p333, %p334
      %p336 = scmp.ne.s32.totalorder %s327, %s328
      %p337 = scmp.eq.s32.totalorder %s44, 0
      %p338 = por %p336, %p337
      %p339 = scmp.ne.s32.totalorder %s327, %s328
      %p340 = scmp.eq.s32.totalorder %s45, 1
      %p341 = por %p339, %p340
      %p343 = scmp.ne.s32.totalorder %s328, %s342
      %p344 = scmp.eq.s32.totalorder %s45, 0
      %p345 = por %p343, %p344
      %s347 = sadd.s32 %s346, 1
      %p350 = scmp.eq.s32.totalorder %s39, 1
      %p351 = scmp.ne.s32.totalorder %s346, %s348
      %p352 = scmp.eq.s32.totalorder %s39, 0
      %p353 = por %p351, %p352
      %p354 = scmp.ne.s32.totalorder %s346, %s348
      %p355 = scmp.eq.s32.totalorder %s44, 1
      %p356 = por %p354, %p355
      %p357 = scmp.ne.s32.totalorder %s348, %s349
      %p358 = scmp.eq.s32.totalorder %s44, 0
      %p359 = por %p357, %p358
      %p360 = scmp.ne.s32.totalorder %s348, %s349
      %p361 = scmp.eq.s32.totalorder %s45, 1
      %p362 = por %p360, %p361
      %p364 = scmp.ne.s32.totalorder %s349, %s363
      %p365 = scmp.eq.s32.totalorder %s45, 0
      %p366 = por %p364, %p365
      %s368 = sadd.s32 %s367, 1
      %p371 = scmp.eq.s32.totalorder %s39, 1
      %p372 = scmp.ne.s32.totalorder %s367, %s369
      %p373 = scmp.eq.s32.totalorder %s39, 0
      %p374 = por %p372, %p373
      %p375 = scmp.ne.s32.totalorder %s367, %s369
      %p376 = scmp.eq.s32.totalorder %s44, 1
      %p377 = por %p375, %p376
      %p378 = scmp.ne.s32.totalorder %s369, %s370
      %p379 = scmp.eq.s32.totalorder %s44, 0
      %p380 = por %p378, %p379
      %p381 = scmp.ne.s32.totalorder %s369, %s370
      %p382 = scmp.eq.s32.totalorder %s45, 1
      %p383 = por %p381, %p382
      %p385 = scmp.ne.s32.totalorder %s370, %s384
      %p386 = scmp.eq.s32.totalorder %s45, 0
      %p387 = por %p385, %p386
      %s389 = sadd.s32 %s388, 1
      %p392 = scmp.eq.s32.totalorder %s39, 1
      %p393 = scmp.ne.s32.totalorder %s388, %s390
      %p394 = scmp.eq.s32.totalorder %s39, 0
      %p395 = por %p393, %p394
      %p396 = scmp.ne.s32.totalorder %s388, %s390
      %p397 = scmp.eq.s32.totalorder %s44, 1
      %p398 = por %p396, %p397
      %p399 = scmp.ne.s32.totalorder %s390, %s391
      %p400 = scmp.eq.s32.totalorder %s44, 0
      %p401 = por %p399, %p400
      %p402 = scmp.ne.s32.totalorder %s390, %s391
      %p403 = scmp.eq.s32.totalorder %s45, 1
      %p404 = por %p402, %p403
      %p406 = scmp.ne.s32.totalorder %s391, %s405
      %p407 = scmp.eq.s32.totalorder %s45, 0
      %p408 = por %p406, %p407
      %s409 = ssub.s32 %s39, %s46
      %p410 = scmp.eq.s32.totalorder %s409, 0
      %s412 = sadd.s32 %s411, 1
      %s413 = scalar_select %p410, %s411, %s412
      %p416 = pneg %p410
      %p417 = scmp.eq.s32.totalorder %s39, 1
      %p418 = por %p416, %p417
      %p419 = scmp.ne.s32.totalorder %s411, %s414
      %p420 = scmp.eq.s32.totalorder %s39, 0
      %p421 = por %p419, %p420
      %p422 = scmp.ne.s32.totalorder %s411, %s414
      %p423 = scmp.eq.s32.totalorder %s44, 1
      %p424 = por %p422, %p423
      %p425 = scmp.ne.s32.totalorder %s414, %s415
      %p426 = scmp.eq.s32.totalorder %s44, 0
      %p427 = por %p425, %p426
      %p428 = scmp.ne.s32.totalorder %s414, %s415
      %p429 = scmp.eq.s32.totalorder %s45, 1
      %p430 = por %p428, %p429
      %p432 = scmp.ne.s32.totalorder %s415, %s431
      %p433 = scmp.eq.s32.totalorder %s45, 0
      %p434 = por %p432, %p433
      %p435 = scmp.le.s32.totalorder 1, %s39
      %p436 = scmp.lt.s32.totalorder %s39, 3
      %p437 = pnand %p435, %p436
      %p438 = pneg %p437
      // Predicated region
      $region9: #{whisper_wrapper_forward.1} parent=5 // pred_check
        _
      $region10: #{whisper_wrapper_forward.1} parent=5 // pred_check_branch
        %440 = sbr.rel (%p437) target = $region12
      $region11: #{whisper_wrapper_forward.1} parent=5 // pred_region
        %s441 = ssub.s32 %s39, 1
        // Predicated region
        $region13: #{whisper_wrapper_forward.1} parent=11 // pred_check
          %p442 = pneg %p86
        $region14: #{whisper_wrapper_forward.1} parent=11 // pred_check_branch
          %444 = sbr.rel (%p442) target = $region16
        $region15: #{whisper_wrapper_forward.1} parent=11 // pred_region
          _
        $region16: #{whisper_wrapper_forward.1} parent=11 // pred_fallthru
          _
        // Predicated region
        $region17: #{whisper_wrapper_forward.1} parent=11 // pred_check
          %p445 = pneg %p107
        $region18: #{whisper_wrapper_forward.1} parent=11 // pred_check_branch
          %447 = sbr.rel (%p445) target = $region20
        $region19: #{whisper_wrapper_forward.1} parent=11 // pred_region
          _
        $region20: #{whisper_wrapper_forward.1} parent=11 // pred_fallthru
          _
        // Predicated region
        $region21: #{whisper_wrapper_forward.1} parent=11 // pred_check
          %p448 = pneg %p128
        $region22: #{whisper_wrapper_forward.1} parent=11 // pred_check_branch
          %450 = sbr.rel (%p448) target = $region24
        $region23: #{whisper_wrapper_forward.1} parent=11 // pred_region
          _
        $region24: #{whisper_wrapper_forward.1} parent=11 // pred_fallthru
          _
        // Predicated region
        $region25: #{whisper_wrapper_forward.1} parent=11 // pred_check
          %p451 = pneg %p149
        $region26: #{whisper_wrapper_forward.1} parent=11 // pred_check_branch
          %453 = sbr.rel (%p451) target = $region28
        $region27: #{whisper_wrapper_forward.1} parent=11 // pred_region
          _
        $region28: #{whisper_wrapper_forward.1} parent=11 // pred_fallthru
          _
        // Predicated region
        $region29: #{whisper_wrapper_forward.1} parent=11 // pred_check
          %p454 = pneg %p170
        $region30: #{whisper_wrapper_forward.1} parent=11 // pred_check_branch
          %456 = sbr.rel (%p454) target = $region32
        $region31: #{whisper_wrapper_forward.1} parent=11 // pred_region
          _
        $region32: #{whisper_wrapper_forward.1} parent=11 // pred_fallthru
          _
        // Predicated region
        $region33: #{whisper_wrapper_forward.1} parent=11 // pred_check
          %p457 = pneg %p191
        $region34: #{whisper_wrapper_forward.1} parent=11 // pred_check_branch
          %459 = sbr.rel (%p457) target = $region36
        $region35: #{whisper_wrapper_forward.1} parent=11 // pred_region
          %s461 = ssub.s32 3072, 3072
          %462 = vsyncadd [#allocation5], %s461
          %s463 = sshll.u32 [#allocation4], 4
          %s464 = int_to_ptr.vmem [resolvable:$true] %s463
          %469 = dma.hbm_to_vmem [thread:$0]  %s7, 3072, %s464, [#allocation5], 128, 128, 8
        $region36: #{whisper_wrapper_forward.1} parent=11 // pred_fallthru
          _
        // Predicated region
        $region37: #{whisper_wrapper_forward.1} parent=11 // pred_check
          %p470 = pneg %p212
        $region38: #{whisper_wrapper_forward.1} parent=11 // pred_check_branch
          %472 = sbr.rel (%p470) target = $region40
        $region39: #{whisper_wrapper_forward.1} parent=11 // pred_region
          %s474 = ssub.s32 384, 384
          %475 = vsyncadd [#allocation8], %s474
          %s476 = sshll.u32 [#allocation7], 4
          %s477 = int_to_ptr.vmem [resolvable:$true] %s476
          %482 = dma.hbm_to_vmem [thread:$0]  %s8, 384, %s477, [#allocation8], 128, 128, 8
        $region40: #{whisper_wrapper_forward.1} parent=11 // pred_fallthru
          _
        // Predicated region
        $region41: #{whisper_wrapper_forward.1} parent=11 // pred_check
          %p483 = pneg %p233
        $region42: #{whisper_wrapper_forward.1} parent=11 // pred_check_branch
          %485 = sbr.rel (%p483) target = $region44
        $region43: #{whisper_wrapper_forward.1} parent=11 // pred_region
          %s487 = ssub.s32 128, 128
          %488 = vsyncadd [#allocation8], %s487
          %s489 = sshll.u32 [#allocation9], 4
          %s490 = int_to_ptr.vmem [resolvable:$true] %s489
          %495 = dma.hbm_to_vmem [thread:$0]  %s9, 128, %s490, [#allocation8], 64, 64, 4
        $region44: #{whisper_wrapper_forward.1} parent=11 // pred_fallthru
          _
        // Predicated region
        $region45: #{whisper_wrapper_forward.1} parent=11 // pred_check
          %p496 = pneg %p254
        $region46: #{whisper_wrapper_forward.1} parent=11 // pred_check_branch
          %498 = sbr.rel (%p496) target = $region48
        $region47: #{whisper_wrapper_forward.1} parent=11 // pred_region
          %s500 = ssub.s32 4096, 4096
          %501 = vsyncadd [#allocation11], %s500
          %s502 = sshll.u32 [#allocation10], 4
          %s503 = int_to_ptr.vmem [resolvable:$true] %s502
          %508 = dma.hbm_to_vmem [thread:$0]  %s10, 4096, %s503, [#allocation11], 256, 256, 16
        $region48: #{whisper_wrapper_forward.1} parent=11 // pred_fallthru
          _
        // Predicated region
        $region49: #{whisper_wrapper_forward.1} parent=11 // pred_check
          %p509 = pneg %p275
        $region50: #{whisper_wrapper_forward.1} parent=11 // pred_check_branch
          %511 = sbr.rel (%p509) target = $region52
        $region51: #{whisper_wrapper_forward.1} parent=11 // pred_region
          %s513 = ssub.s32 64, 64
          %514 = vsyncadd [#allocation11], %s513
          %s515 = sshll.u32 [#allocation12], 4
          %s516 = int_to_ptr.vmem [resolvable:$true] %s515
          %521 = dma.hbm_to_vmem [thread:$0]  %s11, 64, %s516, [#allocation11], 32, 32, 2
        $region52: #{whisper_wrapper_forward.1} parent=11 // pred_fallthru
          _
        // Predicated region
        $region53: #{whisper_wrapper_forward.1} parent=11 // pred_check
          %p522 = pneg %p296
        $region54: #{whisper_wrapper_forward.1} parent=11 // pred_check_branch
          %524 = sbr.rel (%p522) target = $region56
        $region55: #{whisper_wrapper_forward.1} parent=11 // pred_region
          %s526 = ssub.s32 2048, 2048
          %527 = vsyncadd [#allocation14], %s526
          %s528 = sshll.u32 [#allocation13], 4
          %s529 = int_to_ptr.vmem [resolvable:$true] %s528
          %534 = dma.hbm_to_vmem [thread:$0]  %s12, 2048, %s529, [#allocation14], 128, 128, 8
        $region56: #{whisper_wrapper_forward.1} parent=11 // pred_fallthru
          _
        // Predicated region
        $region57: #{whisper_wrapper_forward.1} parent=11 // pred_check
          %p535 = pneg %p317
        $region58: #{whisper_wrapper_forward.1} parent=11 // pred_check_branch
          %537 = sbr.rel (%p535) target = $region60
        $region59: #{whisper_wrapper_forward.1} parent=11 // pred_region
          %s539 = ssub.s32 64, 64
          %540 = vsyncadd [#allocation14], %s539
          %s541 = sshll.u32 [#allocation15], 4
          %s542 = int_to_ptr.vmem [resolvable:$true] %s541
          %547 = dma.hbm_to_vmem [thread:$0]  %s13, 64, %s542, [#allocation14], 32, 32, 2
        $region60: #{whisper_wrapper_forward.1} parent=11 // pred_fallthru
          _
        // Predicated region
        $region61: #{whisper_wrapper_forward.1} parent=11 // pred_check
          %p548 = pneg %p338
        $region62: #{whisper_wrapper_forward.1} parent=11 // pred_check_branch
          %550 = sbr.rel (%p548) target = $region64
        $region63: #{whisper_wrapper_forward.1} parent=11 // pred_region
          %s552 = ssub.s32 4096, 4096
          %553 = vsyncadd [#allocation17], %s552
          %s554 = sshll.u32 [#allocation16], 4
          %s555 = int_to_ptr.vmem [resolvable:$true] %s554
          %560 = dma.hbm_to_vmem [thread:$0]  %s14, 4096, %s555, [#allocation17], 256, 256, 16
        $region64: #{whisper_wrapper_forward.1} parent=11 // pred_fallthru
          _
        // Predicated region
        $region65: #{whisper_wrapper_forward.1} parent=11 // pred_check
          %p561 = pneg %p359
        $region66: #{whisper_wrapper_forward.1} parent=11 // pred_check_branch
          %563 = sbr.rel (%p561) target = $region68
        $region67: #{whisper_wrapper_forward.1} parent=11 // pred_region
          %s565 = ssub.s32 64, 64
          %566 = vsyncadd [#allocation17], %s565
          %s567 = sshll.u32 [#allocation18], 4
          %s568 = int_to_ptr.vmem [resolvable:$true] %s567
          %573 = dma.hbm_to_vmem [thread:$0]  %s15, 64, %s568, [#allocation17], 32, 32, 2
        $region68: #{whisper_wrapper_forward.1} parent=11 // pred_fallthru
          _
        // Predicated region
        $region69: #{whisper_wrapper_forward.1} parent=11 // pred_check
          %p574 = pneg %p380
        $region70: #{whisper_wrapper_forward.1} parent=11 // pred_check_branch
          %576 = sbr.rel (%p574) target = $region72
        $region71: #{whisper_wrapper_forward.1} parent=11 // pred_region
          _
        $region72: #{whisper_wrapper_forward.1} parent=11 // pred_fallthru
          _
        // Predicated region
        $region73: #{whisper_wrapper_forward.1} parent=11 // pred_check
          %p577 = pneg %p401
        $region74: #{whisper_wrapper_forward.1} parent=11 // pred_check_branch
          %579 = sbr.rel (%p577) target = $region76
        $region75: #{whisper_wrapper_forward.1} parent=11 // pred_region
          %s581 = ssub.s32 32, 32
          %582 = vsyncadd [#allocation20], %s581
          %s584 = sshll.u32 [#allocation19], 4
          %s585 = int_to_ptr.vmem [resolvable:$true] %s584
          %587 = dma.hbm_to_vmem [thread:$0]  %s17, 32, %s585, [#allocation20]
        $region76: #{whisper_wrapper_forward.1} parent=11 // pred_fallthru
          _
      $region12: #{whisper_wrapper_forward.1} parent=5 // pred_fallthru
        _
      %p588 = scmp.lt.s32.totalorder %s39, 2
      // Predicated region
      $region77: #{whisper_wrapper_forward.1} parent=5 // pred_check
        %p589 = pneg %p588
      $region78: #{whisper_wrapper_forward.1} parent=5 // pred_check_branch
        %591 = sbr.rel (%p589) target = $region80
      $region79: #{whisper_wrapper_forward.1} parent=5 // pred_region
        // Predicated region
        $region81: #{whisper_wrapper_forward.1} parent=79 // pred_check
          %p592 = pneg %p59
        $region82: #{whisper_wrapper_forward.1} parent=79 // pred_check_branch
          %594 = sbr.rel (%p592) target = $region84
        $region83: #{whisper_wrapper_forward.1} parent=79 // pred_region
          %p595 = scmp.lt.s32.totalorder %s39, 1
          %s596 = scalar_select %p595, %s39, 1
          %s597 = smul.addr %s596, 12
          %s598 = smul.addr %s597, 8
          %s599 = scalar_lea.vmem %s1, %s598
        $region84: #{whisper_wrapper_forward.1} parent=79 // pred_fallthru
          _
      $region80: #{whisper_wrapper_forward.1} parent=5 // pred_fallthru
        _
      %p600 = scmp.le.s32.totalorder 1, %s39
      %p601 = scmp.lt.s32.totalorder %s39, 3
      %p602 = pnand %p600, %p601
      %p603 = pneg %p602
      // Predicated region
      $region85: #{whisper_wrapper_forward.1} parent=5 // pred_check
        _
      $region86: #{whisper_wrapper_forward.1} parent=5 // pred_check_branch
        %605 = sbr.rel (%p602) target = $region88
      $region87: #{whisper_wrapper_forward.1} parent=5 // pred_region
        %s606 = ssub.s32 %s39, 1
        // Predicated region
        $region89: #{whisper_wrapper_forward.1} parent=87 // pred_check
          %p607 = pneg %p191
        $region90: #{whisper_wrapper_forward.1} parent=87 // pred_check_branch
          %609 = sbr.rel (%p607) target = $region92
        $region91: #{whisper_wrapper_forward.1} parent=87 // pred_region
          %610 = dma.done [#allocation5], 3072
        $region92: #{whisper_wrapper_forward.1} parent=87 // pred_fallthru
          _
        // Predicated region
        $region93: #{whisper_wrapper_forward.1} parent=87 // pred_check
          %p611 = pneg %p212
        $region94: #{whisper_wrapper_forward.1} parent=87 // pred_check_branch
          %613 = sbr.rel (%p611) target = $region96
        $region95: #{whisper_wrapper_forward.1} parent=87 // pred_region
          %614 = dma.done [#allocation8], 384
        $region96: #{whisper_wrapper_forward.1} parent=87 // pred_fallthru
          _
        // Predicated region
        $region97: #{whisper_wrapper_forward.1} parent=87 // pred_check
          %p615 = pneg %p233
        $region98: #{whisper_wrapper_forward.1} parent=87 // pred_check_branch
          %617 = sbr.rel (%p615) target = $region100
        $region99: #{whisper_wrapper_forward.1} parent=87 // pred_region
          %618 = dma.done [#allocation8], 128
        $region100: #{whisper_wrapper_forward.1} parent=87 // pred_fallthru
          _
        // Predicated region
        $region101: #{whisper_wrapper_forward.1} parent=87 // pred_check
          %p619 = pneg %p254
        $region102: #{whisper_wrapper_forward.1} parent=87 // pred_check_branch
          %621 = sbr.rel (%p619) target = $region104
        $region103: #{whisper_wrapper_forward.1} parent=87 // pred_region
          %622 = dma.done [#allocation11], 4096
        $region104: #{whisper_wrapper_forward.1} parent=87 // pred_fallthru
          _
        // Predicated region
        $region105: #{whisper_wrapper_forward.1} parent=87 // pred_check
          %p623 = pneg %p275
        $region106: #{whisper_wrapper_forward.1} parent=87 // pred_check_branch
          %625 = sbr.rel (%p623) target = $region108
        $region107: #{whisper_wrapper_forward.1} parent=87 // pred_region
          %626 = dma.done [#allocation11], 64
        $region108: #{whisper_wrapper_forward.1} parent=87 // pred_fallthru
          _
        // Predicated region
        $region109: #{whisper_wrapper_forward.1} parent=87 // pred_check
          %p627 = pneg %p296
        $region110: #{whisper_wrapper_forward.1} parent=87 // pred_check_branch
          %629 = sbr.rel (%p627) target = $region112
        $region111: #{whisper_wrapper_forward.1} parent=87 // pred_region
          %630 = dma.done [#allocation14], 2048
        $region112: #{whisper_wrapper_forward.1} parent=87 // pred_fallthru
          _
        // Predicated region
        $region113: #{whisper_wrapper_forward.1} parent=87 // pred_check
          %p631 = pneg %p317
        $region114: #{whisper_wrapper_forward.1} parent=87 // pred_check_branch
          %633 = sbr.rel (%p631) target = $region116
        $region115: #{whisper_wrapper_forward.1} parent=87 // pred_region
          %634 = dma.done [#allocation14], 64
        $region116: #{whisper_wrapper_forward.1} parent=87 // pred_fallthru
          _
        // Predicated region
        $region117: #{whisper_wrapper_forward.1} parent=87 // pred_check
          %p635 = pneg %p338
        $region118: #{whisper_wrapper_forward.1} parent=87 // pred_check_branch
          %637 = sbr.rel (%p635) target = $region120
        $region119: #{whisper_wrapper_forward.1} parent=87 // pred_region
          %638 = dma.done [#allocation17], 4096
        $region120: #{whisper_wrapper_forward.1} parent=87 // pred_fallthru
          _
        // Predicated region
        $region121: #{whisper_wrapper_forward.1} parent=87 // pred_check
          %p639 = pneg %p359
        $region122: #{whisper_wrapper_forward.1} parent=87 // pred_check_branch
          %641 = sbr.rel (%p639) target = $region124
        $region123: #{whisper_wrapper_forward.1} parent=87 // pred_region
          %642 = dma.done [#allocation17], 64
        $region124: #{whisper_wrapper_forward.1} parent=87 // pred_fallthru
          _
        // Predicated region
        $region125: #{whisper_wrapper_forward.1} parent=87 // pred_check
          %p643 = pneg %p401
        $region126: #{whisper_wrapper_forward.1} parent=87 // pred_check_branch
          %645 = sbr.rel (%p643) target = $region128
        $region127: #{whisper_wrapper_forward.1} parent=87 // pred_region
          %646 = dma.done [#allocation20], 32
        $region128: #{whisper_wrapper_forward.1} parent=87 // pred_fallthru
          _
        %p647 = scmp.lt.s32.totalorder %s44, 1
        %s648 = scalar_select %p647, %s44, 1
        %s649 = smul.addr %s648, 12
        %s650 = smul.addr %s649, 8
        %s651 = scalar_lea.vmem %s1, %s650
        %p652 = pneg %p65
        %p653 = pneg %p62
        %p654 = pneg %p86
        %p655 = pneg %p83
        %p656 = pneg %p107
        %p657 = pneg %p104
        %p658 = pneg %p128
        %p659 = pneg %p125
        %p660 = pneg %p149
        %p661 = pneg %p146
        %p662 = pneg %p170
        %p663 = pneg %p167
        %p664 = pneg %p191
        %p665 = pneg %p188
        %p666 = pneg %p212
        %p667 = pneg %p209
        %p668 = pneg %p233
        %p669 = pneg %p230
        %p670 = pneg %p254
        %p671 = pneg %p251
        %p672 = pneg %p275
        %p673 = pneg %p272
        %p674 = pneg %p296
        %p675 = pneg %p293
        %p676 = pneg %p317
        %p677 = pneg %p314
        %p678 = pneg %p338
        %p679 = pneg %p335
        %p680 = pneg %p359
        %p681 = pneg %p356
        %p682 = pneg %p380
        %p683 = pneg %p377
        %p684 = pneg %p401
        %p685 = pneg %p398
        %p686 = pneg %p427
        %p687 = pneg %p424
        %s688 = sand.u32 %s414, 1
        %s689 = scalar_lea.sflag [#allocation6], %s688
        %s690 = sand.u32 %s414, 1
        %s691 = scalar_lea.vmem [#allocation21], %s690
        %p692 = scmp.lt.s32.totalorder %s44, 1
        %s693 = scalar_select %p692, %s44, 1
        %s694 = smul.addr %s693, 12
        %s695 = smul.addr %s694, 8
        %s696 = scalar_lea.vmem %s1, %s695
        %v697 = vld [vmem:[%s696] sm:$0xff]
        %v698 = vld [vmem:[%s696 + $0x8] sm:$0xff]
        %v699 = vld [vmem:[%s696 + $0x10] sm:$0xff]
        %v700 = vld [vmem:[%s696 + $0x18] sm:$0xff]
        %v701 = vld [vmem:[%s696 + $0x20] sm:$0xff]
        %v702 = vld [vmem:[%s696 + $0x28] sm:$0xff]
        %v703 = vld [vmem:[%s696 + $0x30] sm:$0xff]
        %v704 = vld [vmem:[%s696 + $0x38] sm:$0xff]
        %v705 = vld [vmem:[%s696 + $0x40] sm:$0xff]
        %v706 = vld [vmem:[%s696 + $0x48] sm:$0xff]
        %v707 = vld [vmem:[%s696 + $0x50] sm:$0xff]
        %v708 = vld [vmem:[%s696 + $0x58] sm:$0xff]
        %v709 = vld [vmem:[%s2] sm:$0xff]
        %v710 = vld [vmem:[%s2 + $0x8] sm:$0xff]
        %v711 = vld [vmem:[%s2 + $0x10] sm:$0xff]
        %v712 = vld [vmem:[%s2 + $0x18] sm:$0xff]
        %v713 = vld [vmem:[%s2 + $0x20] sm:$0xff]
        %v714 = vld [vmem:[%s2 + $0x28] sm:$0xff]
        %v715 = vld [vmem:[%s2 + $0x30] sm:$0xff]
        %v716 = vld [vmem:[%s2 + $0x38] sm:$0xff]
        %v717 = vld [vmem:[%s2 + $0x40] sm:$0xff]
        %v718 = vld [vmem:[%s2 + $0x48] sm:$0xff]
        %v719 = vld [vmem:[%s2 + $0x50] sm:$0xff]
        %v720 = vld [vmem:[%s2 + $0x58] sm:$0xff]
        %v721 = vld [vmem:[%s2 + $0x60] sm:$0xff]
        %v722 = vld [vmem:[%s2 + $0x68] sm:$0xff]
        %v723 = vld [vmem:[%s2 + $0x70] sm:$0xff]
        %v724 = vld [vmem:[%s2 + $0x78] sm:$0xff]
        %v725 = vld [vmem:[%s2 + $0x80] sm:$0xff]
        %v726 = vld [vmem:[%s2 + $0x88] sm:$0xff]
        %v727 = vld [vmem:[%s2 + $0x90] sm:$0xff]
        %v728 = vld [vmem:[%s2 + $0x98] sm:$0xff]
        %v729 = vld [vmem:[%s2 + $0xa0] sm:$0xff]
        %v730 = vld [vmem:[%s2 + $0xa8] sm:$0xff]
        %v731 = vld [vmem:[%s2 + $0xb0] sm:$0xff]
        %v732 = vld [vmem:[%s2 + $0xb8] sm:$0xff]
        %v733 = vld [vmem:[%s2 + $0xc0] sm:$0xff]
        %v734 = vld [vmem:[%s2 + $0xc8] sm:$0xff]
        %v735 = vld [vmem:[%s2 + $0xd0] sm:$0xff]
        %v736 = vld [vmem:[%s2 + $0xd8] sm:$0xff]
        %v737 = vld [vmem:[%s2 + $0xe0] sm:$0xff]
        %v738 = vld [vmem:[%s2 + $0xe8] sm:$0xff]
        %v739 = vld [vmem:[%s2 + $0xf0] sm:$0xff]
        %v740 = vld [vmem:[%s2 + $0xf8] sm:$0xff]
        %v741 = vld [vmem:[%s2 + $0x100] sm:$0xff]
        %v742 = vld [vmem:[%s2 + $0x108] sm:$0xff]
        %v743 = vld [vmem:[%s2 + $0x110] sm:$0xff]
        %v744 = vld [vmem:[%s2 + $0x118] sm:$0xff]
        %v745 = vld [vmem:[%s2 + $0x120] sm:$0xff]
        %v746 = vld [vmem:[%s2 + $0x128] sm:$0xff]
        %v747 = vld [vmem:[%s2 + $0x130] sm:$0xff]
        %v748 = vld [vmem:[%s2 + $0x138] sm:$0xff]
        %v749 = vld [vmem:[%s2 + $0x140] sm:$0xff]
        %v750 = vld [vmem:[%s2 + $0x148] sm:$0xff]
        %v751 = vld [vmem:[%s2 + $0x150] sm:$0xff]
        %v752 = vld [vmem:[%s2 + $0x158] sm:$0xff]
        %v753 = vld [vmem:[%s2 + $0x160] sm:$0xff]
        %v754 = vld [vmem:[%s2 + $0x168] sm:$0xff]
        %v755 = vld [vmem:[%s2 + $0x170] sm:$0xff]
        %v756 = vld [vmem:[%s2 + $0x178] sm:$0xff]
        %v757 = vld [vmem:[%s2 + $0x180] sm:$0xff]
        %v758 = vld [vmem:[%s2 + $0x188] sm:$0xff]
        %v759 = vld [vmem:[%s2 + $0x190] sm:$0xff]
        %v760 = vld [vmem:[%s2 + $0x198] sm:$0xff]
        %v761 = vld [vmem:[%s2 + $0x1a0] sm:$0xff]
        %v762 = vld [vmem:[%s2 + $0x1a8] sm:$0xff]
        %v763 = vld [vmem:[%s2 + $0x1b0] sm:$0xff]
        %v764 = vld [vmem:[%s2 + $0x1b8] sm:$0xff]
        %v765 = vld [vmem:[%s2 + $0x1c0] sm:$0xff]
        %v766 = vld [vmem:[%s2 + $0x1c8] sm:$0xff]
        %v767 = vld [vmem:[%s2 + $0x1d0] sm:$0xff]
        %v768 = vld [vmem:[%s2 + $0x1d8] sm:$0xff]
        %v769 = vld [vmem:[%s2 + $0x1e0] sm:$0xff]
        %v770 = vld [vmem:[%s2 + $0x1e8] sm:$0xff]
        %v771 = vld [vmem:[%s2 + $0x1f0] sm:$0xff]
        %v772 = vld [vmem:[%s2 + $0x1f8] sm:$0xff]
        %v773 = vld [vmem:[%s2 + $0x200] sm:$0xff]
        %v774 = vld [vmem:[%s2 + $0x208] sm:$0xff]
        %v775 = vld [vmem:[%s2 + $0x210] sm:$0xff]
        %v776 = vld [vmem:[%s2 + $0x218] sm:$0xff]
        %v777 = vld [vmem:[%s2 + $0x220] sm:$0xff]
        %v778 = vld [vmem:[%s2 + $0x228] sm:$0xff]
        %v779 = vld [vmem:[%s2 + $0x230] sm:$0xff]
        %v780 = vld [vmem:[%s2 + $0x238] sm:$0xff]
        %v781 = vld [vmem:[%s2 + $0x240] sm:$0xff]
        %v782 = vld [vmem:[%s2 + $0x248] sm:$0xff]
        %v783 = vld [vmem:[%s2 + $0x250] sm:$0xff]
        %v784 = vld [vmem:[%s2 + $0x258] sm:$0xff]
        %v785 = vld [vmem:[%s2 + $0x260] sm:$0xff]
        %v786 = vld [vmem:[%s2 + $0x268] sm:$0xff]
        %v787 = vld [vmem:[%s2 + $0x270] sm:$0xff]
        %v788 = vld [vmem:[%s2 + $0x278] sm:$0xff]
        %s789 = scalar_lea.vmem %s2, 640
        %v790 = vld [vmem:[%s789] sm:$0xff]
        %v791 = vld [vmem:[%s789 + $0x8] sm:$0xff]
        %v792 = vld [vmem:[%s789 + $0x10] sm:$0xff]
        %v793 = vld [vmem:[%s789 + $0x18] sm:$0xff]
        %v794 = vld [vmem:[%s789 + $0x20] sm:$0xff]
        %v795 = vld [vmem:[%s789 + $0x28] sm:$0xff]
        %v796 = vld [vmem:[%s789 + $0x30] sm:$0xff]
        %v797 = vld [vmem:[%s789 + $0x38] sm:$0xff]
        %v798 = vld [vmem:[%s789 + $0x40] sm:$0xff]
        %v799 = vld [vmem:[%s789 + $0x48] sm:$0xff]
        %v800 = vld [vmem:[%s789 + $0x50] sm:$0xff]
        %v801 = vld [vmem:[%s789 + $0x58] sm:$0xff]
        %v802 = vld [vmem:[%s789 + $0x60] sm:$0xff]
        %v803 = vld [vmem:[%s789 + $0x68] sm:$0xff]
        %v804 = vld [vmem:[%s789 + $0x70] sm:$0xff]
        %v805 = vld [vmem:[%s789 + $0x78] sm:$0xff]
        %v806 = vld [vmem:[%s789 + $0x80] sm:$0xff]
        %v807 = vld [vmem:[%s789 + $0x88] sm:$0xff]
        %v808 = vld [vmem:[%s789 + $0x90] sm:$0xff]
        %v809 = vld [vmem:[%s789 + $0x98] sm:$0xff]
        %v810 = vld [vmem:[%s789 + $0xa0] sm:$0xff]
        %v811 = vld [vmem:[%s789 + $0xa8] sm:$0xff]
        %v812 = vld [vmem:[%s789 + $0xb0] sm:$0xff]
        %v813 = vld [vmem:[%s789 + $0xb8] sm:$0xff]
        %v814 = vld [vmem:[%s789 + $0xc0] sm:$0xff]
        %v815 = vld [vmem:[%s789 + $0xc8] sm:$0xff]
        %v816 = vld [vmem:[%s789 + $0xd0] sm:$0xff]
        %v817 = vld [vmem:[%s789 + $0xd8] sm:$0xff]
        %v818 = vld [vmem:[%s789 + $0xe0] sm:$0xff]
        %v819 = vld [vmem:[%s789 + $0xe8] sm:$0xff]
        %v820 = vld [vmem:[%s789 + $0xf0] sm:$0xff]
        %v821 = vld [vmem:[%s789 + $0xf8] sm:$0xff]
        %v822 = vld [vmem:[%s789 + $0x100] sm:$0xff]
        %v823 = vld [vmem:[%s789 + $0x108] sm:$0xff]
        %v824 = vld [vmem:[%s789 + $0x110] sm:$0xff]
        %v825 = vld [vmem:[%s789 + $0x118] sm:$0xff]
        %v826 = vld [vmem:[%s789 + $0x120] sm:$0xff]
        %v827 = vld [vmem:[%s789 + $0x128] sm:$0xff]
        %v828 = vld [vmem:[%s789 + $0x130] sm:$0xff]
        %v829 = vld [vmem:[%s789 + $0x138] sm:$0xff]
        %v830 = vld [vmem:[%s789 + $0x140] sm:$0xff]
        %v831 = vld [vmem:[%s789 + $0x148] sm:$0xff]
        %v832 = vld [vmem:[%s789 + $0x150] sm:$0xff]
        %v833 = vld [vmem:[%s789 + $0x158] sm:$0xff]
        %v834 = vld [vmem:[%s789 + $0x160] sm:$0xff]
        %v835 = vld [vmem:[%s789 + $0x168] sm:$0xff]
        %v836 = vld [vmem:[%s789 + $0x170] sm:$0xff]
        %v837 = vld [vmem:[%s789 + $0x178] sm:$0xff]
        %v838 = vld [vmem:[%s789 + $0x180] sm:$0xff]
        %v839 = vld [vmem:[%s789 + $0x188] sm:$0xff]
        %v840 = vld [vmem:[%s789 + $0x190] sm:$0xff]
        %v841 = vld [vmem:[%s789 + $0x198] sm:$0xff]
        %v842 = vld [vmem:[%s789 + $0x1a0] sm:$0xff]
        %v843 = vld [vmem:[%s789 + $0x1a8] sm:$0xff]
        %v844 = vld [vmem:[%s789 + $0x1b0] sm:$0xff]
        %v845 = vld [vmem:[%s789 + $0x1b8] sm:$0xff]
        %v846 = vld [vmem:[%s789 + $0x1c0] sm:$0xff]
        %v847 = vld [vmem:[%s789 + $0x1c8] sm:$0xff]
        %v848 = vld [vmem:[%s789 + $0x1d0] sm:$0xff]
        %v849 = vld [vmem:[%s789 + $0x1d8] sm:$0xff]
        %v850 = vld [vmem:[%s789 + $0x1e0] sm:$0xff]
        %v851 = vld [vmem:[%s789 + $0x1e8] sm:$0xff]
        %v852 = vld [vmem:[%s789 + $0x1f0] sm:$0xff]
        %v853 = vld [vmem:[%s789 + $0x1f8] sm:$0xff]
        %v854 = vld [vmem:[%s789 + $0x200] sm:$0xff]
        %v855 = vld [vmem:[%s789 + $0x208] sm:$0xff]
        %v856 = vld [vmem:[%s789 + $0x210] sm:$0xff]
        %v857 = vld [vmem:[%s789 + $0x218] sm:$0xff]
        %v858 = vld [vmem:[%s789 + $0x220] sm:$0xff]
        %v859 = vld [vmem:[%s789 + $0x228] sm:$0xff]
        %v860 = vld [vmem:[%s789 + $0x230] sm:$0xff]
        %v861 = vld [vmem:[%s789 + $0x238] sm:$0xff]
        %v862 = vld [vmem:[%s789 + $0x240] sm:$0xff]
        %v863 = vld [vmem:[%s789 + $0x248] sm:$0xff]
        %v864 = vld [vmem:[%s789 + $0x250] sm:$0xff]
        %v865 = vld [vmem:[%s789 + $0x258] sm:$0xff]
        %v866 = vld [vmem:[%s789 + $0x260] sm:$0xff]
        %v867 = vld [vmem:[%s789 + $0x268] sm:$0xff]
        %v868 = vld [vmem:[%s789 + $0x270] sm:$0xff]
        %v869 = vld [vmem:[%s789 + $0x278] sm:$0xff]
        %vm882 = vcmask 1046528
        %v883 = vrot.slane %v697, 1
        %v884 = vrot.slane %v699, 1
        %v885 = vsel %vm882, %v883, %v884
        %v886 = vrot.slane %v698, 1
        %v887 = vrot.slane %v700, 1
        %v888 = vsel %vm882, %v886, %v887
        %v889 = vrot.slane %v701, 1
        %v890 = vsel %vm882, %v884, %v889
        %v891 = vrot.slane %v702, 1
        %v892 = vsel %vm882, %v887, %v891
        %v893 = vrot.slane %v703, 1
        %v894 = vsel %vm882, %v889, %v893
        %v895 = vrot.slane %v704, 1
        %v896 = vsel %vm882, %v891, %v895
        %v897 = vrot.slane %v705, 1
        %v898 = vsel %vm882, %v893, %v897
        %v899 = vrot.slane %v706, 1
        %v900 = vsel %vm882, %v895, %v899
        %v901 = vrot.slane %v707, 1
        %v902 = vsel %vm882, %v897, %v901
        %v903 = vrot.slane %v708, 1
        %v904 = vsel %vm882, %v899, %v903
        %vm910 = vcmask 261120
        %v911 = vsel %vm910, %v888, 0
        %v913 = vsel %vm910, %v892, 0
        %v915 = vsel %vm910, %v896, 0
        %v917 = vsel %vm910, %v900, 0
        %v919 = vsel %vm910, %v904, 0
        %921 = vmatprep.subr.mxu0 %v791
        %922 = vmatpush1.msra.mxu0 %v790
        %923 = vmatprep.subr.mxu0 %v795
        %924 = vmatpush1.msra.mxu0 %v794
        %925 = vmatprep.subr.mxu0 %v799
        %926 = vmatpush1.msra.mxu0 %v798
        %927 = vmatprep.subr.mxu0 %v803
        %928 = vmatpush1.msra.mxu0 %v802
        %929 = vmatprep.subr.mxu0 %v807
        %930 = vmatpush1.msra.mxu0 %v806
        %931 = vmatprep.subr.mxu0 %v811
        %932 = vmatpush1.msra.mxu0 %v810
        %933 = vmatprep.subr.mxu0 %v815
        %934 = vmatpush1.msra.mxu0 %v814
        %935 = vmatprep.subr.mxu0 %v819
        %936 = vmatpush1.msra.mxu0 %v818
        %937 = vmatprep.subr.mxu0 %v823
        %938 = vmatpush1.msra.mxu0 %v822
        %939 = vmatprep.subr.mxu0 %v827
        %940 = vmatpush1.msra.mxu0 %v826
        %941 = vmatprep.subr.mxu0 %v831
        %942 = vmatpush1.msra.mxu0 %v830
        %943 = vmatprep.subr.mxu0 %v835
        %944 = vmatpush1.msra.mxu0 %v834
        %945 = vmatprep.subr.mxu0 %v839
        %946 = vmatpush1.msra.mxu0 %v838
        %947 = vmatprep.subr.mxu0 %v843
        %948 = vmatpush1.msra.mxu0 %v842
        %949 = vmatprep.subr.mxu0 %v847
        %950 = vmatpush1.msra.mxu0 %v846
        %951 = vmatprep.subr.mxu0 %v851
        %952 = vmatpush1.msra.mxu0 %v850
        %953 = vmatprep.subr.mxu0 %v855
        %954 = vmatpush1.msra.mxu0 %v854
        %955 = vmatprep.subr.mxu0 %v859
        %956 = vmatpush1.msra.mxu0 %v858
        %957 = vmatprep.subr.mxu0 %v863
        %958 = vmatpush1.msra.mxu0 %v862
        %959 = vmatprep.subr.mxu0 %v867
        %960 = vmatpush1.msra.mxu0 %v866
        %961 = vmatprep.subr.mxu0 0.0
        %962 = vmatpush1.msra.mxu0 0.0
        %963 = vmatprep.subr.mxu0 0.0
        %964 = vmatpush1.msra.mxu0 0.0
        %965 = vmatprep.subr.mxu0 0.0
        %966 = vmatpush1.msra.mxu0 0.0
        %967 = vmatprep.subr.mxu0 0.0
        %968 = vmatpush1.msra.mxu0 0.0
        %969 = vmatprep.subr.mxu0 0.0
        %970 = vmatpush1.msra.mxu0 0.0
        %971 = vmatprep.subr.mxu0 0.0
        %972 = vmatpush1.msra.mxu0 0.0
        %973 = vmatprep.subr.mxu0 0.0
        %974 = vmatpush1.msra.mxu0 0.0
        %975 = vmatprep.subr.mxu0 0.0
        %976 = vmatpush1.msra.mxu0 0.0
        %977 = vmatprep.subr.mxu0 0.0
        %978 = vmatpush1.msra.mxu0 0.0
        %979 = vmatprep.subr.mxu0 0.0
        %980 = vmatpush1.msra.mxu0 0.0
        %981 = vmatprep.subr.mxu0 0.0
        %982 = vmatpush1.msra.mxu0 0.0
        %983 = vmatprep.subr.mxu0 0.0
        %984 = vmatpush1.msra.mxu0 0.0
        %985 = vmatprep.mubr.f32.mxu0 %v911
        %986 = vmatmul.mubr.f32.gmra.mrb[0].mxu0 %v885
        %v987 = vpop.f32.mrb[0].mxu0
        %v988 = vadd.f32 0.0, %v987
        %v989 = vpop.f32.mrb[0].mxu0
        %v990 = vadd.f32 0.0, %v989
        %991 = vmatprep.mubr.f32.mxu0 %v913
        %992 = vmatmul.mubr.f32.gmra.mrb[0].mxu0 %v890
        %v993 = vpop.f32.mrb[0].mxu0
        %v994 = vadd.f32 0.0, %v993
        %v995 = vpop.f32.mrb[0].mxu0
        %v996 = vadd.f32 0.0, %v995
        %997 = vmatprep.mubr.f32.mxu0 %v915
        %998 = vmatmul.mubr.f32.gmra.mrb[0].mxu0 %v894
        %v999 = vpop.f32.mrb[0].mxu0
        %v1000 = vadd.f32 0.0, %v999
        %v1001 = vpop.f32.mrb[0].mxu0
        %v1002 = vadd.f32 0.0, %v1001
        %1003 = vmatprep.mubr.f32.mxu0 %v917
        %1004 = vmatmul.mubr.f32.gmra.mrb[0].mxu0 %v898
        %v1005 = vpop.f32.mrb[0].mxu0
        %v1006 = vadd.f32 0.0, %v1005
        %v1007 = vpop.f32.mrb[0].mxu0
        %v1008 = vadd.f32 0.0, %v1007
        %1009 = vmatprep.mubr.f32.mxu0 %v919
        %1010 = vmatmul.mubr.f32.gmra.mrb[0].mxu0 %v902
        %v1011 = vpop.f32.mrb[0].mxu0
        %v1012 = vadd.f32 0.0, %v1011
        %v1013 = vpop.f32.mrb[0].mxu0
        %v1014 = vadd.f32 0.0, %v1013
        %1015 = vdwg.mxu0
        %1016 = vmatprep.subr.mxu0 %v793
        %1017 = vmatpush1.msra.mxu0 %v792
        %1018 = vmatprep.subr.mxu0 %v797
        %1019 = vmatpush1.msra.mxu0 %v796
        %1020 = vmatprep.subr.mxu0 %v801
        %1021 = vmatpush1.msra.mxu0 %v800
        %1022 = vmatprep.subr.mxu0 %v805
        %1023 = vmatpush1.msra.mxu0 %v804
        %1024 = vmatprep.subr.mxu0 %v809
        %1025 = vmatpush1.msra.mxu0 %v808
        %1026 = vmatprep.subr.mxu0 %v813
        %1027 = vmatpush1.msra.mxu0 %v812
        %1028 = vmatprep.subr.mxu0 %v817
        %1029 = vmatpush1.msra.mxu0 %v816
        %1030 = vmatprep.subr.mxu0 %v821
        %1031 = vmatpush1.msra.mxu0 %v820
        %1032 = vmatprep.subr.mxu0 %v825
        %1033 = vmatpush1.msra.mxu0 %v824
        %1034 = vmatprep.subr.mxu0 %v829
        %1035 = vmatpush1.msra.mxu0 %v828
        %1036 = vmatprep.subr.mxu0 %v833
        %1037 = vmatpush1.msra.mxu0 %v832
        %1038 = vmatprep.subr.mxu0 %v837
        %1039 = vmatpush1.msra.mxu0 %v836
        %1040 = vmatprep.subr.mxu0 %v841
        %1041 = vmatpush1.msra.mxu0 %v840
        %1042 = vmatprep.subr.mxu0 %v845
        %1043 = vmatpush1.msra.mxu0 %v844
        %1044 = vmatprep.subr.mxu0 %v849
        %1045 = vmatpush1.msra.mxu0 %v848
        %1046 = vmatprep.subr.mxu0 %v853
        %1047 = vmatpush1.msra.mxu0 %v852
        %1048 = vmatprep.subr.mxu0 %v857
        %1049 = vmatpush1.msra.mxu0 %v856
        %1050 = vmatprep.subr.mxu0 %v861
        %1051 = vmatpush1.msra.mxu0 %v860
        %1052 = vmatprep.subr.mxu0 %v865
        %1053 = vmatpush1.msra.mxu0 %v864
        %1054 = vmatprep.subr.mxu0 %v869
        %1055 = vmatpush1.msra.mxu0 %v868
        %1056 = vmatprep.subr.mxu0 0.0
        %1057 = vmatpush1.msra.mxu0 0.0
        %1058 = vmatprep.subr.mxu0 0.0
        %1059 = vmatpush1.msra.mxu0 0.0
        %1060 = vmatprep.subr.mxu0 0.0
        %1061 = vmatpush1.msra.mxu0 0.0
        %1062 = vmatprep.subr.mxu0 0.0
        %1063 = vmatpush1.msra.mxu0 0.0
        %1064 = vmatprep.subr.mxu0 0.0
        %1065 = vmatpush1.msra.mxu0 0.0
        %1066 = vmatprep.subr.mxu0 0.0
        %1067 = vmatpush1.msra.mxu0 0.0
        %1068 = vmatprep.subr.mxu0 0.0
        %1069 = vmatpush1.msra.mxu0 0.0
        %1070 = vmatprep.subr.mxu0 0.0
        %1071 = vmatpush1.msra.mxu0 0.0
        %1072 = vmatprep.subr.mxu0 0.0
        %1073 = vmatpush1.msra.mxu0 0.0
        %1074 = vmatprep.subr.mxu0 0.0
        %1075 = vmatpush1.msra.mxu0 0.0
        %1076 = vmatprep.subr.mxu0 0.0
        %1077 = vmatpush1.msra.mxu0 0.0
        %1078 = vmatprep.subr.mxu0 0.0
        %1079 = vmatpush1.msra.mxu0 0.0
        %1080 = vmatprep.mubr.f32.mxu0 %v911
        %1081 = vmatmul.mubr.f32.gmra.mrb[0].mxu0 %v885
        %v1082 = vpop.f32.mrb[0].mxu0
        %v1083 = vadd.f32 0.0, %v1082
        %v1084 = vpop.f32.mrb[0].mxu0
        %v1085 = vadd.f32 0.0, %v1084
        %1086 = vmatprep.mubr.f32.mxu0 %v913
        %1087 = vmatmul.mubr.f32.gmra.mrb[0].mxu0 %v890
        %v1088 = vpop.f32.mrb[0].mxu0
        %v1089 = vadd.f32 0.0, %v1088
        %v1090 = vpop.f32.mrb[0].mxu0
        %v1091 = vadd.f32 0.0, %v1090
        %1092 = vmatprep.mubr.f32.mxu0 %v915
        %1093 = vmatmul.mubr.f32.gmra.mrb[0].mxu0 %v894
        %v1094 = vpop.f32.mrb[0].mxu0
        %v1095 = vadd.f32 0.0, %v1094
        %v1096 = vpop.f32.mrb[0].mxu0
        %v1097 = vadd.f32 0.0, %v1096
        %1098 = vmatprep.mubr.f32.mxu0 %v917
        %1099 = vmatmul.mubr.f32.gmra.mrb[0].mxu0 %v898
        %v1100 = vpop.f32.mrb[0].mxu0
        %v1101 = vadd.f32 0.0, %v1100
        %v1102 = vpop.f32.mrb[0].mxu0
        %v1103 = vadd.f32 0.0, %v1102
        %1104 = vmatprep.mubr.f32.mxu0 %v919
        %1105 = vmatmul.mubr.f32.gmra.mrb[0].mxu0 %v902
        %v1106 = vpop.f32.mrb[0].mxu0
        %v1107 = vadd.f32 0.0, %v1106
        %v1108 = vpop.f32.mrb[0].mxu0
        %v1109 = vadd.f32 0.0, %v1108
        %1110 = vdwg.mxu0
        %v1111 = vsel %vm910, %v698, 0
        %v1113 = vsel %vm910, %v700, 0
        %v1115 = vsel %vm910, %v702, 0
        %v1117 = vsel %vm910, %v704, 0
        %v1119 = vsel %vm910, %v706, 0
        %1121 = vmatprep.subr.mxu0 %v710
        %1122 = vmatpush1.msra.mxu0 %v709
        %1123 = vmatprep.subr.mxu0 %v714
        %1124 = vmatpush1.msra.mxu0 %v713
        %1125 = vmatprep.subr.mxu0 %v718
        %1126 = vmatpush1.msra.mxu0 %v717
        %1127 = vmatprep.subr.mxu0 %v722
        %1128 = vmatpush1.msra.mxu0 %v721
        %1129 = vmatprep.subr.mxu0 %v726
        %1130 = vmatpush1.msra.mxu0 %v725
        %1131 = vmatprep.subr.mxu0 %v730
        %1132 = vmatpush1.msra.mxu0 %v729
        %1133 = vmatprep.subr.mxu0 %v734
        %1134 = vmatpush1.msra.mxu0 %v733
        %1135 = vmatprep.subr.mxu0 %v738
        %1136 = vmatpush1.msra.mxu0 %v737
        %1137 = vmatprep.subr.mxu0 %v742
        %1138 = vmatpush1.msra.mxu0 %v741
        %1139 = vmatprep.subr.mxu0 %v746
        %1140 = vmatpush1.msra.mxu0 %v745
        %1141 = vmatprep.subr.mxu0 %v750
        %1142 = vmatpush1.msra.mxu0 %v749
        %1143 = vmatprep.subr.mxu0 %v754
        %1144 = vmatpush1.msra.mxu0 %v753
        %1145 = vmatprep.subr.mxu0 %v758
        %1146 = vmatpush1.msra.mxu0 %v757
        %1147 = vmatprep.subr.mxu0 %v762
        %1148 = vmatpush1.msra.mxu0 %v761
        %1149 = vmatprep.subr.mxu0 %v766
        %1150 = vmatpush1.msra.mxu0 %v765
        %1151 = vmatprep.subr.mxu0 %v770
        %1152 = vmatpush1.msra.mxu0 %v769
        %1153 = vmatprep.subr.mxu0 %v774
        %1154 = vmatpush1.msra.mxu0 %v773
        %1155 = vmatprep.subr.mxu0 %v778
        %1156 = vmatpush1.msra.mxu0 %v777
        %1157 = vmatprep.subr.mxu0 %v782
        %1158 = vmatpush1.msra.mxu0 %v781
        %1159 = vmatprep.subr.mxu0 %v786
        %1160 = vmatpush1.msra.mxu0 %v785
        %1161 = vmatprep.subr.mxu0 0.0
        %1162 = vmatpush1.msra.mxu0 0.0
        %1163 = vmatprep.subr.mxu0 0.0
        %1164 = vmatpush1.msra.mxu0 0.0
        %1165 = vmatprep.subr.mxu0 0.0
        %1166 = vmatpush1.msra.mxu0 0.0
        %1167 = vmatprep.subr.mxu0 0.0
        %1168 = vmatpush1.msra.mxu0 0.0
        %1169 = vmatprep.subr.mxu0 0.0
        %1170 = vmatpush1.msra.mxu0 0.0
        %1171 = vmatprep.subr.mxu0 0.0
        %1172 = vmatpush1.msra.mxu0 0.0
        %1173 = vmatprep.subr.mxu0 0.0
        %1174 = vmatpush1.msra.mxu0 0.0
        %1175 = vmatprep.subr.mxu0 0.0
        %1176 = vmatpush1.msra.mxu0 0.0
        %1177 = vmatprep.subr.mxu0 0.0
        %1178 = vmatpush1.msra.mxu0 0.0
        %1179 = vmatprep.subr.mxu0 0.0
        %1180 = vmatpush1.msra.mxu0 0.0
        %1181 = vmatprep.subr.mxu0 0.0
        %1182 = vmatpush1.msra.mxu0 0.0
        %1183 = vmatprep.subr.mxu0 0.0
        %1184 = vmatpush1.msra.mxu0 0.0
        %1185 = vmatprep.mubr.f32.mxu0 %v1111
        %1186 = vmatmul.mubr.f32.gmra.mrb[0].mxu0 %v697
        %v1187 = vpop.f32.mrb[0].mxu0
        %v1188 = vadd.f32 %v988, %v1187
        %v1189 = vpop.f32.mrb[0].mxu0
        %v1190 = vadd.f32 %v990, %v1189
        %1191 = vmatprep.mubr.f32.mxu0 %v1113
        %1192 = vmatmul.mubr.f32.gmra.mrb[0].mxu0 %v699
        %v1193 = vpop.f32.mrb[0].mxu0
        %v1194 = vadd.f32 %v994, %v1193
        %v1195 = vpop.f32.mrb[0].mxu0
        %v1196 = vadd.f32 %v996, %v1195
        %1197 = vmatprep.mubr.f32.mxu0 %v1115
        %1198 = vmatmul.mubr.f32.gmra.mrb[0].mxu0 %v701
        %v1199 = vpop.f32.mrb[0].mxu0
        %v1200 = vadd.f32 %v1000, %v1199
        %v1201 = vpop.f32.mrb[0].mxu0
        %v1202 = vadd.f32 %v1002, %v1201
        %1203 = vmatprep.mubr.f32.mxu0 %v1117
        %1204 = vmatmul.mubr.f32.gmra.mrb[0].mxu0 %v703
        %v1205 = vpop.f32.mrb[0].mxu0
        %v1206 = vadd.f32 %v1006, %v1205
        %v1207 = vpop.f32.mrb[0].mxu0
        %v1208 = vadd.f32 %v1008, %v1207
        %1209 = vmatprep.mubr.f32.mxu0 %v1119
        %1210 = vmatmul.mubr.f32.gmra.mrb[0].mxu0 %v705
        %v1211 = vpop.f32.mrb[0].mxu0
        %v1212 = vadd.f32 %v1012, %v1211
        %v1213 = vpop.f32.mrb[0].mxu0
        %v1214 = vadd.f32 %v1014, %v1213
        %1215 = vdwg.mxu0
        %1216 = vmatprep.subr.mxu0 %v712
        %1217 = vmatpush1.msra.mxu0 %v711
        %1218 = vmatprep.subr.mxu0 %v716
        %1219 = vmatpush1.msra.mxu0 %v715
        %1220 = vmatprep.subr.mxu0 %v720
        %1221 = vmatpush1.msra.mxu0 %v719
        %1222 = vmatprep.subr.mxu0 %v724
        %1223 = vmatpush1.msra.mxu0 %v723
        %1224 = vmatprep.subr.mxu0 %v728
        %1225 = vmatpush1.msra.mxu0 %v727
        %1226 = vmatprep.subr.mxu0 %v732
        %1227 = vmatpush1.msra.mxu0 %v731
        %1228 = vmatprep.subr.mxu0 %v736
        %1229 = vmatpush1.msra.mxu0 %v735
        %1230 = vmatprep.subr.mxu0 %v740
        %1231 = vmatpush1.msra.mxu0 %v739
        %1232 = vmatprep.subr.mxu0 %v744
        %1233 = vmatpush1.msra.mxu0 %v743
        %1234 = vmatprep.subr.mxu0 %v748
        %1235 = vmatpush1.msra.mxu0 %v747
        %1236 = vmatprep.subr.mxu0 %v752
        %1237 = vmatpush1.msra.mxu0 %v751
        %1238 = vmatprep.subr.mxu0 %v756
        %1239 = vmatpush1.msra.mxu0 %v755
        %1240 = vmatprep.subr.mxu0 %v760
        %1241 = vmatpush1.msra.mxu0 %v759
        %1242 = vmatprep.subr.mxu0 %v764
        %1243 = vmatpush1.msra.mxu0 %v763
        %1244 = vmatprep.subr.mxu0 %v768
        %1245 = vmatpush1.msra.mxu0 %v767
        %1246 = vmatprep.subr.mxu0 %v772
        %1247 = vmatpush1.msra.mxu0 %v771
        %1248 = vmatprep.subr.mxu0 %v776
        %1249 = vmatpush1.msra.mxu0 %v775
        %1250 = vmatprep.subr.mxu0 %v780
        %1251 = vmatpush1.msra.mxu0 %v779
        %1252 = vmatprep.subr.mxu0 %v784
        %1253 = vmatpush1.msra.mxu0 %v783
        %1254 = vmatprep.subr.mxu0 %v788
        %1255 = vmatpush1.msra.mxu0 %v787
        %1256 = vmatprep.subr.mxu0 0.0
        %1257 = vmatpush1.msra.mxu0 0.0
        %1258 = vmatprep.subr.mxu0 0.0
        %1259 = vmatpush1.msra.mxu0 0.0
        %1260 = vmatprep.subr.mxu0 0.0
        %1261 = vmatpush1.msra.mxu0 0.0
        %1262 = vmatprep.subr.mxu0 0.0
        %1263 = vmatpush1.msra.mxu0 0.0
        %1264 = vmatprep.subr.mxu0 0.0
        %1265 = vmatpush1.msra.mxu0 0.0
        %1266 = vmatprep.subr.mxu0 0.0
        %1267 = vmatpush1.msra.mxu0 0.0
        %1268 = vmatprep.subr.mxu0 0.0
        %1269 = vmatpush1.msra.mxu0 0.0
        %1270 = vmatprep.subr.mxu0 0.0
        %1271 = vmatpush1.msra.mxu0 0.0
        %1272 = vmatprep.subr.mxu0 0.0
        %1273 = vmatpush1.msra.mxu0 0.0
        %1274 = vmatprep.subr.mxu0 0.0
        %1275 = vmatpush1.msra.mxu0 0.0
        %1276 = vmatprep.subr.mxu0 0.0
        %1277 = vmatpush1.msra.mxu0 0.0
        %1278 = vmatprep.subr.mxu0 0.0
        %1279 = vmatpush1.msra.mxu0 0.0
        %1280 = vmatprep.mubr.f32.mxu0 %v1111
        %1281 = vmatmul.mubr.f32.gmra.mrb[0].mxu0 %v697
        %v1282 = vpop.f32.mrb[0].mxu0
        %v1283 = vadd.f32 %v1083, %v1282
        %v1284 = vpop.f32.mrb[0].mxu0
        %v1285 = vadd.f32 %v1085, %v1284
        %1286 = vmatprep.mubr.f32.mxu0 %v1113
        %1287 = vmatmul.mubr.f32.gmra.mrb[0].mxu0 %v699
        %v1288 = vpop.f32.mrb[0].mxu0
        %v1289 = vadd.f32 %v1089, %v1288
        %v1290 = vpop.f32.mrb[0].mxu0
        %v1291 = vadd.f32 %v1091, %v1290
        %1292 = vmatprep.mubr.f32.mxu0 %v1115
        %1293 = vmatmul.mubr.f32.gmra.mrb[0].mxu0 %v701
        %v1294 = vpop.f32.mrb[0].mxu0
        %v1295 = vadd.f32 %v1095, %v1294
        %v1296 = vpop.f32.mrb[0].mxu0
        %v1297 = vadd.f32 %v1097, %v1296
        %1298 = vmatprep.mubr.f32.mxu0 %v1117
        %1299 = vmatmul.mubr.f32.gmra.mrb[0].mxu0 %v703
        %v1300 = vpop.f32.mrb[0].mxu0
        %v1301 = vadd.f32 %v1101, %v1300
        %v1302 = vpop.f32.mrb[0].mxu0
        %v1303 = vadd.f32 %v1103, %v1302
        %1304 = vmatprep.mubr.f32.mxu0 %v1119
        %1305 = vmatmul.mubr.f32.gmra.mrb[0].mxu0 %v705
        %v1306 = vpop.f32.mrb[0].mxu0
        %v1307 = vadd.f32 %v1107, %v1306
        %v1308 = vpop.f32.mrb[0].mxu0
        %v1309 = vadd.f32 %v1109, %v1308
        %1310 = vdwg.mxu0
        %s1311 = scalar_lea.vmem %s2, 1280
        %v1312 = vld [vmem:[%s1311] sm:$0xff]
        %v1313 = vld [vmem:[%s1311 + $0x8] sm:$0xff]
        %v1314 = vld [vmem:[%s1311 + $0x10] sm:$0xff]
        %v1315 = vld [vmem:[%s1311 + $0x18] sm:$0xff]
        %v1316 = vld [vmem:[%s1311 + $0x20] sm:$0xff]
        %v1317 = vld [vmem:[%s1311 + $0x28] sm:$0xff]
        %v1318 = vld [vmem:[%s1311 + $0x30] sm:$0xff]
        %v1319 = vld [vmem:[%s1311 + $0x38] sm:$0xff]
        %v1320 = vld [vmem:[%s1311 + $0x40] sm:$0xff]
        %v1321 = vld [vmem:[%s1311 + $0x48] sm:$0xff]
        %v1322 = vld [vmem:[%s1311 + $0x50] sm:$0xff]
        %v1323 = vld [vmem:[%s1311 + $0x58] sm:$0xff]
        %v1324 = vld [vmem:[%s1311 + $0x60] sm:$0xff]
        %v1325 = vld [vmem:[%s1311 + $0x68] sm:$0xff]
        %v1326 = vld [vmem:[%s1311 + $0x70] sm:$0xff]
        %v1327 = vld [vmem:[%s1311 + $0x78] sm:$0xff]
        %v1328 = vld [vmem:[%s1311 + $0x80] sm:$0xff]
        %v1329 = vld [vmem:[%s1311 + $0x88] sm:$0xff]
        %v1330 = vld [vmem:[%s1311 + $0x90] sm:$0xff]
        %v1331 = vld [vmem:[%s1311 + $0x98] sm:$0xff]
        %v1332 = vld [vmem:[%s1311 + $0xa0] sm:$0xff]
        %v1333 = vld [vmem:[%s1311 + $0xa8] sm:$0xff]
        %v1334 = vld [vmem:[%s1311 + $0xb0] sm:$0xff]
        %v1335 = vld [vmem:[%s1311 + $0xb8] sm:$0xff]
        %v1336 = vld [vmem:[%s1311 + $0xc0] sm:$0xff]
        %v1337 = vld [vmem:[%s1311 + $0xc8] sm:$0xff]
        %v1338 = vld [vmem:[%s1311 + $0xd0] sm:$0xff]
        %v1339 = vld [vmem:[%s1311 + $0xd8] sm:$0xff]
        %v1340 = vld [vmem:[%s1311 + $0xe0] sm:$0xff]
        %v1341 = vld [vmem:[%s1311 + $0xe8] sm:$0xff]
        %v1342 = vld [vmem:[%s1311 + $0xf0] sm:$0xff]
        %v1343 = vld [vmem:[%s1311 + $0xf8] sm:$0xff]
        %v1344 = vld [vmem:[%s1311 + $0x100] sm:$0xff]
        %v1345 = vld [vmem:[%s1311 + $0x108] sm:$0xff]
        %v1346 = vld [vmem:[%s1311 + $0x110] sm:$0xff]
        %v1347 = vld [vmem:[%s1311 + $0x118] sm:$0xff]
        %v1348 = vld [vmem:[%s1311 + $0x120] sm:$0xff]
        %v1349 = vld [vmem:[%s1311 + $0x128] sm:$0xff]
        %v1350 = vld [vmem:[%s1311 + $0x130] sm:$0xff]
        %v1351 = vld [vmem:[%s1311 + $0x138] sm:$0xff]
        %v1352 = vld [vmem:[%s1311 + $0x140] sm:$0xff]
        %v1353 = vld [vmem:[%s1311 + $0x148] sm:$0xff]
        %v1354 = vld [vmem:[%s1311 + $0x150] sm:$0xff]
        %v1355 = vld [vmem:[%s1311 + $0x158] sm:$0xff]
        %v1356 = vld [vmem:[%s1311 + $0x160] sm:$0xff]
        %v1357 = vld [vmem:[%s1311 + $0x168] sm:$0xff]
        %v1358 = vld [vmem:[%s1311 + $0x170] sm:$0xff]
        %v1359 = vld [vmem:[%s1311 + $0x178] sm:$0xff]
        %v1360 = vld [vmem:[%s1311 + $0x180] sm:$0xff]
        %v1361 = vld [vmem:[%s1311 + $0x188] sm:$0xff]
        %v1362 = vld [vmem:[%s1311 + $0x190] sm:$0xff]
        %v1363 = vld [vmem:[%s1311 + $0x198] sm:$0xff]
        %v1364 = vld [vmem:[%s1311 + $0x1a0] sm:$0xff]
        %v1365 = vld [vmem:[%s1311 + $0x1a8] sm:$0xff]
        %v1366 = vld [vmem:[%s1311 + $0x1b0] sm:$0xff]
        %v1367 = vld [vmem:[%s1311 + $0x1b8] sm:$0xff]
        %v1368 = vld [vmem:[%s1311 + $0x1c0] sm:$0xff]
        %v1369 = vld [vmem:[%s1311 + $0x1c8] sm:$0xff]
        %v1370 = vld [vmem:[%s1311 + $0x1d0] sm:$0xff]
        %v1371 = vld [vmem:[%s1311 + $0x1d8] sm:$0xff]
        %v1372 = vld [vmem:[%s1311 + $0x1e0] sm:$0xff]
        %v1373 = vld [vmem:[%s1311 + $0x1e8] sm:$0xff]
        %v1374 = vld [vmem:[%s1311 + $0x1f0] sm:$0xff]
        %v1375 = vld [vmem:[%s1311 + $0x1f8] sm:$0xff]
        %v1376 = vld [vmem:[%s1311 + $0x200] sm:$0xff]
        %v1377 = vld [vmem:[%s1311 + $0x208] sm:$0xff]
        %v1378 = vld [vmem:[%s1311 + $0x210] sm:$0xff]
        %v1379 = vld [vmem:[%s1311 + $0x218] sm:$0xff]
        %v1380 = vld [vmem:[%s1311 + $0x220] sm:$0xff]
        %v1381 = vld [vmem:[%s1311 + $0x228] sm:$0xff]
        %v1382 = vld [vmem:[%s1311 + $0x230] sm:$0xff]
        %v1383 = vld [vmem:[%s1311 + $0x238] sm:$0xff]
        %v1384 = vld [vmem:[%s1311 + $0x240] sm:$0xff]
        %v1385 = vld [vmem:[%s1311 + $0x248] sm:$0xff]
        %v1386 = vld [vmem:[%s1311 + $0x250] sm:$0xff]
        %v1387 = vld [vmem:[%s1311 + $0x258] sm:$0xff]
        %v1388 = vld [vmem:[%s1311 + $0x260] sm:$0xff]
        %v1389 = vld [vmem:[%s1311 + $0x268] sm:$0xff]
        %v1390 = vld [vmem:[%s1311 + $0x270] sm:$0xff]
        %v1391 = vld [vmem:[%s1311 + $0x278] sm:$0xff]
        %vm1392 = vcmask 1045504
        %v1393 = vrot.slane %v697, 2
        %v1394 = vrot.slane %v699, 2
        %v1395 = vsel %vm1392, %v1393, %v1394
        %v1396 = vrot.slane %v698, 2
        %v1397 = vrot.slane %v700, 2
        %v1398 = vsel %vm1392, %v1396, %v1397
        %v1399 = vrot.slane %v701, 2
        %v1400 = vsel %vm1392, %v1394, %v1399
        %v1401 = vrot.slane %v702, 2
        %v1402 = vsel %vm1392, %v1397, %v1401
        %v1403 = vrot.slane %v703, 2
        %v1404 = vsel %vm1392, %v1399, %v1403
        %v1405 = vrot.slane %v704, 2
        %v1406 = vsel %vm1392, %v1401, %v1405
        %v1407 = vrot.slane %v705, 2
        %v1408 = vsel %vm1392, %v1403, %v1407
        %v1409 = vrot.slane %v706, 2
        %v1410 = vsel %vm1392, %v1405, %v1409
        %v1411 = vrot.slane %v707, 2
        %v1412 = vsel %vm1392, %v1407, %v1411
        %v1413 = vrot.slane %v708, 2
        %v1414 = vsel %vm1392, %v1409, %v1413
        %v1420 = vsel %vm910, %v1398, 0
        %v1422 = vsel %vm910, %v1402, 0
        %v1424 = vsel %vm910, %v1406, 0
        %v1426 = vsel %vm910, %v1410, 0
        %v1428 = vsel %vm910, %v1414, 0
        %1430 = vmatprep.subr.mxu0 %v1313
        %1431 = vmatpush1.msra.mxu0 %v1312
        %1432 = vmatprep.subr.mxu0 %v1317
        %1433 = vmatpush1.msra.mxu0 %v1316
        %1434 = vmatprep.subr.mxu0 %v1321
        %1435 = vmatpush1.msra.mxu0 %v1320
        %1436 = vmatprep.subr.mxu0 %v1325
        %1437 = vmatpush1.msra.mxu0 %v1324
        %1438 = vmatprep.subr.mxu0 %v1329
        %1439 = vmatpush1.msra.mxu0 %v1328
        %1440 = vmatprep.subr.mxu0 %v1333
        %1441 = vmatpush1.msra.mxu0 %v1332
        %1442 = vmatprep.subr.mxu0 %v1337
        %1443 = vmatpush1.msra.mxu0 %v1336
        %1444 = vmatprep.subr.mxu0 %v1341
        %1445 = vmatpush1.msra.mxu0 %v1340
        %1446 = vmatprep.subr.mxu0 %v1345
        %1447 = vmatpush1.msra.mxu0 %v1344
        %1448 = vmatprep.subr.mxu0 %v1349
        %1449 = vmatpush1.msra.mxu0 %v1348
        %1450 = vmatprep.subr.mxu0 %v1353
        %1451 = vmatpush1.msra.mxu0 %v1352
        %1452 = vmatprep.subr.mxu0 %v1357
        %1453 = vmatpush1.msra.mxu0 %v1356
        %1454 = vmatprep.subr.mxu0 %v1361
        %1455 = vmatpush1.msra.mxu0 %v1360
        %1456 = vmatprep.subr.mxu0 %v1365
        %1457 = vmatpush1.msra.mxu0 %v1364
        %1458 = vmatprep.subr.mxu0 %v1369
        %1459 = vmatpush1.msra.mxu0 %v1368
        %1460 = vmatprep.subr.mxu0 %v1373
        %1461 = vmatpush1.msra.mxu0 %v1372
        %1462 = vmatprep.subr.mxu0 %v1377
        %1463 = vmatpush1.msra.mxu0 %v1376
        %1464 = vmatprep.subr.mxu0 %v1381
        %1465 = vmatpush1.msra.mxu0 %v1380
        %1466 = vmatprep.subr.mxu0 %v1385
        %1467 = vmatpush1.msra.mxu0 %v1384
        %1468 = vmatprep.subr.mxu0 %v1389
        %1469 = vmatpush1.msra.mxu0 %v1388
        %1470 = vmatprep.subr.mxu0 0.0
        %1471 = vmatpush1.msra.mxu0 0.0
        %1472 = vmatprep.subr.mxu0 0.0
        %1473 = vmatpush1.msra.mxu0 0.0
        %1474 = vmatprep.subr.mxu0 0.0
        %1475 = vmatpush1.msra.mxu0 0.0
        %1476 = vmatprep.subr.mxu0 0.0
        %1477 = vmatpush1.msra.mxu0 0.0
        %1478 = vmatprep.subr.mxu0 0.0
        %1479 = vmatpush1.msra.mxu0 0.0
        %1480 = vmatprep.subr.mxu0 0.0
        %1481 = vmatpush1.msra.mxu0 0.0
        %1482 = vmatprep.subr.mxu0 0.0
        %1483 = vmatpush1.msra.mxu0 0.0
        %1484 = vmatprep.subr.mxu0 0.0
        %1485 = vmatpush1.msra.mxu0 0.0
        %1486 = vmatprep.subr.mxu0 0.0
        %1487 = vmatpush1.msra.mxu0 0.0
        %1488 = vmatprep.subr.mxu0 0.0
        %1489 = vmatpush1.msra.mxu0 0.0
        %1490 = vmatprep.subr.mxu0 0.0
        %1491 = vmatpush1.msra.mxu0 0.0
        %1492 = vmatprep.subr.mxu0 0.0
        %1493 = vmatpush1.msra.mxu0 0.0
        %1494 = vmatprep.mubr.f32.mxu0 %v1420
        %1495 = vmatmul.mubr.f32.gmra.mrb[0].mxu0 %v1395
        %v1496 = vpop.f32.mrb[0].mxu0
        %v1497 = vadd.f32 0.0, %v1496
        %v1498 = vpop.f32.mrb[0].mxu0
        %v1499 = vadd.f32 0.0, %v1498
        %1500 = vmatprep.mubr.f32.mxu0 %v1422
        %1501 = vmatmul.mubr.f32.gmra.mrb[0].mxu0 %v1400
        %v1502 = vpop.f32.mrb[0].mxu0
        %v1503 = vadd.f32 0.0, %v1502
        %v1504 = vpop.f32.mrb[0].mxu0
        %v1505 = vadd.f32 0.0, %v1504
        %1506 = vmatprep.mubr.f32.mxu0 %v1424
        %1507 = vmatmul.mubr.f32.gmra.mrb[0].mxu0 %v1404
        %v1508 = vpop.f32.mrb[0].mxu0
        %v1509 = vadd.f32 0.0, %v1508
        %v1510 = vpop.f32.mrb[0].mxu0
        %v1511 = vadd.f32 0.0, %v1510
        %1512 = vmatprep.mubr.f32.mxu0 %v1426
        %1513 = vmatmul.mubr.f32.gmra.mrb[0].mxu0 %v1408
        %v1514 = vpop.f32.mrb[0].mxu0
        %v1515 = vadd.f32 0.0, %v1514
        %v1516 = vpop.f32.mrb[0].mxu0
        %v1517 = vadd.f32 0.0, %v1516
        %1518 = vmatprep.mubr.f32.mxu0 %v1428
        %1519 = vmatmul.mubr.f32.gmra.mrb[0].mxu0 %v1412
        %v1520 = vpop.f32.mrb[0].mxu0
        %v1521 = vadd.f32 0.0, %v1520
        %v1522 = vpop.f32.mrb[0].mxu0
        %v1523 = vadd.f32 0.0, %v1522
        %1524 = vdwg.mxu0
        %1525 = vmatprep.subr.mxu0 %v1315
        %1526 = vmatpush1.msra.mxu0 %v1314
        %1527 = vmatprep.subr.mxu0 %v1319
        %1528 = vmatpush1.msra.mxu0 %v1318
        %1529 = vmatprep.subr.mxu0 %v1323
        %1530 = vmatpush1.msra.mxu0 %v1322
        %1531 = vmatprep.subr.mxu0 %v1327
        %1532 = vmatpush1.msra.mxu0 %v1326
        %1533 = vmatprep.subr.mxu0 %v1331
        %1534 = vmatpush1.msra.mxu0 %v1330
        %1535 = vmatprep.subr.mxu0 %v1335
        %1536 = vmatpush1.msra.mxu0 %v1334
        %1537 = vmatprep.subr.mxu0 %v1339
        %1538 = vmatpush1.msra.mxu0 %v1338
        %1539 = vmatprep.subr.mxu0 %v1343
        %1540 = vmatpush1.msra.mxu0 %v1342
        %1541 = vmatprep.subr.mxu0 %v1347
        %1542 = vmatpush1.msra.mxu0 %v1346
        %1543 = vmatprep.subr.mxu0 %v1351
        %1544 = vmatpush1.msra.mxu0 %v1350
        %1545 = vmatprep.subr.mxu0 %v1355
        %1546 = vmatpush1.msra.mxu0 %v1354
        %1547 = vmatprep.subr.mxu0 %v1359
        %1548 = vmatpush1.msra.mxu0 %v1358
        %1549 = vmatprep.subr.mxu0 %v1363
        %1550 = vmatpush1.msra.mxu0 %v1362
        %1551 = vmatprep.subr.mxu0 %v1367
        %1552 = vmatpush1.msra.mxu0 %v1366
        %1553 = vmatprep.subr.mxu0 %v1371
        %1554 = vmatpush1.msra.mxu0 %v1370
        %1555 = vmatprep.subr.mxu0 %v1375
        %1556 = vmatpush1.msra.mxu0 %v1374
        %1557 = vmatprep.subr.mxu0 %v1379
        %1558 = vmatpush1.msra.mxu0 %v1378
        %1559 = vmatprep.subr.mxu0 %v1383
        %1560 = vmatpush1.msra.mxu0 %v1382
        %1561 = vmatprep.subr.mxu0 %v1387
        %1562 = vmatpush1.msra.mxu0 %v1386
        %1563 = vmatprep.subr.mxu0 %v1391
        %1564 = vmatpush1.msra.mxu0 %v1390
        %1565 = vmatprep.subr.mxu0 0.0
        %1566 = vmatpush1.msra.mxu0 0.0
        %1567 = vmatprep.subr.mxu0 0.0
        %1568 = vmatpush1.msra.mxu0 0.0
        %1569 = vmatprep.subr.mxu0 0.0
        %1570 = vmatpush1.msra.mxu0 0.0
        %1571 = vmatprep.subr.mxu0 0.0
        %1572 = vmatpush1.msra.mxu0 0.0
        %1573 = vmatprep.subr.mxu0 0.0
        %1574 = vmatpush1.msra.mxu0 0.0
        %1575 = vmatprep.subr.mxu0 0.0
        %1576 = vmatpush1.msra.mxu0 0.0
        %1577 = vmatprep.subr.mxu0 0.0
        %1578 = vmatpush1.msra.mxu0 0.0
        %1579 = vmatprep.subr.mxu0 0.0
        %1580 = vmatpush1.msra.mxu0 0.0
        %1581 = vmatprep.subr.mxu0 0.0
        %1582 = vmatpush1.msra.mxu0 0.0
        %1583 = vmatprep.subr.mxu0 0.0
        %1584 = vmatpush1.msra.mxu0 0.0
        %1585 = vmatprep.subr.mxu0 0.0
        %1586 = vmatpush1.msra.mxu0 0.0
        %1587 = vmatprep.subr.mxu0 0.0
        %1588 = vmatpush1.msra.mxu0 0.0
        %1589 = vmatprep.mubr.f32.mxu0 %v1420
        %1590 = vmatmul.mubr.f32.gmra.mrb[0].mxu0 %v1395
        %v1591 = vpop.f32.mrb[0].mxu0
        %v1592 = vadd.f32 0.0, %v1591
        %v1593 = vpop.f32.mrb[0].mxu0
        %v1594 = vadd.f32 0.0, %v1593
        %1595 = vmatprep.mubr.f32.mxu0 %v1422
        %1596 = vmatmul.mubr.f32.gmra.mrb[0].mxu0 %v1400
        %v1597 = vpop.f32.mrb[0].mxu0
        %v1598 = vadd.f32 0.0, %v1597
        %v1599 = vpop.f32.mrb[0].mxu0
        %v1600 = vadd.f32 0.0, %v1599
        %1601 = vmatprep.mubr.f32.mxu0 %v1424
        %1602 = vmatmul.mubr.f32.gmra.mrb[0].mxu0 %v1404
        %v1603 = vpop.f32.mrb[0].mxu0
        %v1604 = vadd.f32 0.0, %v1603
        %v1605 = vpop.f32.mrb[0].mxu0
        %v1606 = vadd.f32 0.0, %v1605
        %1607 = vmatprep.mubr.f32.mxu0 %v1426
        %1608 = vmatmul.mubr.f32.gmra.mrb[0].mxu0 %v1408
        %v1609 = vpop.f32.mrb[0].mxu0
        %v1610 = vadd.f32 0.0, %v1609
        %v1611 = vpop.f32.mrb[0].mxu0
        %v1612 = vadd.f32 0.0, %v1611
        %1613 = vmatprep.mubr.f32.mxu0 %v1428
        %1614 = vmatmul.mubr.f32.gmra.mrb[0].mxu0 %v1412
        %v1615 = vpop.f32.mrb[0].mxu0
        %v1616 = vadd.f32 0.0, %v1615
        %v1617 = vpop.f32.mrb[0].mxu0
        %v1618 = vadd.f32 0.0, %v1617
        %1619 = vdwg.mxu0
        %v1620 = vadd.f32 %v1188, %v1497
        %v1621 = vadd.f32 %v1190, %v1499
        %v1622 = vadd.f32 %v1283, %v1592
        %v1623 = vadd.f32 %v1285, %v1594
        %v1624 = vadd.f32 %v1194, %v1503
        %v1625 = vadd.f32 %v1196, %v1505
        %v1626 = vadd.f32 %v1289, %v1598
        %v1627 = vadd.f32 %v1291, %v1600
        %v1628 = vadd.f32 %v1200, %v1509
        %v1629 = vadd.f32 %v1202, %v1511
        %v1630 = vadd.f32 %v1295, %v1604
        %v1631 = vadd.f32 %v1297, %v1606
        %v1632 = vadd.f32 %v1206, %v1515
        %v1633 = vadd.f32 %v1208, %v1517
        %v1634 = vadd.f32 %v1301, %v1610
        %v1635 = vadd.f32 %v1303, %v1612
        %v1636 = vadd.f32 %v1212, %v1521
        %v1637 = vadd.f32 %v1214, %v1523
        %v1638 = vadd.f32 %v1307, %v1616
        %v1639 = vadd.f32 %v1309, %v1618
        %v1640 = vmul.f32 %v1620, %v1620
        %v1641 = vmul.f32 %v1621, %v1621
        %v1642 = vmul.f32 %v1624, %v1624
        %v1643 = vmul.f32 %v1625, %v1625
        %v1644 = vmul.f32 %v1628, %v1628
        %v1645 = vmul.f32 %v1629, %v1629
        %v1646 = vmul.f32 %v1632, %v1632
        %v1647 = vmul.f32 %v1633, %v1633
        %v1648 = vmul.f32 %v1636, %v1636
        %v1649 = vmul.f32 %v1637, %v1637
        %v1650 = vmul.f32 %v1622, %v1622
        %v1651 = vmul.f32 %v1623, %v1623
        %v1652 = vmul.f32 %v1626, %v1626
        %v1653 = vmul.f32 %v1627, %v1627
        %v1654 = vmul.f32 %v1630, %v1630
        %v1655 = vmul.f32 %v1631, %v1631
        %v1656 = vmul.f32 %v1634, %v1634
        %v1657 = vmul.f32 %v1635, %v1635
        %v1658 = vmul.f32 %v1638, %v1638
        %v1659 = vmul.f32 %v1639, %v1639
        %v1660 = vadd.f32 %v1640, %v1650
        %v1661 = vadd.f32 %v1641, %v1651
        %v1662 = vadd.f32 %v1642, %v1652
        %v1663 = vadd.f32 %v1643, %v1653
        %v1664 = vadd.f32 %v1644, %v1654
        %v1665 = vadd.f32 %v1645, %v1655
        %v1666 = vadd.f32 %v1646, %v1656
        %v1667 = vadd.f32 %v1647, %v1657
        %v1668 = vadd.f32 %v1648, %v1658
        %v1669 = vadd.f32 %v1649, %v1659
        %v1670 = vld [vmem:[%s3] sm:$0xff]
        %v1671 = vld [vmem:[%s3 + $0x8] sm:$0xff]
        %v1672 = vld [vmem:[%s3 + $0x10] sm:$0xff]
        %v1673 = vld [vmem:[%s3 + $0x18] sm:$0xff]
        %v1674 = vld [vmem:[%s3 + $0x20] sm:$0xff]
        %v1675 = vld [vmem:[%s3 + $0x28] sm:$0xff]
        %v1676 = vld [vmem:[%s3 + $0x30] sm:$0xff]
        %v1677 = vld [vmem:[%s3 + $0x38] sm:$0xff]
        %v1678 = vld [vmem:[%s3 + $0x40] sm:$0xff]
        %v1679 = vld [vmem:[%s3 + $0x48] sm:$0xff]
        %v1680 = vld [vmem:[%s3 + $0x50] sm:$0xff]
        %v1681 = vld [vmem:[%s3 + $0x58] sm:$0xff]
        %v1682 = vld [vmem:[%s3 + $0x60] sm:$0xff]
        %v1683 = vld [vmem:[%s3 + $0x68] sm:$0xff]
        %v1684 = vld [vmem:[%s3 + $0x70] sm:$0xff]
        %v1685 = vld [vmem:[%s3 + $0x78] sm:$0xff]
        %v1686 = vld [vmem:[%s3 + $0x80] sm:$0xff]
        %v1687 = vld [vmem:[%s3 + $0x88] sm:$0xff]
        %v1688 = vld [vmem:[%s3 + $0x90] sm:$0xff]
        %v1689 = vld [vmem:[%s3 + $0x98] sm:$0xff]
        %v1690 = vld [vmem:[%s3 + $0xa0] sm:$0xff]
        %v1691 = vld [vmem:[%s3 + $0xa8] sm:$0xff]
        %v1692 = vld [vmem:[%s3 + $0xb0] sm:$0xff]
        %v1693 = vld [vmem:[%s3 + $0xb8] sm:$0xff]
        %v1694 = vld [vmem:[%s3 + $0xc0] sm:$0xff]
        %v1695 = vld [vmem:[%s3 + $0xc8] sm:$0xff]
        %v1696 = vld [vmem:[%s3 + $0xd0] sm:$0xff]
        %v1697 = vld [vmem:[%s3 + $0xd8] sm:$0xff]
        %v1698 = vld [vmem:[%s3 + $0xe0] sm:$0xff]
        %v1699 = vld [vmem:[%s3 + $0xe8] sm:$0xff]
        %v1700 = vld [vmem:[%s3 + $0xf0] sm:$0xff]
        %v1701 = vld [vmem:[%s3 + $0xf8] sm:$0xff]
        %1702 = vmatprep.subr.mxu0 0.0
        %1703 = vmatpush1.msra.mxu0 %v1670
        %1704 = vmatprep.subr.mxu0 0.0
        %1705 = vmatpush1.msra.mxu0 %v1671
        %1706 = vmatprep.subr.mxu0 0.0
        %1707 = vmatpush1.msra.mxu0 %v1672
        %1708 = vmatprep.subr.mxu0 0.0
        %1709 = vmatpush1.msra.mxu0 %v1673
        %1710 = vmatprep.subr.mxu0 0.0
        %1711 = vmatpush1.msra.mxu0 %v1674
        %1712 = vmatprep.subr.mxu0 0.0
        %1713 = vmatpush1.msra.mxu0 %v1675
        %1714 = vmatprep.subr.mxu0 0.0
        %1715 = vmatpush1.msra.mxu0 %v1676
        %1716 = vmatprep.subr.mxu0 0.0
        %1717 = vmatpush1.msra.mxu0 %v1677
        %1718 = vmatprep.subr.mxu0 0.0
        %1719 = vmatpush1.msra.mxu0 %v1678
        %1720 = vmatprep.subr.mxu0 0.0
        %1721 = vmatpush1.msra.mxu0 %v1679
        %1722 = vmatprep.subr.mxu0 0.0
        %1723 = vmatpush1.msra.mxu0 %v1680
        %1724 = vmatprep.subr.mxu0 0.0
        %1725 = vmatpush1.msra.mxu0 %v1681
        %1726 = vmatprep.subr.mxu0 0.0
        %1727 = vmatpush1.msra.mxu0 %v1682
        %1728 = vmatprep.subr.mxu0 0.0
        %1729 = vmatpush1.msra.mxu0 %v1683
        %1730 = vmatprep.subr.mxu0 0.0
        %1731 = vmatpush1.msra.mxu0 %v1684
        %1732 = vmatprep.subr.mxu0 0.0
        %1733 = vmatpush1.msra.mxu0 %v1685
        %1734 = vmatprep.subr.mxu0 0.0
        %1735 = vmatpush1.msra.mxu0 %v1686
        %1736 = vmatprep.subr.mxu0 0.0
        %1737 = vmatpush1.msra.mxu0 %v1687
        %1738 = vmatprep.subr.mxu0 0.0
        %1739 = vmatpush1.msra.mxu0 %v1688
        %1740 = vmatprep.subr.mxu0 0.0
        %1741 = vmatpush1.msra.mxu0 %v1689
        %1742 = vmatprep.subr.mxu0 0.0
        %1743 = vmatpush1.msra.mxu0 %v1690
        %1744 = vmatprep.subr.mxu0 0.0
        %1745 = vmatpush1.msra.mxu0 %v1691
        %1746 = vmatprep.subr.mxu0 0.0
        %1747 = vmatpush1.msra.mxu0 %v1692
        %1748 = vmatprep.subr.mxu0 0.0
        %1749 = vmatpush1.msra.mxu0 %v1693
        %1750 = vmatprep.subr.mxu0 0.0
        %1751 = vmatpush1.msra.mxu0 %v1694
        %1752 = vmatprep.subr.mxu0 0.0
        %1753 = vmatpush1.msra.mxu0 %v1695
        %1754 = vmatprep.subr.mxu0 0.0
        %1755 = vmatpush1.msra.mxu0 %v1696
        %1756 = vmatprep.subr.mxu0 0.0
        %1757 = vmatpush1.msra.mxu0 %v1697
        %1758 = vmatprep.subr.mxu0 0.0
        %1759 = vmatpush1.msra.mxu0 %v1698
        %1760 = vmatprep.subr.mxu0 0.0
        %1761 = vmatpush1.msra.mxu0 %v1699
        %1762 = vmatprep.subr.mxu0 0.0
        %1763 = vmatpush1.msra.mxu0 %v1700
        %1764 = vmatprep.subr.mxu0 0.0
        %1765 = vmatpush1.msra.mxu0 %v1701
        %1766 = vmatprep.mubr.f32.mxu0 %v1661
        %1767 = vmatmul.mubr.f32.gmra.mrb[0].mxu0 %v1660
        %v1768 = vpop.f32.mrb[0].mxu0
        %v1769 = vadd.f32 0.0, %v1768
        %v1770 = vpop.f32.mrb[0].mxu0
        %1771 = vmatprep.mubr.f32.mxu0 %v1663
        %1772 = vmatmul.mubr.f32.gmra.mrb[0].mxu0 %v1662
        %v1773 = vpop.f32.mrb[0].mxu0
        %v1774 = vadd.f32 0.0, %v1773
        %v1775 = vpop.f32.mrb[0].mxu0
        %1776 = vmatprep.mubr.f32.mxu0 %v1665
        %1777 = vmatmul.mubr.f32.gmra.mrb[0].mxu0 %v1664
        %v1778 = vpop.f32.mrb[0].mxu0
        %v1779 = vadd.f32 0.0, %v1778
        %v1780 = vpop.f32.mrb[0].mxu0
        %1781 = vmatprep.mubr.f32.mxu0 %v1667
        %1782 = vmatmul.mubr.f32.gmra.mrb[0].mxu0 %v1666
        %v1783 = vpop.f32.mrb[0].mxu0
        %v1784 = vadd.f32 0.0, %v1783
        %v1785 = vpop.f32.mrb[0].mxu0
        %1786 = vmatprep.mubr.f32.mxu0 %v1669
        %1787 = vmatmul.mubr.f32.gmra.mrb[0].mxu0 %v1668
        %v1788 = vpop.f32.mrb[0].mxu0
        %v1789 = vadd.f32 0.0, %v1788
        %v1790 = vpop.f32.mrb[0].mxu0
        %1791 = vdwg.mxu0
        %v1792 = vmax.f32 %v1769, 1e-10
        %v1793 = vmax.f32 %v1774, 1e-10
        %v1794 = vmax.f32 %v1779, 1e-10
        %v1795 = vmax.f32 %v1784, 1e-10
        %v1796 = vmax.f32 %v1789, 1e-10
        %v1797 = vlog2.pop %v1792
        %v1798 = vmul.f32 %v1797, 0.6931472
        %v1799 = vlog2.pop %v1793
        %v1800 = vmul.f32 %v1799, 0.6931472
        %v1801 = vlog2.pop %v1794
        %v1802 = vmul.f32 %v1801, 0.6931472
        %v1803 = vlog2.pop %v1795
        %v1804 = vmul.f32 %v1803, 0.6931472
        %v1805 = vlog2.pop %v1796
        %v1806 = vmul.f32 %v1805, 0.6931472
        %v1807 = vmul.f32 %v1798, 0.4342945
        %v1808 = vmul.f32 %v1800, 0.4342945
        %v1809 = vmul.f32 %v1802, 0.4342945
        %v1810 = vmul.f32 %v1804, 0.4342945
        %v1811 = vmul.f32 %v1806, 0.4342945
        %v1812 = vmax.f32 %v1807, %v1811
        %v1813 = vmax.f32 %v1812, %v1808
        %v1814 = vmax.f32 %v1809, %v1810
        %v1815 = vmax.f32 %v1813, %v1814
        %1816 = vmax.xlane.f32.xlu0 %v1815
        %v1817 = vpop.xlane.xlu0 %1816
        %v1818 = vrot.slane %v1817, 4
        %v1819 = vmax.f32 %v1817, %v1818
        %v1820 = vrot.slane %v1819, 2
        %v1821 = vmax.f32 %v1819, %v1820
        %v1822 = vrot.slane %v1821, 1
        %v1823 = vmax.f32 %v1821, %v1822
        %s1824 = vtos %v1823
        %s1825 = ssub.f32 %s1824, 8.0
        %v1826 = vstv %s1825
        %v1827 = vmax.f32 %v1807, %v1826
        %v1828 = vmax.f32 %v1808, %v1826
        %v1829 = vmax.f32 %v1809, %v1826
        %v1830 = vmax.f32 %v1810, %v1826
        %v1831 = vmax.f32 %v1811, %v1826
        %v1832 = vadd.f32 %v1827, 4.0
        %v1833 = vadd.f32 %v1828, 4.0
        %v1834 = vadd.f32 %v1829, 4.0
        %v1835 = vadd.f32 %v1830, 4.0
        %v1836 = vadd.f32 %v1831, 4.0
        %v1837 = vrcp.pop 4.0
        %v1838 = vmul.f32 %v1832, %v1837
        %v1839 = vmul.f32 %v1833, %v1837
        %v1840 = vmul.f32 %v1834, %v1837
        %v1841 = vmul.f32 %v1835, %v1837
        %v1842 = vmul.f32 %v1836, %v1837
        %v1843 = vld [vmem:[%s5] sm:$0x3]
        %vm1849 = vcmask 1040384
        %v1850 = vrot.slane %v1838, 7
        %v1851 = vrot.slane %v1839, 7
        %v1852 = vsel %vm1849, %v1850, %v1851
        %v1853 = vrot.slane %v1840, 7
        %v1854 = vsel %vm1849, %v1851, %v1853
        %v1855 = vrot.slane %v1841, 7
        %v1856 = vsel %vm1849, %v1853, %v1855
        %v1857 = vrot.slane %v1842, 7
        %v1858 = vsel %vm1849, %v1855, %v1857
        %v1864 = vsel %vm1849, 0.0, %v1850
        %v1865 = vrot.slane %v1838, 1
        %v1866 = vrot.slane %v1839, 1
        %v1867 = vsel %vm882, %v1865, %v1866
        %v1868 = vrot.slane %v1840, 1
        %v1869 = vsel %vm882, %v1866, %v1868
        %v1870 = vrot.slane %v1841, 1
        %v1871 = vsel %vm882, %v1868, %v1870
        %v1872 = vrot.slane %v1842, 1
        %v1873 = vsel %vm882, %v1870, %v1872
        %v1879 = vsel %vm882, %v1872, 0.0
        %v1880 = vld [vmem:[%s4] sm:$0xff]
        %v1881 = vld [vmem:[%s4 + $0x8] sm:$0xff]
        %v1882 = vld [vmem:[%s4 + $0x10] sm:$0xff]
        %v1883 = vld [vmem:[%s4 + $0x18] sm:$0xff]
        %v1884 = vld [vmem:[%s4 + $0x20] sm:$0xff]
        %v1885 = vld [vmem:[%s4 + $0x28] sm:$0xff]
        %v1886 = vld [vmem:[%s4 + $0x30] sm:$0xff]
        %v1887 = vld [vmem:[%s4 + $0x38] sm:$0xff]
        %v1888 = vld [vmem:[%s4 + $0x40] sm:$0xff]
        %v1889 = vld [vmem:[%s4 + $0x48] sm:$0xff]
        %v1890 = vld [vmem:[%s4 + $0x50] sm:$0xff]
        %v1891 = vld [vmem:[%s4 + $0x58] sm:$0xff]
        %v1892 = vld [vmem:[%s4 + $0x60] sm:$0xff]
        %v1893 = vld [vmem:[%s4 + $0x68] sm:$0xff]
        %v1894 = vld [vmem:[%s4 + $0x70] sm:$0xff]
        %v1895 = vld [vmem:[%s4 + $0x78] sm:$0xff]
        %s1896 = scalar_lea.vmem %s4, 128
        %v1897 = vld [vmem:[%s1896] sm:$0xff]
        %v1898 = vld [vmem:[%s1896 + $0x8] sm:$0xff]
        %v1899 = vld [vmem:[%s1896 + $0x10] sm:$0xff]
        %v1900 = vld [vmem:[%s1896 + $0x18] sm:$0xff]
        %v1901 = vld [vmem:[%s1896 + $0x20] sm:$0xff]
        %v1902 = vld [vmem:[%s1896 + $0x28] sm:$0xff]
        %v1903 = vld [vmem:[%s1896 + $0x30] sm:$0xff]
        %v1904 = vld [vmem:[%s1896 + $0x38] sm:$0xff]
        %v1905 = vld [vmem:[%s1896 + $0x40] sm:$0xff]
        %v1906 = vld [vmem:[%s1896 + $0x48] sm:$0xff]
        %v1907 = vld [vmem:[%s1896 + $0x50] sm:$0xff]
        %v1908 = vld [vmem:[%s1896 + $0x58] sm:$0xff]
        %v1909 = vld [vmem:[%s1896 + $0x60] sm:$0xff]
        %v1910 = vld [vmem:[%s1896 + $0x68] sm:$0xff]
        %v1911 = vld [vmem:[%s1896 + $0x70] sm:$0xff]
        %v1912 = vld [vmem:[%s1896 + $0x78] sm:$0xff]
        %1913 = vmatprep.subr.mxu0 0.0
        %1914 = vmatpush1.msra.mxu0 %v1897
        %1915 = vmatprep.subr.mxu0 0.0
        %1916 = vmatpush1.msra.mxu0 %v1898
        %1917 = vmatprep.subr.mxu0 0.0
        %1918 = vmatpush1.msra.mxu0 %v1899
        %1919 = vmatprep.subr.mxu0 0.0
        %1920 = vmatpush1.msra.mxu0 %v1900
        %1921 = vmatprep.subr.mxu0 0.0
        %1922 = vmatpush1.msra.mxu0 %v1901
        %1923 = vmatprep.subr.mxu0 0.0
        %1924 = vmatpush1.msra.mxu0 %v1902
        %1925 = vmatprep.subr.mxu0 0.0
        %1926 = vmatpush1.msra.mxu0 %v1903
        %1927 = vmatprep.subr.mxu0 0.0
        %1928 = vmatpush1.msra.mxu0 %v1904
        %1929 = vmatprep.subr.mxu0 0.0
        %1930 = vmatpush1.msra.mxu0 %v1905
        %1931 = vmatprep.subr.mxu0 0.0
        %1932 = vmatpush1.msra.mxu0 %v1906
        %1933 = vmatprep.subr.mxu0 0.0
        %1934 = vmatpush1.msra.mxu0 %v1907
        %1935 = vmatprep.subr.mxu0 0.0
        %1936 = vmatpush1.msra.mxu0 %v1908
        %1937 = vmatprep.subr.mxu0 0.0
        %1938 = vmatpush1.msra.mxu0 %v1909
        %1939 = vmatprep.subr.mxu0 0.0
        %1940 = vmatpush1.msra.mxu0 %v1910
        %1941 = vmatprep.subr.mxu0 0.0
        %1942 = vmatpush1.msra.mxu0 %v1911
        %1943 = vmatprep.subr.mxu0 0.0
        %1944 = vmatpush1.msra.mxu0 %v1912
        %1945 = vmatprep.subr.mxu0 0.0
        %1946 = vmatpush1.msra.mxu0 0.0
        %1947 = vmatprep.subr.mxu0 0.0
        %1948 = vmatpush1.msra.mxu0 0.0
        %1949 = vmatprep.subr.mxu0 0.0
        %1950 = vmatpush1.msra.mxu0 0.0
        %1951 = vmatprep.subr.mxu0 0.0
        %1952 = vmatpush1.msra.mxu0 0.0
        %1953 = vmatprep.subr.mxu0 0.0
        %1954 = vmatpush1.msra.mxu0 0.0
        %1955 = vmatprep.subr.mxu0 0.0
        %1956 = vmatpush1.msra.mxu0 0.0
        %1957 = vmatprep.subr.mxu0 0.0
        %1958 = vmatpush1.msra.mxu0 0.0
        %1959 = vmatprep.subr.mxu0 0.0
        %1960 = vmatpush1.msra.mxu0 0.0
        %1961 = vmatprep.subr.mxu0 0.0
        %1962 = vmatpush1.msra.mxu0 0.0
        %1963 = vmatprep.subr.mxu0 0.0
        %1964 = vmatpush1.msra.mxu0 0.0
        %1965 = vmatprep.subr.mxu0 0.0
        %1966 = vmatpush1.msra.mxu0 0.0
        %1967 = vmatprep.subr.mxu0 0.0
        %1968 = vmatpush1.msra.mxu0 0.0
        %1969 = vmatprep.subr.mxu0 0.0
        %1970 = vmatpush1.msra.mxu0 0.0
        %1971 = vmatprep.subr.mxu0 0.0
        %1972 = vmatpush1.msra.mxu0 0.0
        %1973 = vmatprep.subr.mxu0 0.0
        %1974 = vmatpush1.msra.mxu0 0.0
        %1975 = vmatprep.subr.mxu0 0.0
        %1976 = vmatpush1.msra.mxu0 0.0
        %1977 = vmatprep.mubr.f32.mxu0 0.0
        %1978 = vmatmul.mubr.f32.gmra.mrb[0].mxu0 %v1838
        %v1979 = vpop.f32.mrb[0].mxu0
        %v1980 = vadd.f32 0.0, %v1979
        %v1981 = vpop.f32.mrb[0].mxu0
        %1982 = vmatprep.mubr.f32.mxu0 0.0
        %1983 = vmatmul.mubr.f32.gmra.mrb[0].mxu0 %v1839
        %v1984 = vpop.f32.mrb[0].mxu0
        %v1985 = vadd.f32 0.0, %v1984
        %v1986 = vpop.f32.mrb[0].mxu0
        %1987 = vmatprep.mubr.f32.mxu0 0.0
        %1988 = vmatmul.mubr.f32.gmra.mrb[0].mxu0 %v1840
        %v1989 = vpop.f32.mrb[0].mxu0
        %v1990 = vadd.f32 0.0, %v1989
        %v1991 = vpop.f32.mrb[0].mxu0
        %1992 = vmatprep.mubr.f32.mxu0 0.0
        %1993 = vmatmul.mubr.f32.gmra.mrb[0].mxu0 %v1841
        %v1994 = vpop.f32.mrb[0].mxu0
        %v1995 = vadd.f32 0.0, %v1994
        %v1996 = vpop.f32.mrb[0].mxu0
        %1997 = vmatprep.mubr.f32.mxu0 0.0
        %1998 = vmatmul.mubr.f32.gmra.mrb[0].mxu0 %v1842
        %v1999 = vpop.f32.mrb[0].mxu0
        %v2000 = vadd.f32 0.0, %v1999
        %v2001 = vpop.f32.mrb[0].mxu0
        %2002 = vdwg.mxu0
        %2003 = vmatprep.subr.mxu0 0.0
        %2004 = vmatpush1.msra.mxu0 %v1880
        %2005 = vmatprep.subr.mxu0 0.0
        %2006 = vmatpush1.msra.mxu0 %v1881
        %2007 = vmatprep.subr.mxu0 0.0
        %2008 = vmatpush1.msra.mxu0 %v1882
        %2009 = vmatprep.subr.mxu0 0.0
        %2010 = vmatpush1.msra.mxu0 %v1883
        %2011 = vmatprep.subr.mxu0 0.0
        %2012 = vmatpush1.msra.mxu0 %v1884
        %2013 = vmatprep.subr.mxu0 0.0
        %2014 = vmatpush1.msra.mxu0 %v1885
        %2015 = vmatprep.subr.mxu0 0.0
        %2016 = vmatpush1.msra.mxu0 %v1886
        %2017 = vmatprep.subr.mxu0 0.0
        %2018 = vmatpush1.msra.mxu0 %v1887
        %2019 = vmatprep.subr.mxu0 0.0
        %2020 = vmatpush1.msra.mxu0 %v1888
        %2021 = vmatprep.subr.mxu0 0.0
        %2022 = vmatpush1.msra.mxu0 %v1889
        %2023 = vmatprep.subr.mxu0 0.0
        %2024 = vmatpush1.msra.mxu0 %v1890
        %2025 = vmatprep.subr.mxu0 0.0
        %2026 = vmatpush1.msra.mxu0 %v1891
        %2027 = vmatprep.subr.mxu0 0.0
        %2028 = vmatpush1.msra.mxu0 %v1892
        %2029 = vmatprep.subr.mxu0 0.0
        %2030 = vmatpush1.msra.mxu0 %v1893
        %2031 = vmatprep.subr.mxu0 0.0
        %2032 = vmatpush1.msra.mxu0 %v1894
        %2033 = vmatprep.subr.mxu0 0.0
        %2034 = vmatpush1.msra.mxu0 %v1895
        %2035 = vmatprep.subr.mxu0 0.0
        %2036 = vmatpush1.msra.mxu0 0.0
        %2037 = vmatprep.subr.mxu0 0.0
        %2038 = vmatpush1.msra.mxu0 0.0
        %2039 = vmatprep.subr.mxu0 0.0
        %2040 = vmatpush1.msra.mxu0 0.0
        %2041 = vmatprep.subr.mxu0 0.0
        %2042 = vmatpush1.msra.mxu0 0.0
        %2043 = vmatprep.subr.mxu0 0.0
        %2044 = vmatpush1.msra.mxu0 0.0
        %2045 = vmatprep.subr.mxu0 0.0
        %2046 = vmatpush1.msra.mxu0 0.0
        %2047 = vmatprep.subr.mxu0 0.0
        %2048 = vmatpush1.msra.mxu0 0.0
        %2049 = vmatprep.subr.mxu0 0.0
        %2050 = vmatpush1.msra.mxu0 0.0
        %2051 = vmatprep.subr.mxu0 0.0
        %2052 = vmatpush1.msra.mxu0 0.0
        %2053 = vmatprep.subr.mxu0 0.0
        %2054 = vmatpush1.msra.mxu0 0.0
        %2055 = vmatprep.subr.mxu0 0.0
        %2056 = vmatpush1.msra.mxu0 0.0
        %2057 = vmatprep.subr.mxu0 0.0
        %2058 = vmatpush1.msra.mxu0 0.0
        %2059 = vmatprep.subr.mxu0 0.0
        %2060 = vmatpush1.msra.mxu0 0.0
        %2061 = vmatprep.subr.mxu0 0.0
        %2062 = vmatpush1.msra.mxu0 0.0
        %2063 = vmatprep.subr.mxu0 0.0
        %2064 = vmatpush1.msra.mxu0 0.0
        %2065 = vmatprep.subr.mxu0 0.0
        %2066 = vmatpush1.msra.mxu0 0.0
        %2067 = vmatprep.mubr.f32.mxu0 0.0
        %2068 = vmatmul.mubr.f32.gmra.mrb[0].mxu0 %v1864
        %v2069 = vpop.f32.mrb[0].mxu0
        %v2070 = vadd.f32 %v1980, %v2069
        %v2071 = vpop.f32.mrb[0].mxu0
        %2072 = vmatprep.mubr.f32.mxu0 0.0
        %2073 = vmatmul.mubr.f32.gmra.mrb[0].mxu0 %v1852
        %v2074 = vpop.f32.mrb[0].mxu0
        %v2075 = vadd.f32 %v1985, %v2074
        %v2076 = vpop.f32.mrb[0].mxu0
        %2077 = vmatprep.mubr.f32.mxu0 0.0
        %2078 = vmatmul.mubr.f32.gmra.mrb[0].mxu0 %v1854
        %v2079 = vpop.f32.mrb[0].mxu0
        %v2080 = vadd.f32 %v1990, %v2079
        %v2081 = vpop.f32.mrb[0].mxu0
        %2082 = vmatprep.mubr.f32.mxu0 0.0
        %2083 = vmatmul.mubr.f32.gmra.mrb[0].mxu0 %v1856
        %v2084 = vpop.f32.mrb[0].mxu0
        %v2085 = vadd.f32 %v1995, %v2084
        %v2086 = vpop.f32.mrb[0].mxu0
        %2087 = vmatprep.mubr.f32.mxu0 0.0
        %2088 = vmatmul.mubr.f32.gmra.mrb[0].mxu0 %v1858
        %v2089 = vpop.f32.mrb[0].mxu0
        %v2090 = vadd.f32 %v2000, %v2089
        %v2091 = vpop.f32.mrb[0].mxu0
        %2092 = vdwg.mxu0
        %s2093 = scalar_lea.vmem %s4, 256
        %v2094 = vld [vmem:[%s2093] sm:$0xff]
        %v2095 = vld [vmem:[%s2093 + $0x8] sm:$0xff]
        %v2096 = vld [vmem:[%s2093 + $0x10] sm:$0xff]
        %v2097 = vld [vmem:[%s2093 + $0x18] sm:$0xff]
        %v2098 = vld [vmem:[%s2093 + $0x20] sm:$0xff]
        %v2099 = vld [vmem:[%s2093 + $0x28] sm:$0xff]
        %v2100 = vld [vmem:[%s2093 + $0x30] sm:$0xff]
        %v2101 = vld [vmem:[%s2093 + $0x38] sm:$0xff]
        %v2102 = vld [vmem:[%s2093 + $0x40] sm:$0xff]
        %v2103 = vld [vmem:[%s2093 + $0x48] sm:$0xff]
        %v2104 = vld [vmem:[%s2093 + $0x50] sm:$0xff]
        %v2105 = vld [vmem:[%s2093 + $0x58] sm:$0xff]
        %v2106 = vld [vmem:[%s2093 + $0x60] sm:$0xff]
        %v2107 = vld [vmem:[%s2093 + $0x68] sm:$0xff]
        %v2108 = vld [vmem:[%s2093 + $0x70] sm:$0xff]
        %v2109 = vld [vmem:[%s2093 + $0x78] sm:$0xff]
        %2110 = vmatprep.subr.mxu0 0.0
        %2111 = vmatpush1.msra.mxu0 %v2094
        %2112 = vmatprep.subr.mxu0 0.0
        %2113 = vmatpush1.msra.mxu0 %v2095
        %2114 = vmatprep.subr.mxu0 0.0
        %2115 = vmatpush1.msra.mxu0 %v2096
        %2116 = vmatprep.subr.mxu0 0.0
        %2117 = vmatpush1.msra.mxu0 %v2097
        %2118 = vmatprep.subr.mxu0 0.0
        %2119 = vmatpush1.msra.mxu0 %v2098
        %2120 = vmatprep.subr.mxu0 0.0
        %2121 = vmatpush1.msra.mxu0 %v2099
        %2122 = vmatprep.subr.mxu0 0.0
        %2123 = vmatpush1.msra.mxu0 %v2100
        %2124 = vmatprep.subr.mxu0 0.0
        %2125 = vmatpush1.msra.mxu0 %v2101
        %2126 = vmatprep.subr.mxu0 0.0
        %2127 = vmatpush1.msra.mxu0 %v2102
        %2128 = vmatprep.subr.mxu0 0.0
        %2129 = vmatpush1.msra.mxu0 %v2103
        %2130 = vmatprep.subr.mxu0 0.0
        %2131 = vmatpush1.msra.mxu0 %v2104
        %2132 = vmatprep.subr.mxu0 0.0
        %2133 = vmatpush1.msra.mxu0 %v2105
        %2134 = vmatprep.subr.mxu0 0.0
        %2135 = vmatpush1.msra.mxu0 %v2106
        %2136 = vmatprep.subr.mxu0 0.0
        %2137 = vmatpush1.msra.mxu0 %v2107
        %2138 = vmatprep.subr.mxu0 0.0
        %2139 = vmatpush1.msra.mxu0 %v2108
        %2140 = vmatprep.subr.mxu0 0.0
        %2141 = vmatpush1.msra.mxu0 %v2109
        %2142 = vmatprep.subr.mxu0 0.0
        %2143 = vmatpush1.msra.mxu0 0.0
        %2144 = vmatprep.subr.mxu0 0.0
        %2145 = vmatpush1.msra.mxu0 0.0
        %2146 = vmatprep.subr.mxu0 0.0
        %2147 = vmatpush1.msra.mxu0 0.0
        %2148 = vmatprep.subr.mxu0 0.0
        %2149 = vmatpush1.msra.mxu0 0.0
        %2150 = vmatprep.subr.mxu0 0.0
        %2151 = vmatpush1.msra.mxu0 0.0
        %2152 = vmatprep.subr.mxu0 0.0
        %2153 = vmatpush1.msra.mxu0 0.0
        %2154 = vmatprep.subr.mxu0 0.0
        %2155 = vmatpush1.msra.mxu0 0.0
        %2156 = vmatprep.subr.mxu0 0.0
        %2157 = vmatpush1.msra.mxu0 0.0
        %2158 = vmatprep.subr.mxu0 0.0
        %2159 = vmatpush1.msra.mxu0 0.0
        %2160 = vmatprep.subr.mxu0 0.0
        %2161 = vmatpush1.msra.mxu0 0.0
        %2162 = vmatprep.subr.mxu0 0.0
        %2163 = vmatpush1.msra.mxu0 0.0
        %2164 = vmatprep.subr.mxu0 0.0
        %2165 = vmatpush1.msra.mxu0 0.0
        %2166 = vmatprep.subr.mxu0 0.0
        %2167 = vmatpush1.msra.mxu0 0.0
        %2168 = vmatprep.subr.mxu0 0.0
        %2169 = vmatpush1.msra.mxu0 0.0
        %2170 = vmatprep.subr.mxu0 0.0
        %2171 = vmatpush1.msra.mxu0 0.0
        %2172 = vmatprep.subr.mxu0 0.0
        %2173 = vmatpush1.msra.mxu0 0.0
        %2174 = vmatprep.mubr.f32.mxu0 0.0
        %2175 = vmatmul.mubr.f32.gmra.mrb[0].mxu0 %v1867
        %v2176 = vpop.f32.mrb[0].mxu0
        %v2177 = vadd.f32 0.0, %v2176
        %v2178 = vpop.f32.mrb[0].mxu0
        %2179 = vmatprep.mubr.f32.mxu0 0.0
        %2180 = vmatmul.mubr.f32.gmra.mrb[0].mxu0 %v1869
        %v2181 = vpop.f32.mrb[0].mxu0
        %v2182 = vadd.f32 0.0, %v2181
        %v2183 = vpop.f32.mrb[0].mxu0
        %2184 = vmatprep.mubr.f32.mxu0 0.0
        %2185 = vmatmul.mubr.f32.gmra.mrb[0].mxu0 %v1871
        %v2186 = vpop.f32.mrb[0].mxu0
        %v2187 = vadd.f32 0.0, %v2186
        %v2188 = vpop.f32.mrb[0].mxu0
        %2189 = vmatprep.mubr.f32.mxu0 0.0
        %2190 = vmatmul.mubr.f32.gmra.mrb[0].mxu0 %v1873
        %v2191 = vpop.f32.mrb[0].mxu0
        %v2192 = vadd.f32 0.0, %v2191
        %v2193 = vpop.f32.mrb[0].mxu0
        %2194 = vmatprep.mubr.f32.mxu0 0.0
        %2195 = vmatmul.mubr.f32.gmra.mrb[0].mxu0 %v1879
        %v2196 = vpop.f32.mrb[0].mxu0
        %v2197 = vadd.f32 0.0, %v2196
        %v2198 = vpop.f32.mrb[0].mxu0
        %2199 = vdwg.mxu0
        %v2200 = vadd.f32 %v2070, %v2177
        %v2201 = vadd.f32 %v2075, %v2182
        %v2202 = vadd.f32 %v2080, %v2187
        %v2203 = vadd.f32 %v2085, %v2192
        %v2204 = vadd.f32 %v2090, %v2197
        %v2205 = vlaneseq
        %v2206 = vshrl.u32 %v2205, 7
        %v2207 = vsub.s32 0, %v2206
        %v2208 = vrot.slane %v1843, %v2207
        %v2209 = vadd.f32 %v2200, %v2208
        %v2210 = vadd.f32 %v2201, %v2208
        %v2211 = vadd.f32 %v2202, %v2208
        %v2212 = vadd.f32 %v2203, %v2208
        %v2213 = vadd.f32 %v2204, %v2208
        %v2214 = vmul.f32 %v2209, 0.70710677
        %v2215 = vmul.f32 %v2210, 0.70710677
        %v2216 = vmul.f32 %v2211, 0.70710677
        %v2217 = vmul.f32 %v2212, 0.70710677
        %v2218 = vmul.f32 %v2213, 0.70710677
        %v2219 = vand.u32 2147483647, %v2214
        %v2220 = vand.u32 2147483647, %v2215
        %v2221 = vand.u32 2147483647, %v2216
        %v2222 = vand.u32 2147483647, %v2217
        %v2223 = vand.u32 2147483647, %v2218
        %v2224 = vmul.f32 %v2219, 0.3275911
        %v2225 = vmul.f32 %v2220, 0.3275911
        %v2226 = vmul.f32 %v2221, 0.3275911
        %v2227 = vmul.f32 %v2222, 0.3275911
        %v2228 = vmul.f32 %v2223, 0.3275911
        %v2229 = vadd.f32 %v2224, 1.0
        %v2230 = vadd.f32 %v2225, 1.0
        %v2231 = vadd.f32 %v2226, 1.0
        %v2232 = vadd.f32 %v2227, 1.0
        %v2233 = vadd.f32 %v2228, 1.0
        %v2234 = vrcp.pop %v2229
        %v2235 = vmul.f32 1.0, %v2234
        %v2236 = vrcp.pop %v2230
        %v2237 = vmul.f32 1.0, %v2236
        %v2238 = vrcp.pop %v2231
        %v2239 = vmul.f32 1.0, %v2238
        %v2240 = vrcp.pop %v2232
        %v2241 = vmul.f32 1.0, %v2240
        %v2242 = vrcp.pop %v2233
        %v2243 = vmul.f32 1.0, %v2242
        %v2244 = vmul.f32 %v2235, 1.0614054
        %v2245 = vmul.f32 %v2237, 1.0614054
        %v2246 = vmul.f32 %v2239, 1.0614054
        %v2247 = vmul.f32 %v2241, 1.0614054
        %v2248 = vmul.f32 %v2243, 1.0614054
        %v2249 = vadd.f32 %v2244, -1.4531521
        %v2250 = vadd.f32 %v2245, -1.4531521
        %v2251 = vadd.f32 %v2246, -1.4531521
        %v2252 = vadd.f32 %v2247, -1.4531521
        %v2253 = vadd.f32 %v2248, -1.4531521
        %v2254 = vmul.f32 %v2235, %v2249
        %v2255 = vmul.f32 %v2237, %v2250
        %v2256 = vmul.f32 %v2239, %v2251
        %v2257 = vmul.f32 %v2241, %v2252
        %v2258 = vmul.f32 %v2243, %v2253
        %v2259 = vadd.f32 %v2254, 1.4214138
        %v2260 = vadd.f32 %v2255, 1.4214138
        %v2261 = vadd.f32 %v2256, 1.4214138
        %v2262 = vadd.f32 %v2257, 1.4214138
        %v2263 = vadd.f32 %v2258, 1.4214138
        %v2264 = vmul.f32 %v2235, %v2259
        %v2265 = vmul.f32 %v2237, %v2260
        %v2266 = vmul.f32 %v2239, %v2261
        %v2267 = vmul.f32 %v2241, %v2262
        %v2268 = vmul.f32 %v2243, %v2263
        %v2269 = vadd.f32 %v2264, -0.28449672
        %v2270 = vadd.f32 %v2265, -0.28449672
        %v2271 = vadd.f32 %v2266, -0.28449672
        %v2272 = vadd.f32 %v2267, -0.28449672
        %v2273 = vadd.f32 %v2268, -0.28449672
        %v2274 = vmul.f32 %v2235, %v2269
        %v2275 = vmul.f32 %v2237, %v2270
        %v2276 = vmul.f32 %v2239, %v2271
        %v2277 = vmul.f32 %v2241, %v2272
        %v2278 = vmul.f32 %v2243, %v2273
        %v2279 = vadd.f32 %v2274, 0.2548296
        %v2280 = vadd.f32 %v2275, 0.2548296
        %v2281 = vadd.f32 %v2276, 0.2548296
        %v2282 = vadd.f32 %v2277, 0.2548296
        %v2283 = vadd.f32 %v2278, 0.2548296
        %v2284 = vmul.f32 %v2235, %v2279
        %v2285 = vmul.f32 %v2237, %v2280
        %v2286 = vmul.f32 %v2239, %v2281
        %v2287 = vmul.f32 %v2241, %v2282
        %v2288 = vmul.f32 %v2243, %v2283
        %v2289 = vsub.f32 0.0, %v2219
        %v2290 = vsub.f32 0.0, %v2220
        %v2291 = vsub.f32 0.0, %v2221
        %v2292 = vsub.f32 0.0, %v2222
        %v2293 = vsub.f32 0.0, %v2223
        %v2294 = vmul.f32 %v2289, %v2219
        %v2295 = vmul.f32 %v2290, %v2220
        %v2296 = vmul.f32 %v2291, %v2221
        %v2297 = vmul.f32 %v2292, %v2222
        %v2298 = vmul.f32 %v2293, %v2223
        %v2299 = vmul.f32 %v2294, 1.442695
        %v2300 = vpow.pop %v2299
        %v2301 = vmul.f32 %v2295, 1.442695
        %v2302 = vpow.pop %v2301
        %v2303 = vmul.f32 %v2296, 1.442695
        %v2304 = vpow.pop %v2303
        %v2305 = vmul.f32 %v2297, 1.442695
        %v2306 = vpow.pop %v2305
        %v2307 = vmul.f32 %v2298, 1.442695
        %v2308 = vpow.pop %v2307
        %v2309 = vmul.f32 %v2284, %v2300
        %v2310 = vmul.f32 %v2285, %v2302
        %v2311 = vmul.f32 %v2286, %v2304
        %v2312 = vmul.f32 %v2287, %v2306
        %v2313 = vmul.f32 %v2288, %v2308
        %v2314 = vsub.f32 1.0, %v2309
        %v2315 = vsub.f32 1.0, %v2310
        %v2316 = vsub.f32 1.0, %v2311
        %v2317 = vsub.f32 1.0, %v2312
        %v2318 = vsub.f32 1.0, %v2313
        %vm2319 = vcmp.ge.f32.partialorder %v2214, 0.0
        %vm2320 = vcmp.ge.f32.partialorder %v2215, 0.0
        %vm2321 = vcmp.ge.f32.partialorder %v2216, 0.0
        %vm2322 = vcmp.ge.f32.partialorder %v2217, 0.0
        %vm2323 = vcmp.ge.f32.partialorder %v2218, 0.0
        %v2324 = vsub.f32 0.0, %v2314
        %v2325 = vsub.f32 0.0, %v2315
        %v2326 = vsub.f32 0.0, %v2316
        %v2327 = vsub.f32 0.0, %v2317
        %v2328 = vsub.f32 0.0, %v2318
        %v2329 = vsel %vm2319, %v2314, %v2324
        %v2330 = vsel %vm2320, %v2315, %v2325
        %v2331 = vsel %vm2321, %v2316, %v2326
        %v2332 = vsel %vm2322, %v2317, %v2327
        %v2333 = vsel %vm2323, %v2318, %v2328
        %v2334 = vmul.f32 %v2209, 0.5
        %v2335 = vmul.f32 %v2210, 0.5
        %v2336 = vmul.f32 %v2211, 0.5
        %v2337 = vmul.f32 %v2212, 0.5
        %v2338 = vmul.f32 %v2213, 0.5
        %v2339 = vadd.f32 %v2329, 1.0
        %v2340 = vadd.f32 %v2330, 1.0
        %v2341 = vadd.f32 %v2331, 1.0
        %v2342 = vadd.f32 %v2332, 1.0
        %v2343 = vadd.f32 %v2333, 1.0
        %v2344 = vmul.f32 %v2334, %v2339
        %v2345 = vmul.f32 %v2335, %v2340
        %v2346 = vmul.f32 %v2336, %v2341
        %v2347 = vmul.f32 %v2337, %v2342
        %v2348 = vmul.f32 %v2338, %v2343
        %v2349 = vld [vmem:[%s6] sm:$0xff]
        %v2350 = vld [vmem:[%s6 + $0x8] sm:$0xff]
        %v2351 = vld [vmem:[%s6 + $0x10] sm:$0xff]
        %v2352 = vld [vmem:[%s6 + $0x18] sm:$0xff]
        %v2353 = vld [vmem:[%s6 + $0x20] sm:$0xff]
        %v2354 = vld [vmem:[%s6 + $0x28] sm:$0xff]
        %v2355 = vld [vmem:[%s6 + $0x30] sm:$0xff]
        %v2356 = vld [vmem:[%s6 + $0x38] sm:$0xff]
        %v2357 = vld [vmem:[%s6 + $0x40] sm:$0xff]
        %vm2358 = vcmask 326656
        %v2360 = vsel %vm2358, %v2349, 0
        %v2363 = vsel %vm2358, %v2350, 0
        %v2366 = vsel %vm2358, %v2351, 0
        %v2369 = vsel %vm2358, %v2352, 0
        %v2372 = vsel %vm2358, %v2353, 0
        %v2375 = vsel %vm2358, %v2354, 0
        %v2378 = vsel %vm2358, %v2355, 0
        %v2381 = vsel %vm2358, %v2356, 0
        %v2384 = vsel %vm2358, %v2357, 0
        %2386 = vmatprep.subr.mxu0 0.0
        %2387 = vmatpush1.msra.mxu0 %v2344
        %2388 = vmatprep.subr.mxu0 0.0
        %2389 = vmatpush1.msra.mxu0 %v2345
        %2390 = vmatprep.subr.mxu0 0.0
        %2391 = vmatpush1.msra.mxu0 %v2346
        %2392 = vmatprep.subr.mxu0 0.0
        %2393 = vmatpush1.msra.mxu0 %v2347
        %2394 = vmatprep.subr.mxu0 0.0
        %2395 = vmatpush1.msra.mxu0 %v2348
        %2396 = vmatprep.subr.mxu0 0.0
        %2397 = vmatpush1.msra.mxu0 0.0
        %2398 = vmatprep.subr.mxu0 0.0
        %2399 = vmatpush1.msra.mxu0 0.0
        %2400 = vmatprep.subr.mxu0 0.0
        %2401 = vmatpush1.msra.mxu0 0.0
        %2402 = vmatprep.subr.mxu0 0.0
        %2403 = vmatpush1.msra.mxu0 0.0
        %2404 = vmatprep.subr.mxu0 0.0
        %2405 = vmatpush1.msra.mxu0 0.0
        %2406 = vmatprep.subr.mxu0 0.0
        %2407 = vmatpush1.msra.mxu0 0.0
        %2408 = vmatprep.subr.mxu0 0.0
        %2409 = vmatpush1.msra.mxu0 0.0
        %2410 = vmatprep.subr.mxu0 0.0
        %2411 = vmatpush1.msra.mxu0 0.0
        %2412 = vmatprep.subr.mxu0 0.0
        %2413 = vmatpush1.msra.mxu0 0.0
        %2414 = vmatprep.subr.mxu0 0.0
        %2415 = vmatpush1.msra.mxu0 0.0
        %2416 = vmatprep.subr.mxu0 0.0
        %2417 = vmatpush1.msra.mxu0 0.0
        %2418 = vmatprep.subr.mxu0 0.0
        %2419 = vmatpush1.msra.mxu0 0.0
        %2420 = vmatprep.subr.mxu0 0.0
        %2421 = vmatpush1.msra.mxu0 0.0
        %2422 = vmatprep.subr.mxu0 0.0
        %2423 = vmatpush1.msra.mxu0 0.0
        %2424 = vmatprep.subr.mxu0 0.0
        %2425 = vmatpush1.msra.mxu0 0.0
        %2426 = vmatprep.subr.mxu0 0.0
        %2427 = vmatpush1.msra.mxu0 0.0
        %2428 = vmatprep.subr.mxu0 0.0
        %2429 = vmatpush1.msra.mxu0 0.0
        %2430 = vmatprep.subr.mxu0 0.0
        %2431 = vmatpush1.msra.mxu0 0.0
        %2432 = vmatprep.subr.mxu0 0.0
        %2433 = vmatpush1.msra.mxu0 0.0
        %2434 = vmatprep.subr.mxu0 0.0
        %2435 = vmatpush1.msra.mxu0 0.0
        %2436 = vmatprep.subr.mxu0 0.0
        %2437 = vmatpush1.msra.mxu0 0.0
        %2438 = vmatprep.subr.mxu0 0.0
        %2439 = vmatpush1.msra.mxu0 0.0
        %2440 = vmatprep.subr.mxu0 0.0
        %2441 = vmatpush1.msra.mxu0 0.0
        %2442 = vmatprep.subr.mxu0 0.0
        %2443 = vmatpush1.msra.mxu0 0.0
        %2444 = vmatprep.subr.mxu0 0.0
        %2445 = vmatpush1.msra.mxu0 0.0
        %2446 = vmatprep.subr.mxu0 0.0
        %2447 = vmatpush1.msra.mxu0 0.0
        %2448 = vmatprep.subr.mxu0 0.0
        %2449 = vmatpush1.msra.mxu0 0.0
        %2450 = vmatprep.mubr.f32.mxu0 0.0
        %2451 = vmatmul.mubr.f32.gmra.mrb[0].mxu0 %v2360
        %v2452 = vpop.f32.mrb[0].mxu0
        %v2453 = vadd.f32 0.0, %v2452
        %v2454 = vpop.f32.mrb[0].mxu0
        %2455 = vmatprep.mubr.f32.mxu0 0.0
        %2456 = vmatmul.mubr.f32.gmra.mrb[0].mxu0 %v2363
        %v2457 = vpop.f32.mrb[0].mxu0
        %v2458 = vadd.f32 0.0, %v2457
        %v2459 = vpop.f32.mrb[0].mxu0
        %2460 = vmatprep.mubr.f32.mxu0 0.0
        %2461 = vmatmul.mubr.f32.gmra.mrb[0].mxu0 %v2366
        %v2462 = vpop.f32.mrb[0].mxu0
        %v2463 = vadd.f32 0.0, %v2462
        %v2464 = vpop.f32.mrb[0].mxu0
        %2465 = vmatprep.mubr.f32.mxu0 0.0
        %2466 = vmatmul.mubr.f32.gmra.mrb[0].mxu0 %v2369
        %v2467 = vpop.f32.mrb[0].mxu0
        %v2468 = vadd.f32 0.0, %v2467
        %v2469 = vpop.f32.mrb[0].mxu0
        %2470 = vmatprep.mubr.f32.mxu0 0.0
        %2471 = vmatmul.mubr.f32.gmra.mrb[0].mxu0 %v2372
        %v2472 = vpop.f32.mrb[0].mxu0
        %v2473 = vadd.f32 0.0, %v2472
        %v2474 = vpop.f32.mrb[0].mxu0
        %2475 = vmatprep.mubr.f32.mxu0 0.0
        %2476 = vmatmul.mubr.f32.gmra.mrb[0].mxu0 %v2375
        %v2477 = vpop.f32.mrb[0].mxu0
        %v2478 = vadd.f32 0.0, %v2477
        %v2479 = vpop.f32.mrb[0].mxu0
        %2480 = vmatprep.mubr.f32.mxu0 0.0
        %2481 = vmatmul.mubr.f32.gmra.mrb[0].mxu0 %v2378
        %v2482 = vpop.f32.mrb[0].mxu0
        %v2483 = vadd.f32 0.0, %v2482
        %v2484 = vpop.f32.mrb[0].mxu0
        %2485 = vmatprep.mubr.f32.mxu0 0.0
        %2486 = vmatmul.mubr.f32.gmra.mrb[0].mxu0 %v2381
        %v2487 = vpop.f32.mrb[0].mxu0
        %v2488 = vadd.f32 0.0, %v2487
        %v2489 = vpop.f32.mrb[0].mxu0
        %2490 = vmatprep.mubr.f32.mxu0 0.0
        %2491 = vmatmul.mubr.f32.gmra.mrb[0].mxu0 %v2384
        %v2492 = vpop.f32.mrb[0].mxu0
        %v2493 = vadd.f32 0.0, %v2492
        %v2494 = vpop.f32.mrb[0].mxu0
        %2495 = vdwg.mxu0
        %v2496 = vld [vmem:[#allocation4] sm:$0xff]
        %v2497 = vld [vmem:[#allocation4 + $0x8] sm:$0xff]
        %v2498 = vld [vmem:[#allocation4 + $0x10] sm:$0xff]
        %v2499 = vld [vmem:[#allocation4 + $0x18] sm:$0xff]
        %v2500 = vld [vmem:[#allocation4 + $0x20] sm:$0xff]
        %v2501 = vld [vmem:[#allocation4 + $0x28] sm:$0xff]
        %v2502 = vld [vmem:[#allocation4 + $0x30] sm:$0xff]
        %v2503 = vld [vmem:[#allocation4 + $0x38] sm:$0xff]
        %s2504 = scalar_lea.vmem [#allocation4], 64
        %v2505 = vld [vmem:[%s2504] sm:$0xff]
        %v2506 = vld [vmem:[%s2504 + $0x8] sm:$0xff]
        %v2507 = vld [vmem:[%s2504 + $0x10] sm:$0xff]
        %v2508 = vld [vmem:[%s2504 + $0x18] sm:$0xff]
        %v2509 = vld [vmem:[%s2504 + $0x20] sm:$0xff]
        %v2510 = vld [vmem:[%s2504 + $0x28] sm:$0xff]
        %v2511 = vld [vmem:[%s2504 + $0x30] sm:$0xff]
        %v2512 = vld [vmem:[%s2504 + $0x38] sm:$0xff]
        %vm2513 = vcmask 523264
        %v2515 = vsel %vm2513, %v2468, 0
        %v2518 = vsel %vm2513, %v2473, 0
        %v2521 = vsel %vm2513, %v2478, 0
        %2523 = vmatprep.subr.mxu0 0.0
        %2524 = vmatpush1.msra.mxu0 %v2505
        %2525 = vmatprep.subr.mxu0 0.0
        %2526 = vmatpush1.msra.mxu0 %v2506
        %2527 = vmatprep.subr.mxu0 0.0
        %2528 = vmatpush1.msra.mxu0 %v2507
        %2529 = vmatprep.subr.mxu0 0.0
        %2530 = vmatpush1.msra.mxu0 %v2508
        %2531 = vmatprep.subr.mxu0 0.0
        %2532 = vmatpush1.msra.mxu0 %v2509
        %2533 = vmatprep.subr.mxu0 0.0
        %2534 = vmatpush1.msra.mxu0 %v2510
        %2535 = vmatprep.subr.mxu0 0.0
        %2536 = vmatpush1.msra.mxu0 %v2511
        %2537 = vmatprep.subr.mxu0 0.0
        %2538 = vmatpush1.msra.mxu0 %v2512
        %2539 = vmatprep.subr.mxu0 0.0
        %2540 = vmatpush1.msra.mxu0 0.0
        %2541 = vmatprep.subr.mxu0 0.0
        %2542 = vmatpush1.msra.mxu0 0.0
        %2543 = vmatprep.subr.mxu0 0.0
        %2544 = vmatpush1.msra.mxu0 0.0
        %2545 = vmatprep.subr.mxu0 0.0
        %2546 = vmatpush1.msra.mxu0 0.0
        %2547 = vmatprep.subr.mxu0 0.0
        %2548 = vmatpush1.msra.mxu0 0.0
        %2549 = vmatprep.subr.mxu0 0.0
        %2550 = vmatpush1.msra.mxu0 0.0
        %2551 = vmatprep.subr.mxu0 0.0
        %2552 = vmatpush1.msra.mxu0 0.0
        %2553 = vmatprep.subr.mxu0 0.0
        %2554 = vmatpush1.msra.mxu0 0.0
        %2555 = vmatprep.subr.mxu0 0.0
        %2556 = vmatpush1.msra.mxu0 0.0
        %2557 = vmatprep.subr.mxu0 0.0
        %2558 = vmatpush1.msra.mxu0 0.0
        %2559 = vmatprep.subr.mxu0 0.0
        %2560 = vmatpush1.msra.mxu0 0.0
        %2561 = vmatprep.subr.mxu0 0.0
        %2562 = vmatpush1.msra.mxu0 0.0
        %2563 = vmatprep.subr.mxu0 0.0
        %2564 = vmatpush1.msra.mxu0 0.0
        %2565 = vmatprep.subr.mxu0 0.0
        %2566 = vmatpush1.msra.mxu0 0.0
        %2567 = vmatprep.subr.mxu0 0.0
        %2568 = vmatpush1.msra.mxu0 0.0
        %2569 = vmatprep.subr.mxu0 0.0
        %2570 = vmatpush1.msra.mxu0 0.0
        %2571 = vmatprep.subr.mxu0 0.0
        %2572 = vmatpush1.msra.mxu0 0.0
        %2573 = vmatprep.subr.mxu0 0.0
        %2574 = vmatpush1.msra.mxu0 0.0
        %2575 = vmatprep.subr.mxu0 0.0
        %2576 = vmatpush1.msra.mxu0 0.0
        %2577 = vmatprep.subr.mxu0 0.0
        %2578 = vmatpush1.msra.mxu0 0.0
        %2579 = vmatprep.subr.mxu0 0.0
        %2580 = vmatpush1.msra.mxu0 0.0
        %2581 = vmatprep.subr.mxu0 0.0
        %2582 = vmatpush1.msra.mxu0 0.0
        %2583 = vmatprep.subr.mxu0 0.0
        %2584 = vmatpush1.msra.mxu0 0.0
        %2585 = vmatprep.subr.mxu0 0.0
        %2586 = vmatpush1.msra.mxu0 0.0
        %2587 = vmatprep.mubr.f32.mxu0 0.0
        %2588 = vmatmul.mubr.f32.gmra.mrb[0].mxu0 %v2515
        %v2589 = vpop.f32.mrb[0].mxu0
        %v2590 = vadd.f32 0.0, %v2589
        %v2591 = vpop.f32.mrb[0].mxu0
        %2592 = vmatprep.mubr.f32.mxu0 0.0
        %2593 = vmatmul.mubr.f32.gmra.mrb[0].mxu0 %v2518
        %v2594 = vpop.f32.mrb[0].mxu0
        %v2595 = vadd.f32 0.0, %v2594
        %v2596 = vpop.f32.mrb[0].mxu0
        %2597 = vmatprep.mubr.f32.mxu0 0.0
        %2598 = vmatmul.mubr.f32.gmra.mrb[0].mxu0 %v2521
        %v2599 = vpop.f32.mrb[0].mxu0
        %v2600 = vadd.f32 0.0, %v2599
        %v2601 = vpop.f32.mrb[0].mxu0
        %2602 = vdwg.mxu0
        %v2604 = vsel %vm2513, %v2453, 0
        %v2607 = vsel %vm2513, %v2458, 0
        %v2610 = vsel %vm2513, %v2463, 0
        %2612 = vmatprep.subr.mxu0 0.0
        %2613 = vmatpush1.msra.mxu0 %v2496
        %2614 = vmatprep.subr.mxu0 0.0
        %2615 = vmatpush1.msra.mxu0 %v2497
        %2616 = vmatprep.subr.mxu0 0.0
        %2617 = vmatpush1.msra.mxu0 %v2498
        %2618 = vmatprep.subr.mxu0 0.0
        %2619 = vmatpush1.msra.mxu0 %v2499
        %2620 = vmatprep.subr.mxu0 0.0
        %2621 = vmatpush1.msra.mxu0 %v2500
        %2622 = vmatprep.subr.mxu0 0.0
        %2623 = vmatpush1.msra.mxu0 %v2501
        %2624 = vmatprep.subr.mxu0 0.0
        %2625 = vmatpush1.msra.mxu0 %v2502
        %2626 = vmatprep.subr.mxu0 0.0
        %2627 = vmatpush1.msra.mxu0 %v2503
        %2628 = vmatprep.subr.mxu0 0.0
        %2629 = vmatpush1.msra.mxu0 0.0
        %2630 = vmatprep.subr.mxu0 0.0
        %2631 = vmatpush1.msra.mxu0 0.0
        %2632 = vmatprep.subr.mxu0 0.0
        %2633 = vmatpush1.msra.mxu0 0.0
        %2634 = vmatprep.subr.mxu0 0.0
        %2635 = vmatpush1.msra.mxu0 0.0
        %2636 = vmatprep.subr.mxu0 0.0
        %2637 = vmatpush1.msra.mxu0 0.0
        %2638 = vmatprep.subr.mxu0 0.0
        %2639 = vmatpush1.msra.mxu0 0.0
        %2640 = vmatprep.subr.mxu0 0.0
        %2641 = vmatpush1.msra.mxu0 0.0
        %2642 = vmatprep.subr.mxu0 0.0
        %2643 = vmatpush1.msra.mxu0 0.0
        %2644 = vmatprep.subr.mxu0 0.0
        %2645 = vmatpush1.msra.mxu0 0.0
        %2646 = vmatprep.subr.mxu0 0.0
        %2647 = vmatpush1.msra.mxu0 0.0
        %2648 = vmatprep.subr.mxu0 0.0
        %2649 = vmatpush1.msra.mxu0 0.0
        %2650 = vmatprep.subr.mxu0 0.0
        %2651 = vmatpush1.msra.mxu0 0.0
        %2652 = vmatprep.subr.mxu0 0.0
        %2653 = vmatpush1.msra.mxu0 0.0
        %2654 = vmatprep.subr.mxu0 0.0
        %2655 = vmatpush1.msra.mxu0 0.0
        %2656 = vmatprep.subr.mxu0 0.0
        %2657 = vmatpush1.msra.mxu0 0.0
        %2658 = vmatprep.subr.mxu0 0.0
        %2659 = vmatpush1.msra.mxu0 0.0
        %2660 = vmatprep.subr.mxu0 0.0
        %2661 = vmatpush1.msra.mxu0 0.0
        %2662 = vmatprep.subr.mxu0 0.0
        %2663 = vmatpush1.msra.mxu0 0.0
        %2664 = vmatprep.subr.mxu0 0.0
        %2665 = vmatpush1.msra.mxu0 0.0
        %2666 = vmatprep.subr.mxu0 0.0
        %2667 = vmatpush1.msra.mxu0 0.0
        %2668 = vmatprep.subr.mxu0 0.0
        %2669 = vmatpush1.msra.mxu0 0.0
        %2670 = vmatprep.subr.mxu0 0.0
        %2671 = vmatpush1.msra.mxu0 0.0
        %2672 = vmatprep.subr.mxu0 0.0
        %2673 = vmatpush1.msra.mxu0 0.0
        %2674 = vmatprep.subr.mxu0 0.0
        %2675 = vmatpush1.msra.mxu0 0.0
        %2676 = vmatprep.mubr.f32.mxu0 0.0
        %2677 = vmatmul.mubr.f32.gmra.mrb[0].mxu0 %v2604
        %v2678 = vpop.f32.mrb[0].mxu0
        %v2679 = vadd.f32 %v2590, %v2678
        %v2680 = vpop.f32.mrb[0].mxu0
        %2681 = vmatprep.mubr.f32.mxu0 0.0
        %2682 = vmatmul.mubr.f32.gmra.mrb[0].mxu0 %v2607
        %v2683 = vpop.f32.mrb[0].mxu0
        %v2684 = vadd.f32 %v2595, %v2683
        %v2685 = vpop.f32.mrb[0].mxu0
        %2686 = vmatprep.mubr.f32.mxu0 0.0
        %2687 = vmatmul.mubr.f32.gmra.mrb[0].mxu0 %v2610
        %v2688 = vpop.f32.mrb[0].mxu0
        %v2689 = vadd.f32 %v2600, %v2688
        %v2690 = vpop.f32.mrb[0].mxu0
        %2691 = vdwg.mxu0
        %s2692 = scalar_lea.vmem [#allocation4], 128
        %v2693 = vld [vmem:[%s2692] sm:$0xff]
        %v2694 = vld [vmem:[%s2692 + $0x8] sm:$0xff]
        %v2695 = vld [vmem:[%s2692 + $0x10] sm:$0xff]
        %v2696 = vld [vmem:[%s2692 + $0x18] sm:$0xff]
        %v2697 = vld [vmem:[%s2692 + $0x20] sm:$0xff]
        %v2698 = vld [vmem:[%s2692 + $0x28] sm:$0xff]
        %v2699 = vld [vmem:[%s2692 + $0x30] sm:$0xff]
        %v2700 = vld [vmem:[%s2692 + $0x38] sm:$0xff]
        %v2702 = vsel %vm2513, %v2483, 0
        %v2705 = vsel %vm2513, %v2488, 0
        %v2708 = vsel %vm2513, %v2493, 0
        %2710 = vmatprep.subr.mxu0 0.0
        %2711 = vmatpush1.msra.mxu0 %v2693
        %2712 = vmatprep.subr.mxu0 0.0
        %2713 = vmatpush1.msra.mxu0 %v2694
        %2714 = vmatprep.subr.mxu0 0.0
        %2715 = vmatpush1.msra.mxu0 %v2695
        %2716 = vmatprep.subr.mxu0 0.0
        %2717 = vmatpush1.msra.mxu0 %v2696
        %2718 = vmatprep.subr.mxu0 0.0
        %2719 = vmatpush1.msra.mxu0 %v2697
        %2720 = vmatprep.subr.mxu0 0.0
        %2721 = vmatpush1.msra.mxu0 %v2698
        %2722 = vmatprep.subr.mxu0 0.0
        %2723 = vmatpush1.msra.mxu0 %v2699
        %2724 = vmatprep.subr.mxu0 0.0
        %2725 = vmatpush1.msra.mxu0 %v2700
        %2726 = vmatprep.subr.mxu0 0.0
        %2727 = vmatpush1.msra.mxu0 0.0
        %2728 = vmatprep.subr.mxu0 0.0
        %2729 = vmatpush1.msra.mxu0 0.0
        %2730 = vmatprep.subr.mxu0 0.0
        %2731 = vmatpush1.msra.mxu0 0.0
        %2732 = vmatprep.subr.mxu0 0.0
        %2733 = vmatpush1.msra.mxu0 0.0
        %2734 = vmatprep.subr.mxu0 0.0
        %2735 = vmatpush1.msra.mxu0 0.0
        %2736 = vmatprep.subr.mxu0 0.0
        %2737 = vmatpush1.msra.mxu0 0.0
        %2738 = vmatprep.subr.mxu0 0.0
        %2739 = vmatpush1.msra.mxu0 0.0
        %2740 = vmatprep.subr.mxu0 0.0
        %2741 = vmatpush1.msra.mxu0 0.0
        %2742 = vmatprep.subr.mxu0 0.0
        %2743 = vmatpush1.msra.mxu0 0.0
        %2744 = vmatprep.subr.mxu0 0.0
        %2745 = vmatpush1.msra.mxu0 0.0
        %2746 = vmatprep.subr.mxu0 0.0
        %2747 = vmatpush1.msra.mxu0 0.0
        %2748 = vmatprep.subr.mxu0 0.0
        %2749 = vmatpush1.msra.mxu0 0.0
        %2750 = vmatprep.subr.mxu0 0.0
        %2751 = vmatpush1.msra.mxu0 0.0
        %2752 = vmatprep.subr.mxu0 0.0
        %2753 = vmatpush1.msra.mxu0 0.0
        %2754 = vmatprep.subr.mxu0 0.0
        %2755 = vmatpush1.msra.mxu0 0.0
        %2756 = vmatprep.subr.mxu0 0.0
        %2757 = vmatpush1.msra.mxu0 0.0
        %2758 = vmatprep.subr.mxu0 0.0
        %2759 = vmatpush1.msra.mxu0 0.0
        %2760 = vmatprep.subr.mxu0 0.0
        %2761 = vmatpush1.msra.mxu0 0.0
        %2762 = vmatprep.subr.mxu0 0.0
        %2763 = vmatpush1.msra.mxu0 0.0
        %2764 = vmatprep.subr.mxu0 0.0
        %2765 = vmatpush1.msra.mxu0 0.0
        %2766 = vmatprep.subr.mxu0 0.0
        %2767 = vmatpush1.msra.mxu0 0.0
        %2768 = vmatprep.subr.mxu0 0.0
        %2769 = vmatpush1.msra.mxu0 0.0
        %2770 = vmatprep.subr.mxu0 0.0
        %2771 = vmatpush1.msra.mxu0 0.0
        %2772 = vmatprep.subr.mxu0 0.0
        %2773 = vmatpush1.msra.mxu0 0.0
        %2774 = vmatprep.mubr.f32.mxu0 0.0
        %2775 = vmatmul.mubr.f32.gmra.mrb[0].mxu0 %v2702
        %v2776 = vpop.f32.mrb[0].mxu0
        %v2777 = vadd.f32 0.0, %v2776
        %v2778 = vpop.f32.mrb[0].mxu0
        %2779 = vmatprep.mubr.f32.mxu0 0.0
        %2780 = vmatmul.mubr.f32.gmra.mrb[0].mxu0 %v2705
        %v2781 = vpop.f32.mrb[0].mxu0
        %v2782 = vadd.f32 0.0, %v2781
        %v2783 = vpop.f32.mrb[0].mxu0
        %2784 = vmatprep.mubr.f32.mxu0 0.0
        %2785 = vmatmul.mubr.f32.gmra.mrb[0].mxu0 %v2708
        %v2786 = vpop.f32.mrb[0].mxu0
        %v2787 = vadd.f32 0.0, %v2786
        %v2788 = vpop.f32.mrb[0].mxu0
        %2789 = vdwg.mxu0
        %v2790 = vadd.f32 %v2679, %v2777
        %v2791 = vadd.f32 %v2684, %v2782
        %v2792 = vadd.f32 %v2689, %v2787
        %v2793 = vlaneseq
        %v2794 = vshrl.u32 %v2793, 7
        %v2795 = vsub.s32 1, %v2794
        %v2796 = vrot.slane %v1843, %v2795
        %v2797 = vadd.f32 %v2790, %v2796
        %v2798 = vadd.f32 %v2791, %v2796
        %v2799 = vadd.f32 %v2792, %v2796
        %v2800 = vmul.f32 %v2797, 0.70710677
        %v2801 = vmul.f32 %v2798, 0.70710677
        %v2802 = vmul.f32 %v2799, 0.70710677
        %v2803 = vand.u32 2147483647, %v2800
        %v2804 = vand.u32 2147483647, %v2801
        %v2805 = vand.u32 2147483647, %v2802
        %v2806 = vmul.f32 %v2803, 0.3275911
        %v2807 = vmul.f32 %v2804, 0.3275911
        %v2808 = vmul.f32 %v2805, 0.3275911
        %v2809 = vadd.f32 %v2806, 1.0
        %v2810 = vadd.f32 %v2807, 1.0
        %v2811 = vadd.f32 %v2808, 1.0
        %v2812 = vrcp.pop %v2809
        %v2813 = vmul.f32 1.0, %v2812
        %v2814 = vrcp.pop %v2810
        %v2815 = vmul.f32 1.0, %v2814
        %v2816 = vrcp.pop %v2811
        %v2817 = vmul.f32 1.0, %v2816
        %v2818 = vmul.f32 %v2813, 1.0614054
        %v2819 = vmul.f32 %v2815, 1.0614054
        %v2820 = vmul.f32 %v2817, 1.0614054
        %v2821 = vadd.f32 %v2818, -1.4531521
        %v2822 = vadd.f32 %v2819, -1.4531521
        %v2823 = vadd.f32 %v2820, -1.4531521
        %v2824 = vmul.f32 %v2813, %v2821
        %v2825 = vmul.f32 %v2815, %v2822
        %v2826 = vmul.f32 %v2817, %v2823
        %v2827 = vadd.f32 %v2824, 1.4214138
        %v2828 = vadd.f32 %v2825, 1.4214138
        %v2829 = vadd.f32 %v2826, 1.4214138
        %v2830 = vmul.f32 %v2813, %v2827
        %v2831 = vmul.f32 %v2815, %v2828
        %v2832 = vmul.f32 %v2817, %v2829
        %v2833 = vadd.f32 %v2830, -0.28449672
        %v2834 = vadd.f32 %v2831, -0.28449672
        %v2835 = vadd.f32 %v2832, -0.28449672
        %v2836 = vmul.f32 %v2813, %v2833
        %v2837 = vmul.f32 %v2815, %v2834
        %v2838 = vmul.f32 %v2817, %v2835
        %v2839 = vadd.f32 %v2836, 0.2548296
        %v2840 = vadd.f32 %v2837, 0.2548296
        %v2841 = vadd.f32 %v2838, 0.2548296
        %v2842 = vmul.f32 %v2813, %v2839
        %v2843 = vmul.f32 %v2815, %v2840
        %v2844 = vmul.f32 %v2817, %v2841
        %v2845 = vsub.f32 0.0, %v2803
        %v2846 = vsub.f32 0.0, %v2804
        %v2847 = vsub.f32 0.0, %v2805
        %v2848 = vmul.f32 %v2845, %v2803
        %v2849 = vmul.f32 %v2846, %v2804
        %v2850 = vmul.f32 %v2847, %v2805
        %v2851 = vmul.f32 %v2848, 1.442695
        %v2852 = vpow.pop %v2851
        %v2853 = vmul.f32 %v2849, 1.442695
        %v2854 = vpow.pop %v2853
        %v2855 = vmul.f32 %v2850, 1.442695
        %v2856 = vpow.pop %v2855
        %v2857 = vmul.f32 %v2842, %v2852
        %v2858 = vmul.f32 %v2843, %v2854
        %v2859 = vmul.f32 %v2844, %v2856
        %v2860 = vsub.f32 1.0, %v2857
        %v2861 = vsub.f32 1.0, %v2858
        %v2862 = vsub.f32 1.0, %v2859
        %vm2863 = vcmp.ge.f32.partialorder %v2800, 0.0
        %vm2864 = vcmp.ge.f32.partialorder %v2801, 0.0
        %vm2865 = vcmp.ge.f32.partialorder %v2802, 0.0
        %v2866 = vsub.f32 0.0, %v2860
        %v2867 = vsub.f32 0.0, %v2861
        %v2868 = vsub.f32 0.0, %v2862
        %v2869 = vsel %vm2863, %v2860, %v2866
        %v2870 = vsel %vm2864, %v2861, %v2867
        %v2871 = vsel %vm2865, %v2862, %v2868
        %v2872 = vmul.f32 %v2797, 0.5
        %v2873 = vmul.f32 %v2798, 0.5
        %v2874 = vmul.f32 %v2799, 0.5
        %v2875 = vadd.f32 %v2869, 1.0
        %v2876 = vadd.f32 %v2870, 1.0
        %v2877 = vadd.f32 %v2871, 1.0
        %v2878 = vmul.f32 %v2872, %v2875
        %v2879 = vmul.f32 %v2873, %v2876
        %v2880 = vmul.f32 %v2874, %v2877
        %v2881 = vld [vmem:[#allocation7] sm:$0xff]
        %v2882 = vld [vmem:[#allocation7 + $0x8] sm:$0xff]
        %v2883 = vld [vmem:[#allocation7 + $0x10] sm:$0xf]
        %v2884 = vadd.f32 %v2878, %v2881
        %v2885 = vadd.f32 %v2879, %v2882
        %v2886 = vadd.f32 %v2880, %v2883
        %v2887 = vld [vmem:[#allocation9] sm:$0xf]
        %v2888 = vsel %vm2513, %v2884, 0.0
        %2889 = vadd.xlane.f32.xlu0 %v2888
        %v2890 = vpop.xlane.xlu0 %2889
        %v2891 = vsel %vm2513, %v2885, 0.0
        %2892 = vadd.xlane.f32.xlu0 %v2891
        %v2893 = vpop.xlane.xlu0 %2892
        %vm2894 = vcmask 519168
        %v2895 = vsel %vm2894, %v2886, 0.0
        %2896 = vadd.xlane.f32.xlu0 %v2895
        %v2897 = vpop.xlane.xlu0 %2896
        %v2898 = vrcp.pop 64.0
        %v2899 = vmul.f32 %v2890, %v2898
        %v2900 = vmul.f32 %v2893, %v2898
        %v2901 = vmul.f32 %v2897, %v2898
        %v2902 = vsub.f32 %v2884, %v2899
        %v2903 = vsub.f32 %v2885, %v2900
        %v2904 = vsub.f32 %v2886, %v2901
        %v2905 = vmul.f32 %v2902, %v2902
        %v2906 = vmul.f32 %v2903, %v2903
        %v2907 = vmul.f32 %v2904, %v2904
        %v2908 = vsel %vm2513, %v2905, 0.0
        %2909 = vadd.xlane.f32.xlu0 %v2908
        %v2910 = vpop.xlane.xlu0 %2909
        %v2911 = vsel %vm2513, %v2906, 0.0
        %2912 = vadd.xlane.f32.xlu0 %v2911
        %v2913 = vpop.xlane.xlu0 %2912
        %v2914 = vsel %vm2894, %v2907, 0.0
        %2915 = vadd.xlane.f32.xlu0 %v2914
        %v2916 = vpop.xlane.xlu0 %2915
        %v2917 = vmul.f32 %v2910, %v2898
        %v2918 = vmul.f32 %v2913, %v2898
        %v2919 = vmul.f32 %v2916, %v2898
        %v2920 = vadd.f32 %v2917, 1e-05
        %v2921 = vadd.f32 %v2918, 1e-05
        %v2922 = vadd.f32 %v2919, 1e-05
        %v2923 = vrsqrt.pop %v2920
        %v2924 = vrsqrt.pop %v2921
        %v2925 = vrsqrt.pop %v2922
        %v2926 = vmul.f32 %v2902, %v2923
        %v2927 = vmul.f32 %v2903, %v2924
        %v2928 = vmul.f32 %v2904, %v2925
        %v2929 = vlaneseq
        %v2930 = vshrl.u32 %v2929, 7
        %v2931 = vsub.s32 0, %v2930
        %v2932 = vrot.slane %v2887, %v2931
        %v2933 = vmul.f32 %v2926, %v2932
        %v2934 = vmul.f32 %v2927, %v2932
        %v2935 = vmul.f32 %v2928, %v2932
        %v2936 = vlaneseq
        %v2937 = vshrl.u32 %v2936, 7
        %v2938 = vsub.s32 1, %v2937
        %v2939 = vrot.slane %v2887, %v2938
        %v2940 = vadd.f32 %v2933, %v2939
        %v2941 = vadd.f32 %v2934, %v2939
        %v2942 = vadd.f32 %v2935, %v2939
        %v2943 = vld [vmem:[#allocation10] sm:$0xff]
        %v2944 = vld [vmem:[#allocation10 + $0x8] sm:$0xff]
        %v2945 = vld [vmem:[#allocation10 + $0x10] sm:$0xff]
        %v2946 = vld [vmem:[#allocation10 + $0x18] sm:$0xff]
        %v2947 = vld [vmem:[#allocation10 + $0x20] sm:$0xff]
        %v2948 = vld [vmem:[#allocation10 + $0x28] sm:$0xff]
        %v2949 = vld [vmem:[#allocation10 + $0x30] sm:$0xff]
        %v2950 = vld [vmem:[#allocation10 + $0x38] sm:$0xff]
        %v2951 = vld [vmem:[#allocation10 + $0x40] sm:$0xff]
        %v2952 = vld [vmem:[#allocation10 + $0x48] sm:$0xff]
        %v2953 = vld [vmem:[#allocation10 + $0x50] sm:$0xff]
        %v2954 = vld [vmem:[#allocation10 + $0x58] sm:$0xff]
        %v2955 = vld [vmem:[#allocation10 + $0x60] sm:$0xff]
        %v2956 = vld [vmem:[#allocation10 + $0x68] sm:$0xff]
        %v2957 = vld [vmem:[#allocation10 + $0x70] sm:$0xff]
        %v2958 = vld [vmem:[#allocation10 + $0x78] sm:$0xff]
        %v2959 = vld [vmem:[#allocation12] sm:$0x3]
        %v2961 = vlaneseq
        %v2962 = vshrl.u32 %v2961, 7
        %v2963 = vsub.s32 0, %v2962
        %v2964 = vrot.slane %v2959, %v2963
        %v2965 = vlaneseq
        %v2966 = vshrl.u32 %v2965, 7
        %v2967 = vsub.s32 1, %v2966
        %v2968 = vrot.slane %v2959, %v2967
        %v2972 = vsel %vm2513, %v2940, 0
        %v2975 = vsel %vm2513, %v2941, 0
        %v2978 = vsel %vm2513, %v2942, 0
        %2980 = vmatprep.subr.mxu0 %v2944
        %2981 = vmatpush1.msra.mxu0 %v2943
        %2982 = vmatprep.subr.mxu0 %v2946
        %2983 = vmatpush1.msra.mxu0 %v2945
        %2984 = vmatprep.subr.mxu0 %v2948
        %2985 = vmatpush1.msra.mxu0 %v2947
        %2986 = vmatprep.subr.mxu0 %v2950
        %2987 = vmatpush1.msra.mxu0 %v2949
        %2988 = vmatprep.subr.mxu0 %v2952
        %2989 = vmatpush1.msra.mxu0 %v2951
        %2990 = vmatprep.subr.mxu0 %v2954
        %2991 = vmatpush1.msra.mxu0 %v2953
        %2992 = vmatprep.subr.mxu0 %v2956
        %2993 = vmatpush1.msra.mxu0 %v2955
        %2994 = vmatprep.subr.mxu0 %v2958
        %2995 = vmatpush1.msra.mxu0 %v2957
        %2996 = vmatprep.subr.mxu0 0.0
        %2997 = vmatpush1.msra.mxu0 0.0
        %2998 = vmatprep.subr.mxu0 0.0
        %2999 = vmatpush1.msra.mxu0 0.0
        %3000 = vmatprep.subr.mxu0 0.0
        %3001 = vmatpush1.msra.mxu0 0.0
        %3002 = vmatprep.subr.mxu0 0.0
        %3003 = vmatpush1.msra.mxu0 0.0
        %3004 = vmatprep.subr.mxu0 0.0
        %3005 = vmatpush1.msra.mxu0 0.0
        %3006 = vmatprep.subr.mxu0 0.0
        %3007 = vmatpush1.msra.mxu0 0.0
        %3008 = vmatprep.subr.mxu0 0.0
        %3009 = vmatpush1.msra.mxu0 0.0
        %3010 = vmatprep.subr.mxu0 0.0
        %3011 = vmatpush1.msra.mxu0 0.0
        %3012 = vmatprep.subr.mxu0 0.0
        %3013 = vmatpush1.msra.mxu0 0.0
        %3014 = vmatprep.subr.mxu0 0.0
        %3015 = vmatpush1.msra.mxu0 0.0
        %3016 = vmatprep.subr.mxu0 0.0
        %3017 = vmatpush1.msra.mxu0 0.0
        %3018 = vmatprep.subr.mxu0 0.0
        %3019 = vmatpush1.msra.mxu0 0.0
        %3020 = vmatprep.subr.mxu0 0.0
        %3021 = vmatpush1.msra.mxu0 0.0
        %3022 = vmatprep.subr.mxu0 0.0
        %3023 = vmatpush1.msra.mxu0 0.0
        %3024 = vmatprep.subr.mxu0 0.0
        %3025 = vmatpush1.msra.mxu0 0.0
        %3026 = vmatprep.subr.mxu0 0.0
        %3027 = vmatpush1.msra.mxu0 0.0
        %3028 = vmatprep.subr.mxu0 0.0
        %3029 = vmatpush1.msra.mxu0 0.0
        %3030 = vmatprep.subr.mxu0 0.0
        %3031 = vmatpush1.msra.mxu0 0.0
        %3032 = vmatprep.subr.mxu0 0.0
        %3033 = vmatpush1.msra.mxu0 0.0
        %3034 = vmatprep.subr.mxu0 0.0
        %3035 = vmatpush1.msra.mxu0 0.0
        %3036 = vmatprep.subr.mxu0 0.0
        %3037 = vmatpush1.msra.mxu0 0.0
        %3038 = vmatprep.subr.mxu0 0.0
        %3039 = vmatpush1.msra.mxu0 0.0
        %3040 = vmatprep.subr.mxu0 0.0
        %3041 = vmatpush1.msra.mxu0 0.0
        %3042 = vmatprep.subr.mxu0 0.0
        %3043 = vmatpush1.msra.mxu0 0.0
        %3044 = vmatprep.mubr.f32.mxu0 0.0
        %3045 = vmatmul.mubr.f32.gmra.mrb[0].mxu0 %v2972
        %v3046 = vpop.f32.mrb[0].mxu0
        %v3047 = vadd.f32 %v2964, %v3046
        %v3048 = vpop.f32.mrb[0].mxu0
        %v3049 = vadd.f32 %v2968, %v3048
        %3050 = vmatprep.mubr.f32.mxu0 0.0
        %3051 = vmatmul.mubr.f32.gmra.mrb[0].mxu0 %v2975
        %v3052 = vpop.f32.mrb[0].mxu0
        %v3053 = vadd.f32 %v2964, %v3052
        %v3054 = vpop.f32.mrb[0].mxu0
        %v3055 = vadd.f32 %v2968, %v3054
        %3056 = vmatprep.mubr.f32.mxu0 0.0
        %3057 = vmatmul.mubr.f32.gmra.mrb[0].mxu0 %v2978
        %v3058 = vpop.f32.mrb[0].mxu0
        %v3059 = vadd.f32 %v2964, %v3058
        %v3060 = vpop.f32.mrb[0].mxu0
        %v3061 = vadd.f32 %v2968, %v3060
        %3062 = vdwg.mxu0
        %3066 = vrot.lane.b32.xlu0 %v3047, 64
        %v3067 = vpop.permute.xlu0 %3066
        %3068 = vrot.lane.b32.xlu0 %v3053, 64
        %v3069 = vpop.permute.xlu0 %3068
        %3070 = vrot.lane.b32.xlu0 %v3059, 64
        %v3071 = vpop.permute.xlu0 %3070
        %vm3072 = vcmask 130048
        %v3073 = vsel %vm3072, %v3047, 0
        %v3075 = vsel %vm3072, %v3053, 0
        %v3077 = vsel %vm3072, %v3059, 0
        %v3079 = vsel %vm3072, %v3067, 0
        %v3081 = vsel %vm3072, %v3069, 0
        %v3083 = vsel %vm3072, %v3071, 0
        %3085 = vmatprep.subr.mxu0 0.0
        %3086 = vmatpush1.xpose.msra.mxu0 %v3079
        %3087 = vmatprep.subr.mxu0 0.0
        %3088 = vmatpush1.xpose.msra.mxu0 %v3081
        %3089 = vmatprep.subr.mxu0 0.0
        %3090 = vmatpush1.xpose.msra.mxu0 %v3083
        %3091 = vmatprep.subr.mxu0 0.0
        %3092 = vmatpush1.xpose.msra.mxu0 0.0
        %3093 = vmatprep.subr.mxu0 0.0
        %3094 = vmatpush1.xpose.msra.mxu0 0.0
        %3095 = vmatprep.subr.mxu0 0.0
        %3096 = vmatpush1.xpose.msra.mxu0 0.0
        %3097 = vmatprep.subr.mxu0 0.0
        %3098 = vmatpush1.xpose.msra.mxu0 0.0
        %3099 = vmatprep.subr.mxu0 0.0
        %3100 = vmatpush1.xpose.msra.mxu0 0.0
        %3101 = vmatprep.subr.mxu0 0.0
        %3102 = vmatpush1.xpose.msra.mxu0 0.0
        %3103 = vmatprep.subr.mxu0 0.0
        %3104 = vmatpush1.xpose.msra.mxu0 0.0
        %3105 = vmatprep.subr.mxu0 0.0
        %3106 = vmatpush1.xpose.msra.mxu0 0.0
        %3107 = vmatprep.subr.mxu0 0.0
        %3108 = vmatpush1.xpose.msra.mxu0 0.0
        %3109 = vmatprep.subr.mxu0 0.0
        %3110 = vmatpush1.xpose.msra.mxu0 0.0
        %3111 = vmatprep.subr.mxu0 0.0
        %3112 = vmatpush1.xpose.msra.mxu0 0.0
        %3113 = vmatprep.subr.mxu0 0.0
        %3114 = vmatpush1.xpose.msra.mxu0 0.0
        %3115 = vmatprep.subr.mxu0 0.0
        %3116 = vmatpush1.xpose.msra.mxu0 0.0
        %3117 = vmatprep.subr.mxu0 0.0
        %3118 = vmatpush1.xpose.msra.mxu0 0.0
        %3119 = vmatprep.subr.mxu0 0.0
        %3120 = vmatpush1.xpose.msra.mxu0 0.0
        %3121 = vmatprep.subr.mxu0 0.0
        %3122 = vmatpush1.xpose.msra.mxu0 0.0
        %3123 = vmatprep.subr.mxu0 0.0
        %3124 = vmatpush1.xpose.msra.mxu0 0.0
        %3125 = vmatprep.subr.mxu0 0.0
        %3126 = vmatpush1.xpose.msra.mxu0 0.0
        %3127 = vmatprep.subr.mxu0 0.0
        %3128 = vmatpush1.xpose.msra.mxu0 0.0
        %3129 = vmatprep.subr.mxu0 0.0
        %3130 = vmatpush1.xpose.msra.mxu0 0.0
        %3131 = vmatprep.subr.mxu0 0.0
        %3132 = vmatpush1.xpose.msra.mxu0 0.0
        %3133 = vmatprep.subr.mxu0 0.0
        %3134 = vmatpush1.xpose.msra.mxu0 0.0
        %3135 = vmatprep.subr.mxu0 0.0
        %3136 = vmatpush1.xpose.msra.mxu0 0.0
        %3137 = vmatprep.subr.mxu0 0.0
        %3138 = vmatpush1.xpose.msra.mxu0 0.0
        %3139 = vmatprep.subr.mxu0 0.0
        %3140 = vmatpush1.xpose.msra.mxu0 0.0
        %3141 = vmatprep.subr.mxu0 0.0
        %3142 = vmatpush1.xpose.msra.mxu0 0.0
        %3143 = vmatprep.subr.mxu0 0.0
        %3144 = vmatpush1.xpose.msra.mxu0 0.0
        %3145 = vmatprep.subr.mxu0 0.0
        %3146 = vmatpush1.xpose.msra.mxu0 0.0
        %3147 = vmatprep.subr.mxu0 0.0
        %3148 = vmatpush1.xpose.msra.mxu0 0.0
        %3149 = vmatprep.mubr.f32.mxu0 0.0
        %3150 = vmatmul.mubr.f32.gmra.mrb[0].mxu0 %v3073
        %v3151 = vpop.f32.mrb[0].mxu0
        %v3152 = vadd.f32 0.0, %v3151
        %v3153 = vpop.f32.mrb[0].mxu0
        %3154 = vmatprep.mubr.f32.mxu0 0.0
        %3155 = vmatmul.mubr.f32.gmra.mrb[0].mxu0 %v3075
        %v3156 = vpop.f32.mrb[0].mxu0
        %v3157 = vadd.f32 0.0, %v3156
        %v3158 = vpop.f32.mrb[0].mxu0
        %3159 = vmatprep.mubr.f32.mxu0 0.0
        %3160 = vmatmul.mubr.f32.gmra.mrb[0].mxu0 %v3077
        %v3161 = vpop.f32.mrb[0].mxu0
        %v3162 = vadd.f32 0.0, %v3161
        %v3163 = vpop.f32.mrb[0].mxu0
        %3164 = vdwg.mxu0
        %v3165 = vmul.f32 %v3152, 0.25
        %v3166 = vmul.f32 %v3157, 0.25
        %v3167 = vmul.f32 %v3162, 0.25
        %vm3168 = vcmask 162816
        %v3169 = vsel %vm3168, %v3165, -inf
        %3170 = vmax.xlane.f32.xlu0 %v3169
        %v3171 = vpop.xlane.xlu0 %3170
        %v3172 = vsel %vm3168, %v3166, -inf
        %3173 = vmax.xlane.f32.xlu0 %v3172
        %v3174 = vpop.xlane.xlu0 %3173
        %vm3175 = vcmask 158720
        %v3176 = vsel %vm3175, %v3167, -inf
        %3177 = vmax.xlane.f32.xlu0 %v3176
        %v3178 = vpop.xlane.xlu0 %3177
        %v3179 = vsub.f32 %v3165, %v3171
        %v3180 = vsub.f32 %v3166, %v3174
        %v3181 = vsub.f32 %v3167, %v3178
        %v3182 = vmul.f32 %v3179, 1.442695
        %v3183 = vpow.pop %v3182
        %v3184 = vmul.f32 %v3180, 1.442695
        %v3185 = vpow.pop %v3184
        %v3186 = vmul.f32 %v3181, 1.442695
        %v3187 = vpow.pop %v3186
        %v3188 = vsel %vm3168, %v3183, 0.0
        %3189 = vadd.xlane.f32.xlu0 %v3188
        %v3190 = vpop.xlane.xlu0 %3189
        %v3191 = vsel %vm3168, %v3185, 0.0
        %3192 = vadd.xlane.f32.xlu0 %v3191
        %v3193 = vpop.xlane.xlu0 %3192
        %v3194 = vsel %vm3175, %v3187, 0.0
        %3195 = vadd.xlane.f32.xlu0 %v3194
        %v3196 = vpop.xlane.xlu0 %3195
        %v3197 = vrcp.pop %v3190
        %v3198 = vmul.f32 %v3183, %v3197
        %v3199 = vrcp.pop %v3193
        %v3200 = vmul.f32 %v3185, %v3199
        %v3201 = vrcp.pop %v3196
        %v3202 = vmul.f32 %v3187, %v3201
        %v3204 = vsel %vm3168, %v3198, 0
        %v3207 = vsel %vm3168, %v3200, 0
        %v3210 = vsel %vm3168, %v3202, 0
        %vm3212 = vcmask 1043456
        %v3214 = vsel %vm3212, %v3061, 0
        %3216 = vmatprep.subr.mxu0 0.0
        %3217 = vmatpush1.msra.mxu0 %v3049
        %3218 = vmatprep.subr.mxu0 0.0
        %3219 = vmatpush1.msra.mxu0 %v3055
        %3220 = vmatprep.subr.mxu0 0.0
        %3221 = vmatpush1.msra.mxu0 %v3214
        %3222 = vmatprep.subr.mxu0 0.0
        %3223 = vmatpush1.msra.mxu0 0.0
        %3224 = vmatprep.subr.mxu0 0.0
        %3225 = vmatpush1.msra.mxu0 0.0
        %3226 = vmatprep.subr.mxu0 0.0
        %3227 = vmatpush1.msra.mxu0 0.0
        %3228 = vmatprep.subr.mxu0 0.0
        %3229 = vmatpush1.msra.mxu0 0.0
        %3230 = vmatprep.subr.mxu0 0.0
        %3231 = vmatpush1.msra.mxu0 0.0
        %3232 = vmatprep.subr.mxu0 0.0
        %3233 = vmatpush1.msra.mxu0 0.0
        %3234 = vmatprep.subr.mxu0 0.0
        %3235 = vmatpush1.msra.mxu0 0.0
        %3236 = vmatprep.subr.mxu0 0.0
        %3237 = vmatpush1.msra.mxu0 0.0
        %3238 = vmatprep.subr.mxu0 0.0
        %3239 = vmatpush1.msra.mxu0 0.0
        %3240 = vmatprep.subr.mxu0 0.0
        %3241 = vmatpush1.msra.mxu0 0.0
        %3242 = vmatprep.subr.mxu0 0.0
        %3243 = vmatpush1.msra.mxu0 0.0
        %3244 = vmatprep.subr.mxu0 0.0
        %3245 = vmatpush1.msra.mxu0 0.0
        %3246 = vmatprep.subr.mxu0 0.0
        %3247 = vmatpush1.msra.mxu0 0.0
        %3248 = vmatprep.subr.mxu0 0.0
        %3249 = vmatpush1.msra.mxu0 0.0
        %3250 = vmatprep.subr.mxu0 0.0
        %3251 = vmatpush1.msra.mxu0 0.0
        %3252 = vmatprep.subr.mxu0 0.0
        %3253 = vmatpush1.msra.mxu0 0.0
        %3254 = vmatprep.subr.mxu0 0.0
        %3255 = vmatpush1.msra.mxu0 0.0
        %3256 = vmatprep.subr.mxu0 0.0
        %3257 = vmatpush1.msra.mxu0 0.0
        %3258 = vmatprep.subr.mxu0 0.0
        %3259 = vmatpush1.msra.mxu0 0.0
        %3260 = vmatprep.subr.mxu0 0.0
        %3261 = vmatpush1.msra.mxu0 0.0
        %3262 = vmatprep.subr.mxu0 0.0
        %3263 = vmatpush1.msra.mxu0 0.0
        %3264 = vmatprep.subr.mxu0 0.0
        %3265 = vmatpush1.msra.mxu0 0.0
        %3266 = vmatprep.subr.mxu0 0.0
        %3267 = vmatpush1.msra.mxu0 0.0
        %3268 = vmatprep.subr.mxu0 0.0
        %3269 = vmatpush1.msra.mxu0 0.0
        %3270 = vmatprep.subr.mxu0 0.0
        %3271 = vmatpush1.msra.mxu0 0.0
        %3272 = vmatprep.subr.mxu0 0.0
        %3273 = vmatpush1.msra.mxu0 0.0
        %3274 = vmatprep.subr.mxu0 0.0
        %3275 = vmatpush1.msra.mxu0 0.0
        %3276 = vmatprep.subr.mxu0 0.0
        %3277 = vmatpush1.msra.mxu0 0.0
        %3278 = vmatprep.subr.mxu0 0.0
        %3279 = vmatpush1.msra.mxu0 0.0
        %3280 = vmatprep.mubr.f32.mxu0 0.0
        %3281 = vmatmul.mubr.f32.gmra.mrb[0].mxu0 %v3204
        %v3282 = vpop.f32.mrb[0].mxu0
        %v3283 = vadd.f32 0.0, %v3282
        %v3284 = vpop.f32.mrb[0].mxu0
        %3285 = vmatprep.mubr.f32.mxu0 0.0
        %3286 = vmatmul.mubr.f32.gmra.mrb[0].mxu0 %v3207
        %v3287 = vpop.f32.mrb[0].mxu0
        %v3288 = vadd.f32 0.0, %v3287
        %v3289 = vpop.f32.mrb[0].mxu0
        %3290 = vmatprep.mubr.f32.mxu0 0.0
        %3291 = vmatmul.mubr.f32.gmra.mrb[0].mxu0 %v3210
        %v3292 = vpop.f32.mrb[0].mxu0
        %v3293 = vadd.f32 0.0, %v3292
        %v3294 = vpop.f32.mrb[0].mxu0
        %3295 = vdwg.mxu0
        %v3296 = vld [vmem:[#allocation13] sm:$0xff]
        %v3297 = vld [vmem:[#allocation13 + $0x8] sm:$0xff]
        %3298 = vrot.lane.b32.xlu0 %v3047, 112
        %v3299 = vpop.permute.xlu0 %3298
        %3300 = vrot.lane.b32.xlu0 %v3053, 112
        %v3301 = vpop.permute.xlu0 %3300
        %3302 = vrot.lane.b32.xlu0 %v3059, 112
        %v3303 = vpop.permute.xlu0 %3302
        %3304 = vrot.lane.b32.xlu0 %v3047, 48
        %v3305 = vpop.permute.xlu0 %3304
        %3306 = vrot.lane.b32.xlu0 %v3053, 48
        %v3307 = vpop.permute.xlu0 %3306
        %3308 = vrot.lane.b32.xlu0 %v3059, 48
        %v3309 = vpop.permute.xlu0 %3308
        %v3310 = vsel %vm3072, %v3299, 0
        %v3312 = vsel %vm3072, %v3301, 0
        %v3314 = vsel %vm3072, %v3303, 0
        %v3316 = vsel %vm3072, %v3305, 0
        %v3318 = vsel %vm3072, %v3307, 0
        %v3320 = vsel %vm3072, %v3309, 0
        %3322 = vmatprep.subr.mxu0 0.0
        %3323 = vmatpush1.xpose.msra.mxu0 %v3316
        %3324 = vmatprep.subr.mxu0 0.0
        %3325 = vmatpush1.xpose.msra.mxu0 %v3318
        %3326 = vmatprep.subr.mxu0 0.0
        %3327 = vmatpush1.xpose.msra.mxu0 %v3320
        %3328 = vmatprep.subr.mxu0 0.0
        %3329 = vmatpush1.xpose.msra.mxu0 0.0
        %3330 = vmatprep.subr.mxu0 0.0
        %3331 = vmatpush1.xpose.msra.mxu0 0.0
        %3332 = vmatprep.subr.mxu0 0.0
        %3333 = vmatpush1.xpose.msra.mxu0 0.0
        %3334 = vmatprep.subr.mxu0 0.0
        %3335 = vmatpush1.xpose.msra.mxu0 0.0
        %3336 = vmatprep.subr.mxu0 0.0
        %3337 = vmatpush1.xpose.msra.mxu0 0.0
        %3338 = vmatprep.subr.mxu0 0.0
        %3339 = vmatpush1.xpose.msra.mxu0 0.0
        %3340 = vmatprep.subr.mxu0 0.0
        %3341 = vmatpush1.xpose.msra.mxu0 0.0
        %3342 = vmatprep.subr.mxu0 0.0
        %3343 = vmatpush1.xpose.msra.mxu0 0.0
        %3344 = vmatprep.subr.mxu0 0.0
        %3345 = vmatpush1.xpose.msra.mxu0 0.0
        %3346 = vmatprep.subr.mxu0 0.0
        %3347 = vmatpush1.xpose.msra.mxu0 0.0
        %3348 = vmatprep.subr.mxu0 0.0
        %3349 = vmatpush1.xpose.msra.mxu0 0.0
        %3350 = vmatprep.subr.mxu0 0.0
        %3351 = vmatpush1.xpose.msra.mxu0 0.0
        %3352 = vmatprep.subr.mxu0 0.0
        %3353 = vmatpush1.xpose.msra.mxu0 0.0
        %3354 = vmatprep.subr.mxu0 0.0
        %3355 = vmatpush1.xpose.msra.mxu0 0.0
        %3356 = vmatprep.subr.mxu0 0.0
        %3357 = vmatpush1.xpose.msra.mxu0 0.0
        %3358 = vmatprep.subr.mxu0 0.0
        %3359 = vmatpush1.xpose.msra.mxu0 0.0
        %3360 = vmatprep.subr.mxu0 0.0
        %3361 = vmatpush1.xpose.msra.mxu0 0.0
        %3362 = vmatprep.subr.mxu0 0.0
        %3363 = vmatpush1.xpose.msra.mxu0 0.0
        %3364 = vmatprep.subr.mxu0 0.0
        %3365 = vmatpush1.xpose.msra.mxu0 0.0
        %3366 = vmatprep.subr.mxu0 0.0
        %3367 = vmatpush1.xpose.msra.mxu0 0.0
        %3368 = vmatprep.subr.mxu0 0.0
        %3369 = vmatpush1.xpose.msra.mxu0 0.0
        %3370 = vmatprep.subr.mxu0 0.0
        %3371 = vmatpush1.xpose.msra.mxu0 0.0
        %3372 = vmatprep.subr.mxu0 0.0
        %3373 = vmatpush1.xpose.msra.mxu0 0.0
        %3374 = vmatprep.subr.mxu0 0.0
        %3375 = vmatpush1.xpose.msra.mxu0 0.0
        %3376 = vmatprep.subr.mxu0 0.0
        %3377 = vmatpush1.xpose.msra.mxu0 0.0
        %3378 = vmatprep.subr.mxu0 0.0
        %3379 = vmatpush1.xpose.msra.mxu0 0.0
        %3380 = vmatprep.subr.mxu0 0.0
        %3381 = vmatpush1.xpose.msra.mxu0 0.0
        %3382 = vmatprep.subr.mxu0 0.0
        %3383 = vmatpush1.xpose.msra.mxu0 0.0
        %3384 = vmatprep.subr.mxu0 0.0
        %3385 = vmatpush1.xpose.msra.mxu0 0.0
        %3386 = vmatprep.mubr.f32.mxu0 0.0
        %3387 = vmatmul.mubr.f32.gmra.mrb[0].mxu0 %v3310
        %v3388 = vpop.f32.mrb[0].mxu0
        %v3389 = vadd.f32 0.0, %v3388
        %v3390 = vpop.f32.mrb[0].mxu0
        %3391 = vmatprep.mubr.f32.mxu0 0.0
        %3392 = vmatmul.mubr.f32.gmra.mrb[0].mxu0 %v3312
        %v3393 = vpop.f32.mrb[0].mxu0
        %v3394 = vadd.f32 0.0, %v3393
        %v3395 = vpop.f32.mrb[0].mxu0
        %3396 = vmatprep.mubr.f32.mxu0 0.0
        %3397 = vmatmul.mubr.f32.gmra.mrb[0].mxu0 %v3314
        %v3398 = vpop.f32.mrb[0].mxu0
        %v3399 = vadd.f32 0.0, %v3398
        %v3400 = vpop.f32.mrb[0].mxu0
        %3401 = vdwg.mxu0
        %v3402 = vmul.f32 %v3389, 0.25
        %v3403 = vmul.f32 %v3394, 0.25
        %v3404 = vmul.f32 %v3399, 0.25
        %v3405 = vsel %vm3168, %v3402, -inf
        %3406 = vmax.xlane.f32.xlu0 %v3405
        %v3407 = vpop.xlane.xlu0 %3406
        %v3408 = vsel %vm3168, %v3403, -inf
        %3409 = vmax.xlane.f32.xlu0 %v3408
        %v3410 = vpop.xlane.xlu0 %3409
        %v3411 = vsel %vm3175, %v3404, -inf
        %3412 = vmax.xlane.f32.xlu0 %v3411
        %v3413 = vpop.xlane.xlu0 %3412
        %v3414 = vsub.f32 %v3402, %v3407
        %v3415 = vsub.f32 %v3403, %v3410
        %v3416 = vsub.f32 %v3404, %v3413
        %v3417 = vmul.f32 %v3414, 1.442695
        %v3418 = vpow.pop %v3417
        %v3419 = vmul.f32 %v3415, 1.442695
        %v3420 = vpow.pop %v3419
        %v3421 = vmul.f32 %v3416, 1.442695
        %v3422 = vpow.pop %v3421
        %v3423 = vsel %vm3168, %v3418, 0.0
        %3424 = vadd.xlane.f32.xlu0 %v3423
        %v3425 = vpop.xlane.xlu0 %3424
        %v3426 = vsel %vm3168, %v3420, 0.0
        %3427 = vadd.xlane.f32.xlu0 %v3426
        %v3428 = vpop.xlane.xlu0 %3427
        %v3429 = vsel %vm3175, %v3422, 0.0
        %3430 = vadd.xlane.f32.xlu0 %v3429
        %v3431 = vpop.xlane.xlu0 %3430
        %v3432 = vrcp.pop %v3425
        %v3433 = vmul.f32 %v3418, %v3432
        %v3434 = vrcp.pop %v3428
        %v3435 = vmul.f32 %v3420, %v3434
        %v3436 = vrcp.pop %v3431
        %v3437 = vmul.f32 %v3422, %v3436
        %3440 = vrot.lane.b32.xlu0 %v3049, 112
        %v3441 = vpop.permute.xlu0 %3440
        %3442 = vrot.lane.b32.xlu0 %v3055, 112
        %v3443 = vpop.permute.xlu0 %3442
        %3444 = vrot.lane.b32.xlu0 %v3061, 112
        %v3445 = vpop.permute.xlu0 %3444
        %v3449 = vsel %vm3168, %v3433, 0
        %v3452 = vsel %vm3168, %v3435, 0
        %v3455 = vsel %vm3168, %v3437, 0
        %v3457 = vsel %vm3212, %v3445, 0
        %3459 = vmatprep.subr.mxu0 0.0
        %3460 = vmatpush1.msra.mxu0 %v3441
        %3461 = vmatprep.subr.mxu0 0.0
        %3462 = vmatpush1.msra.mxu0 %v3443
        %3463 = vmatprep.subr.mxu0 0.0
        %3464 = vmatpush1.msra.mxu0 %v3457
        %3465 = vmatprep.subr.mxu0 0.0
        %3466 = vmatpush1.msra.mxu0 0.0
        %3467 = vmatprep.subr.mxu0 0.0
        %3468 = vmatpush1.msra.mxu0 0.0
        %3469 = vmatprep.subr.mxu0 0.0
        %3470 = vmatpush1.msra.mxu0 0.0
        %3471 = vmatprep.subr.mxu0 0.0
        %3472 = vmatpush1.msra.mxu0 0.0
        %3473 = vmatprep.subr.mxu0 0.0
        %3474 = vmatpush1.msra.mxu0 0.0
        %3475 = vmatprep.subr.mxu0 0.0
        %3476 = vmatpush1.msra.mxu0 0.0
        %3477 = vmatprep.subr.mxu0 0.0
        %3478 = vmatpush1.msra.mxu0 0.0
        %3479 = vmatprep.subr.mxu0 0.0
        %3480 = vmatpush1.msra.mxu0 0.0
        %3481 = vmatprep.subr.mxu0 0.0
        %3482 = vmatpush1.msra.mxu0 0.0
        %3483 = vmatprep.subr.mxu0 0.0
        %3484 = vmatpush1.msra.mxu0 0.0
        %3485 = vmatprep.subr.mxu0 0.0
        %3486 = vmatpush1.msra.mxu0 0.0
        %3487 = vmatprep.subr.mxu0 0.0
        %3488 = vmatpush1.msra.mxu0 0.0
        %3489 = vmatprep.subr.mxu0 0.0
        %3490 = vmatpush1.msra.mxu0 0.0
        %3491 = vmatprep.subr.mxu0 0.0
        %3492 = vmatpush1.msra.mxu0 0.0
        %3493 = vmatprep.subr.mxu0 0.0
        %3494 = vmatpush1.msra.mxu0 0.0
        %3495 = vmatprep.subr.mxu0 0.0
        %3496 = vmatpush1.msra.mxu0 0.0
        %3497 = vmatprep.subr.mxu0 0.0
        %3498 = vmatpush1.msra.mxu0 0.0
        %3499 = vmatprep.subr.mxu0 0.0
        %3500 = vmatpush1.msra.mxu0 0.0
        %3501 = vmatprep.subr.mxu0 0.0
        %3502 = vmatpush1.msra.mxu0 0.0
        %3503 = vmatprep.subr.mxu0 0.0
        %3504 = vmatpush1.msra.mxu0 0.0
        %3505 = vmatprep.subr.mxu0 0.0
        %3506 = vmatpush1.msra.mxu0 0.0
        %3507 = vmatprep.subr.mxu0 0.0
        %3508 = vmatpush1.msra.mxu0 0.0
        %3509 = vmatprep.subr.mxu0 0.0
        %3510 = vmatpush1.msra.mxu0 0.0
        %3511 = vmatprep.subr.mxu0 0.0
        %3512 = vmatpush1.msra.mxu0 0.0
        %3513 = vmatprep.subr.mxu0 0.0
        %3514 = vmatpush1.msra.mxu0 0.0
        %3515 = vmatprep.subr.mxu0 0.0
        %3516 = vmatpush1.msra.mxu0 0.0
        %3517 = vmatprep.subr.mxu0 0.0
        %3518 = vmatpush1.msra.mxu0 0.0
        %3519 = vmatprep.subr.mxu0 0.0
        %3520 = vmatpush1.msra.mxu0 0.0
        %3521 = vmatprep.subr.mxu0 0.0
        %3522 = vmatpush1.msra.mxu0 0.0
        %3523 = vmatprep.mubr.f32.mxu0 0.0
        %3524 = vmatmul.mubr.f32.gmra.mrb[0].mxu0 %v3449
        %v3525 = vpop.f32.mrb[0].mxu0
        %v3526 = vadd.f32 0.0, %v3525
        %v3527 = vpop.f32.mrb[0].mxu0
        %3528 = vmatprep.mubr.f32.mxu0 0.0
        %3529 = vmatmul.mubr.f32.gmra.mrb[0].mxu0 %v3452
        %v3530 = vpop.f32.mrb[0].mxu0
        %v3531 = vadd.f32 0.0, %v3530
        %v3532 = vpop.f32.mrb[0].mxu0
        %3533 = vmatprep.mubr.f32.mxu0 0.0
        %3534 = vmatmul.mubr.f32.gmra.mrb[0].mxu0 %v3455
        %v3535 = vpop.f32.mrb[0].mxu0
        %v3536 = vadd.f32 0.0, %v3535
        %v3537 = vpop.f32.mrb[0].mxu0
        %3538 = vdwg.mxu0
        %s3539 = scalar_lea.vmem [#allocation13], 16
        %v3540 = vld [vmem:[%s3539] sm:$0xff]
        %v3541 = vld [vmem:[%s3539 + $0x8] sm:$0xff]
        %v3543 = vsel %vm3072, %v3526, 0
        %v3546 = vsel %vm3072, %v3531, 0
        %v3549 = vsel %vm3072, %v3536, 0
        %3551 = vmatprep.subr.mxu0 0.0
        %3552 = vmatpush1.msra.mxu0 %v3540
        %3553 = vmatprep.subr.mxu0 0.0
        %3554 = vmatpush1.msra.mxu0 %v3541
        %3555 = vmatprep.subr.mxu0 0.0
        %3556 = vmatpush1.msra.mxu0 0.0
        %3557 = vmatprep.subr.mxu0 0.0
        %3558 = vmatpush1.msra.mxu0 0.0
        %3559 = vmatprep.subr.mxu0 0.0
        %3560 = vmatpush1.msra.mxu0 0.0
        %3561 = vmatprep.subr.mxu0 0.0
        %3562 = vmatpush1.msra.mxu0 0.0
        %3563 = vmatprep.subr.mxu0 0.0
        %3564 = vmatpush1.msra.mxu0 0.0
        %3565 = vmatprep.subr.mxu0 0.0
        %3566 = vmatpush1.msra.mxu0 0.0
        %3567 = vmatprep.subr.mxu0 0.0
        %3568 = vmatpush1.msra.mxu0 0.0
        %3569 = vmatprep.subr.mxu0 0.0
        %3570 = vmatpush1.msra.mxu0 0.0
        %3571 = vmatprep.subr.mxu0 0.0
        %3572 = vmatpush1.msra.mxu0 0.0
        %3573 = vmatprep.subr.mxu0 0.0
        %3574 = vmatpush1.msra.mxu0 0.0
        %3575 = vmatprep.subr.mxu0 0.0
        %3576 = vmatpush1.msra.mxu0 0.0
        %3577 = vmatprep.subr.mxu0 0.0
        %3578 = vmatpush1.msra.mxu0 0.0
        %3579 = vmatprep.subr.mxu0 0.0
        %3580 = vmatpush1.msra.mxu0 0.0
        %3581 = vmatprep.subr.mxu0 0.0
        %3582 = vmatpush1.msra.mxu0 0.0
        %3583 = vmatprep.subr.mxu0 0.0
        %3584 = vmatpush1.msra.mxu0 0.0
        %3585 = vmatprep.subr.mxu0 0.0
        %3586 = vmatpush1.msra.mxu0 0.0
        %3587 = vmatprep.subr.mxu0 0.0
        %3588 = vmatpush1.msra.mxu0 0.0
        %3589 = vmatprep.subr.mxu0 0.0
        %3590 = vmatpush1.msra.mxu0 0.0
        %3591 = vmatprep.subr.mxu0 0.0
        %3592 = vmatpush1.msra.mxu0 0.0
        %3593 = vmatprep.subr.mxu0 0.0
        %3594 = vmatpush1.msra.mxu0 0.0
        %3595 = vmatprep.subr.mxu0 0.0
        %3596 = vmatpush1.msra.mxu0 0.0
        %3597 = vmatprep.subr.mxu0 0.0
        %3598 = vmatpush1.msra.mxu0 0.0
        %3599 = vmatprep.subr.mxu0 0.0
        %3600 = vmatpush1.msra.mxu0 0.0
        %3601 = vmatprep.subr.mxu0 0.0
        %3602 = vmatpush1.msra.mxu0 0.0
        %3603 = vmatprep.subr.mxu0 0.0
        %3604 = vmatpush1.msra.mxu0 0.0
        %3605 = vmatprep.subr.mxu0 0.0
        %3606 = vmatpush1.msra.mxu0 0.0
        %3607 = vmatprep.subr.mxu0 0.0
        %3608 = vmatpush1.msra.mxu0 0.0
        %3609 = vmatprep.subr.mxu0 0.0
        %3610 = vmatpush1.msra.mxu0 0.0
        %3611 = vmatprep.subr.mxu0 0.0
        %3612 = vmatpush1.msra.mxu0 0.0
        %3613 = vmatprep.subr.mxu0 0.0
        %3614 = vmatpush1.msra.mxu0 0.0
        %3615 = vmatprep.mubr.f32.mxu0 0.0
        %3616 = vmatmul.mubr.f32.gmra.mrb[0].mxu0 %v3543
        %v3617 = vpop.f32.mrb[0].mxu0
        %v3618 = vadd.f32 0.0, %v3617
        %v3619 = vpop.f32.mrb[0].mxu0
        %3620 = vmatprep.mubr.f32.mxu0 0.0
        %3621 = vmatmul.mubr.f32.gmra.mrb[0].mxu0 %v3546
        %v3622 = vpop.f32.mrb[0].mxu0
        %v3623 = vadd.f32 0.0, %v3622
        %v3624 = vpop.f32.mrb[0].mxu0
        %3625 = vmatprep.mubr.f32.mxu0 0.0
        %3626 = vmatmul.mubr.f32.gmra.mrb[0].mxu0 %v3549
        %v3627 = vpop.f32.mrb[0].mxu0
        %v3628 = vadd.f32 0.0, %v3627
        %v3629 = vpop.f32.mrb[0].mxu0
        %3630 = vdwg.mxu0
        %v3632 = vsel %vm3072, %v3283, 0
        %v3635 = vsel %vm3072, %v3288, 0
        %v3638 = vsel %vm3072, %v3293, 0
        %3640 = vmatprep.subr.mxu0 0.0
        %3641 = vmatpush1.msra.mxu0 %v3296
        %3642 = vmatprep.subr.mxu0 0.0
        %3643 = vmatpush1.msra.mxu0 %v3297
        %3644 = vmatprep.subr.mxu0 0.0
        %3645 = vmatpush1.msra.mxu0 0.0
        %3646 = vmatprep.subr.mxu0 0.0
        %3647 = vmatpush1.msra.mxu0 0.0
        %3648 = vmatprep.subr.mxu0 0.0
        %3649 = vmatpush1.msra.mxu0 0.0
        %3650 = vmatprep.subr.mxu0 0.0
        %3651 = vmatpush1.msra.mxu0 0.0
        %3652 = vmatprep.subr.mxu0 0.0
        %3653 = vmatpush1.msra.mxu0 0.0
        %3654 = vmatprep.subr.mxu0 0.0
        %3655 = vmatpush1.msra.mxu0 0.0
        %3656 = vmatprep.subr.mxu0 0.0
        %3657 = vmatpush1.msra.mxu0 0.0
        %3658 = vmatprep.subr.mxu0 0.0
        %3659 = vmatpush1.msra.mxu0 0.0
        %3660 = vmatprep.subr.mxu0 0.0
        %3661 = vmatpush1.msra.mxu0 0.0
        %3662 = vmatprep.subr.mxu0 0.0
        %3663 = vmatpush1.msra.mxu0 0.0
        %3664 = vmatprep.subr.mxu0 0.0
        %3665 = vmatpush1.msra.mxu0 0.0
        %3666 = vmatprep.subr.mxu0 0.0
        %3667 = vmatpush1.msra.mxu0 0.0
        %3668 = vmatprep.subr.mxu0 0.0
        %3669 = vmatpush1.msra.mxu0 0.0
        %3670 = vmatprep.subr.mxu0 0.0
        %3671 = vmatpush1.msra.mxu0 0.0
        %3672 = vmatprep.subr.mxu0 0.0
        %3673 = vmatpush1.msra.mxu0 0.0
        %3674 = vmatprep.subr.mxu0 0.0
        %3675 = vmatpush1.msra.mxu0 0.0
        %3676 = vmatprep.subr.mxu0 0.0
        %3677 = vmatpush1.msra.mxu0 0.0
        %3678 = vmatprep.subr.mxu0 0.0
        %3679 = vmatpush1.msra.mxu0 0.0
        %3680 = vmatprep.subr.mxu0 0.0
        %3681 = vmatpush1.msra.mxu0 0.0
        %3682 = vmatprep.subr.mxu0 0.0
        %3683 = vmatpush1.msra.mxu0 0.0
        %3684 = vmatprep.subr.mxu0 0.0
        %3685 = vmatpush1.msra.mxu0 0.0
        %3686 = vmatprep.subr.mxu0 0.0
        %3687 = vmatpush1.msra.mxu0 0.0
        %3688 = vmatprep.subr.mxu0 0.0
        %3689 = vmatpush1.msra.mxu0 0.0
        %3690 = vmatprep.subr.mxu0 0.0
        %3691 = vmatpush1.msra.mxu0 0.0
        %3692 = vmatprep.subr.mxu0 0.0
        %3693 = vmatpush1.msra.mxu0 0.0
        %3694 = vmatprep.subr.mxu0 0.0
        %3695 = vmatpush1.msra.mxu0 0.0
        %3696 = vmatprep.subr.mxu0 0.0
        %3697 = vmatpush1.msra.mxu0 0.0
        %3698 = vmatprep.subr.mxu0 0.0
        %3699 = vmatpush1.msra.mxu0 0.0
        %3700 = vmatprep.subr.mxu0 0.0
        %3701 = vmatpush1.msra.mxu0 0.0
        %3702 = vmatprep.subr.mxu0 0.0
        %3703 = vmatpush1.msra.mxu0 0.0
        %3704 = vmatprep.mubr.f32.mxu0 0.0
        %3705 = vmatmul.mubr.f32.gmra.mrb[0].mxu0 %v3632
        %v3706 = vpop.f32.mrb[0].mxu0
        %v3707 = vadd.f32 %v3618, %v3706
        %v3708 = vpop.f32.mrb[0].mxu0
        %3709 = vmatprep.mubr.f32.mxu0 0.0
        %3710 = vmatmul.mubr.f32.gmra.mrb[0].mxu0 %v3635
        %v3711 = vpop.f32.mrb[0].mxu0
        %v3712 = vadd.f32 %v3623, %v3711
        %v3713 = vpop.f32.mrb[0].mxu0
        %3714 = vmatprep.mubr.f32.mxu0 0.0
        %3715 = vmatmul.mubr.f32.gmra.mrb[0].mxu0 %v3638
        %v3716 = vpop.f32.mrb[0].mxu0
        %v3717 = vadd.f32 %v3628, %v3716
        %v3718 = vpop.f32.mrb[0].mxu0
        %3719 = vdwg.mxu0
        %3720 = vrot.lane.b32.xlu0 %v3047, 96
        %v3721 = vpop.permute.xlu0 %3720
        %3722 = vrot.lane.b32.xlu0 %v3053, 96
        %v3723 = vpop.permute.xlu0 %3722
        %3724 = vrot.lane.b32.xlu0 %v3059, 96
        %v3725 = vpop.permute.xlu0 %3724
        %3726 = vrot.lane.b32.xlu0 %v3047, 32
        %v3727 = vpop.permute.xlu0 %3726
        %3728 = vrot.lane.b32.xlu0 %v3053, 32
        %v3729 = vpop.permute.xlu0 %3728
        %3730 = vrot.lane.b32.xlu0 %v3059, 32
        %v3731 = vpop.permute.xlu0 %3730
        %v3732 = vsel %vm3072, %v3721, 0
        %v3734 = vsel %vm3072, %v3723, 0
        %v3736 = vsel %vm3072, %v3725, 0
        %v3738 = vsel %vm3072, %v3727, 0
        %v3740 = vsel %vm3072, %v3729, 0
        %v3742 = vsel %vm3072, %v3731, 0
        %3744 = vmatprep.subr.mxu0 0.0
        %3745 = vmatpush1.xpose.msra.mxu0 %v3738
        %3746 = vmatprep.subr.mxu0 0.0
        %3747 = vmatpush1.xpose.msra.mxu0 %v3740
        %3748 = vmatprep.subr.mxu0 0.0
        %3749 = vmatpush1.xpose.msra.mxu0 %v3742
        %3750 = vmatprep.subr.mxu0 0.0
        %3751 = vmatpush1.xpose.msra.mxu0 0.0
        %3752 = vmatprep.subr.mxu0 0.0
        %3753 = vmatpush1.xpose.msra.mxu0 0.0
        %3754 = vmatprep.subr.mxu0 0.0
        %3755 = vmatpush1.xpose.msra.mxu0 0.0
        %3756 = vmatprep.subr.mxu0 0.0
        %3757 = vmatpush1.xpose.msra.mxu0 0.0
        %3758 = vmatprep.subr.mxu0 0.0
        %3759 = vmatpush1.xpose.msra.mxu0 0.0
        %3760 = vmatprep.subr.mxu0 0.0
        %3761 = vmatpush1.xpose.msra.mxu0 0.0
        %3762 = vmatprep.subr.mxu0 0.0
        %3763 = vmatpush1.xpose.msra.mxu0 0.0
        %3764 = vmatprep.subr.mxu0 0.0
        %3765 = vmatpush1.xpose.msra.mxu0 0.0
        %3766 = vmatprep.subr.mxu0 0.0
        %3767 = vmatpush1.xpose.msra.mxu0 0.0
        %3768 = vmatprep.subr.mxu0 0.0
        %3769 = vmatpush1.xpose.msra.mxu0 0.0
        %3770 = vmatprep.subr.mxu0 0.0
        %3771 = vmatpush1.xpose.msra.mxu0 0.0
        %3772 = vmatprep.subr.mxu0 0.0
        %3773 = vmatpush1.xpose.msra.mxu0 0.0
        %3774 = vmatprep.subr.mxu0 0.0
        %3775 = vmatpush1.xpose.msra.mxu0 0.0
        %3776 = vmatprep.subr.mxu0 0.0
        %3777 = vmatpush1.xpose.msra.mxu0 0.0
        %3778 = vmatprep.subr.mxu0 0.0
        %3779 = vmatpush1.xpose.msra.mxu0 0.0
        %3780 = vmatprep.subr.mxu0 0.0
        %3781 = vmatpush1.xpose.msra.mxu0 0.0
        %3782 = vmatprep.subr.mxu0 0.0
        %3783 = vmatpush1.xpose.msra.mxu0 0.0
        %3784 = vmatprep.subr.mxu0 0.0
        %3785 = vmatpush1.xpose.msra.mxu0 0.0
        %3786 = vmatprep.subr.mxu0 0.0
        %3787 = vmatpush1.xpose.msra.mxu0 0.0
        %3788 = vmatprep.subr.mxu0 0.0
        %3789 = vmatpush1.xpose.msra.mxu0 0.0
        %3790 = vmatprep.subr.mxu0 0.0
        %3791 = vmatpush1.xpose.msra.mxu0 0.0
        %3792 = vmatprep.subr.mxu0 0.0
        %3793 = vmatpush1.xpose.msra.mxu0 0.0
        %3794 = vmatprep.subr.mxu0 0.0
        %3795 = vmatpush1.xpose.msra.mxu0 0.0
        %3796 = vmatprep.subr.mxu0 0.0
        %3797 = vmatpush1.xpose.msra.mxu0 0.0
        %3798 = vmatprep.subr.mxu0 0.0
        %3799 = vmatpush1.xpose.msra.mxu0 0.0
        %3800 = vmatprep.subr.mxu0 0.0
        %3801 = vmatpush1.xpose.msra.mxu0 0.0
        %3802 = vmatprep.subr.mxu0 0.0
        %3803 = vmatpush1.xpose.msra.mxu0 0.0
        %3804 = vmatprep.subr.mxu0 0.0
        %3805 = vmatpush1.xpose.msra.mxu0 0.0
        %3806 = vmatprep.subr.mxu0 0.0
        %3807 = vmatpush1.xpose.msra.mxu0 0.0
        %3808 = vmatprep.mubr.f32.mxu0 0.0
        %3809 = vmatmul.mubr.f32.gmra.mrb[0].mxu0 %v3732
        %v3810 = vpop.f32.mrb[0].mxu0
        %v3811 = vadd.f32 0.0, %v3810
        %v3812 = vpop.f32.mrb[0].mxu0
        %3813 = vmatprep.mubr.f32.mxu0 0.0
        %3814 = vmatmul.mubr.f32.gmra.mrb[0].mxu0 %v3734
        %v3815 = vpop.f32.mrb[0].mxu0
        %v3816 = vadd.f32 0.0, %v3815
        %v3817 = vpop.f32.mrb[0].mxu0
        %3818 = vmatprep.mubr.f32.mxu0 0.0
        %3819 = vmatmul.mubr.f32.gmra.mrb[0].mxu0 %v3736
        %v3820 = vpop.f32.mrb[0].mxu0
        %v3821 = vadd.f32 0.0, %v3820
        %v3822 = vpop.f32.mrb[0].mxu0
        %3823 = vdwg.mxu0
        %v3824 = vmul.f32 %v3811, 0.25
        %v3825 = vmul.f32 %v3816, 0.25
        %v3826 = vmul.f32 %v3821, 0.25
        %v3827 = vsel %vm3168, %v3824, -inf
        %3828 = vmax.xlane.f32.xlu0 %v3827
        %v3829 = vpop.xlane.xlu0 %3828
        %v3830 = vsel %vm3168, %v3825, -inf
        %3831 = vmax.xlane.f32.xlu0 %v3830
        %v3832 = vpop.xlane.xlu0 %3831
        %v3833 = vsel %vm3175, %v3826, -inf
        %3834 = vmax.xlane.f32.xlu0 %v3833
        %v3835 = vpop.xlane.xlu0 %3834
        %v3836 = vsub.f32 %v3824, %v3829
        %v3837 = vsub.f32 %v3825, %v3832
        %v3838 = vsub.f32 %v3826, %v3835
        %v3839 = vmul.f32 %v3836, 1.442695
        %v3840 = vpow.pop %v3839
        %v3841 = vmul.f32 %v3837, 1.442695
        %v3842 = vpow.pop %v3841
        %v3843 = vmul.f32 %v3838, 1.442695
        %v3844 = vpow.pop %v3843
        %v3845 = vsel %vm3168, %v3840, 0.0
        %3846 = vadd.xlane.f32.xlu0 %v3845
        %v3847 = vpop.xlane.xlu0 %3846
        %v3848 = vsel %vm3168, %v3842, 0.0
        %3849 = vadd.xlane.f32.xlu0 %v3848
        %v3850 = vpop.xlane.xlu0 %3849
        %v3851 = vsel %vm3175, %v3844, 0.0
        %3852 = vadd.xlane.f32.xlu0 %v3851
        %v3853 = vpop.xlane.xlu0 %3852
        %v3854 = vrcp.pop %v3847
        %v3855 = vmul.f32 %v3840, %v3854
        %v3856 = vrcp.pop %v3850
        %v3857 = vmul.f32 %v3842, %v3856
        %v3858 = vrcp.pop %v3853
        %v3859 = vmul.f32 %v3844, %v3858
        %3860 = vrot.lane.b32.xlu0 %v3049, 96
        %v3861 = vpop.permute.xlu0 %3860
        %3862 = vrot.lane.b32.xlu0 %v3055, 96
        %v3863 = vpop.permute.xlu0 %3862
        %3864 = vrot.lane.b32.xlu0 %v3061, 96
        %v3865 = vpop.permute.xlu0 %3864
        %v3869 = vsel %vm3168, %v3855, 0
        %v3872 = vsel %vm3168, %v3857, 0
        %v3875 = vsel %vm3168, %v3859, 0
        %v3877 = vsel %vm3212, %v3865, 0
        %3879 = vmatprep.subr.mxu0 0.0
        %3880 = vmatpush1.msra.mxu0 %v3861
        %3881 = vmatprep.subr.mxu0 0.0
        %3882 = vmatpush1.msra.mxu0 %v3863
        %3883 = vmatprep.subr.mxu0 0.0
        %3884 = vmatpush1.msra.mxu0 %v3877
        %3885 = vmatprep.subr.mxu0 0.0
        %3886 = vmatpush1.msra.mxu0 0.0
        %3887 = vmatprep.subr.mxu0 0.0
        %3888 = vmatpush1.msra.mxu0 0.0
        %3889 = vmatprep.subr.mxu0 0.0
        %3890 = vmatpush1.msra.mxu0 0.0
        %3891 = vmatprep.subr.mxu0 0.0
        %3892 = vmatpush1.msra.mxu0 0.0
        %3893 = vmatprep.subr.mxu0 0.0
        %3894 = vmatpush1.msra.mxu0 0.0
        %3895 = vmatprep.subr.mxu0 0.0
        %3896 = vmatpush1.msra.mxu0 0.0
        %3897 = vmatprep.subr.mxu0 0.0
        %3898 = vmatpush1.msra.mxu0 0.0
        %3899 = vmatprep.subr.mxu0 0.0
        %3900 = vmatpush1.msra.mxu0 0.0
        %3901 = vmatprep.subr.mxu0 0.0
        %3902 = vmatpush1.msra.mxu0 0.0
        %3903 = vmatprep.subr.mxu0 0.0
        %3904 = vmatpush1.msra.mxu0 0.0
        %3905 = vmatprep.subr.mxu0 0.0
        %3906 = vmatpush1.msra.mxu0 0.0
        %3907 = vmatprep.subr.mxu0 0.0
        %3908 = vmatpush1.msra.mxu0 0.0
        %3909 = vmatprep.subr.mxu0 0.0
        %3910 = vmatpush1.msra.mxu0 0.0
        %3911 = vmatprep.subr.mxu0 0.0
        %3912 = vmatpush1.msra.mxu0 0.0
        %3913 = vmatprep.subr.mxu0 0.0
        %3914 = vmatpush1.msra.mxu0 0.0
        %3915 = vmatprep.subr.mxu0 0.0
        %3916 = vmatpush1.msra.mxu0 0.0
        %3917 = vmatprep.subr.mxu0 0.0
        %3918 = vmatpush1.msra.mxu0 0.0
        %3919 = vmatprep.subr.mxu0 0.0
        %3920 = vmatpush1.msra.mxu0 0.0
        %3921 = vmatprep.subr.mxu0 0.0
        %3922 = vmatpush1.msra.mxu0 0.0
        %3923 = vmatprep.subr.mxu0 0.0
        %3924 = vmatpush1.msra.mxu0 0.0
        %3925 = vmatprep.subr.mxu0 0.0
        %3926 = vmatpush1.msra.mxu0 0.0
        %3927 = vmatprep.subr.mxu0 0.0
        %3928 = vmatpush1.msra.mxu0 0.0
        %3929 = vmatprep.subr.mxu0 0.0
        %3930 = vmatpush1.msra.mxu0 0.0
        %3931 = vmatprep.subr.mxu0 0.0
        %3932 = vmatpush1.msra.mxu0 0.0
        %3933 = vmatprep.subr.mxu0 0.0
        %3934 = vmatpush1.msra.mxu0 0.0
        %3935 = vmatprep.subr.mxu0 0.0
        %3936 = vmatpush1.msra.mxu0 0.0
        %3937 = vmatprep.subr.mxu0 0.0
        %3938 = vmatpush1.msra.mxu0 0.0
        %3939 = vmatprep.subr.mxu0 0.0
        %3940 = vmatpush1.msra.mxu0 0.0
        %3941 = vmatprep.subr.mxu0 0.0
        %3942 = vmatpush1.msra.mxu0 0.0
        %3943 = vmatprep.mubr.f32.mxu0 0.0
        %3944 = vmatmul.mubr.f32.gmra.mrb[0].mxu0 %v3869
        %v3945 = vpop.f32.mrb[0].mxu0
        %v3946 = vadd.f32 0.0, %v3945
        %v3947 = vpop.f32.mrb[0].mxu0
        %3948 = vmatprep.mubr.f32.mxu0 0.0
        %3949 = vmatmul.mubr.f32.gmra.mrb[0].mxu0 %v3872
        %v3950 = vpop.f32.mrb[0].mxu0
        %v3951 = vadd.f32 0.0, %v3950
        %v3952 = vpop.f32.mrb[0].mxu0
        %3953 = vmatprep.mubr.f32.mxu0 0.0
        %3954 = vmatmul.mubr.f32.gmra.mrb[0].mxu0 %v3875
        %v3955 = vpop.f32.mrb[0].mxu0
        %v3956 = vadd.f32 0.0, %v3955
        %v3957 = vpop.f32.mrb[0].mxu0
        %3958 = vdwg.mxu0
        %s3959 = scalar_lea.vmem [#allocation13], 32
        %v3960 = vld [vmem:[%s3959] sm:$0xff]
        %v3961 = vld [vmem:[%s3959 + $0x8] sm:$0xff]
        %v3963 = vsel %vm3072, %v3946, 0
        %v3966 = vsel %vm3072, %v3951, 0
        %v3969 = vsel %vm3072, %v3956, 0
        %3971 = vmatprep.subr.mxu0 0.0
        %3972 = vmatpush1.msra.mxu0 %v3960
        %3973 = vmatprep.subr.mxu0 0.0
        %3974 = vmatpush1.msra.mxu0 %v3961
        %3975 = vmatprep.subr.mxu0 0.0
        %3976 = vmatpush1.msra.mxu0 0.0
        %3977 = vmatprep.subr.mxu0 0.0
        %3978 = vmatpush1.msra.mxu0 0.0
        %3979 = vmatprep.subr.mxu0 0.0
        %3980 = vmatpush1.msra.mxu0 0.0
        %3981 = vmatprep.subr.mxu0 0.0
        %3982 = vmatpush1.msra.mxu0 0.0
        %3983 = vmatprep.subr.mxu0 0.0
        %3984 = vmatpush1.msra.mxu0 0.0
        %3985 = vmatprep.subr.mxu0 0.0
        %3986 = vmatpush1.msra.mxu0 0.0
        %3987 = vmatprep.subr.mxu0 0.0
        %3988 = vmatpush1.msra.mxu0 0.0
        %3989 = vmatprep.subr.mxu0 0.0
        %3990 = vmatpush1.msra.mxu0 0.0
        %3991 = vmatprep.subr.mxu0 0.0
        %3992 = vmatpush1.msra.mxu0 0.0
        %3993 = vmatprep.subr.mxu0 0.0
        %3994 = vmatpush1.msra.mxu0 0.0
        %3995 = vmatprep.subr.mxu0 0.0
        %3996 = vmatpush1.msra.mxu0 0.0
        %3997 = vmatprep.subr.mxu0 0.0
        %3998 = vmatpush1.msra.mxu0 0.0
        %3999 = vmatprep.subr.mxu0 0.0
        %4000 = vmatpush1.msra.mxu0 0.0
        %4001 = vmatprep.subr.mxu0 0.0
        %4002 = vmatpush1.msra.mxu0 0.0
        %4003 = vmatprep.subr.mxu0 0.0
        %4004 = vmatpush1.msra.mxu0 0.0
        %4005 = vmatprep.subr.mxu0 0.0
        %4006 = vmatpush1.msra.mxu0 0.0
        %4007 = vmatprep.subr.mxu0 0.0
        %4008 = vmatpush1.msra.mxu0 0.0
        %4009 = vmatprep.subr.mxu0 0.0
        %4010 = vmatpush1.msra.mxu0 0.0
        %4011 = vmatprep.subr.mxu0 0.0
        %4012 = vmatpush1.msra.mxu0 0.0
        %4013 = vmatprep.subr.mxu0 0.0
        %4014 = vmatpush1.msra.mxu0 0.0
        %4015 = vmatprep.subr.mxu0 0.0
        %4016 = vmatpush1.msra.mxu0 0.0
        %4017 = vmatprep.subr.mxu0 0.0
        %4018 = vmatpush1.msra.mxu0 0.0
        %4019 = vmatprep.subr.mxu0 0.0
        %4020 = vmatpush1.msra.mxu0 0.0
        %4021 = vmatprep.subr.mxu0 0.0
        %4022 = vmatpush1.msra.mxu0 0.0
        %4023 = vmatprep.subr.mxu0 0.0
        %4024 = vmatpush1.msra.mxu0 0.0
        %4025 = vmatprep.subr.mxu0 0.0
        %4026 = vmatpush1.msra.mxu0 0.0
        %4027 = vmatprep.subr.mxu0 0.0
        %4028 = vmatpush1.msra.mxu0 0.0
        %4029 = vmatprep.subr.mxu0 0.0
        %4030 = vmatpush1.msra.mxu0 0.0
        %4031 = vmatprep.subr.mxu0 0.0
        %4032 = vmatpush1.msra.mxu0 0.0
        %4033 = vmatprep.subr.mxu0 0.0
        %4034 = vmatpush1.msra.mxu0 0.0
        %4035 = vmatprep.mubr.f32.mxu0 0.0
        %4036 = vmatmul.mubr.f32.gmra.mrb[0].mxu0 %v3963
        %v4037 = vpop.f32.mrb[0].mxu0
        %v4038 = vadd.f32 0.0, %v4037
        %v4039 = vpop.f32.mrb[0].mxu0
        %4040 = vmatprep.mubr.f32.mxu0 0.0
        %4041 = vmatmul.mubr.f32.gmra.mrb[0].mxu0 %v3966
        %v4042 = vpop.f32.mrb[0].mxu0
        %v4043 = vadd.f32 0.0, %v4042
        %v4044 = vpop.f32.mrb[0].mxu0
        %4045 = vmatprep.mubr.f32.mxu0 0.0
        %4046 = vmatmul.mubr.f32.gmra.mrb[0].mxu0 %v3969
        %v4047 = vpop.f32.mrb[0].mxu0
        %v4048 = vadd.f32 0.0, %v4047
        %v4049 = vpop.f32.mrb[0].mxu0
        %4050 = vdwg.mxu0
        %v4051 = vadd.f32 %v3707, %v4038
        %v4052 = vadd.f32 %v3712, %v4043
        %v4053 = vadd.f32 %v3717, %v4048
        %4054 = vrot.lane.b32.xlu0 %v3047, 80
        %v4055 = vpop.permute.xlu0 %4054
        %4056 = vrot.lane.b32.xlu0 %v3053, 80
        %v4057 = vpop.permute.xlu0 %4056
        %4058 = vrot.lane.b32.xlu0 %v3059, 80
        %v4059 = vpop.permute.xlu0 %4058
        %4060 = vrot.lane.b32.xlu0 %v3047, 16
        %v4061 = vpop.permute.xlu0 %4060
        %4062 = vrot.lane.b32.xlu0 %v3053, 16
        %v4063 = vpop.permute.xlu0 %4062
        %4064 = vrot.lane.b32.xlu0 %v3059, 16
        %v4065 = vpop.permute.xlu0 %4064
        %v4066 = vsel %vm3072, %v4055, 0
        %v4068 = vsel %vm3072, %v4057, 0
        %v4070 = vsel %vm3072, %v4059, 0
        %v4072 = vsel %vm3072, %v4061, 0
        %v4074 = vsel %vm3072, %v4063, 0
        %v4076 = vsel %vm3072, %v4065, 0
        %4078 = vmatprep.subr.mxu0 0.0
        %4079 = vmatpush1.xpose.msra.mxu0 %v4072
        %4080 = vmatprep.subr.mxu0 0.0
        %4081 = vmatpush1.xpose.msra.mxu0 %v4074
        %4082 = vmatprep.subr.mxu0 0.0
        %4083 = vmatpush1.xpose.msra.mxu0 %v4076
        %4084 = vmatprep.subr.mxu0 0.0
        %4085 = vmatpush1.xpose.msra.mxu0 0.0
        %4086 = vmatprep.subr.mxu0 0.0
        %4087 = vmatpush1.xpose.msra.mxu0 0.0
        %4088 = vmatprep.subr.mxu0 0.0
        %4089 = vmatpush1.xpose.msra.mxu0 0.0
        %4090 = vmatprep.subr.mxu0 0.0
        %4091 = vmatpush1.xpose.msra.mxu0 0.0
        %4092 = vmatprep.subr.mxu0 0.0
        %4093 = vmatpush1.xpose.msra.mxu0 0.0
        %4094 = vmatprep.subr.mxu0 0.0
        %4095 = vmatpush1.xpose.msra.mxu0 0.0
        %4096 = vmatprep.subr.mxu0 0.0
        %4097 = vmatpush1.xpose.msra.mxu0 0.0
        %4098 = vmatprep.subr.mxu0 0.0
        %4099 = vmatpush1.xpose.msra.mxu0 0.0
        %4100 = vmatprep.subr.mxu0 0.0
        %4101 = vmatpush1.xpose.msra.mxu0 0.0
        %4102 = vmatprep.subr.mxu0 0.0
        %4103 = vmatpush1.xpose.msra.mxu0 0.0
        %4104 = vmatprep.subr.mxu0 0.0
        %4105 = vmatpush1.xpose.msra.mxu0 0.0
        %4106 = vmatprep.subr.mxu0 0.0
        %4107 = vmatpush1.xpose.msra.mxu0 0.0
        %4108 = vmatprep.subr.mxu0 0.0
        %4109 = vmatpush1.xpose.msra.mxu0 0.0
        %4110 = vmatprep.subr.mxu0 0.0
        %4111 = vmatpush1.xpose.msra.mxu0 0.0
        %4112 = vmatprep.subr.mxu0 0.0
        %4113 = vmatpush1.xpose.msra.mxu0 0.0
        %4114 = vmatprep.subr.mxu0 0.0
        %4115 = vmatpush1.xpose.msra.mxu0 0.0
        %4116 = vmatprep.subr.mxu0 0.0
        %4117 = vmatpush1.xpose.msra.mxu0 0.0
        %4118 = vmatprep.subr.mxu0 0.0
        %4119 = vmatpush1.xpose.msra.mxu0 0.0
        %4120 = vmatprep.subr.mxu0 0.0
        %4121 = vmatpush1.xpose.msra.mxu0 0.0
        %4122 = vmatprep.subr.mxu0 0.0
        %4123 = vmatpush1.xpose.msra.mxu0 0.0
        %4124 = vmatprep.subr.mxu0 0.0
        %4125 = vmatpush1.xpose.msra.mxu0 0.0
        %4126 = vmatprep.subr.mxu0 0.0
        %4127 = vmatpush1.xpose.msra.mxu0 0.0
        %4128 = vmatprep.subr.mxu0 0.0
        %4129 = vmatpush1.xpose.msra.mxu0 0.0
        %4130 = vmatprep.subr.mxu0 0.0
        %4131 = vmatpush1.xpose.msra.mxu0 0.0
        %4132 = vmatprep.subr.mxu0 0.0
        %4133 = vmatpush1.xpose.msra.mxu0 0.0
        %4134 = vmatprep.subr.mxu0 0.0
        %4135 = vmatpush1.xpose.msra.mxu0 0.0
        %4136 = vmatprep.subr.mxu0 0.0
        %4137 = vmatpush1.xpose.msra.mxu0 0.0
        %4138 = vmatprep.subr.mxu0 0.0
        %4139 = vmatpush1.xpose.msra.mxu0 0.0
        %4140 = vmatprep.subr.mxu0 0.0
        %4141 = vmatpush1.xpose.msra.mxu0 0.0
        %4142 = vmatprep.mubr.f32.mxu0 0.0
        %4143 = vmatmul.mubr.f32.gmra.mrb[0].mxu0 %v4066
        %v4144 = vpop.f32.mrb[0].mxu0
        %v4145 = vadd.f32 0.0, %v4144
        %v4146 = vpop.f32.mrb[0].mxu0
        %4147 = vmatprep.mubr.f32.mxu0 0.0
        %4148 = vmatmul.mubr.f32.gmra.mrb[0].mxu0 %v4068
        %v4149 = vpop.f32.mrb[0].mxu0
        %v4150 = vadd.f32 0.0, %v4149
        %v4151 = vpop.f32.mrb[0].mxu0
        %4152 = vmatprep.mubr.f32.mxu0 0.0
        %4153 = vmatmul.mubr.f32.gmra.mrb[0].mxu0 %v4070
        %v4154 = vpop.f32.mrb[0].mxu0
        %v4155 = vadd.f32 0.0, %v4154
        %v4156 = vpop.f32.mrb[0].mxu0
        %4157 = vdwg.mxu0
        %v4158 = vmul.f32 %v4145, 0.25
        %v4159 = vmul.f32 %v4150, 0.25
        %v4160 = vmul.f32 %v4155, 0.25
        %v4161 = vsel %vm3168, %v4158, -inf
        %4162 = vmax.xlane.f32.xlu0 %v4161
        %v4163 = vpop.xlane.xlu0 %4162
        %v4164 = vsel %vm3168, %v4159, -inf
        %4165 = vmax.xlane.f32.xlu0 %v4164
        %v4166 = vpop.xlane.xlu0 %4165
        %v4167 = vsel %vm3175, %v4160, -inf
        %4168 = vmax.xlane.f32.xlu0 %v4167
        %v4169 = vpop.xlane.xlu0 %4168
        %v4170 = vsub.f32 %v4158, %v4163
        %v4171 = vsub.f32 %v4159, %v4166
        %v4172 = vsub.f32 %v4160, %v4169
        %v4173 = vmul.f32 %v4170, 1.442695
        %v4174 = vpow.pop %v4173
        %v4175 = vmul.f32 %v4171, 1.442695
        %v4176 = vpow.pop %v4175
        %v4177 = vmul.f32 %v4172, 1.442695
        %v4178 = vpow.pop %v4177
        %v4179 = vsel %vm3168, %v4174, 0.0
        %4180 = vadd.xlane.f32.xlu0 %v4179
        %v4181 = vpop.xlane.xlu0 %4180
        %v4182 = vsel %vm3168, %v4176, 0.0
        %4183 = vadd.xlane.f32.xlu0 %v4182
        %v4184 = vpop.xlane.xlu0 %4183
        %v4185 = vsel %vm3175, %v4178, 0.0
        %4186 = vadd.xlane.f32.xlu0 %v4185
        %v4187 = vpop.xlane.xlu0 %4186
        %v4188 = vrcp.pop %v4181
        %v4189 = vmul.f32 %v4174, %v4188
        %v4190 = vrcp.pop %v4184
        %v4191 = vmul.f32 %v4176, %v4190
        %v4192 = vrcp.pop %v4187
        %v4193 = vmul.f32 %v4178, %v4192
        %4194 = vrot.lane.b32.xlu0 %v3049, 80
        %v4195 = vpop.permute.xlu0 %4194
        %4196 = vrot.lane.b32.xlu0 %v3055, 80
        %v4197 = vpop.permute.xlu0 %4196
        %4198 = vrot.lane.b32.xlu0 %v3061, 80
        %v4199 = vpop.permute.xlu0 %4198
        %v4203 = vsel %vm3168, %v4189, 0
        %v4206 = vsel %vm3168, %v4191, 0
        %v4209 = vsel %vm3168, %v4193, 0
        %v4211 = vsel %vm3212, %v4199, 0
        %4213 = vmatprep.subr.mxu0 0.0
        %4214 = vmatpush1.msra.mxu0 %v4195
        %4215 = vmatprep.subr.mxu0 0.0
        %4216 = vmatpush1.msra.mxu0 %v4197
        %4217 = vmatprep.subr.mxu0 0.0
        %4218 = vmatpush1.msra.mxu0 %v4211
        %4219 = vmatprep.subr.mxu0 0.0
        %4220 = vmatpush1.msra.mxu0 0.0
        %4221 = vmatprep.subr.mxu0 0.0
        %4222 = vmatpush1.msra.mxu0 0.0
        %4223 = vmatprep.subr.mxu0 0.0
        %4224 = vmatpush1.msra.mxu0 0.0
        %4225 = vmatprep.subr.mxu0 0.0
        %4226 = vmatpush1.msra.mxu0 0.0
        %4227 = vmatprep.subr.mxu0 0.0
        %4228 = vmatpush1.msra.mxu0 0.0
        %4229 = vmatprep.subr.mxu0 0.0
        %4230 = vmatpush1.msra.mxu0 0.0
        %4231 = vmatprep.subr.mxu0 0.0
        %4232 = vmatpush1.msra.mxu0 0.0
        %4233 = vmatprep.subr.mxu0 0.0
        %4234 = vmatpush1.msra.mxu0 0.0
        %4235 = vmatprep.subr.mxu0 0.0
        %4236 = vmatpush1.msra.mxu0 0.0
        %4237 = vmatprep.subr.mxu0 0.0
        %4238 = vmatpush1.msra.mxu0 0.0
        %4239 = vmatprep.subr.mxu0 0.0
        %4240 = vmatpush1.msra.mxu0 0.0
        %4241 = vmatprep.subr.mxu0 0.0
        %4242 = vmatpush1.msra.mxu0 0.0
        %4243 = vmatprep.subr.mxu0 0.0
        %4244 = vmatpush1.msra.mxu0 0.0
        %4245 = vmatprep.subr.mxu0 0.0
        %4246 = vmatpush1.msra.mxu0 0.0
        %4247 = vmatprep.subr.mxu0 0.0
        %4248 = vmatpush1.msra.mxu0 0.0
        %4249 = vmatprep.subr.mxu0 0.0
        %4250 = vmatpush1.msra.mxu0 0.0
        %4251 = vmatprep.subr.mxu0 0.0
        %4252 = vmatpush1.msra.mxu0 0.0
        %4253 = vmatprep.subr.mxu0 0.0
        %4254 = vmatpush1.msra.mxu0 0.0
        %4255 = vmatprep.subr.mxu0 0.0
        %4256 = vmatpush1.msra.mxu0 0.0
        %4257 = vmatprep.subr.mxu0 0.0
        %4258 = vmatpush1.msra.mxu0 0.0
        %4259 = vmatprep.subr.mxu0 0.0
        %4260 = vmatpush1.msra.mxu0 0.0
        %4261 = vmatprep.subr.mxu0 0.0
        %4262 = vmatpush1.msra.mxu0 0.0
        %4263 = vmatprep.subr.mxu0 0.0
        %4264 = vmatpush1.msra.mxu0 0.0
        %4265 = vmatprep.subr.mxu0 0.0
        %4266 = vmatpush1.msra.mxu0 0.0
        %4267 = vmatprep.subr.mxu0 0.0
        %4268 = vmatpush1.msra.mxu0 0.0
        %4269 = vmatprep.subr.mxu0 0.0
        %4270 = vmatpush1.msra.mxu0 0.0
        %4271 = vmatprep.subr.mxu0 0.0
        %4272 = vmatpush1.msra.mxu0 0.0
        %4273 = vmatprep.subr.mxu0 0.0
        %4274 = vmatpush1.msra.mxu0 0.0
        %4275 = vmatprep.subr.mxu0 0.0
        %4276 = vmatpush1.msra.mxu0 0.0
        %4277 = vmatprep.mubr.f32.mxu0 0.0
        %4278 = vmatmul.mubr.f32.gmra.mrb[0].mxu0 %v4203
        %v4279 = vpop.f32.mrb[0].mxu0
        %v4280 = vadd.f32 0.0, %v4279
        %v4281 = vpop.f32.mrb[0].mxu0
        %4282 = vmatprep.mubr.f32.mxu0 0.0
        %4283 = vmatmul.mubr.f32.gmra.mrb[0].mxu0 %v4206
        %v4284 = vpop.f32.mrb[0].mxu0
        %v4285 = vadd.f32 0.0, %v4284
        %v4286 = vpop.f32.mrb[0].mxu0
        %4287 = vmatprep.mubr.f32.mxu0 0.0
        %4288 = vmatmul.mubr.f32.gmra.mrb[0].mxu0 %v4209
        %v4289 = vpop.f32.mrb[0].mxu0
        %v4290 = vadd.f32 0.0, %v4289
        %v4291 = vpop.f32.mrb[0].mxu0
        %4292 = vdwg.mxu0
        %s4293 = scalar_lea.vmem [#allocation13], 48
        %v4294 = vld [vmem:[%s4293] sm:$0xff]
        %v4295 = vld [vmem:[%s4293 + $0x8] sm:$0xff]
        %v4297 = vsel %vm3072, %v4280, 0
        %v4300 = vsel %vm3072, %v4285, 0
        %v4303 = vsel %vm3072, %v4290, 0
        %4305 = vmatprep.subr.mxu0 0.0
        %4306 = vmatpush1.msra.mxu0 %v4294
        %4307 = vmatprep.subr.mxu0 0.0
        %4308 = vmatpush1.msra.mxu0 %v4295
        %4309 = vmatprep.subr.mxu0 0.0
        %4310 = vmatpush1.msra.mxu0 0.0
        %4311 = vmatprep.subr.mxu0 0.0
        %4312 = vmatpush1.msra.mxu0 0.0
        %4313 = vmatprep.subr.mxu0 0.0
        %4314 = vmatpush1.msra.mxu0 0.0
        %4315 = vmatprep.subr.mxu0 0.0
        %4316 = vmatpush1.msra.mxu0 0.0
        %4317 = vmatprep.subr.mxu0 0.0
        %4318 = vmatpush1.msra.mxu0 0.0
        %4319 = vmatprep.subr.mxu0 0.0
        %4320 = vmatpush1.msra.mxu0 0.0
        %4321 = vmatprep.subr.mxu0 0.0
        %4322 = vmatpush1.msra.mxu0 0.0
        %4323 = vmatprep.subr.mxu0 0.0
        %4324 = vmatpush1.msra.mxu0 0.0
        %4325 = vmatprep.subr.mxu0 0.0
        %4326 = vmatpush1.msra.mxu0 0.0
        %4327 = vmatprep.subr.mxu0 0.0
        %4328 = vmatpush1.msra.mxu0 0.0
        %4329 = vmatprep.subr.mxu0 0.0
        %4330 = vmatpush1.msra.mxu0 0.0
        %4331 = vmatprep.subr.mxu0 0.0
        %4332 = vmatpush1.msra.mxu0 0.0
        %4333 = vmatprep.subr.mxu0 0.0
        %4334 = vmatpush1.msra.mxu0 0.0
        %4335 = vmatprep.subr.mxu0 0.0
        %4336 = vmatpush1.msra.mxu0 0.0
        %4337 = vmatprep.subr.mxu0 0.0
        %4338 = vmatpush1.msra.mxu0 0.0
        %4339 = vmatprep.subr.mxu0 0.0
        %4340 = vmatpush1.msra.mxu0 0.0
        %4341 = vmatprep.subr.mxu0 0.0
        %4342 = vmatpush1.msra.mxu0 0.0
        %4343 = vmatprep.subr.mxu0 0.0
        %4344 = vmatpush1.msra.mxu0 0.0
        %4345 = vmatprep.subr.mxu0 0.0
        %4346 = vmatpush1.msra.mxu0 0.0
        %4347 = vmatprep.subr.mxu0 0.0
        %4348 = vmatpush1.msra.mxu0 0.0
        %4349 = vmatprep.subr.mxu0 0.0
        %4350 = vmatpush1.msra.mxu0 0.0
        %4351 = vmatprep.subr.mxu0 0.0
        %4352 = vmatpush1.msra.mxu0 0.0
        %4353 = vmatprep.subr.mxu0 0.0
        %4354 = vmatpush1.msra.mxu0 0.0
        %4355 = vmatprep.subr.mxu0 0.0
        %4356 = vmatpush1.msra.mxu0 0.0
        %4357 = vmatprep.subr.mxu0 0.0
        %4358 = vmatpush1.msra.mxu0 0.0
        %4359 = vmatprep.subr.mxu0 0.0
        %4360 = vmatpush1.msra.mxu0 0.0
        %4361 = vmatprep.subr.mxu0 0.0
        %4362 = vmatpush1.msra.mxu0 0.0
        %4363 = vmatprep.subr.mxu0 0.0
        %4364 = vmatpush1.msra.mxu0 0.0
        %4365 = vmatprep.subr.mxu0 0.0
        %4366 = vmatpush1.msra.mxu0 0.0
        %4367 = vmatprep.subr.mxu0 0.0
        %4368 = vmatpush1.msra.mxu0 0.0
        %4369 = vmatprep.mubr.f32.mxu0 0.0
        %4370 = vmatmul.mubr.f32.gmra.mrb[0].mxu0 %v4297
        %v4371 = vpop.f32.mrb[0].mxu0
        %v4372 = vadd.f32 0.0, %v4371
        %v4373 = vpop.f32.mrb[0].mxu0
        %4374 = vmatprep.mubr.f32.mxu0 0.0
        %4375 = vmatmul.mubr.f32.gmra.mrb[0].mxu0 %v4300
        %v4376 = vpop.f32.mrb[0].mxu0
        %v4377 = vadd.f32 0.0, %v4376
        %v4378 = vpop.f32.mrb[0].mxu0
        %4379 = vmatprep.mubr.f32.mxu0 0.0
        %4380 = vmatmul.mubr.f32.gmra.mrb[0].mxu0 %v4303
        %v4381 = vpop.f32.mrb[0].mxu0
        %v4382 = vadd.f32 0.0, %v4381
        %v4383 = vpop.f32.mrb[0].mxu0
        %4384 = vdwg.mxu0
        %v4385 = vadd.f32 %v4051, %v4372
        %v4386 = vadd.f32 %v4052, %v4377
        %v4387 = vadd.f32 %v4053, %v4382
        %v4388 = vld [vmem:[#allocation15] sm:$0x3]
        %v4389 = vadd.f32 %v2884, %v4385
        %v4390 = vadd.f32 %v2885, %v4386
        %v4391 = vadd.f32 %v2886, %v4387
        %v4392 = vlaneseq
        %v4393 = vshrl.u32 %v4392, 7
        %v4394 = vsub.s32 0, %v4393
        %v4395 = vrot.slane %v4388, %v4394
        %v4396 = vadd.f32 %v4389, %v4395
        %v4397 = vadd.f32 %v4390, %v4395
        %v4398 = vadd.f32 %v4391, %v4395
        %v4399 = vsel %vm2513, %v4396, 0.0
        %4400 = vadd.xlane.f32.xlu0 %v4399
        %v4401 = vpop.xlane.xlu0 %4400
        %v4402 = vsel %vm2513, %v4397, 0.0
        %4403 = vadd.xlane.f32.xlu0 %v4402
        %v4404 = vpop.xlane.xlu0 %4403
        %v4405 = vsel %vm2894, %v4398, 0.0
        %4406 = vadd.xlane.f32.xlu0 %v4405
        %v4407 = vpop.xlane.xlu0 %4406
        %v4408 = vmul.f32 %v4401, %v2898
        %v4409 = vmul.f32 %v4404, %v2898
        %v4410 = vmul.f32 %v4407, %v2898
        %v4411 = vsub.f32 %v4396, %v4408
        %v4412 = vsub.f32 %v4397, %v4409
        %v4413 = vsub.f32 %v4398, %v4410
        %v4414 = vmul.f32 %v4411, %v4411
        %v4415 = vmul.f32 %v4412, %v4412
        %v4416 = vmul.f32 %v4413, %v4413
        %v4417 = vsel %vm2513, %v4414, 0.0
        %4418 = vadd.xlane.f32.xlu0 %v4417
        %v4419 = vpop.xlane.xlu0 %4418
        %v4420 = vsel %vm2513, %v4415, 0.0
        %4421 = vadd.xlane.f32.xlu0 %v4420
        %v4422 = vpop.xlane.xlu0 %4421
        %v4423 = vsel %vm2894, %v4416, 0.0
        %4424 = vadd.xlane.f32.xlu0 %v4423
        %v4425 = vpop.xlane.xlu0 %4424
        %v4426 = vmul.f32 %v4419, %v2898
        %v4427 = vmul.f32 %v4422, %v2898
        %v4428 = vmul.f32 %v4425, %v2898
        %v4429 = vadd.f32 %v4426, 1e-05
        %v4430 = vadd.f32 %v4427, 1e-05
        %v4431 = vadd.f32 %v4428, 1e-05
        %v4432 = vrsqrt.pop %v4429
        %v4433 = vrsqrt.pop %v4430
        %v4434 = vrsqrt.pop %v4431
        %v4435 = vmul.f32 %v4411, %v4432
        %v4436 = vmul.f32 %v4412, %v4433
        %v4437 = vmul.f32 %v4413, %v4434
        %v4438 = vlaneseq
        %v4439 = vshrl.u32 %v4438, 7
        %v4440 = vsub.s32 2, %v4439
        %v4441 = vrot.slane %v2887, %v4440
        %v4442 = vmul.f32 %v4435, %v4441
        %v4443 = vmul.f32 %v4436, %v4441
        %v4444 = vmul.f32 %v4437, %v4441
        %v4445 = vlaneseq
        %v4446 = vshrl.u32 %v4445, 7
        %v4447 = vsub.s32 3, %v4446
        %v4448 = vrot.slane %v2887, %v4447
        %v4449 = vadd.f32 %v4442, %v4448
        %v4450 = vadd.f32 %v4443, %v4448
        %v4451 = vadd.f32 %v4444, %v4448
        %v4452 = vld [vmem:[#allocation16] sm:$0xff]
        %v4453 = vld [vmem:[#allocation16 + $0x8] sm:$0xff]
        %v4454 = vld [vmem:[#allocation16 + $0x10] sm:$0xff]
        %v4455 = vld [vmem:[#allocation16 + $0x18] sm:$0xff]
        %v4456 = vld [vmem:[#allocation16 + $0x20] sm:$0xff]
        %v4457 = vld [vmem:[#allocation16 + $0x28] sm:$0xff]
        %v4458 = vld [vmem:[#allocation16 + $0x30] sm:$0xff]
        %v4459 = vld [vmem:[#allocation16 + $0x38] sm:$0xff]
        %v4460 = vld [vmem:[#allocation16 + $0x40] sm:$0xff]
        %v4461 = vld [vmem:[#allocation16 + $0x48] sm:$0xff]
        %v4462 = vld [vmem:[#allocation16 + $0x50] sm:$0xff]
        %v4463 = vld [vmem:[#allocation16 + $0x58] sm:$0xff]
        %v4464 = vld [vmem:[#allocation16 + $0x60] sm:$0xff]
        %v4465 = vld [vmem:[#allocation16 + $0x68] sm:$0xff]
        %v4466 = vld [vmem:[#allocation16 + $0x70] sm:$0xff]
        %v4467 = vld [vmem:[#allocation16 + $0x78] sm:$0xff]
        %v4468 = vld [vmem:[#allocation18] sm:$0x3]
        %v4470 = vlaneseq
        %v4471 = vshrl.u32 %v4470, 7
        %v4472 = vsub.s32 0, %v4471
        %v4473 = vrot.slane %v4468, %v4472
        %v4474 = vlaneseq
        %v4475 = vshrl.u32 %v4474, 7
        %v4476 = vsub.s32 1, %v4475
        %v4477 = vrot.slane %v4468, %v4476
        %v4481 = vsel %vm2513, %v4449, 0
        %v4484 = vsel %vm2513, %v4450, 0
        %v4487 = vsel %vm2513, %v4451, 0
        %4489 = vmatprep.subr.mxu0 %v4453
        %4490 = vmatpush1.msra.mxu0 %v4452
        %4491 = vmatprep.subr.mxu0 %v4455
        %4492 = vmatpush1.msra.mxu0 %v4454
        %4493 = vmatprep.subr.mxu0 %v4457
        %4494 = vmatpush1.msra.mxu0 %v4456
        %4495 = vmatprep.subr.mxu0 %v4459
        %4496 = vmatpush1.msra.mxu0 %v4458
        %4497 = vmatprep.subr.mxu0 %v4461
        %4498 = vmatpush1.msra.mxu0 %v4460
        %4499 = vmatprep.subr.mxu0 %v4463
        %4500 = vmatpush1.msra.mxu0 %v4462
        %4501 = vmatprep.subr.mxu0 %v4465
        %4502 = vmatpush1.msra.mxu0 %v4464
        %4503 = vmatprep.subr.mxu0 %v4467
        %4504 = vmatpush1.msra.mxu0 %v4466
        %4505 = vmatprep.subr.mxu0 0.0
        %4506 = vmatpush1.msra.mxu0 0.0
        %4507 = vmatprep.subr.mxu0 0.0
        %4508 = vmatpush1.msra.mxu0 0.0
        %4509 = vmatprep.subr.mxu0 0.0
        %4510 = vmatpush1.msra.mxu0 0.0
        %4511 = vmatprep.subr.mxu0 0.0
        %4512 = vmatpush1.msra.mxu0 0.0
        %4513 = vmatprep.subr.mxu0 0.0
        %4514 = vmatpush1.msra.mxu0 0.0
        %4515 = vmatprep.subr.mxu0 0.0
        %4516 = vmatpush1.msra.mxu0 0.0
        %4517 = vmatprep.subr.mxu0 0.0
        %4518 = vmatpush1.msra.mxu0 0.0
        %4519 = vmatprep.subr.mxu0 0.0
        %4520 = vmatpush1.msra.mxu0 0.0
        %4521 = vmatprep.subr.mxu0 0.0
        %4522 = vmatpush1.msra.mxu0 0.0
        %4523 = vmatprep.subr.mxu0 0.0
        %4524 = vmatpush1.msra.mxu0 0.0
        %4525 = vmatprep.subr.mxu0 0.0
        %4526 = vmatpush1.msra.mxu0 0.0
        %4527 = vmatprep.subr.mxu0 0.0
        %4528 = vmatpush1.msra.mxu0 0.0
        %4529 = vmatprep.subr.mxu0 0.0
        %4530 = vmatpush1.msra.mxu0 0.0
        %4531 = vmatprep.subr.mxu0 0.0
        %4532 = vmatpush1.msra.mxu0 0.0
        %4533 = vmatprep.subr.mxu0 0.0
        %4534 = vmatpush1.msra.mxu0 0.0
        %4535 = vmatprep.subr.mxu0 0.0
        %4536 = vmatpush1.msra.mxu0 0.0
        %4537 = vmatprep.subr.mxu0 0.0
        %4538 = vmatpush1.msra.mxu0 0.0
        %4539 = vmatprep.subr.mxu0 0.0
        %4540 = vmatpush1.msra.mxu0 0.0
        %4541 = vmatprep.subr.mxu0 0.0
        %4542 = vmatpush1.msra.mxu0 0.0
        %4543 = vmatprep.subr.mxu0 0.0
        %4544 = vmatpush1.msra.mxu0 0.0
        %4545 = vmatprep.subr.mxu0 0.0
        %4546 = vmatpush1.msra.mxu0 0.0
        %4547 = vmatprep.subr.mxu0 0.0
        %4548 = vmatpush1.msra.mxu0 0.0
        %4549 = vmatprep.subr.mxu0 0.0
        %4550 = vmatpush1.msra.mxu0 0.0
        %4551 = vmatprep.subr.mxu0 0.0
        %4552 = vmatpush1.msra.mxu0 0.0
        %4553 = vmatprep.mubr.f32.mxu0 0.0
        %4554 = vmatmul.mubr.f32.gmra.mrb[0].mxu0 %v4481
        %v4555 = vpop.f32.mrb[0].mxu0
        %v4556 = vadd.f32 %v4473, %v4555
        %v4557 = vpop.f32.mrb[0].mxu0
        %v4558 = vadd.f32 %v4477, %v4557
        %4559 = vmatprep.mubr.f32.mxu0 0.0
        %4560 = vmatmul.mubr.f32.gmra.mrb[0].mxu0 %v4484
        %v4561 = vpop.f32.mrb[0].mxu0
        %v4562 = vadd.f32 %v4473, %v4561
        %v4563 = vpop.f32.mrb[0].mxu0
        %v4564 = vadd.f32 %v4477, %v4563
        %4565 = vmatprep.mubr.f32.mxu0 0.0
        %4566 = vmatmul.mubr.f32.gmra.mrb[0].mxu0 %v4487
        %v4567 = vpop.f32.mrb[0].mxu0
        %v4568 = vadd.f32 %v4473, %v4567
        %v4569 = vpop.f32.mrb[0].mxu0
        %v4570 = vadd.f32 %v4477, %v4569
        %4571 = vdwg.mxu0
        %v4572 = vmul.f32 %v4556, 0.70710677
        %v4573 = vmul.f32 %v4558, 0.70710677
        %v4574 = vmul.f32 %v4562, 0.70710677
        %v4575 = vmul.f32 %v4564, 0.70710677
        %v4576 = vmul.f32 %v4568, 0.70710677
        %v4577 = vmul.f32 %v4570, 0.70710677
        %v4578 = vand.u32 2147483647, %v4572
        %v4579 = vand.u32 2147483647, %v4573
        %v4580 = vand.u32 2147483647, %v4574
        %v4581 = vand.u32 2147483647, %v4575
        %v4582 = vand.u32 2147483647, %v4576
        %v4583 = vand.u32 2147483647, %v4577
        %v4584 = vmul.f32 %v4578, 0.3275911
        %v4585 = vmul.f32 %v4579, 0.3275911
        %v4586 = vmul.f32 %v4580, 0.3275911
        %v4587 = vmul.f32 %v4581, 0.3275911
        %v4588 = vmul.f32 %v4582, 0.3275911
        %v4589 = vmul.f32 %v4583, 0.3275911
        %v4590 = vadd.f32 %v4584, 1.0
        %v4591 = vadd.f32 %v4585, 1.0
        %v4592 = vadd.f32 %v4586, 1.0
        %v4593 = vadd.f32 %v4587, 1.0
        %v4594 = vadd.f32 %v4588, 1.0
        %v4595 = vadd.f32 %v4589, 1.0
        %v4596 = vrcp.pop %v4590
        %v4597 = vmul.f32 1.0, %v4596
        %v4598 = vrcp.pop %v4591
        %v4599 = vmul.f32 1.0, %v4598
        %v4600 = vrcp.pop %v4592
        %v4601 = vmul.f32 1.0, %v4600
        %v4602 = vrcp.pop %v4593
        %v4603 = vmul.f32 1.0, %v4602
        %v4604 = vrcp.pop %v4594
        %v4605 = vmul.f32 1.0, %v4604
        %v4606 = vrcp.pop %v4595
        %v4607 = vmul.f32 1.0, %v4606
        %v4608 = vmul.f32 %v4597, 1.0614054
        %v4609 = vmul.f32 %v4599, 1.0614054
        %v4610 = vmul.f32 %v4601, 1.0614054
        %v4611 = vmul.f32 %v4603, 1.0614054
        %v4612 = vmul.f32 %v4605, 1.0614054
        %v4613 = vmul.f32 %v4607, 1.0614054
        %v4614 = vadd.f32 %v4608, -1.4531521
        %v4615 = vadd.f32 %v4609, -1.4531521
        %v4616 = vadd.f32 %v4610, -1.4531521
        %v4617 = vadd.f32 %v4611, -1.4531521
        %v4618 = vadd.f32 %v4612, -1.4531521
        %v4619 = vadd.f32 %v4613, -1.4531521
        %v4620 = vmul.f32 %v4597, %v4614
        %v4621 = vmul.f32 %v4599, %v4615
        %v4622 = vmul.f32 %v4601, %v4616
        %v4623 = vmul.f32 %v4603, %v4617
        %v4624 = vmul.f32 %v4605, %v4618
        %v4625 = vmul.f32 %v4607, %v4619
        %v4626 = vadd.f32 %v4620, 1.4214138
        %v4627 = vadd.f32 %v4621, 1.4214138
        %v4628 = vadd.f32 %v4622, 1.4214138
        %v4629 = vadd.f32 %v4623, 1.4214138
        %v4630 = vadd.f32 %v4624, 1.4214138
        %v4631 = vadd.f32 %v4625, 1.4214138
        %v4632 = vmul.f32 %v4597, %v4626
        %v4633 = vmul.f32 %v4599, %v4627
        %v4634 = vmul.f32 %v4601, %v4628
        %v4635 = vmul.f32 %v4603, %v4629
        %v4636 = vmul.f32 %v4605, %v4630
        %v4637 = vmul.f32 %v4607, %v4631
        %v4638 = vadd.f32 %v4632, -0.28449672
        %v4639 = vadd.f32 %v4633, -0.28449672
        %v4640 = vadd.f32 %v4634, -0.28449672
        %v4641 = vadd.f32 %v4635, -0.28449672
        %v4642 = vadd.f32 %v4636, -0.28449672
        %v4643 = vadd.f32 %v4637, -0.28449672
        %v4644 = vmul.f32 %v4597, %v4638
        %v4645 = vmul.f32 %v4599, %v4639
        %v4646 = vmul.f32 %v4601, %v4640
        %v4647 = vmul.f32 %v4603, %v4641
        %v4648 = vmul.f32 %v4605, %v4642
        %v4649 = vmul.f32 %v4607, %v4643
        %v4650 = vadd.f32 %v4644, 0.2548296
        %v4651 = vadd.f32 %v4645, 0.2548296
        %v4652 = vadd.f32 %v4646, 0.2548296
        %v4653 = vadd.f32 %v4647, 0.2548296
        %v4654 = vadd.f32 %v4648, 0.2548296
        %v4655 = vadd.f32 %v4649, 0.2548296
        %v4656 = vmul.f32 %v4597, %v4650
        %v4657 = vmul.f32 %v4599, %v4651
        %v4658 = vmul.f32 %v4601, %v4652
        %v4659 = vmul.f32 %v4603, %v4653
        %v4660 = vmul.f32 %v4605, %v4654
        %v4661 = vmul.f32 %v4607, %v4655
        %v4662 = vsub.f32 0.0, %v4578
        %v4663 = vsub.f32 0.0, %v4579
        %v4664 = vsub.f32 0.0, %v4580
        %v4665 = vsub.f32 0.0, %v4581
        %v4666 = vsub.f32 0.0, %v4582
        %v4667 = vsub.f32 0.0, %v4583
        %v4668 = vmul.f32 %v4662, %v4578
        %v4669 = vmul.f32 %v4663, %v4579
        %v4670 = vmul.f32 %v4664, %v4580
        %v4671 = vmul.f32 %v4665, %v4581
        %v4672 = vmul.f32 %v4666, %v4582
        %v4673 = vmul.f32 %v4667, %v4583
        %v4674 = vmul.f32 %v4668, 1.442695
        %v4675 = vpow.pop %v4674
        %v4676 = vmul.f32 %v4669, 1.442695
        %v4677 = vpow.pop %v4676
        %v4678 = vmul.f32 %v4670, 1.442695
        %v4679 = vpow.pop %v4678
        %v4680 = vmul.f32 %v4671, 1.442695
        %v4681 = vpow.pop %v4680
        %v4682 = vmul.f32 %v4672, 1.442695
        %v4683 = vpow.pop %v4682
        %v4684 = vmul.f32 %v4673, 1.442695
        %v4685 = vpow.pop %v4684
        %v4686 = vmul.f32 %v4656, %v4675
        %v4687 = vmul.f32 %v4657, %v4677
        %v4688 = vmul.f32 %v4658, %v4679
        %v4689 = vmul.f32 %v4659, %v4681
        %v4690 = vmul.f32 %v4660, %v4683
        %v4691 = vmul.f32 %v4661, %v4685
        %v4692 = vsub.f32 1.0, %v4686
        %v4693 = vsub.f32 1.0, %v4687
        %v4694 = vsub.f32 1.0, %v4688
        %v4695 = vsub.f32 1.0, %v4689
        %v4696 = vsub.f32 1.0, %v4690
        %v4697 = vsub.f32 1.0, %v4691
        %vm4698 = vcmp.ge.f32.partialorder %v4572, 0.0
        %vm4699 = vcmp.ge.f32.partialorder %v4573, 0.0
        %vm4700 = vcmp.ge.f32.partialorder %v4574, 0.0
        %vm4701 = vcmp.ge.f32.partialorder %v4575, 0.0
        %vm4702 = vcmp.ge.f32.partialorder %v4576, 0.0
        %vm4703 = vcmp.ge.f32.partialorder %v4577, 0.0
        %v4704 = vsub.f32 0.0, %v4692
        %v4705 = vsub.f32 0.0, %v4693
        %v4706 = vsub.f32 0.0, %v4694
        %v4707 = vsub.f32 0.0, %v4695
        %v4708 = vsub.f32 0.0, %v4696
        %v4709 = vsub.f32 0.0, %v4697
        %v4710 = vsel %vm4698, %v4692, %v4704
        %v4711 = vsel %vm4699, %v4693, %v4705
        %v4712 = vsel %vm4700, %v4694, %v4706
        %v4713 = vsel %vm4701, %v4695, %v4707
        %v4714 = vsel %vm4702, %v4696, %v4708
        %v4715 = vsel %vm4703, %v4697, %v4709
        %v4716 = vmul.f32 %v4556, 0.5
        %v4717 = vmul.f32 %v4558, 0.5
        %v4718 = vmul.f32 %v4562, 0.5
        %v4719 = vmul.f32 %v4564, 0.5
        %v4720 = vmul.f32 %v4568, 0.5
        %v4721 = vmul.f32 %v4570, 0.5
        %v4722 = vadd.f32 %v4710, 1.0
        %v4723 = vadd.f32 %v4711, 1.0
        %v4724 = vadd.f32 %v4712, 1.0
        %v4725 = vadd.f32 %v4713, 1.0
        %v4726 = vadd.f32 %v4714, 1.0
        %v4727 = vadd.f32 %v4715, 1.0
        %v4728 = vmul.f32 %v4716, %v4722
        %v4729 = vmul.f32 %v4717, %v4723
        %v4730 = vmul.f32 %v4718, %v4724
        %v4731 = vmul.f32 %v4719, %v4725
        %v4732 = vmul.f32 %v4720, %v4726
        %v4733 = vmul.f32 %v4721, %v4727
        %v4734 = vld [vmem:[%s16] sm:$0xff]
        %v4735 = vld [vmem:[%s16 + $0x8] sm:$0xff]
        %v4736 = vld [vmem:[%s16 + $0x10] sm:$0xff]
        %v4737 = vld [vmem:[%s16 + $0x18] sm:$0xff]
        %v4738 = vld [vmem:[%s16 + $0x20] sm:$0xff]
        %v4739 = vld [vmem:[%s16 + $0x28] sm:$0xff]
        %v4740 = vld [vmem:[%s16 + $0x30] sm:$0xff]
        %v4741 = vld [vmem:[%s16 + $0x38] sm:$0xff]
        %v4742 = vld [vmem:[%s16 + $0x40] sm:$0xff]
        %v4743 = vld [vmem:[%s16 + $0x48] sm:$0xff]
        %v4744 = vld [vmem:[%s16 + $0x50] sm:$0xff]
        %v4745 = vld [vmem:[%s16 + $0x58] sm:$0xff]
        %v4746 = vld [vmem:[%s16 + $0x60] sm:$0xff]
        %v4747 = vld [vmem:[%s16 + $0x68] sm:$0xff]
        %v4748 = vld [vmem:[%s16 + $0x70] sm:$0xff]
        %v4749 = vld [vmem:[%s16 + $0x78] sm:$0xff]
        %v4750 = vld [vmem:[%s16 + $0x80] sm:$0xff]
        %v4751 = vld [vmem:[%s16 + $0x88] sm:$0xff]
        %v4752 = vld [vmem:[%s16 + $0x90] sm:$0xff]
        %v4753 = vld [vmem:[%s16 + $0x98] sm:$0xff]
        %v4754 = vld [vmem:[%s16 + $0xa0] sm:$0xff]
        %v4755 = vld [vmem:[%s16 + $0xa8] sm:$0xff]
        %v4756 = vld [vmem:[%s16 + $0xb0] sm:$0xff]
        %v4757 = vld [vmem:[%s16 + $0xb8] sm:$0xff]
        %v4758 = vld [vmem:[%s16 + $0xc0] sm:$0xff]
        %v4759 = vld [vmem:[%s16 + $0xc8] sm:$0xff]
        %v4760 = vld [vmem:[%s16 + $0xd0] sm:$0xff]
        %v4761 = vld [vmem:[%s16 + $0xd8] sm:$0xff]
        %v4762 = vld [vmem:[%s16 + $0xe0] sm:$0xff]
        %v4763 = vld [vmem:[%s16 + $0xe8] sm:$0xff]
        %v4764 = vld [vmem:[%s16 + $0xf0] sm:$0xff]
        %v4765 = vld [vmem:[%s16 + $0xf8] sm:$0xff]
        %4766 = vmatprep.subr.mxu0 0.0
        %4767 = vmatpush1.msra.mxu0 %v4734
        %4768 = vmatprep.subr.mxu0 0.0
        %4769 = vmatpush1.msra.mxu0 %v4735
        %4770 = vmatprep.subr.mxu0 0.0
        %4771 = vmatpush1.msra.mxu0 %v4736
        %4772 = vmatprep.subr.mxu0 0.0
        %4773 = vmatpush1.msra.mxu0 %v4737
        %4774 = vmatprep.subr.mxu0 0.0
        %4775 = vmatpush1.msra.mxu0 %v4738
        %4776 = vmatprep.subr.mxu0 0.0
        %4777 = vmatpush1.msra.mxu0 %v4739
        %4778 = vmatprep.subr.mxu0 0.0
        %4779 = vmatpush1.msra.mxu0 %v4740
        %4780 = vmatprep.subr.mxu0 0.0
        %4781 = vmatpush1.msra.mxu0 %v4741
        %4782 = vmatprep.subr.mxu0 0.0
        %4783 = vmatpush1.msra.mxu0 %v4742
        %4784 = vmatprep.subr.mxu0 0.0
        %4785 = vmatpush1.msra.mxu0 %v4743
        %4786 = vmatprep.subr.mxu0 0.0
        %4787 = vmatpush1.msra.mxu0 %v4744
        %4788 = vmatprep.subr.mxu0 0.0
        %4789 = vmatpush1.msra.mxu0 %v4745
        %4790 = vmatprep.subr.mxu0 0.0
        %4791 = vmatpush1.msra.mxu0 %v4746
        %4792 = vmatprep.subr.mxu0 0.0
        %4793 = vmatpush1.msra.mxu0 %v4747
        %4794 = vmatprep.subr.mxu0 0.0
        %4795 = vmatpush1.msra.mxu0 %v4748
        %4796 = vmatprep.subr.mxu0 0.0
        %4797 = vmatpush1.msra.mxu0 %v4749
        %4798 = vmatprep.subr.mxu0 0.0
        %4799 = vmatpush1.msra.mxu0 %v4750
        %4800 = vmatprep.subr.mxu0 0.0
        %4801 = vmatpush1.msra.mxu0 %v4751
        %4802 = vmatprep.subr.mxu0 0.0
        %4803 = vmatpush1.msra.mxu0 %v4752
        %4804 = vmatprep.subr.mxu0 0.0
        %4805 = vmatpush1.msra.mxu0 %v4753
        %4806 = vmatprep.subr.mxu0 0.0
        %4807 = vmatpush1.msra.mxu0 %v4754
        %4808 = vmatprep.subr.mxu0 0.0
        %4809 = vmatpush1.msra.mxu0 %v4755
        %4810 = vmatprep.subr.mxu0 0.0
        %4811 = vmatpush1.msra.mxu0 %v4756
        %4812 = vmatprep.subr.mxu0 0.0
        %4813 = vmatpush1.msra.mxu0 %v4757
        %4814 = vmatprep.subr.mxu0 0.0
        %4815 = vmatpush1.msra.mxu0 %v4758
        %4816 = vmatprep.subr.mxu0 0.0
        %4817 = vmatpush1.msra.mxu0 %v4759
        %4818 = vmatprep.subr.mxu0 0.0
        %4819 = vmatpush1.msra.mxu0 %v4760
        %4820 = vmatprep.subr.mxu0 0.0
        %4821 = vmatpush1.msra.mxu0 %v4761
        %4822 = vmatprep.subr.mxu0 0.0
        %4823 = vmatpush1.msra.mxu0 %v4762
        %4824 = vmatprep.subr.mxu0 0.0
        %4825 = vmatpush1.msra.mxu0 %v4763
        %4826 = vmatprep.subr.mxu0 0.0
        %4827 = vmatpush1.msra.mxu0 %v4764
        %4828 = vmatprep.subr.mxu0 0.0
        %4829 = vmatpush1.msra.mxu0 %v4765
        %4830 = vmatprep.mubr.f32.mxu0 %v4729
        %4831 = vmatmul.mubr.f32.gmra.mrb[0].mxu0 %v4728
        %v4832 = vpop.f32.mrb[0].mxu0
        %v4833 = vadd.f32 0.0, %v4832
        %v4834 = vpop.f32.mrb[0].mxu0
        %4835 = vmatprep.mubr.f32.mxu0 %v4731
        %4836 = vmatmul.mubr.f32.gmra.mrb[0].mxu0 %v4730
        %v4837 = vpop.f32.mrb[0].mxu0
        %v4838 = vadd.f32 0.0, %v4837
        %v4839 = vpop.f32.mrb[0].mxu0
        %4840 = vmatprep.mubr.f32.mxu0 %v4733
        %4841 = vmatmul.mubr.f32.gmra.mrb[0].mxu0 %v4732
        %v4842 = vpop.f32.mrb[0].mxu0
        %v4843 = vadd.f32 0.0, %v4842
        %v4844 = vpop.f32.mrb[0].mxu0
        %4845 = vdwg.mxu0
        %v4846 = vadd.f32 %v4396, %v4833
        %v4847 = vadd.f32 %v4397, %v4838
        %v4848 = vadd.f32 %v4398, %v4843
        %v4849 = vlaneseq
        %v4850 = vshrl.u32 %v4849, 7
        %v4851 = vsub.s32 1, %v4850
        %v4852 = vrot.slane %v4388, %v4851
        %v4853 = vadd.f32 %v4846, %v4852
        %v4854 = vadd.f32 %v4847, %v4852
        %v4855 = vadd.f32 %v4848, %v4852
        %s4856 = scalar_lea.vmem [#allocation9], 4
        %v4857 = vld [vmem:[%s4856] sm:$0xf]
        %v4858 = vsel %vm2513, %v4853, 0.0
        %4859 = vadd.xlane.f32.xlu0 %v4858
        %v4860 = vpop.xlane.xlu0 %4859
        %v4861 = vsel %vm2513, %v4854, 0.0
        %4862 = vadd.xlane.f32.xlu0 %v4861
        %v4863 = vpop.xlane.xlu0 %4862
        %v4864 = vsel %vm2894, %v4855, 0.0
        %4865 = vadd.xlane.f32.xlu0 %v4864
        %v4866 = vpop.xlane.xlu0 %4865
        %v4867 = vmul.f32 %v4860, %v2898
        %v4868 = vmul.f32 %v4863, %v2898
        %v4869 = vmul.f32 %v4866, %v2898
        %v4870 = vsub.f32 %v4853, %v4867
        %v4871 = vsub.f32 %v4854, %v4868
        %v4872 = vsub.f32 %v4855, %v4869
        %v4873 = vmul.f32 %v4870, %v4870
        %v4874 = vmul.f32 %v4871, %v4871
        %v4875 = vmul.f32 %v4872, %v4872
        %v4876 = vsel %vm2513, %v4873, 0.0
        %4877 = vadd.xlane.f32.xlu0 %v4876
        %v4878 = vpop.xlane.xlu0 %4877
        %v4879 = vsel %vm2513, %v4874, 0.0
        %4880 = vadd.xlane.f32.xlu0 %v4879
        %v4881 = vpop.xlane.xlu0 %4880
        %v4882 = vsel %vm2894, %v4875, 0.0
        %4883 = vadd.xlane.f32.xlu0 %v4882
        %v4884 = vpop.xlane.xlu0 %4883
        %v4885 = vmul.f32 %v4878, %v2898
        %v4886 = vmul.f32 %v4881, %v2898
        %v4887 = vmul.f32 %v4884, %v2898
        %v4888 = vadd.f32 %v4885, 1e-05
        %v4889 = vadd.f32 %v4886, 1e-05
        %v4890 = vadd.f32 %v4887, 1e-05
        %v4891 = vrsqrt.pop %v4888
        %v4892 = vrsqrt.pop %v4889
        %v4893 = vrsqrt.pop %v4890
        %v4894 = vmul.f32 %v4870, %v4891
        %v4895 = vmul.f32 %v4871, %v4892
        %v4896 = vmul.f32 %v4872, %v4893
        %v4897 = vlaneseq
        %v4898 = vshrl.u32 %v4897, 7
        %v4899 = vsub.s32 0, %v4898
        %v4900 = vrot.slane %v4857, %v4899
        %v4901 = vmul.f32 %v4894, %v4900
        %v4902 = vmul.f32 %v4895, %v4900
        %v4903 = vmul.f32 %v4896, %v4900
        %v4904 = vlaneseq
        %v4905 = vshrl.u32 %v4904, 7
        %v4906 = vsub.s32 1, %v4905
        %v4907 = vrot.slane %v4857, %v4906
        %v4908 = vadd.f32 %v4901, %v4907
        %v4909 = vadd.f32 %v4902, %v4907
        %v4910 = vadd.f32 %v4903, %v4907
        %s4911 = scalar_lea.vmem [#allocation10], 128
        %v4912 = vld [vmem:[%s4911] sm:$0xff]
        %v4913 = vld [vmem:[%s4911 + $0x8] sm:$0xff]
        %v4914 = vld [vmem:[%s4911 + $0x10] sm:$0xff]
        %v4915 = vld [vmem:[%s4911 + $0x18] sm:$0xff]
        %v4916 = vld [vmem:[%s4911 + $0x20] sm:$0xff]
        %v4917 = vld [vmem:[%s4911 + $0x28] sm:$0xff]
        %v4918 = vld [vmem:[%s4911 + $0x30] sm:$0xff]
        %v4919 = vld [vmem:[%s4911 + $0x38] sm:$0xff]
        %v4920 = vld [vmem:[%s4911 + $0x40] sm:$0xff]
        %v4921 = vld [vmem:[%s4911 + $0x48] sm:$0xff]
        %v4922 = vld [vmem:[%s4911 + $0x50] sm:$0xff]
        %v4923 = vld [vmem:[%s4911 + $0x58] sm:$0xff]
        %v4924 = vld [vmem:[%s4911 + $0x60] sm:$0xff]
        %v4925 = vld [vmem:[%s4911 + $0x68] sm:$0xff]
        %v4926 = vld [vmem:[%s4911 + $0x70] sm:$0xff]
        %v4927 = vld [vmem:[%s4911 + $0x78] sm:$0xff]
        %s4928 = scalar_lea.vmem [#allocation12], 2
        %v4929 = vld [vmem:[%s4928] sm:$0x3]
        %v4931 = vlaneseq
        %v4932 = vshrl.u32 %v4931, 7
        %v4933 = vsub.s32 0, %v4932
        %v4934 = vrot.slane %v4929, %v4933
        %v4935 = vlaneseq
        %v4936 = vshrl.u32 %v4935, 7
        %v4937 = vsub.s32 1, %v4936
        %v4938 = vrot.slane %v4929, %v4937
        %v4942 = vsel %vm2513, %v4908, 0
        %v4945 = vsel %vm2513, %v4909, 0
        %v4948 = vsel %vm2513, %v4910, 0
        %4950 = vmatprep.subr.mxu0 %v4913
        %4951 = vmatpush1.msra.mxu0 %v4912
        %4952 = vmatprep.subr.mxu0 %v4915
        %4953 = vmatpush1.msra.mxu0 %v4914
        %4954 = vmatprep.subr.mxu0 %v4917
        %4955 = vmatpush1.msra.mxu0 %v4916
        %4956 = vmatprep.subr.mxu0 %v4919
        %4957 = vmatpush1.msra.mxu0 %v4918
        %4958 = vmatprep.subr.mxu0 %v4921
        %4959 = vmatpush1.msra.mxu0 %v4920
        %4960 = vmatprep.subr.mxu0 %v4923
        %4961 = vmatpush1.msra.mxu0 %v4922
        %4962 = vmatprep.subr.mxu0 %v4925
        %4963 = vmatpush1.msra.mxu0 %v4924
        %4964 = vmatprep.subr.mxu0 %v4927
        %4965 = vmatpush1.msra.mxu0 %v4926
        %4966 = vmatprep.subr.mxu0 0.0
        %4967 = vmatpush1.msra.mxu0 0.0
        %4968 = vmatprep.subr.mxu0 0.0
        %4969 = vmatpush1.msra.mxu0 0.0
        %4970 = vmatprep.subr.mxu0 0.0
        %4971 = vmatpush1.msra.mxu0 0.0
        %4972 = vmatprep.subr.mxu0 0.0
        %4973 = vmatpush1.msra.mxu0 0.0
        %4974 = vmatprep.subr.mxu0 0.0
        %4975 = vmatpush1.msra.mxu0 0.0
        %4976 = vmatprep.subr.mxu0 0.0
        %4977 = vmatpush1.msra.mxu0 0.0
        %4978 = vmatprep.subr.mxu0 0.0
        %4979 = vmatpush1.msra.mxu0 0.0
        %4980 = vmatprep.subr.mxu0 0.0
        %4981 = vmatpush1.msra.mxu0 0.0
        %4982 = vmatprep.subr.mxu0 0.0
        %4983 = vmatpush1.msra.mxu0 0.0
        %4984 = vmatprep.subr.mxu0 0.0
        %4985 = vmatpush1.msra.mxu0 0.0
        %4986 = vmatprep.subr.mxu0 0.0
        %4987 = vmatpush1.msra.mxu0 0.0
        %4988 = vmatprep.subr.mxu0 0.0
        %4989 = vmatpush1.msra.mxu0 0.0
        %4990 = vmatprep.subr.mxu0 0.0
        %4991 = vmatpush1.msra.mxu0 0.0
        %4992 = vmatprep.subr.mxu0 0.0
        %4993 = vmatpush1.msra.mxu0 0.0
        %4994 = vmatprep.subr.mxu0 0.0
        %4995 = vmatpush1.msra.mxu0 0.0
        %4996 = vmatprep.subr.mxu0 0.0
        %4997 = vmatpush1.msra.mxu0 0.0
        %4998 = vmatprep.subr.mxu0 0.0
        %4999 = vmatpush1.msra.mxu0 0.0
        %5000 = vmatprep.subr.mxu0 0.0
        %5001 = vmatpush1.msra.mxu0 0.0
        %5002 = vmatprep.subr.mxu0 0.0
        %5003 = vmatpush1.msra.mxu0 0.0
        %5004 = vmatprep.subr.mxu0 0.0
        %5005 = vmatpush1.msra.mxu0 0.0
        %5006 = vmatprep.subr.mxu0 0.0
        %5007 = vmatpush1.msra.mxu0 0.0
        %5008 = vmatprep.subr.mxu0 0.0
        %5009 = vmatpush1.msra.mxu0 0.0
        %5010 = vmatprep.subr.mxu0 0.0
        %5011 = vmatpush1.msra.mxu0 0.0
        %5012 = vmatprep.subr.mxu0 0.0
        %5013 = vmatpush1.msra.mxu0 0.0
        %5014 = vmatprep.mubr.f32.mxu0 0.0
        %5015 = vmatmul.mubr.f32.gmra.mrb[0].mxu0 %v4942
        %v5016 = vpop.f32.mrb[0].mxu0
        %v5017 = vadd.f32 %v4934, %v5016
        %v5018 = vpop.f32.mrb[0].mxu0
        %v5019 = vadd.f32 %v4938, %v5018
        %5020 = vmatprep.mubr.f32.mxu0 0.0
        %5021 = vmatmul.mubr.f32.gmra.mrb[0].mxu0 %v4945
        %v5022 = vpop.f32.mrb[0].mxu0
        %v5023 = vadd.f32 %v4934, %v5022
        %v5024 = vpop.f32.mrb[0].mxu0
        %v5025 = vadd.f32 %v4938, %v5024
        %5026 = vmatprep.mubr.f32.mxu0 0.0
        %5027 = vmatmul.mubr.f32.gmra.mrb[0].mxu0 %v4948
        %v5028 = vpop.f32.mrb[0].mxu0
        %v5029 = vadd.f32 %v4934, %v5028
        %v5030 = vpop.f32.mrb[0].mxu0
        %v5031 = vadd.f32 %v4938, %v5030
        %5032 = vdwg.mxu0
        %5036 = vrot.lane.b32.xlu0 %v5017, 64
        %v5037 = vpop.permute.xlu0 %5036
        %5038 = vrot.lane.b32.xlu0 %v5023, 64
        %v5039 = vpop.permute.xlu0 %5038
        %5040 = vrot.lane.b32.xlu0 %v5029, 64
        %v5041 = vpop.permute.xlu0 %5040
        %v5042 = vsel %vm3072, %v5017, 0
        %v5044 = vsel %vm3072, %v5023, 0
        %v5046 = vsel %vm3072, %v5029, 0
        %v5048 = vsel %vm3072, %v5037, 0
        %v5050 = vsel %vm3072, %v5039, 0
        %v5052 = vsel %vm3072, %v5041, 0
        %5054 = vmatprep.subr.mxu0 0.0
        %5055 = vmatpush1.xpose.msra.mxu0 %v5048
        %5056 = vmatprep.subr.mxu0 0.0
        %5057 = vmatpush1.xpose.msra.mxu0 %v5050
        %5058 = vmatprep.subr.mxu0 0.0
        %5059 = vmatpush1.xpose.msra.mxu0 %v5052
        %5060 = vmatprep.subr.mxu0 0.0
        %5061 = vmatpush1.xpose.msra.mxu0 0.0
        %5062 = vmatprep.subr.mxu0 0.0
        %5063 = vmatpush1.xpose.msra.mxu0 0.0
        %5064 = vmatprep.subr.mxu0 0.0
        %5065 = vmatpush1.xpose.msra.mxu0 0.0
        %5066 = vmatprep.subr.mxu0 0.0
        %5067 = vmatpush1.xpose.msra.mxu0 0.0
        %5068 = vmatprep.subr.mxu0 0.0
        %5069 = vmatpush1.xpose.msra.mxu0 0.0
        %5070 = vmatprep.subr.mxu0 0.0
        %5071 = vmatpush1.xpose.msra.mxu0 0.0
        %5072 = vmatprep.subr.mxu0 0.0
        %5073 = vmatpush1.xpose.msra.mxu0 0.0
        %5074 = vmatprep.subr.mxu0 0.0
        %5075 = vmatpush1.xpose.msra.mxu0 0.0
        %5076 = vmatprep.subr.mxu0 0.0
        %5077 = vmatpush1.xpose.msra.mxu0 0.0
        %5078 = vmatprep.subr.mxu0 0.0
        %5079 = vmatpush1.xpose.msra.mxu0 0.0
        %5080 = vmatprep.subr.mxu0 0.0
        %5081 = vmatpush1.xpose.msra.mxu0 0.0
        %5082 = vmatprep.subr.mxu0 0.0
        %5083 = vmatpush1.xpose.msra.mxu0 0.0
        %5084 = vmatprep.subr.mxu0 0.0
        %5085 = vmatpush1.xpose.msra.mxu0 0.0
        %5086 = vmatprep.subr.mxu0 0.0
        %5087 = vmatpush1.xpose.msra.mxu0 0.0
        %5088 = vmatprep.subr.mxu0 0.0
        %5089 = vmatpush1.xpose.msra.mxu0 0.0
        %5090 = vmatprep.subr.mxu0 0.0
        %5091 = vmatpush1.xpose.msra.mxu0 0.0
        %5092 = vmatprep.subr.mxu0 0.0
        %5093 = vmatpush1.xpose.msra.mxu0 0.0
        %5094 = vmatprep.subr.mxu0 0.0
        %5095 = vmatpush1.xpose.msra.mxu0 0.0
        %5096 = vmatprep.subr.mxu0 0.0
        %5097 = vmatpush1.xpose.msra.mxu0 0.0
        %5098 = vmatprep.subr.mxu0 0.0
        %5099 = vmatpush1.xpose.msra.mxu0 0.0
        %5100 = vmatprep.subr.mxu0 0.0
        %5101 = vmatpush1.xpose.msra.mxu0 0.0
        %5102 = vmatprep.subr.mxu0 0.0
        %5103 = vmatpush1.xpose.msra.mxu0 0.0
        %5104 = vmatprep.subr.mxu0 0.0
        %5105 = vmatpush1.xpose.msra.mxu0 0.0
        %5106 = vmatprep.subr.mxu0 0.0
        %5107 = vmatpush1.xpose.msra.mxu0 0.0
        %5108 = vmatprep.subr.mxu0 0.0
        %5109 = vmatpush1.xpose.msra.mxu0 0.0
        %5110 = vmatprep.subr.mxu0 0.0
        %5111 = vmatpush1.xpose.msra.mxu0 0.0
        %5112 = vmatprep.subr.mxu0 0.0
        %5113 = vmatpush1.xpose.msra.mxu0 0.0
        %5114 = vmatprep.subr.mxu0 0.0
        %5115 = vmatpush1.xpose.msra.mxu0 0.0
        %5116 = vmatprep.subr.mxu0 0.0
        %5117 = vmatpush1.xpose.msra.mxu0 0.0
        %5118 = vmatprep.mubr.f32.mxu0 0.0
        %5119 = vmatmul.mubr.f32.gmra.mrb[0].mxu0 %v5042
        %v5120 = vpop.f32.mrb[0].mxu0
        %v5121 = vadd.f32 0.0, %v5120
        %v5122 = vpop.f32.mrb[0].mxu0
        %5123 = vmatprep.mubr.f32.mxu0 0.0
        %5124 = vmatmul.mubr.f32.gmra.mrb[0].mxu0 %v5044
        %v5125 = vpop.f32.mrb[0].mxu0
        %v5126 = vadd.f32 0.0, %v5125
        %v5127 = vpop.f32.mrb[0].mxu0
        %5128 = vmatprep.mubr.f32.mxu0 0.0
        %5129 = vmatmul.mubr.f32.gmra.mrb[0].mxu0 %v5046
        %v5130 = vpop.f32.mrb[0].mxu0
        %v5131 = vadd.f32 0.0, %v5130
        %v5132 = vpop.f32.mrb[0].mxu0
        %5133 = vdwg.mxu0
        %v5134 = vmul.f32 %v5121, 0.25
        %v5135 = vmul.f32 %v5126, 0.25
        %v5136 = vmul.f32 %v5131, 0.25
        %v5137 = vsel %vm3168, %v5134, -inf
        %5138 = vmax.xlane.f32.xlu0 %v5137
        %v5139 = vpop.xlane.xlu0 %5138
        %v5140 = vsel %vm3168, %v5135, -inf
        %5141 = vmax.xlane.f32.xlu0 %v5140
        %v5142 = vpop.xlane.xlu0 %5141
        %v5143 = vsel %vm3175, %v5136, -inf
        %5144 = vmax.xlane.f32.xlu0 %v5143
        %v5145 = vpop.xlane.xlu0 %5144
        %v5146 = vsub.f32 %v5134, %v5139
        %v5147 = vsub.f32 %v5135, %v5142
        %v5148 = vsub.f32 %v5136, %v5145
        %v5149 = vmul.f32 %v5146, 1.442695
        %v5150 = vpow.pop %v5149
        %v5151 = vmul.f32 %v5147, 1.442695
        %v5152 = vpow.pop %v5151
        %v5153 = vmul.f32 %v5148, 1.442695
        %v5154 = vpow.pop %v5153
        %v5155 = vsel %vm3168, %v5150, 0.0
        %5156 = vadd.xlane.f32.xlu0 %v5155
        %v5157 = vpop.xlane.xlu0 %5156
        %v5158 = vsel %vm3168, %v5152, 0.0
        %5159 = vadd.xlane.f32.xlu0 %v5158
        %v5160 = vpop.xlane.xlu0 %5159
        %v5161 = vsel %vm3175, %v5154, 0.0
        %5162 = vadd.xlane.f32.xlu0 %v5161
        %v5163 = vpop.xlane.xlu0 %5162
        %v5164 = vrcp.pop %v5157
        %v5165 = vmul.f32 %v5150, %v5164
        %v5166 = vrcp.pop %v5160
        %v5167 = vmul.f32 %v5152, %v5166
        %v5168 = vrcp.pop %v5163
        %v5169 = vmul.f32 %v5154, %v5168
        %v5171 = vsel %vm3168, %v5165, 0
        %v5174 = vsel %vm3168, %v5167, 0
        %v5177 = vsel %vm3168, %v5169, 0
        %v5180 = vsel %vm3212, %v5031, 0
        %5182 = vmatprep.subr.mxu0 0.0
        %5183 = vmatpush1.msra.mxu0 %v5019
        %5184 = vmatprep.subr.mxu0 0.0
        %5185 = vmatpush1.msra.mxu0 %v5025
        %5186 = vmatprep.subr.mxu0 0.0
        %5187 = vmatpush1.msra.mxu0 %v5180
        %5188 = vmatprep.subr.mxu0 0.0
        %5189 = vmatpush1.msra.mxu0 0.0
        %5190 = vmatprep.subr.mxu0 0.0
        %5191 = vmatpush1.msra.mxu0 0.0
        %5192 = vmatprep.subr.mxu0 0.0
        %5193 = vmatpush1.msra.mxu0 0.0
        %5194 = vmatprep.subr.mxu0 0.0
        %5195 = vmatpush1.msra.mxu0 0.0
        %5196 = vmatprep.subr.mxu0 0.0
        %5197 = vmatpush1.msra.mxu0 0.0
        %5198 = vmatprep.subr.mxu0 0.0
        %5199 = vmatpush1.msra.mxu0 0.0
        %5200 = vmatprep.subr.mxu0 0.0
        %5201 = vmatpush1.msra.mxu0 0.0
        %5202 = vmatprep.subr.mxu0 0.0
        %5203 = vmatpush1.msra.mxu0 0.0
        %5204 = vmatprep.subr.mxu0 0.0
        %5205 = vmatpush1.msra.mxu0 0.0
        %5206 = vmatprep.subr.mxu0 0.0
        %5207 = vmatpush1.msra.mxu0 0.0
        %5208 = vmatprep.subr.mxu0 0.0
        %5209 = vmatpush1.msra.mxu0 0.0
        %5210 = vmatprep.subr.mxu0 0.0
        %5211 = vmatpush1.msra.mxu0 0.0
        %5212 = vmatprep.subr.mxu0 0.0
        %5213 = vmatpush1.msra.mxu0 0.0
        %5214 = vmatprep.subr.mxu0 0.0
        %5215 = vmatpush1.msra.mxu0 0.0
        %5216 = vmatprep.subr.mxu0 0.0
        %5217 = vmatpush1.msra.mxu0 0.0
        %5218 = vmatprep.subr.mxu0 0.0
        %5219 = vmatpush1.msra.mxu0 0.0
        %5220 = vmatprep.subr.mxu0 0.0
        %5221 = vmatpush1.msra.mxu0 0.0
        %5222 = vmatprep.subr.mxu0 0.0
        %5223 = vmatpush1.msra.mxu0 0.0
        %5224 = vmatprep.subr.mxu0 0.0
        %5225 = vmatpush1.msra.mxu0 0.0
        %5226 = vmatprep.subr.mxu0 0.0
        %5227 = vmatpush1.msra.mxu0 0.0
        %5228 = vmatprep.subr.mxu0 0.0
        %5229 = vmatpush1.msra.mxu0 0.0
        %5230 = vmatprep.subr.mxu0 0.0
        %5231 = vmatpush1.msra.mxu0 0.0
        %5232 = vmatprep.subr.mxu0 0.0
        %5233 = vmatpush1.msra.mxu0 0.0
        %5234 = vmatprep.subr.mxu0 0.0
        %5235 = vmatpush1.msra.mxu0 0.0
        %5236 = vmatprep.subr.mxu0 0.0
        %5237 = vmatpush1.msra.mxu0 0.0
        %5238 = vmatprep.subr.mxu0 0.0
        %5239 = vmatpush1.msra.mxu0 0.0
        %5240 = vmatprep.subr.mxu0 0.0
        %5241 = vmatpush1.msra.mxu0 0.0
        %5242 = vmatprep.subr.mxu0 0.0
        %5243 = vmatpush1.msra.mxu0 0.0
        %5244 = vmatprep.subr.mxu0 0.0
        %5245 = vmatpush1.msra.mxu0 0.0
        %5246 = vmatprep.mubr.f32.mxu0 0.0
        %5247 = vmatmul.mubr.f32.gmra.mrb[0].mxu0 %v5171
        %v5248 = vpop.f32.mrb[0].mxu0
        %v5249 = vadd.f32 0.0, %v5248
        %v5250 = vpop.f32.mrb[0].mxu0
        %5251 = vmatprep.mubr.f32.mxu0 0.0
        %5252 = vmatmul.mubr.f32.gmra.mrb[0].mxu0 %v5174
        %v5253 = vpop.f32.mrb[0].mxu0
        %v5254 = vadd.f32 0.0, %v5253
        %v5255 = vpop.f32.mrb[0].mxu0
        %5256 = vmatprep.mubr.f32.mxu0 0.0
        %5257 = vmatmul.mubr.f32.gmra.mrb[0].mxu0 %v5177
        %v5258 = vpop.f32.mrb[0].mxu0
        %v5259 = vadd.f32 0.0, %v5258
        %v5260 = vpop.f32.mrb[0].mxu0
        %5261 = vdwg.mxu0
        %s5262 = scalar_lea.vmem [#allocation13], 64
        %v5263 = vld [vmem:[%s5262] sm:$0xff]
        %v5264 = vld [vmem:[%s5262 + $0x8] sm:$0xff]
        %5265 = vrot.lane.b32.xlu0 %v5017, 112
        %v5266 = vpop.permute.xlu0 %5265
        %5267 = vrot.lane.b32.xlu0 %v5023, 112
        %v5268 = vpop.permute.xlu0 %5267
        %5269 = vrot.lane.b32.xlu0 %v5029, 112
        %v5270 = vpop.permute.xlu0 %5269
        %5271 = vrot.lane.b32.xlu0 %v5017, 48
        %v5272 = vpop.permute.xlu0 %5271
        %5273 = vrot.lane.b32.xlu0 %v5023, 48
        %v5274 = vpop.permute.xlu0 %5273
        %5275 = vrot.lane.b32.xlu0 %v5029, 48
        %v5276 = vpop.permute.xlu0 %5275
        %v5277 = vsel %vm3072, %v5266, 0
        %v5279 = vsel %vm3072, %v5268, 0
        %v5281 = vsel %vm3072, %v5270, 0
        %v5283 = vsel %vm3072, %v5272, 0
        %v5285 = vsel %vm3072, %v5274, 0
        %v5287 = vsel %vm3072, %v5276, 0
        %5289 = vmatprep.subr.mxu0 0.0
        %5290 = vmatpush1.xpose.msra.mxu0 %v5283
        %5291 = vmatprep.subr.mxu0 0.0
        %5292 = vmatpush1.xpose.msra.mxu0 %v5285
        %5293 = vmatprep.subr.mxu0 0.0
        %5294 = vmatpush1.xpose.msra.mxu0 %v5287
        %5295 = vmatprep.subr.mxu0 0.0
        %5296 = vmatpush1.xpose.msra.mxu0 0.0
        %5297 = vmatprep.subr.mxu0 0.0
        %5298 = vmatpush1.xpose.msra.mxu0 0.0
        %5299 = vmatprep.subr.mxu0 0.0
        %5300 = vmatpush1.xpose.msra.mxu0 0.0
        %5301 = vmatprep.subr.mxu0 0.0
        %5302 = vmatpush1.xpose.msra.mxu0 0.0
        %5303 = vmatprep.subr.mxu0 0.0
        %5304 = vmatpush1.xpose.msra.mxu0 0.0
        %5305 = vmatprep.subr.mxu0 0.0
        %5306 = vmatpush1.xpose.msra.mxu0 0.0
        %5307 = vmatprep.subr.mxu0 0.0
        %5308 = vmatpush1.xpose.msra.mxu0 0.0
        %5309 = vmatprep.subr.mxu0 0.0
        %5310 = vmatpush1.xpose.msra.mxu0 0.0
        %5311 = vmatprep.subr.mxu0 0.0
        %5312 = vmatpush1.xpose.msra.mxu0 0.0
        %5313 = vmatprep.subr.mxu0 0.0
        %5314 = vmatpush1.xpose.msra.mxu0 0.0
        %5315 = vmatprep.subr.mxu0 0.0
        %5316 = vmatpush1.xpose.msra.mxu0 0.0
        %5317 = vmatprep.subr.mxu0 0.0
        %5318 = vmatpush1.xpose.msra.mxu0 0.0
        %5319 = vmatprep.subr.mxu0 0.0
        %5320 = vmatpush1.xpose.msra.mxu0 0.0
        %5321 = vmatprep.subr.mxu0 0.0
        %5322 = vmatpush1.xpose.msra.mxu0 0.0
        %5323 = vmatprep.subr.mxu0 0.0
        %5324 = vmatpush1.xpose.msra.mxu0 0.0
        %5325 = vmatprep.subr.mxu0 0.0
        %5326 = vmatpush1.xpose.msra.mxu0 0.0
        %5327 = vmatprep.subr.mxu0 0.0
        %5328 = vmatpush1.xpose.msra.mxu0 0.0
        %5329 = vmatprep.subr.mxu0 0.0
        %5330 = vmatpush1.xpose.msra.mxu0 0.0
        %5331 = vmatprep.subr.mxu0 0.0
        %5332 = vmatpush1.xpose.msra.mxu0 0.0
        %5333 = vmatprep.subr.mxu0 0.0
        %5334 = vmatpush1.xpose.msra.mxu0 0.0
        %5335 = vmatprep.subr.mxu0 0.0
        %5336 = vmatpush1.xpose.msra.mxu0 0.0
        %5337 = vmatprep.subr.mxu0 0.0
        %5338 = vmatpush1.xpose.msra.mxu0 0.0
        %5339 = vmatprep.subr.mxu0 0.0
        %5340 = vmatpush1.xpose.msra.mxu0 0.0
        %5341 = vmatprep.subr.mxu0 0.0
        %5342 = vmatpush1.xpose.msra.mxu0 0.0
        %5343 = vmatprep.subr.mxu0 0.0
        %5344 = vmatpush1.xpose.msra.mxu0 0.0
        %5345 = vmatprep.subr.mxu0 0.0
        %5346 = vmatpush1.xpose.msra.mxu0 0.0
        %5347 = vmatprep.subr.mxu0 0.0
        %5348 = vmatpush1.xpose.msra.mxu0 0.0
        %5349 = vmatprep.subr.mxu0 0.0
        %5350 = vmatpush1.xpose.msra.mxu0 0.0
        %5351 = vmatprep.subr.mxu0 0.0
        %5352 = vmatpush1.xpose.msra.mxu0 0.0
        %5353 = vmatprep.mubr.f32.mxu0 0.0
        %5354 = vmatmul.mubr.f32.gmra.mrb[0].mxu0 %v5277
        %v5355 = vpop.f32.mrb[0].mxu0
        %v5356 = vadd.f32 0.0, %v5355
        %v5357 = vpop.f32.mrb[0].mxu0
        %5358 = vmatprep.mubr.f32.mxu0 0.0
        %5359 = vmatmul.mubr.f32.gmra.mrb[0].mxu0 %v5279
        %v5360 = vpop.f32.mrb[0].mxu0
        %v5361 = vadd.f32 0.0, %v5360
        %v5362 = vpop.f32.mrb[0].mxu0
        %5363 = vmatprep.mubr.f32.mxu0 0.0
        %5364 = vmatmul.mubr.f32.gmra.mrb[0].mxu0 %v5281
        %v5365 = vpop.f32.mrb[0].mxu0
        %v5366 = vadd.f32 0.0, %v5365
        %v5367 = vpop.f32.mrb[0].mxu0
        %5368 = vdwg.mxu0
        %v5369 = vmul.f32 %v5356, 0.25
        %v5370 = vmul.f32 %v5361, 0.25
        %v5371 = vmul.f32 %v5366, 0.25
        %v5372 = vsel %vm3168, %v5369, -inf
        %5373 = vmax.xlane.f32.xlu0 %v5372
        %v5374 = vpop.xlane.xlu0 %5373
        %v5375 = vsel %vm3168, %v5370, -inf
        %5376 = vmax.xlane.f32.xlu0 %v5375
        %v5377 = vpop.xlane.xlu0 %5376
        %v5378 = vsel %vm3175, %v5371, -inf
        %5379 = vmax.xlane.f32.xlu0 %v5378
        %v5380 = vpop.xlane.xlu0 %5379
        %v5381 = vsub.f32 %v5369, %v5374
        %v5382 = vsub.f32 %v5370, %v5377
        %v5383 = vsub.f32 %v5371, %v5380
        %v5384 = vmul.f32 %v5381, 1.442695
        %v5385 = vpow.pop %v5384
        %v5386 = vmul.f32 %v5382, 1.442695
        %v5387 = vpow.pop %v5386
        %v5388 = vmul.f32 %v5383, 1.442695
        %v5389 = vpow.pop %v5388
        %v5390 = vsel %vm3168, %v5385, 0.0
        %5391 = vadd.xlane.f32.xlu0 %v5390
        %v5392 = vpop.xlane.xlu0 %5391
        %v5393 = vsel %vm3168, %v5387, 0.0
        %5394 = vadd.xlane.f32.xlu0 %v5393
        %v5395 = vpop.xlane.xlu0 %5394
        %v5396 = vsel %vm3175, %v5389, 0.0
        %5397 = vadd.xlane.f32.xlu0 %v5396
        %v5398 = vpop.xlane.xlu0 %5397
        %v5399 = vrcp.pop %v5392
        %v5400 = vmul.f32 %v5385, %v5399
        %v5401 = vrcp.pop %v5395
        %v5402 = vmul.f32 %v5387, %v5401
        %v5403 = vrcp.pop %v5398
        %v5404 = vmul.f32 %v5389, %v5403
        %5407 = vrot.lane.b32.xlu0 %v5019, 112
        %v5408 = vpop.permute.xlu0 %5407
        %5409 = vrot.lane.b32.xlu0 %v5025, 112
        %v5410 = vpop.permute.xlu0 %5409
        %5411 = vrot.lane.b32.xlu0 %v5031, 112
        %v5412 = vpop.permute.xlu0 %5411
        %v5416 = vsel %vm3168, %v5400, 0
        %v5419 = vsel %vm3168, %v5402, 0
        %v5422 = vsel %vm3168, %v5404, 0
        %v5424 = vsel %vm3212, %v5412, 0
        %5426 = vmatprep.subr.mxu0 0.0
        %5427 = vmatpush1.msra.mxu0 %v5408
        %5428 = vmatprep.subr.mxu0 0.0
        %5429 = vmatpush1.msra.mxu0 %v5410
        %5430 = vmatprep.subr.mxu0 0.0
        %5431 = vmatpush1.msra.mxu0 %v5424
        %5432 = vmatprep.subr.mxu0 0.0
        %5433 = vmatpush1.msra.mxu0 0.0
        %5434 = vmatprep.subr.mxu0 0.0
        %5435 = vmatpush1.msra.mxu0 0.0
        %5436 = vmatprep.subr.mxu0 0.0
        %5437 = vmatpush1.msra.mxu0 0.0
        %5438 = vmatprep.subr.mxu0 0.0
        %5439 = vmatpush1.msra.mxu0 0.0
        %5440 = vmatprep.subr.mxu0 0.0
        %5441 = vmatpush1.msra.mxu0 0.0
        %5442 = vmatprep.subr.mxu0 0.0
        %5443 = vmatpush1.msra.mxu0 0.0
        %5444 = vmatprep.subr.mxu0 0.0
        %5445 = vmatpush1.msra.mxu0 0.0
        %5446 = vmatprep.subr.mxu0 0.0
        %5447 = vmatpush1.msra.mxu0 0.0
        %5448 = vmatprep.subr.mxu0 0.0
        %5449 = vmatpush1.msra.mxu0 0.0
        %5450 = vmatprep.subr.mxu0 0.0
        %5451 = vmatpush1.msra.mxu0 0.0
        %5452 = vmatprep.subr.mxu0 0.0
        %5453 = vmatpush1.msra.mxu0 0.0
        %5454 = vmatprep.subr.mxu0 0.0
        %5455 = vmatpush1.msra.mxu0 0.0
        %5456 = vmatprep.subr.mxu0 0.0
        %5457 = vmatpush1.msra.mxu0 0.0
        %5458 = vmatprep.subr.mxu0 0.0
        %5459 = vmatpush1.msra.mxu0 0.0
        %5460 = vmatprep.subr.mxu0 0.0
        %5461 = vmatpush1.msra.mxu0 0.0
        %5462 = vmatprep.subr.mxu0 0.0
        %5463 = vmatpush1.msra.mxu0 0.0
        %5464 = vmatprep.subr.mxu0 0.0
        %5465 = vmatpush1.msra.mxu0 0.0
        %5466 = vmatprep.subr.mxu0 0.0
        %5467 = vmatpush1.msra.mxu0 0.0
        %5468 = vmatprep.subr.mxu0 0.0
        %5469 = vmatpush1.msra.mxu0 0.0
        %5470 = vmatprep.subr.mxu0 0.0
        %5471 = vmatpush1.msra.mxu0 0.0
        %5472 = vmatprep.subr.mxu0 0.0
        %5473 = vmatpush1.msra.mxu0 0.0
        %5474 = vmatprep.subr.mxu0 0.0
        %5475 = vmatpush1.msra.mxu0 0.0
        %5476 = vmatprep.subr.mxu0 0.0
        %5477 = vmatpush1.msra.mxu0 0.0
        %5478 = vmatprep.subr.mxu0 0.0
        %5479 = vmatpush1.msra.mxu0 0.0
        %5480 = vmatprep.subr.mxu0 0.0
        %5481 = vmatpush1.msra.mxu0 0.0
        %5482 = vmatprep.subr.mxu0 0.0
        %5483 = vmatpush1.msra.mxu0 0.0
        %5484 = vmatprep.subr.mxu0 0.0
        %5485 = vmatpush1.msra.mxu0 0.0
        %5486 = vmatprep.subr.mxu0 0.0
        %5487 = vmatpush1.msra.mxu0 0.0
        %5488 = vmatprep.subr.mxu0 0.0
        %5489 = vmatpush1.msra.mxu0 0.0
        %5490 = vmatprep.mubr.f32.mxu0 0.0
        %5491 = vmatmul.mubr.f32.gmra.mrb[0].mxu0 %v5416
        %v5492 = vpop.f32.mrb[0].mxu0
        %v5493 = vadd.f32 0.0, %v5492
        %v5494 = vpop.f32.mrb[0].mxu0
        %5495 = vmatprep.mubr.f32.mxu0 0.0
        %5496 = vmatmul.mubr.f32.gmra.mrb[0].mxu0 %v5419
        %v5497 = vpop.f32.mrb[0].mxu0
        %v5498 = vadd.f32 0.0, %v5497
        %v5499 = vpop.f32.mrb[0].mxu0
        %5500 = vmatprep.mubr.f32.mxu0 0.0
        %5501 = vmatmul.mubr.f32.gmra.mrb[0].mxu0 %v5422
        %v5502 = vpop.f32.mrb[0].mxu0
        %v5503 = vadd.f32 0.0, %v5502
        %v5504 = vpop.f32.mrb[0].mxu0
        %5505 = vdwg.mxu0
        %s5506 = scalar_lea.vmem [#allocation13], 80
        %v5507 = vld [vmem:[%s5506] sm:$0xff]
        %v5508 = vld [vmem:[%s5506 + $0x8] sm:$0xff]
        %v5510 = vsel %vm3072, %v5493, 0
        %v5513 = vsel %vm3072, %v5498, 0
        %v5516 = vsel %vm3072, %v5503, 0
        %5518 = vmatprep.subr.mxu0 0.0
        %5519 = vmatpush1.msra.mxu0 %v5507
        %5520 = vmatprep.subr.mxu0 0.0
        %5521 = vmatpush1.msra.mxu0 %v5508
        %5522 = vmatprep.subr.mxu0 0.0
        %5523 = vmatpush1.msra.mxu0 0.0
        %5524 = vmatprep.subr.mxu0 0.0
        %5525 = vmatpush1.msra.mxu0 0.0
        %5526 = vmatprep.subr.mxu0 0.0
        %5527 = vmatpush1.msra.mxu0 0.0
        %5528 = vmatprep.subr.mxu0 0.0
        %5529 = vmatpush1.msra.mxu0 0.0
        %5530 = vmatprep.subr.mxu0 0.0
        %5531 = vmatpush1.msra.mxu0 0.0
        %5532 = vmatprep.subr.mxu0 0.0
        %5533 = vmatpush1.msra.mxu0 0.0
        %5534 = vmatprep.subr.mxu0 0.0
        %5535 = vmatpush1.msra.mxu0 0.0
        %5536 = vmatprep.subr.mxu0 0.0
        %5537 = vmatpush1.msra.mxu0 0.0
        %5538 = vmatprep.subr.mxu0 0.0
        %5539 = vmatpush1.msra.mxu0 0.0
        %5540 = vmatprep.subr.mxu0 0.0
        %5541 = vmatpush1.msra.mxu0 0.0
        %5542 = vmatprep.subr.mxu0 0.0
        %5543 = vmatpush1.msra.mxu0 0.0
        %5544 = vmatprep.subr.mxu0 0.0
        %5545 = vmatpush1.msra.mxu0 0.0
        %5546 = vmatprep.subr.mxu0 0.0
        %5547 = vmatpush1.msra.mxu0 0.0
        %5548 = vmatprep.subr.mxu0 0.0
        %5549 = vmatpush1.msra.mxu0 0.0
        %5550 = vmatprep.subr.mxu0 0.0
        %5551 = vmatpush1.msra.mxu0 0.0
        %5552 = vmatprep.subr.mxu0 0.0
        %5553 = vmatpush1.msra.mxu0 0.0
        %5554 = vmatprep.subr.mxu0 0.0
        %5555 = vmatpush1.msra.mxu0 0.0
        %5556 = vmatprep.subr.mxu0 0.0
        %5557 = vmatpush1.msra.mxu0 0.0
        %5558 = vmatprep.subr.mxu0 0.0
        %5559 = vmatpush1.msra.mxu0 0.0
        %5560 = vmatprep.subr.mxu0 0.0
        %5561 = vmatpush1.msra.mxu0 0.0
        %5562 = vmatprep.subr.mxu0 0.0
        %5563 = vmatpush1.msra.mxu0 0.0
        %5564 = vmatprep.subr.mxu0 0.0
        %5565 = vmatpush1.msra.mxu0 0.0
        %5566 = vmatprep.subr.mxu0 0.0
        %5567 = vmatpush1.msra.mxu0 0.0
        %5568 = vmatprep.subr.mxu0 0.0
        %5569 = vmatpush1.msra.mxu0 0.0
        %5570 = vmatprep.subr.mxu0 0.0
        %5571 = vmatpush1.msra.mxu0 0.0
        %5572 = vmatprep.subr.mxu0 0.0
        %5573 = vmatpush1.msra.mxu0 0.0
        %5574 = vmatprep.subr.mxu0 0.0
        %5575 = vmatpush1.msra.mxu0 0.0
        %5576 = vmatprep.subr.mxu0 0.0
        %5577 = vmatpush1.msra.mxu0 0.0
        %5578 = vmatprep.subr.mxu0 0.0
        %5579 = vmatpush1.msra.mxu0 0.0
        %5580 = vmatprep.subr.mxu0 0.0
        %5581 = vmatpush1.msra.mxu0 0.0
        %5582 = vmatprep.mubr.f32.mxu0 0.0
        %5583 = vmatmul.mubr.f32.gmra.mrb[0].mxu0 %v5510
        %v5584 = vpop.f32.mrb[0].mxu0
        %v5585 = vadd.f32 0.0, %v5584
        %v5586 = vpop.f32.mrb[0].mxu0
        %5587 = vmatprep.mubr.f32.mxu0 0.0
        %5588 = vmatmul.mubr.f32.gmra.mrb[0].mxu0 %v5513
        %v5589 = vpop.f32.mrb[0].mxu0
        %v5590 = vadd.f32 0.0, %v5589
        %v5591 = vpop.f32.mrb[0].mxu0
        %5592 = vmatprep.mubr.f32.mxu0 0.0
        %5593 = vmatmul.mubr.f32.gmra.mrb[0].mxu0 %v5516
        %v5594 = vpop.f32.mrb[0].mxu0
        %v5595 = vadd.f32 0.0, %v5594
        %v5596 = vpop.f32.mrb[0].mxu0
        %5597 = vdwg.mxu0
        %v5599 = vsel %vm3072, %v5249, 0
        %v5602 = vsel %vm3072, %v5254, 0
        %v5605 = vsel %vm3072, %v5259, 0
        %5607 = vmatprep.subr.mxu0 0.0
        %5608 = vmatpush1.msra.mxu0 %v5263
        %5609 = vmatprep.subr.mxu0 0.0
        %5610 = vmatpush1.msra.mxu0 %v5264
        %5611 = vmatprep.subr.mxu0 0.0
        %5612 = vmatpush1.msra.mxu0 0.0
        %5613 = vmatprep.subr.mxu0 0.0
        %5614 = vmatpush1.msra.mxu0 0.0
        %5615 = vmatprep.subr.mxu0 0.0
        %5616 = vmatpush1.msra.mxu0 0.0
        %5617 = vmatprep.subr.mxu0 0.0
        %5618 = vmatpush1.msra.mxu0 0.0
        %5619 = vmatprep.subr.mxu0 0.0
        %5620 = vmatpush1.msra.mxu0 0.0
        %5621 = vmatprep.subr.mxu0 0.0
        %5622 = vmatpush1.msra.mxu0 0.0
        %5623 = vmatprep.subr.mxu0 0.0
        %5624 = vmatpush1.msra.mxu0 0.0
        %5625 = vmatprep.subr.mxu0 0.0
        %5626 = vmatpush1.msra.mxu0 0.0
        %5627 = vmatprep.subr.mxu0 0.0
        %5628 = vmatpush1.msra.mxu0 0.0
        %5629 = vmatprep.subr.mxu0 0.0
        %5630 = vmatpush1.msra.mxu0 0.0
        %5631 = vmatprep.subr.mxu0 0.0
        %5632 = vmatpush1.msra.mxu0 0.0
        %5633 = vmatprep.subr.mxu0 0.0
        %5634 = vmatpush1.msra.mxu0 0.0
        %5635 = vmatprep.subr.mxu0 0.0
        %5636 = vmatpush1.msra.mxu0 0.0
        %5637 = vmatprep.subr.mxu0 0.0
        %5638 = vmatpush1.msra.mxu0 0.0
        %5639 = vmatprep.subr.mxu0 0.0
        %5640 = vmatpush1.msra.mxu0 0.0
        %5641 = vmatprep.subr.mxu0 0.0
        %5642 = vmatpush1.msra.mxu0 0.0
        %5643 = vmatprep.subr.mxu0 0.0
        %5644 = vmatpush1.msra.mxu0 0.0
        %5645 = vmatprep.subr.mxu0 0.0
        %5646 = vmatpush1.msra.mxu0 0.0
        %5647 = vmatprep.subr.mxu0 0.0
        %5648 = vmatpush1.msra.mxu0 0.0
        %5649 = vmatprep.subr.mxu0 0.0
        %5650 = vmatpush1.msra.mxu0 0.0
        %5651 = vmatprep.subr.mxu0 0.0
        %5652 = vmatpush1.msra.mxu0 0.0
        %5653 = vmatprep.subr.mxu0 0.0
        %5654 = vmatpush1.msra.mxu0 0.0
        %5655 = vmatprep.subr.mxu0 0.0
        %5656 = vmatpush1.msra.mxu0 0.0
        %5657 = vmatprep.subr.mxu0 0.0
        %5658 = vmatpush1.msra.mxu0 0.0
        %5659 = vmatprep.subr.mxu0 0.0
        %5660 = vmatpush1.msra.mxu0 0.0
        %5661 = vmatprep.subr.mxu0 0.0
        %5662 = vmatpush1.msra.mxu0 0.0
        %5663 = vmatprep.subr.mxu0 0.0
        %5664 = vmatpush1.msra.mxu0 0.0
        %5665 = vmatprep.subr.mxu0 0.0
        %5666 = vmatpush1.msra.mxu0 0.0
        %5667 = vmatprep.subr.mxu0 0.0
        %5668 = vmatpush1.msra.mxu0 0.0
        %5669 = vmatprep.subr.mxu0 0.0
        %5670 = vmatpush1.msra.mxu0 0.0
        %5671 = vmatprep.mubr.f32.mxu0 0.0
        %5672 = vmatmul.mubr.f32.gmra.mrb[0].mxu0 %v5599
        %v5673 = vpop.f32.mrb[0].mxu0
        %v5674 = vadd.f32 %v5585, %v5673
        %v5675 = vpop.f32.mrb[0].mxu0
        %5676 = vmatprep.mubr.f32.mxu0 0.0
        %5677 = vmatmul.mubr.f32.gmra.mrb[0].mxu0 %v5602
        %v5678 = vpop.f32.mrb[0].mxu0
        %v5679 = vadd.f32 %v5590, %v5678
        %v5680 = vpop.f32.mrb[0].mxu0
        %5681 = vmatprep.mubr.f32.mxu0 0.0
        %5682 = vmatmul.mubr.f32.gmra.mrb[0].mxu0 %v5605
        %v5683 = vpop.f32.mrb[0].mxu0
        %v5684 = vadd.f32 %v5595, %v5683
        %v5685 = vpop.f32.mrb[0].mxu0
        %5686 = vdwg.mxu0
        %5687 = vrot.lane.b32.xlu0 %v5017, 96
        %v5688 = vpop.permute.xlu0 %5687
        %5689 = vrot.lane.b32.xlu0 %v5023, 96
        %v5690 = vpop.permute.xlu0 %5689
        %5691 = vrot.lane.b32.xlu0 %v5029, 96
        %v5692 = vpop.permute.xlu0 %5691
        %5693 = vrot.lane.b32.xlu0 %v5017, 32
        %v5694 = vpop.permute.xlu0 %5693
        %5695 = vrot.lane.b32.xlu0 %v5023, 32
        %v5696 = vpop.permute.xlu0 %5695
        %5697 = vrot.lane.b32.xlu0 %v5029, 32
        %v5698 = vpop.permute.xlu0 %5697
        %v5699 = vsel %vm3072, %v5688, 0
        %v5701 = vsel %vm3072, %v5690, 0
        %v5703 = vsel %vm3072, %v5692, 0
        %v5705 = vsel %vm3072, %v5694, 0
        %v5707 = vsel %vm3072, %v5696, 0
        %v5709 = vsel %vm3072, %v5698, 0
        %5711 = vmatprep.subr.mxu0 0.0
        %5712 = vmatpush1.xpose.msra.mxu0 %v5705
        %5713 = vmatprep.subr.mxu0 0.0
        %5714 = vmatpush1.xpose.msra.mxu0 %v5707
        %5715 = vmatprep.subr.mxu0 0.0
        %5716 = vmatpush1.xpose.msra.mxu0 %v5709
        %5717 = vmatprep.subr.mxu0 0.0
        %5718 = vmatpush1.xpose.msra.mxu0 0.0
        %5719 = vmatprep.subr.mxu0 0.0
        %5720 = vmatpush1.xpose.msra.mxu0 0.0
        %5721 = vmatprep.subr.mxu0 0.0
        %5722 = vmatpush1.xpose.msra.mxu0 0.0
        %5723 = vmatprep.subr.mxu0 0.0
        %5724 = vmatpush1.xpose.msra.mxu0 0.0
        %5725 = vmatprep.subr.mxu0 0.0
        %5726 = vmatpush1.xpose.msra.mxu0 0.0
        %5727 = vmatprep.subr.mxu0 0.0
        %5728 = vmatpush1.xpose.msra.mxu0 0.0
        %5729 = vmatprep.subr.mxu0 0.0
        %5730 = vmatpush1.xpose.msra.mxu0 0.0
        %5731 = vmatprep.subr.mxu0 0.0
        %5732 = vmatpush1.xpose.msra.mxu0 0.0
        %5733 = vmatprep.subr.mxu0 0.0
        %5734 = vmatpush1.xpose.msra.mxu0 0.0
        %5735 = vmatprep.subr.mxu0 0.0
        %5736 = vmatpush1.xpose.msra.mxu0 0.0
        %5737 = vmatprep.subr.mxu0 0.0
        %5738 = vmatpush1.xpose.msra.mxu0 0.0
        %5739 = vmatprep.subr.mxu0 0.0
        %5740 = vmatpush1.xpose.msra.mxu0 0.0
        %5741 = vmatprep.subr.mxu0 0.0
        %5742 = vmatpush1.xpose.msra.mxu0 0.0
        %5743 = vmatprep.subr.mxu0 0.0
        %5744 = vmatpush1.xpose.msra.mxu0 0.0
        %5745 = vmatprep.subr.mxu0 0.0
        %5746 = vmatpush1.xpose.msra.mxu0 0.0
        %5747 = vmatprep.subr.mxu0 0.0
        %5748 = vmatpush1.xpose.msra.mxu0 0.0
        %5749 = vmatprep.subr.mxu0 0.0
        %5750 = vmatpush1.xpose.msra.mxu0 0.0
        %5751 = vmatprep.subr.mxu0 0.0
        %5752 = vmatpush1.xpose.msra.mxu0 0.0
        %5753 = vmatprep.subr.mxu0 0.0
        %5754 = vmatpush1.xpose.msra.mxu0 0.0
        %5755 = vmatprep.subr.mxu0 0.0
        %5756 = vmatpush1.xpose.msra.mxu0 0.0
        %5757 = vmatprep.subr.mxu0 0.0
        %5758 = vmatpush1.xpose.msra.mxu0 0.0
        %5759 = vmatprep.subr.mxu0 0.0
        %5760 = vmatpush1.xpose.msra.mxu0 0.0
        %5761 = vmatprep.subr.mxu0 0.0
        %5762 = vmatpush1.xpose.msra.mxu0 0.0
        %5763 = vmatprep.subr.mxu0 0.0
        %5764 = vmatpush1.xpose.msra.mxu0 0.0
        %5765 = vmatprep.subr.mxu0 0.0
        %5766 = vmatpush1.xpose.msra.mxu0 0.0
        %5767 = vmatprep.subr.mxu0 0.0
        %5768 = vmatpush1.xpose.msra.mxu0 0.0
        %5769 = vmatprep.subr.mxu0 0.0
        %5770 = vmatpush1.xpose.msra.mxu0 0.0
        %5771 = vmatprep.subr.mxu0 0.0
        %5772 = vmatpush1.xpose.msra.mxu0 0.0
        %5773 = vmatprep.subr.mxu0 0.0
        %5774 = vmatpush1.xpose.msra.mxu0 0.0
        %5775 = vmatprep.mubr.f32.mxu0 0.0
        %5776 = vmatmul.mubr.f32.gmra.mrb[0].mxu0 %v5699
        %v5777 = vpop.f32.mrb[0].mxu0
        %v5778 = vadd.f32 0.0, %v5777
        %v5779 = vpop.f32.mrb[0].mxu0
        %5780 = vmatprep.mubr.f32.mxu0 0.0
        %5781 = vmatmul.mubr.f32.gmra.mrb[0].mxu0 %v5701
        %v5782 = vpop.f32.mrb[0].mxu0
        %v5783 = vadd.f32 0.0, %v5782
        %v5784 = vpop.f32.mrb[0].mxu0
        %5785 = vmatprep.mubr.f32.mxu0 0.0
        %5786 = vmatmul.mubr.f32.gmra.mrb[0].mxu0 %v5703
        %v5787 = vpop.f32.mrb[0].mxu0
        %v5788 = vadd.f32 0.0, %v5787
        %v5789 = vpop.f32.mrb[0].mxu0
        %5790 = vdwg.mxu0
        %v5791 = vmul.f32 %v5778, 0.25
        %v5792 = vmul.f32 %v5783, 0.25
        %v5793 = vmul.f32 %v5788, 0.25
        %v5794 = vsel %vm3168, %v5791, -inf
        %5795 = vmax.xlane.f32.xlu0 %v5794
        %v5796 = vpop.xlane.xlu0 %5795
        %v5797 = vsel %vm3168, %v5792, -inf
        %5798 = vmax.xlane.f32.xlu0 %v5797
        %v5799 = vpop.xlane.xlu0 %5798
        %v5800 = vsel %vm3175, %v5793, -inf
        %5801 = vmax.xlane.f32.xlu0 %v5800
        %v5802 = vpop.xlane.xlu0 %5801
        %v5803 = vsub.f32 %v5791, %v5796
        %v5804 = vsub.f32 %v5792, %v5799
        %v5805 = vsub.f32 %v5793, %v5802
        %v5806 = vmul.f32 %v5803, 1.442695
        %v5807 = vpow.pop %v5806
        %v5808 = vmul.f32 %v5804, 1.442695
        %v5809 = vpow.pop %v5808
        %v5810 = vmul.f32 %v5805, 1.442695
        %v5811 = vpow.pop %v5810
        %v5812 = vsel %vm3168, %v5807, 0.0
        %5813 = vadd.xlane.f32.xlu0 %v5812
        %v5814 = vpop.xlane.xlu0 %5813
        %v5815 = vsel %vm3168, %v5809, 0.0
        %5816 = vadd.xlane.f32.xlu0 %v5815
        %v5817 = vpop.xlane.xlu0 %5816
        %v5818 = vsel %vm3175, %v5811, 0.0
        %5819 = vadd.xlane.f32.xlu0 %v5818
        %v5820 = vpop.xlane.xlu0 %5819
        %v5821 = vrcp.pop %v5814
        %v5822 = vmul.f32 %v5807, %v5821
        %v5823 = vrcp.pop %v5817
        %v5824 = vmul.f32 %v5809, %v5823
        %v5825 = vrcp.pop %v5820
        %v5826 = vmul.f32 %v5811, %v5825
        %5827 = vrot.lane.b32.xlu0 %v5019, 96
        %v5828 = vpop.permute.xlu0 %5827
        %5829 = vrot.lane.b32.xlu0 %v5025, 96
        %v5830 = vpop.permute.xlu0 %5829
        %5831 = vrot.lane.b32.xlu0 %v5031, 96
        %v5832 = vpop.permute.xlu0 %5831
        %v5836 = vsel %vm3168, %v5822, 0
        %v5839 = vsel %vm3168, %v5824, 0
        %v5842 = vsel %vm3168, %v5826, 0
        %v5844 = vsel %vm3212, %v5832, 0
        %5846 = vmatprep.subr.mxu0 0.0
        %5847 = vmatpush1.msra.mxu0 %v5828
        %5848 = vmatprep.subr.mxu0 0.0
        %5849 = vmatpush1.msra.mxu0 %v5830
        %5850 = vmatprep.subr.mxu0 0.0
        %5851 = vmatpush1.msra.mxu0 %v5844
        %5852 = vmatprep.subr.mxu0 0.0
        %5853 = vmatpush1.msra.mxu0 0.0
        %5854 = vmatprep.subr.mxu0 0.0
        %5855 = vmatpush1.msra.mxu0 0.0
        %5856 = vmatprep.subr.mxu0 0.0
        %5857 = vmatpush1.msra.mxu0 0.0
        %5858 = vmatprep.subr.mxu0 0.0
        %5859 = vmatpush1.msra.mxu0 0.0
        %5860 = vmatprep.subr.mxu0 0.0
        %5861 = vmatpush1.msra.mxu0 0.0
        %5862 = vmatprep.subr.mxu0 0.0
        %5863 = vmatpush1.msra.mxu0 0.0
        %5864 = vmatprep.subr.mxu0 0.0
        %5865 = vmatpush1.msra.mxu0 0.0
        %5866 = vmatprep.subr.mxu0 0.0
        %5867 = vmatpush1.msra.mxu0 0.0
        %5868 = vmatprep.subr.mxu0 0.0
        %5869 = vmatpush1.msra.mxu0 0.0
        %5870 = vmatprep.subr.mxu0 0.0
        %5871 = vmatpush1.msra.mxu0 0.0
        %5872 = vmatprep.subr.mxu0 0.0
        %5873 = vmatpush1.msra.mxu0 0.0
        %5874 = vmatprep.subr.mxu0 0.0
        %5875 = vmatpush1.msra.mxu0 0.0
        %5876 = vmatprep.subr.mxu0 0.0
        %5877 = vmatpush1.msra.mxu0 0.0
        %5878 = vmatprep.subr.mxu0 0.0
        %5879 = vmatpush1.msra.mxu0 0.0
        %5880 = vmatprep.subr.mxu0 0.0
        %5881 = vmatpush1.msra.mxu0 0.0
        %5882 = vmatprep.subr.mxu0 0.0
        %5883 = vmatpush1.msra.mxu0 0.0
        %5884 = vmatprep.subr.mxu0 0.0
        %5885 = vmatpush1.msra.mxu0 0.0
        %5886 = vmatprep.subr.mxu0 0.0
        %5887 = vmatpush1.msra.mxu0 0.0
        %5888 = vmatprep.subr.mxu0 0.0
        %5889 = vmatpush1.msra.mxu0 0.0
        %5890 = vmatprep.subr.mxu0 0.0
        %5891 = vmatpush1.msra.mxu0 0.0
        %5892 = vmatprep.subr.mxu0 0.0
        %5893 = vmatpush1.msra.mxu0 0.0
        %5894 = vmatprep.subr.mxu0 0.0
        %5895 = vmatpush1.msra.mxu0 0.0
        %5896 = vmatprep.subr.mxu0 0.0
        %5897 = vmatpush1.msra.mxu0 0.0
        %5898 = vmatprep.subr.mxu0 0.0
        %5899 = vmatpush1.msra.mxu0 0.0
        %5900 = vmatprep.subr.mxu0 0.0
        %5901 = vmatpush1.msra.mxu0 0.0
        %5902 = vmatprep.subr.mxu0 0.0
        %5903 = vmatpush1.msra.mxu0 0.0
        %5904 = vmatprep.subr.mxu0 0.0
        %5905 = vmatpush1.msra.mxu0 0.0
        %5906 = vmatprep.subr.mxu0 0.0
        %5907 = vmatpush1.msra.mxu0 0.0
        %5908 = vmatprep.subr.mxu0 0.0
        %5909 = vmatpush1.msra.mxu0 0.0
        %5910 = vmatprep.mubr.f32.mxu0 0.0
        %5911 = vmatmul.mubr.f32.gmra.mrb[0].mxu0 %v5836
        %v5912 = vpop.f32.mrb[0].mxu0
        %v5913 = vadd.f32 0.0, %v5912
        %v5914 = vpop.f32.mrb[0].mxu0
        %5915 = vmatprep.mubr.f32.mxu0 0.0
        %5916 = vmatmul.mubr.f32.gmra.mrb[0].mxu0 %v5839
        %v5917 = vpop.f32.mrb[0].mxu0
        %v5918 = vadd.f32 0.0, %v5917
        %v5919 = vpop.f32.mrb[0].mxu0
        %5920 = vmatprep.mubr.f32.mxu0 0.0
        %5921 = vmatmul.mubr.f32.gmra.mrb[0].mxu0 %v5842
        %v5922 = vpop.f32.mrb[0].mxu0
        %v5923 = vadd.f32 0.0, %v5922
        %v5924 = vpop.f32.mrb[0].mxu0
        %5925 = vdwg.mxu0
        %s5926 = scalar_lea.vmem [#allocation13], 96
        %v5927 = vld [vmem:[%s5926] sm:$0xff]
        %v5928 = vld [vmem:[%s5926 + $0x8] sm:$0xff]
        %v5930 = vsel %vm3072, %v5913, 0
        %v5933 = vsel %vm3072, %v5918, 0
        %v5936 = vsel %vm3072, %v5923, 0
        %5938 = vmatprep.subr.mxu0 0.0
        %5939 = vmatpush1.msra.mxu0 %v5927
        %5940 = vmatprep.subr.mxu0 0.0
        %5941 = vmatpush1.msra.mxu0 %v5928
        %5942 = vmatprep.subr.mxu0 0.0
        %5943 = vmatpush1.msra.mxu0 0.0
        %5944 = vmatprep.subr.mxu0 0.0
        %5945 = vmatpush1.msra.mxu0 0.0
        %5946 = vmatprep.subr.mxu0 0.0
        %5947 = vmatpush1.msra.mxu0 0.0
        %5948 = vmatprep.subr.mxu0 0.0
        %5949 = vmatpush1.msra.mxu0 0.0
        %5950 = vmatprep.subr.mxu0 0.0
        %5951 = vmatpush1.msra.mxu0 0.0
        %5952 = vmatprep.subr.mxu0 0.0
        %5953 = vmatpush1.msra.mxu0 0.0
        %5954 = vmatprep.subr.mxu0 0.0
        %5955 = vmatpush1.msra.mxu0 0.0
        %5956 = vmatprep.subr.mxu0 0.0
        %5957 = vmatpush1.msra.mxu0 0.0
        %5958 = vmatprep.subr.mxu0 0.0
        %5959 = vmatpush1.msra.mxu0 0.0
        %5960 = vmatprep.subr.mxu0 0.0
        %5961 = vmatpush1.msra.mxu0 0.0
        %5962 = vmatprep.subr.mxu0 0.0
        %5963 = vmatpush1.msra.mxu0 0.0
        %5964 = vmatprep.subr.mxu0 0.0
        %5965 = vmatpush1.msra.mxu0 0.0
        %5966 = vmatprep.subr.mxu0 0.0
        %5967 = vmatpush1.msra.mxu0 0.0
        %5968 = vmatprep.subr.mxu0 0.0
        %5969 = vmatpush1.msra.mxu0 0.0
        %5970 = vmatprep.subr.mxu0 0.0
        %5971 = vmatpush1.msra.mxu0 0.0
        %5972 = vmatprep.subr.mxu0 0.0
        %5973 = vmatpush1.msra.mxu0 0.0
        %5974 = vmatprep.subr.mxu0 0.0
        %5975 = vmatpush1.msra.mxu0 0.0
        %5976 = vmatprep.subr.mxu0 0.0
        %5977 = vmatpush1.msra.mxu0 0.0
        %5978 = vmatprep.subr.mxu0 0.0
        %5979 = vmatpush1.msra.mxu0 0.0
        %5980 = vmatprep.subr.mxu0 0.0
        %5981 = vmatpush1.msra.mxu0 0.0
        %5982 = vmatprep.subr.mxu0 0.0
        %5983 = vmatpush1.msra.mxu0 0.0
        %5984 = vmatprep.subr.mxu0 0.0
        %5985 = vmatpush1.msra.mxu0 0.0
        %5986 = vmatprep.subr.mxu0 0.0
        %5987 = vmatpush1.msra.mxu0 0.0
        %5988 = vmatprep.subr.mxu0 0.0
        %5989 = vmatpush1.msra.mxu0 0.0
        %5990 = vmatprep.subr.mxu0 0.0
        %5991 = vmatpush1.msra.mxu0 0.0
        %5992 = vmatprep.subr.mxu0 0.0
        %5993 = vmatpush1.msra.mxu0 0.0
        %5994 = vmatprep.subr.mxu0 0.0
        %5995 = vmatpush1.msra.mxu0 0.0
        %5996 = vmatprep.subr.mxu0 0.0
        %5997 = vmatpush1.msra.mxu0 0.0
        %5998 = vmatprep.subr.mxu0 0.0
        %5999 = vmatpush1.msra.mxu0 0.0
        %6000 = vmatprep.subr.mxu0 0.0
        %6001 = vmatpush1.msra.mxu0 0.0
        %6002 = vmatprep.mubr.f32.mxu0 0.0
        %6003 = vmatmul.mubr.f32.gmra.mrb[0].mxu0 %v5930
        %v6004 = vpop.f32.mrb[0].mxu0
        %v6005 = vadd.f32 0.0, %v6004
        %v6006 = vpop.f32.mrb[0].mxu0
        %6007 = vmatprep.mubr.f32.mxu0 0.0
        %6008 = vmatmul.mubr.f32.gmra.mrb[0].mxu0 %v5933
        %v6009 = vpop.f32.mrb[0].mxu0
        %v6010 = vadd.f32 0.0, %v6009
        %v6011 = vpop.f32.mrb[0].mxu0
        %6012 = vmatprep.mubr.f32.mxu0 0.0
        %6013 = vmatmul.mubr.f32.gmra.mrb[0].mxu0 %v5936
        %v6014 = vpop.f32.mrb[0].mxu0
        %v6015 = vadd.f32 0.0, %v6014
        %v6016 = vpop.f32.mrb[0].mxu0
        %6017 = vdwg.mxu0
        %v6018 = vadd.f32 %v5674, %v6005
        %v6019 = vadd.f32 %v5679, %v6010
        %v6020 = vadd.f32 %v5684, %v6015
        %6021 = vrot.lane.b32.xlu0 %v5017, 80
        %v6022 = vpop.permute.xlu0 %6021
        %6023 = vrot.lane.b32.xlu0 %v5023, 80
        %v6024 = vpop.permute.xlu0 %6023
        %6025 = vrot.lane.b32.xlu0 %v5029, 80
        %v6026 = vpop.permute.xlu0 %6025
        %6027 = vrot.lane.b32.xlu0 %v5017, 16
        %v6028 = vpop.permute.xlu0 %6027
        %6029 = vrot.lane.b32.xlu0 %v5023, 16
        %v6030 = vpop.permute.xlu0 %6029
        %6031 = vrot.lane.b32.xlu0 %v5029, 16
        %v6032 = vpop.permute.xlu0 %6031
        %v6033 = vsel %vm3072, %v6022, 0
        %v6035 = vsel %vm3072, %v6024, 0
        %v6037 = vsel %vm3072, %v6026, 0
        %v6039 = vsel %vm3072, %v6028, 0
        %v6041 = vsel %vm3072, %v6030, 0
        %v6043 = vsel %vm3072, %v6032, 0
        %6045 = vmatprep.subr.mxu0 0.0
        %6046 = vmatpush1.xpose.msra.mxu0 %v6039
        %6047 = vmatprep.subr.mxu0 0.0
        %6048 = vmatpush1.xpose.msra.mxu0 %v6041
        %6049 = vmatprep.subr.mxu0 0.0
        %6050 = vmatpush1.xpose.msra.mxu0 %v6043
        %6051 = vmatprep.subr.mxu0 0.0
        %6052 = vmatpush1.xpose.msra.mxu0 0.0
        %6053 = vmatprep.subr.mxu0 0.0
        %6054 = vmatpush1.xpose.msra.mxu0 0.0
        %6055 = vmatprep.subr.mxu0 0.0
        %6056 = vmatpush1.xpose.msra.mxu0 0.0
        %6057 = vmatprep.subr.mxu0 0.0
        %6058 = vmatpush1.xpose.msra.mxu0 0.0
        %6059 = vmatprep.subr.mxu0 0.0
        %6060 = vmatpush1.xpose.msra.mxu0 0.0
        %6061 = vmatprep.subr.mxu0 0.0
        %6062 = vmatpush1.xpose.msra.mxu0 0.0
        %6063 = vmatprep.subr.mxu0 0.0
        %6064 = vmatpush1.xpose.msra.mxu0 0.0
        %6065 = vmatprep.subr.mxu0 0.0
        %6066 = vmatpush1.xpose.msra.mxu0 0.0
        %6067 = vmatprep.subr.mxu0 0.0
        %6068 = vmatpush1.xpose.msra.mxu0 0.0
        %6069 = vmatprep.subr.mxu0 0.0
        %6070 = vmatpush1.xpose.msra.mxu0 0.0
        %6071 = vmatprep.subr.mxu0 0.0
        %6072 = vmatpush1.xpose.msra.mxu0 0.0
        %6073 = vmatprep.subr.mxu0 0.0
        %6074 = vmatpush1.xpose.msra.mxu0 0.0
        %6075 = vmatprep.subr.mxu0 0.0
        %6076 = vmatpush1.xpose.msra.mxu0 0.0
        %6077 = vmatprep.subr.mxu0 0.0
        %6078 = vmatpush1.xpose.msra.mxu0 0.0
        %6079 = vmatprep.subr.mxu0 0.0
        %6080 = vmatpush1.xpose.msra.mxu0 0.0
        %6081 = vmatprep.subr.mxu0 0.0
        %6082 = vmatpush1.xpose.msra.mxu0 0.0
        %6083 = vmatprep.subr.mxu0 0.0
        %6084 = vmatpush1.xpose.msra.mxu0 0.0
        %6085 = vmatprep.subr.mxu0 0.0
        %6086 = vmatpush1.xpose.msra.mxu0 0.0
        %6087 = vmatprep.subr.mxu0 0.0
        %6088 = vmatpush1.xpose.msra.mxu0 0.0
        %6089 = vmatprep.subr.mxu0 0.0
        %6090 = vmatpush1.xpose.msra.mxu0 0.0
        %6091 = vmatprep.subr.mxu0 0.0
        %6092 = vmatpush1.xpose.msra.mxu0 0.0
        %6093 = vmatprep.subr.mxu0 0.0
        %6094 = vmatpush1.xpose.msra.mxu0 0.0
        %6095 = vmatprep.subr.mxu0 0.0
        %6096 = vmatpush1.xpose.msra.mxu0 0.0
        %6097 = vmatprep.subr.mxu0 0.0
        %6098 = vmatpush1.xpose.msra.mxu0 0.0
        %6099 = vmatprep.subr.mxu0 0.0
        %6100 = vmatpush1.xpose.msra.mxu0 0.0
        %6101 = vmatprep.subr.mxu0 0.0
        %6102 = vmatpush1.xpose.msra.mxu0 0.0
        %6103 = vmatprep.subr.mxu0 0.0
        %6104 = vmatpush1.xpose.msra.mxu0 0.0
        %6105 = vmatprep.subr.mxu0 0.0
        %6106 = vmatpush1.xpose.msra.mxu0 0.0
        %6107 = vmatprep.subr.mxu0 0.0
        %6108 = vmatpush1.xpose.msra.mxu0 0.0
        %6109 = vmatprep.mubr.f32.mxu0 0.0
        %6110 = vmatmul.mubr.f32.gmra.mrb[0].mxu0 %v6033
        %v6111 = vpop.f32.mrb[0].mxu0
        %v6112 = vadd.f32 0.0, %v6111
        %v6113 = vpop.f32.mrb[0].mxu0
        %6114 = vmatprep.mubr.f32.mxu0 0.0
        %6115 = vmatmul.mubr.f32.gmra.mrb[0].mxu0 %v6035
        %v6116 = vpop.f32.mrb[0].mxu0
        %v6117 = vadd.f32 0.0, %v6116
        %v6118 = vpop.f32.mrb[0].mxu0
        %6119 = vmatprep.mubr.f32.mxu0 0.0
        %6120 = vmatmul.mubr.f32.gmra.mrb[0].mxu0 %v6037
        %v6121 = vpop.f32.mrb[0].mxu0
        %v6122 = vadd.f32 0.0, %v6121
        %v6123 = vpop.f32.mrb[0].mxu0
        %6124 = vdwg.mxu0
        %v6125 = vmul.f32 %v6112, 0.25
        %v6126 = vmul.f32 %v6117, 0.25
        %v6127 = vmul.f32 %v6122, 0.25
        %v6128 = vsel %vm3168, %v6125, -inf
        %6129 = vmax.xlane.f32.xlu0 %v6128
        %v6130 = vpop.xlane.xlu0 %6129
        %v6131 = vsel %vm3168, %v6126, -inf
        %6132 = vmax.xlane.f32.xlu0 %v6131
        %v6133 = vpop.xlane.xlu0 %6132
        %v6134 = vsel %vm3175, %v6127, -inf
        %6135 = vmax.xlane.f32.xlu0 %v6134
        %v6136 = vpop.xlane.xlu0 %6135
        %v6137 = vsub.f32 %v6125, %v6130
        %v6138 = vsub.f32 %v6126, %v6133
        %v6139 = vsub.f32 %v6127, %v6136
        %v6140 = vmul.f32 %v6137, 1.442695
        %v6141 = vpow.pop %v6140
        %v6142 = vmul.f32 %v6138, 1.442695
        %v6143 = vpow.pop %v6142
        %v6144 = vmul.f32 %v6139, 1.442695
        %v6145 = vpow.pop %v6144
        %v6146 = vsel %vm3168, %v6141, 0.0
        %6147 = vadd.xlane.f32.xlu0 %v6146
        %v6148 = vpop.xlane.xlu0 %6147
        %v6149 = vsel %vm3168, %v6143, 0.0
        %6150 = vadd.xlane.f32.xlu0 %v6149
        %v6151 = vpop.xlane.xlu0 %6150
        %v6152 = vsel %vm3175, %v6145, 0.0
        %6153 = vadd.xlane.f32.xlu0 %v6152
        %v6154 = vpop.xlane.xlu0 %6153
        %v6155 = vrcp.pop %v6148
        %v6156 = vmul.f32 %v6141, %v6155
        %v6157 = vrcp.pop %v6151
        %v6158 = vmul.f32 %v6143, %v6157
        %v6159 = vrcp.pop %v6154
        %v6160 = vmul.f32 %v6145, %v6159
        %6161 = vrot.lane.b32.xlu0 %v5019, 80
        %v6162 = vpop.permute.xlu0 %6161
        %6163 = vrot.lane.b32.xlu0 %v5025, 80
        %v6164 = vpop.permute.xlu0 %6163
        %6165 = vrot.lane.b32.xlu0 %v5031, 80
        %v6166 = vpop.permute.xlu0 %6165
        %v6170 = vsel %vm3168, %v6156, 0
        %v6173 = vsel %vm3168, %v6158, 0
        %v6176 = vsel %vm3168, %v6160, 0
        %v6178 = vsel %vm3212, %v6166, 0
        %6180 = vmatprep.subr.mxu0 0.0
        %6181 = vmatpush1.msra.mxu0 %v6162
        %6182 = vmatprep.subr.mxu0 0.0
        %6183 = vmatpush1.msra.mxu0 %v6164
        %6184 = vmatprep.subr.mxu0 0.0
        %6185 = vmatpush1.msra.mxu0 %v6178
        %6186 = vmatprep.subr.mxu0 0.0
        %6187 = vmatpush1.msra.mxu0 0.0
        %6188 = vmatprep.subr.mxu0 0.0
        %6189 = vmatpush1.msra.mxu0 0.0
        %6190 = vmatprep.subr.mxu0 0.0
        %6191 = vmatpush1.msra.mxu0 0.0
        %6192 = vmatprep.subr.mxu0 0.0
        %6193 = vmatpush1.msra.mxu0 0.0
        %6194 = vmatprep.subr.mxu0 0.0
        %6195 = vmatpush1.msra.mxu0 0.0
        %6196 = vmatprep.subr.mxu0 0.0
        %6197 = vmatpush1.msra.mxu0 0.0
        %6198 = vmatprep.subr.mxu0 0.0
        %6199 = vmatpush1.msra.mxu0 0.0
        %6200 = vmatprep.subr.mxu0 0.0
        %6201 = vmatpush1.msra.mxu0 0.0
        %6202 = vmatprep.subr.mxu0 0.0
        %6203 = vmatpush1.msra.mxu0 0.0
        %6204 = vmatprep.subr.mxu0 0.0
        %6205 = vmatpush1.msra.mxu0 0.0
        %6206 = vmatprep.subr.mxu0 0.0
        %6207 = vmatpush1.msra.mxu0 0.0
        %6208 = vmatprep.subr.mxu0 0.0
        %6209 = vmatpush1.msra.mxu0 0.0
        %6210 = vmatprep.subr.mxu0 0.0
        %6211 = vmatpush1.msra.mxu0 0.0
        %6212 = vmatprep.subr.mxu0 0.0
        %6213 = vmatpush1.msra.mxu0 0.0
        %6214 = vmatprep.subr.mxu0 0.0
        %6215 = vmatpush1.msra.mxu0 0.0
        %6216 = vmatprep.subr.mxu0 0.0
        %6217 = vmatpush1.msra.mxu0 0.0
        %6218 = vmatprep.subr.mxu0 0.0
        %6219 = vmatpush1.msra.mxu0 0.0
        %6220 = vmatprep.subr.mxu0 0.0
        %6221 = vmatpush1.msra.mxu0 0.0
        %6222 = vmatprep.subr.mxu0 0.0
        %6223 = vmatpush1.msra.mxu0 0.0
        %6224 = vmatprep.subr.mxu0 0.0
        %6225 = vmatpush1.msra.mxu0 0.0
        %6226 = vmatprep.subr.mxu0 0.0
        %6227 = vmatpush1.msra.mxu0 0.0
        %6228 = vmatprep.subr.mxu0 0.0
        %6229 = vmatpush1.msra.mxu0 0.0
        %6230 = vmatprep.subr.mxu0 0.0
        %6231 = vmatpush1.msra.mxu0 0.0
        %6232 = vmatprep.subr.mxu0 0.0
        %6233 = vmatpush1.msra.mxu0 0.0
        %6234 = vmatprep.subr.mxu0 0.0
        %6235 = vmatpush1.msra.mxu0 0.0
        %6236 = vmatprep.subr.mxu0 0.0
        %6237 = vmatpush1.msra.mxu0 0.0
        %6238 = vmatprep.subr.mxu0 0.0
        %6239 = vmatpush1.msra.mxu0 0.0
        %6240 = vmatprep.subr.mxu0 0.0
        %6241 = vmatpush1.msra.mxu0 0.0
        %6242 = vmatprep.subr.mxu0 0.0
        %6243 = vmatpush1.msra.mxu0 0.0
        %6244 = vmatprep.mubr.f32.mxu0 0.0
        %6245 = vmatmul.mubr.f32.gmra.mrb[0].mxu0 %v6170
        %v6246 = vpop.f32.mrb[0].mxu0
        %v6247 = vadd.f32 0.0, %v6246
        %v6248 = vpop.f32.mrb[0].mxu0
        %6249 = vmatprep.mubr.f32.mxu0 0.0
        %6250 = vmatmul.mubr.f32.gmra.mrb[0].mxu0 %v6173
        %v6251 = vpop.f32.mrb[0].mxu0
        %v6252 = vadd.f32 0.0, %v6251
        %v6253 = vpop.f32.mrb[0].mxu0
        %6254 = vmatprep.mubr.f32.mxu0 0.0
        %6255 = vmatmul.mubr.f32.gmra.mrb[0].mxu0 %v6176
        %v6256 = vpop.f32.mrb[0].mxu0
        %v6257 = vadd.f32 0.0, %v6256
        %v6258 = vpop.f32.mrb[0].mxu0
        %6259 = vdwg.mxu0
        %s6260 = scalar_lea.vmem [#allocation13], 112
        %v6261 = vld [vmem:[%s6260] sm:$0xff]
        %v6262 = vld [vmem:[%s6260 + $0x8] sm:$0xff]
        %v6264 = vsel %vm3072, %v6247, 0
        %v6267 = vsel %vm3072, %v6252, 0
        %v6270 = vsel %vm3072, %v6257, 0
        %6272 = vmatprep.subr.mxu0 0.0
        %6273 = vmatpush1.msra.mxu0 %v6261
        %6274 = vmatprep.subr.mxu0 0.0
        %6275 = vmatpush1.msra.mxu0 %v6262
        %6276 = vmatprep.subr.mxu0 0.0
        %6277 = vmatpush1.msra.mxu0 0.0
        %6278 = vmatprep.subr.mxu0 0.0
        %6279 = vmatpush1.msra.mxu0 0.0
        %6280 = vmatprep.subr.mxu0 0.0
        %6281 = vmatpush1.msra.mxu0 0.0
        %6282 = vmatprep.subr.mxu0 0.0
        %6283 = vmatpush1.msra.mxu0 0.0
        %6284 = vmatprep.subr.mxu0 0.0
        %6285 = vmatpush1.msra.mxu0 0.0
        %6286 = vmatprep.subr.mxu0 0.0
        %6287 = vmatpush1.msra.mxu0 0.0
        %6288 = vmatprep.subr.mxu0 0.0
        %6289 = vmatpush1.msra.mxu0 0.0
        %6290 = vmatprep.subr.mxu0 0.0
        %6291 = vmatpush1.msra.mxu0 0.0
        %6292 = vmatprep.subr.mxu0 0.0
        %6293 = vmatpush1.msra.mxu0 0.0
        %6294 = vmatprep.subr.mxu0 0.0
        %6295 = vmatpush1.msra.mxu0 0.0
        %6296 = vmatprep.subr.mxu0 0.0
        %6297 = vmatpush1.msra.mxu0 0.0
        %6298 = vmatprep.subr.mxu0 0.0
        %6299 = vmatpush1.msra.mxu0 0.0
        %6300 = vmatprep.subr.mxu0 0.0
        %6301 = vmatpush1.msra.mxu0 0.0
        %6302 = vmatprep.subr.mxu0 0.0
        %6303 = vmatpush1.msra.mxu0 0.0
        %6304 = vmatprep.subr.mxu0 0.0
        %6305 = vmatpush1.msra.mxu0 0.0
        %6306 = vmatprep.subr.mxu0 0.0
        %6307 = vmatpush1.msra.mxu0 0.0
        %6308 = vmatprep.subr.mxu0 0.0
        %6309 = vmatpush1.msra.mxu0 0.0
        %6310 = vmatprep.subr.mxu0 0.0
        %6311 = vmatpush1.msra.mxu0 0.0
        %6312 = vmatprep.subr.mxu0 0.0
        %6313 = vmatpush1.msra.mxu0 0.0
        %6314 = vmatprep.subr.mxu0 0.0
        %6315 = vmatpush1.msra.mxu0 0.0
        %6316 = vmatprep.subr.mxu0 0.0
        %6317 = vmatpush1.msra.mxu0 0.0
        %6318 = vmatprep.subr.mxu0 0.0
        %6319 = vmatpush1.msra.mxu0 0.0
        %6320 = vmatprep.subr.mxu0 0.0
        %6321 = vmatpush1.msra.mxu0 0.0
        %6322 = vmatprep.subr.mxu0 0.0
        %6323 = vmatpush1.msra.mxu0 0.0
        %6324 = vmatprep.subr.mxu0 0.0
        %6325 = vmatpush1.msra.mxu0 0.0
        %6326 = vmatprep.subr.mxu0 0.0
        %6327 = vmatpush1.msra.mxu0 0.0
        %6328 = vmatprep.subr.mxu0 0.0
        %6329 = vmatpush1.msra.mxu0 0.0
        %6330 = vmatprep.subr.mxu0 0.0
        %6331 = vmatpush1.msra.mxu0 0.0
        %6332 = vmatprep.subr.mxu0 0.0
        %6333 = vmatpush1.msra.mxu0 0.0
        %6334 = vmatprep.subr.mxu0 0.0
        %6335 = vmatpush1.msra.mxu0 0.0
        %6336 = vmatprep.mubr.f32.mxu0 0.0
        %6337 = vmatmul.mubr.f32.gmra.mrb[0].mxu0 %v6264
        %v6338 = vpop.f32.mrb[0].mxu0
        %v6339 = vadd.f32 0.0, %v6338
        %v6340 = vpop.f32.mrb[0].mxu0
        %6341 = vmatprep.mubr.f32.mxu0 0.0
        %6342 = vmatmul.mubr.f32.gmra.mrb[0].mxu0 %v6267
        %v6343 = vpop.f32.mrb[0].mxu0
        %v6344 = vadd.f32 0.0, %v6343
        %v6345 = vpop.f32.mrb[0].mxu0
        %6346 = vmatprep.mubr.f32.mxu0 0.0
        %6347 = vmatmul.mubr.f32.gmra.mrb[0].mxu0 %v6270
        %v6348 = vpop.f32.mrb[0].mxu0
        %v6349 = vadd.f32 0.0, %v6348
        %v6350 = vpop.f32.mrb[0].mxu0
        %6351 = vdwg.mxu0
        %v6352 = vadd.f32 %v6018, %v6339
        %v6353 = vadd.f32 %v6019, %v6344
        %v6354 = vadd.f32 %v6020, %v6349
        %s6355 = scalar_lea.vmem [#allocation15], 2
        %v6356 = vld [vmem:[%s6355] sm:$0x3]
        %v6357 = vadd.f32 %v4853, %v6352
        %v6358 = vadd.f32 %v4854, %v6353
        %v6359 = vadd.f32 %v4855, %v6354
        %v6360 = vlaneseq
        %v6361 = vshrl.u32 %v6360, 7
        %v6362 = vsub.s32 0, %v6361
        %v6363 = vrot.slane %v6356, %v6362
        %v6364 = vadd.f32 %v6357, %v6363
        %v6365 = vadd.f32 %v6358, %v6363
        %v6366 = vadd.f32 %v6359, %v6363
        %v6367 = vsel %vm2513, %v6364, 0.0
        %6368 = vadd.xlane.f32.xlu0 %v6367
        %v6369 = vpop.xlane.xlu0 %6368
        %v6370 = vsel %vm2513, %v6365, 0.0
        %6371 = vadd.xlane.f32.xlu0 %v6370
        %v6372 = vpop.xlane.xlu0 %6371
        %v6373 = vsel %vm2894, %v6366, 0.0
        %6374 = vadd.xlane.f32.xlu0 %v6373
        %v6375 = vpop.xlane.xlu0 %6374
        %v6376 = vmul.f32 %v6369, %v2898
        %v6377 = vmul.f32 %v6372, %v2898
        %v6378 = vmul.f32 %v6375, %v2898
        %v6379 = vsub.f32 %v6364, %v6376
        %v6380 = vsub.f32 %v6365, %v6377
        %v6381 = vsub.f32 %v6366, %v6378
        %v6382 = vmul.f32 %v6379, %v6379
        %v6383 = vmul.f32 %v6380, %v6380
        %v6384 = vmul.f32 %v6381, %v6381
        %v6385 = vsel %vm2513, %v6382, 0.0
        %6386 = vadd.xlane.f32.xlu0 %v6385
        %v6387 = vpop.xlane.xlu0 %6386
        %v6388 = vsel %vm2513, %v6383, 0.0
        %6389 = vadd.xlane.f32.xlu0 %v6388
        %v6390 = vpop.xlane.xlu0 %6389
        %v6391 = vsel %vm2894, %v6384, 0.0
        %6392 = vadd.xlane.f32.xlu0 %v6391
        %v6393 = vpop.xlane.xlu0 %6392
        %v6394 = vmul.f32 %v6387, %v2898
        %v6395 = vmul.f32 %v6390, %v2898
        %v6396 = vmul.f32 %v6393, %v2898
        %v6397 = vadd.f32 %v6394, 1e-05
        %v6398 = vadd.f32 %v6395, 1e-05
        %v6399 = vadd.f32 %v6396, 1e-05
        %v6400 = vrsqrt.pop %v6397
        %v6401 = vrsqrt.pop %v6398
        %v6402 = vrsqrt.pop %v6399
        %v6403 = vmul.f32 %v6379, %v6400
        %v6404 = vmul.f32 %v6380, %v6401
        %v6405 = vmul.f32 %v6381, %v6402
        %v6406 = vlaneseq
        %v6407 = vshrl.u32 %v6406, 7
        %v6408 = vsub.s32 2, %v6407
        %v6409 = vrot.slane %v4857, %v6408
        %v6410 = vmul.f32 %v6403, %v6409
        %v6411 = vmul.f32 %v6404, %v6409
        %v6412 = vmul.f32 %v6405, %v6409
        %v6413 = vlaneseq
        %v6414 = vshrl.u32 %v6413, 7
        %v6415 = vsub.s32 3, %v6414
        %v6416 = vrot.slane %v4857, %v6415
        %v6417 = vadd.f32 %v6410, %v6416
        %v6418 = vadd.f32 %v6411, %v6416
        %v6419 = vadd.f32 %v6412, %v6416
        %s6420 = scalar_lea.vmem [#allocation16], 128
        %v6421 = vld [vmem:[%s6420] sm:$0xff]
        %v6422 = vld [vmem:[%s6420 + $0x8] sm:$0xff]
        %v6423 = vld [vmem:[%s6420 + $0x10] sm:$0xff]
        %v6424 = vld [vmem:[%s6420 + $0x18] sm:$0xff]
        %v6425 = vld [vmem:[%s6420 + $0x20] sm:$0xff]
        %v6426 = vld [vmem:[%s6420 + $0x28] sm:$0xff]
        %v6427 = vld [vmem:[%s6420 + $0x30] sm:$0xff]
        %v6428 = vld [vmem:[%s6420 + $0x38] sm:$0xff]
        %v6429 = vld [vmem:[%s6420 + $0x40] sm:$0xff]
        %v6430 = vld [vmem:[%s6420 + $0x48] sm:$0xff]
        %v6431 = vld [vmem:[%s6420 + $0x50] sm:$0xff]
        %v6432 = vld [vmem:[%s6420 + $0x58] sm:$0xff]
        %v6433 = vld [vmem:[%s6420 + $0x60] sm:$0xff]
        %v6434 = vld [vmem:[%s6420 + $0x68] sm:$0xff]
        %v6435 = vld [vmem:[%s6420 + $0x70] sm:$0xff]
        %v6436 = vld [vmem:[%s6420 + $0x78] sm:$0xff]
        %s6437 = scalar_lea.vmem [#allocation18], 2
        %v6438 = vld [vmem:[%s6437] sm:$0x3]
        %v6440 = vlaneseq
        %v6441 = vshrl.u32 %v6440, 7
        %v6442 = vsub.s32 0, %v6441
        %v6443 = vrot.slane %v6438, %v6442
        %v6444 = vlaneseq
        %v6445 = vshrl.u32 %v6444, 7
        %v6446 = vsub.s32 1, %v6445
        %v6447 = vrot.slane %v6438, %v6446
        %v6451 = vsel %vm2513, %v6417, 0
        %v6454 = vsel %vm2513, %v6418, 0
        %v6457 = vsel %vm2513, %v6419, 0
        %6459 = vmatprep.subr.mxu0 %v6422
        %6460 = vmatpush1.msra.mxu0 %v6421
        %6461 = vmatprep.subr.mxu0 %v6424
        %6462 = vmatpush1.msra.mxu0 %v6423
        %6463 = vmatprep.subr.mxu0 %v6426
        %6464 = vmatpush1.msra.mxu0 %v6425
        %6465 = vmatprep.subr.mxu0 %v6428
        %6466 = vmatpush1.msra.mxu0 %v6427
        %6467 = vmatprep.subr.mxu0 %v6430
        %6468 = vmatpush1.msra.mxu0 %v6429
        %6469 = vmatprep.subr.mxu0 %v6432
        %6470 = vmatpush1.msra.mxu0 %v6431
        %6471 = vmatprep.subr.mxu0 %v6434
        %6472 = vmatpush1.msra.mxu0 %v6433
        %6473 = vmatprep.subr.mxu0 %v6436
        %6474 = vmatpush1.msra.mxu0 %v6435
        %6475 = vmatprep.subr.mxu0 0.0
        %6476 = vmatpush1.msra.mxu0 0.0
        %6477 = vmatprep.subr.mxu0 0.0
        %6478 = vmatpush1.msra.mxu0 0.0
        %6479 = vmatprep.subr.mxu0 0.0
        %6480 = vmatpush1.msra.mxu0 0.0
        %6481 = vmatprep.subr.mxu0 0.0
        %6482 = vmatpush1.msra.mxu0 0.0
        %6483 = vmatprep.subr.mxu0 0.0
        %6484 = vmatpush1.msra.mxu0 0.0
        %6485 = vmatprep.subr.mxu0 0.0
        %6486 = vmatpush1.msra.mxu0 0.0
        %6487 = vmatprep.subr.mxu0 0.0
        %6488 = vmatpush1.msra.mxu0 0.0
        %6489 = vmatprep.subr.mxu0 0.0
        %6490 = vmatpush1.msra.mxu0 0.0
        %6491 = vmatprep.subr.mxu0 0.0
        %6492 = vmatpush1.msra.mxu0 0.0
        %6493 = vmatprep.subr.mxu0 0.0
        %6494 = vmatpush1.msra.mxu0 0.0
        %6495 = vmatprep.subr.mxu0 0.0
        %6496 = vmatpush1.msra.mxu0 0.0
        %6497 = vmatprep.subr.mxu0 0.0
        %6498 = vmatpush1.msra.mxu0 0.0
        %6499 = vmatprep.subr.mxu0 0.0
        %6500 = vmatpush1.msra.mxu0 0.0
        %6501 = vmatprep.subr.mxu0 0.0
        %6502 = vmatpush1.msra.mxu0 0.0
        %6503 = vmatprep.subr.mxu0 0.0
        %6504 = vmatpush1.msra.mxu0 0.0
        %6505 = vmatprep.subr.mxu0 0.0
        %6506 = vmatpush1.msra.mxu0 0.0
        %6507 = vmatprep.subr.mxu0 0.0
        %6508 = vmatpush1.msra.mxu0 0.0
        %6509 = vmatprep.subr.mxu0 0.0
        %6510 = vmatpush1.msra.mxu0 0.0
        %6511 = vmatprep.subr.mxu0 0.0
        %6512 = vmatpush1.msra.mxu0 0.0
        %6513 = vmatprep.subr.mxu0 0.0
        %6514 = vmatpush1.msra.mxu0 0.0
        %6515 = vmatprep.subr.mxu0 0.0
        %6516 = vmatpush1.msra.mxu0 0.0
        %6517 = vmatprep.subr.mxu0 0.0
        %6518 = vmatpush1.msra.mxu0 0.0
        %6519 = vmatprep.subr.mxu0 0.0
        %6520 = vmatpush1.msra.mxu0 0.0
        %6521 = vmatprep.subr.mxu0 0.0
        %6522 = vmatpush1.msra.mxu0 0.0
        %6523 = vmatprep.mubr.f32.mxu0 0.0
        %6524 = vmatmul.mubr.f32.gmra.mrb[0].mxu0 %v6451
        %v6525 = vpop.f32.mrb[0].mxu0
        %v6526 = vadd.f32 %v6443, %v6525
        %v6527 = vpop.f32.mrb[0].mxu0
        %v6528 = vadd.f32 %v6447, %v6527
        %6529 = vmatprep.mubr.f32.mxu0 0.0
        %6530 = vmatmul.mubr.f32.gmra.mrb[0].mxu0 %v6454
        %v6531 = vpop.f32.mrb[0].mxu0
        %v6532 = vadd.f32 %v6443, %v6531
        %v6533 = vpop.f32.mrb[0].mxu0
        %v6534 = vadd.f32 %v6447, %v6533
        %6535 = vmatprep.mubr.f32.mxu0 0.0
        %6536 = vmatmul.mubr.f32.gmra.mrb[0].mxu0 %v6457
        %v6537 = vpop.f32.mrb[0].mxu0
        %v6538 = vadd.f32 %v6443, %v6537
        %v6539 = vpop.f32.mrb[0].mxu0
        %v6540 = vadd.f32 %v6447, %v6539
        %6541 = vdwg.mxu0
        %v6542 = vmul.f32 %v6526, 0.70710677
        %v6543 = vmul.f32 %v6528, 0.70710677
        %v6544 = vmul.f32 %v6532, 0.70710677
        %v6545 = vmul.f32 %v6534, 0.70710677
        %v6546 = vmul.f32 %v6538, 0.70710677
        %v6547 = vmul.f32 %v6540, 0.70710677
        %v6548 = vand.u32 2147483647, %v6542
        %v6549 = vand.u32 2147483647, %v6543
        %v6550 = vand.u32 2147483647, %v6544
        %v6551 = vand.u32 2147483647, %v6545
        %v6552 = vand.u32 2147483647, %v6546
        %v6553 = vand.u32 2147483647, %v6547
        %v6554 = vmul.f32 %v6548, 0.3275911
        %v6555 = vmul.f32 %v6549, 0.3275911
        %v6556 = vmul.f32 %v6550, 0.3275911
        %v6557 = vmul.f32 %v6551, 0.3275911
        %v6558 = vmul.f32 %v6552, 0.3275911
        %v6559 = vmul.f32 %v6553, 0.3275911
        %v6560 = vadd.f32 %v6554, 1.0
        %v6561 = vadd.f32 %v6555, 1.0
        %v6562 = vadd.f32 %v6556, 1.0
        %v6563 = vadd.f32 %v6557, 1.0
        %v6564 = vadd.f32 %v6558, 1.0
        %v6565 = vadd.f32 %v6559, 1.0
        %v6566 = vrcp.pop %v6560
        %v6567 = vmul.f32 1.0, %v6566
        %v6568 = vrcp.pop %v6561
        %v6569 = vmul.f32 1.0, %v6568
        %v6570 = vrcp.pop %v6562
        %v6571 = vmul.f32 1.0, %v6570
        %v6572 = vrcp.pop %v6563
        %v6573 = vmul.f32 1.0, %v6572
        %v6574 = vrcp.pop %v6564
        %v6575 = vmul.f32 1.0, %v6574
        %v6576 = vrcp.pop %v6565
        %v6577 = vmul.f32 1.0, %v6576
        %v6578 = vmul.f32 %v6567, 1.0614054
        %v6579 = vmul.f32 %v6569, 1.0614054
        %v6580 = vmul.f32 %v6571, 1.0614054
        %v6581 = vmul.f32 %v6573, 1.0614054
        %v6582 = vmul.f32 %v6575, 1.0614054
        %v6583 = vmul.f32 %v6577, 1.0614054
        %v6584 = vadd.f32 %v6578, -1.4531521
        %v6585 = vadd.f32 %v6579, -1.4531521
        %v6586 = vadd.f32 %v6580, -1.4531521
        %v6587 = vadd.f32 %v6581, -1.4531521
        %v6588 = vadd.f32 %v6582, -1.4531521
        %v6589 = vadd.f32 %v6583, -1.4531521
        %v6590 = vmul.f32 %v6567, %v6584
        %v6591 = vmul.f32 %v6569, %v6585
        %v6592 = vmul.f32 %v6571, %v6586
        %v6593 = vmul.f32 %v6573, %v6587
        %v6594 = vmul.f32 %v6575, %v6588
        %v6595 = vmul.f32 %v6577, %v6589
        %v6596 = vadd.f32 %v6590, 1.4214138
        %v6597 = vadd.f32 %v6591, 1.4214138
        %v6598 = vadd.f32 %v6592, 1.4214138
        %v6599 = vadd.f32 %v6593, 1.4214138
        %v6600 = vadd.f32 %v6594, 1.4214138
        %v6601 = vadd.f32 %v6595, 1.4214138
        %v6602 = vmul.f32 %v6567, %v6596
        %v6603 = vmul.f32 %v6569, %v6597
        %v6604 = vmul.f32 %v6571, %v6598
        %v6605 = vmul.f32 %v6573, %v6599
        %v6606 = vmul.f32 %v6575, %v6600
        %v6607 = vmul.f32 %v6577, %v6601
        %v6608 = vadd.f32 %v6602, -0.28449672
        %v6609 = vadd.f32 %v6603, -0.28449672
        %v6610 = vadd.f32 %v6604, -0.28449672
        %v6611 = vadd.f32 %v6605, -0.28449672
        %v6612 = vadd.f32 %v6606, -0.28449672
        %v6613 = vadd.f32 %v6607, -0.28449672
        %v6614 = vmul.f32 %v6567, %v6608
        %v6615 = vmul.f32 %v6569, %v6609
        %v6616 = vmul.f32 %v6571, %v6610
        %v6617 = vmul.f32 %v6573, %v6611
        %v6618 = vmul.f32 %v6575, %v6612
        %v6619 = vmul.f32 %v6577, %v6613
        %v6620 = vadd.f32 %v6614, 0.2548296
        %v6621 = vadd.f32 %v6615, 0.2548296
        %v6622 = vadd.f32 %v6616, 0.2548296
        %v6623 = vadd.f32 %v6617, 0.2548296
        %v6624 = vadd.f32 %v6618, 0.2548296
        %v6625 = vadd.f32 %v6619, 0.2548296
        %v6626 = vmul.f32 %v6567, %v6620
        %v6627 = vmul.f32 %v6569, %v6621
        %v6628 = vmul.f32 %v6571, %v6622
        %v6629 = vmul.f32 %v6573, %v6623
        %v6630 = vmul.f32 %v6575, %v6624
        %v6631 = vmul.f32 %v6577, %v6625
        %v6632 = vsub.f32 0.0, %v6548
        %v6633 = vsub.f32 0.0, %v6549
        %v6634 = vsub.f32 0.0, %v6550
        %v6635 = vsub.f32 0.0, %v6551
        %v6636 = vsub.f32 0.0, %v6552
        %v6637 = vsub.f32 0.0, %v6553
        %v6638 = vmul.f32 %v6632, %v6548
        %v6639 = vmul.f32 %v6633, %v6549
        %v6640 = vmul.f32 %v6634, %v6550
        %v6641 = vmul.f32 %v6635, %v6551
        %v6642 = vmul.f32 %v6636, %v6552
        %v6643 = vmul.f32 %v6637, %v6553
        %v6644 = vmul.f32 %v6638, 1.442695
        %v6645 = vpow.pop %v6644
        %v6646 = vmul.f32 %v6639, 1.442695
        %v6647 = vpow.pop %v6646
        %v6648 = vmul.f32 %v6640, 1.442695
        %v6649 = vpow.pop %v6648
        %v6650 = vmul.f32 %v6641, 1.442695
        %v6651 = vpow.pop %v6650
        %v6652 = vmul.f32 %v6642, 1.442695
        %v6653 = vpow.pop %v6652
        %v6654 = vmul.f32 %v6643, 1.442695
        %v6655 = vpow.pop %v6654
        %v6656 = vmul.f32 %v6626, %v6645
        %v6657 = vmul.f32 %v6627, %v6647
        %v6658 = vmul.f32 %v6628, %v6649
        %v6659 = vmul.f32 %v6629, %v6651
        %v6660 = vmul.f32 %v6630, %v6653
        %v6661 = vmul.f32 %v6631, %v6655
        %v6662 = vsub.f32 1.0, %v6656
        %v6663 = vsub.f32 1.0, %v6657
        %v6664 = vsub.f32 1.0, %v6658
        %v6665 = vsub.f32 1.0, %v6659
        %v6666 = vsub.f32 1.0, %v6660
        %v6667 = vsub.f32 1.0, %v6661
        %vm6668 = vcmp.ge.f32.partialorder %v6542, 0.0
        %vm6669 = vcmp.ge.f32.partialorder %v6543, 0.0
        %vm6670 = vcmp.ge.f32.partialorder %v6544, 0.0
        %vm6671 = vcmp.ge.f32.partialorder %v6545, 0.0
        %vm6672 = vcmp.ge.f32.partialorder %v6546, 0.0
        %vm6673 = vcmp.ge.f32.partialorder %v6547, 0.0
        %v6674 = vsub.f32 0.0, %v6662
        %v6675 = vsub.f32 0.0, %v6663
        %v6676 = vsub.f32 0.0, %v6664
        %v6677 = vsub.f32 0.0, %v6665
        %v6678 = vsub.f32 0.0, %v6666
        %v6679 = vsub.f32 0.0, %v6667
        %v6680 = vsel %vm6668, %v6662, %v6674
        %v6681 = vsel %vm6669, %v6663, %v6675
        %v6682 = vsel %vm6670, %v6664, %v6676
        %v6683 = vsel %vm6671, %v6665, %v6677
        %v6684 = vsel %vm6672, %v6666, %v6678
        %v6685 = vsel %vm6673, %v6667, %v6679
        %v6686 = vmul.f32 %v6526, 0.5
        %v6687 = vmul.f32 %v6528, 0.5
        %v6688 = vmul.f32 %v6532, 0.5
        %v6689 = vmul.f32 %v6534, 0.5
        %v6690 = vmul.f32 %v6538, 0.5
        %v6691 = vmul.f32 %v6540, 0.5
        %v6692 = vadd.f32 %v6680, 1.0
        %v6693 = vadd.f32 %v6681, 1.0
        %v6694 = vadd.f32 %v6682, 1.0
        %v6695 = vadd.f32 %v6683, 1.0
        %v6696 = vadd.f32 %v6684, 1.0
        %v6697 = vadd.f32 %v6685, 1.0
        %v6698 = vmul.f32 %v6686, %v6692
        %v6699 = vmul.f32 %v6687, %v6693
        %v6700 = vmul.f32 %v6688, %v6694
        %v6701 = vmul.f32 %v6689, %v6695
        %v6702 = vmul.f32 %v6690, %v6696
        %v6703 = vmul.f32 %v6691, %v6697
        %s6704 = scalar_lea.vmem %s16, 256
        %v6705 = vld [vmem:[%s6704] sm:$0xff]
        %v6706 = vld [vmem:[%s6704 + $0x8] sm:$0xff]
        %v6707 = vld [vmem:[%s6704 + $0x10] sm:$0xff]
        %v6708 = vld [vmem:[%s6704 + $0x18] sm:$0xff]
        %v6709 = vld [vmem:[%s6704 + $0x20] sm:$0xff]
        %v6710 = vld [vmem:[%s6704 + $0x28] sm:$0xff]
        %v6711 = vld [vmem:[%s6704 + $0x30] sm:$0xff]
        %v6712 = vld [vmem:[%s6704 + $0x38] sm:$0xff]
        %v6713 = vld [vmem:[%s6704 + $0x40] sm:$0xff]
        %v6714 = vld [vmem:[%s6704 + $0x48] sm:$0xff]
        %v6715 = vld [vmem:[%s6704 + $0x50] sm:$0xff]
        %v6716 = vld [vmem:[%s6704 + $0x58] sm:$0xff]
        %v6717 = vld [vmem:[%s6704 + $0x60] sm:$0xff]
        %v6718 = vld [vmem:[%s6704 + $0x68] sm:$0xff]
        %v6719 = vld [vmem:[%s6704 + $0x70] sm:$0xff]
        %v6720 = vld [vmem:[%s6704 + $0x78] sm:$0xff]
        %v6721 = vld [vmem:[%s6704 + $0x80] sm:$0xff]
        %v6722 = vld [vmem:[%s6704 + $0x88] sm:$0xff]
        %v6723 = vld [vmem:[%s6704 + $0x90] sm:$0xff]
        %v6724 = vld [vmem:[%s6704 + $0x98] sm:$0xff]
        %v6725 = vld [vmem:[%s6704 + $0xa0] sm:$0xff]
        %v6726 = vld [vmem:[%s6704 + $0xa8] sm:$0xff]
        %v6727 = vld [vmem:[%s6704 + $0xb0] sm:$0xff]
        %v6728 = vld [vmem:[%s6704 + $0xb8] sm:$0xff]
        %v6729 = vld [vmem:[%s6704 + $0xc0] sm:$0xff]
        %v6730 = vld [vmem:[%s6704 + $0xc8] sm:$0xff]
        %v6731 = vld [vmem:[%s6704 + $0xd0] sm:$0xff]
        %v6732 = vld [vmem:[%s6704 + $0xd8] sm:$0xff]
        %v6733 = vld [vmem:[%s6704 + $0xe0] sm:$0xff]
        %v6734 = vld [vmem:[%s6704 + $0xe8] sm:$0xff]
        %v6735 = vld [vmem:[%s6704 + $0xf0] sm:$0xff]
        %v6736 = vld [vmem:[%s6704 + $0xf8] sm:$0xff]
        %6737 = vmatprep.subr.mxu0 0.0
        %6738 = vmatpush1.msra.mxu0 %v6705
        %6739 = vmatprep.subr.mxu0 0.0
        %6740 = vmatpush1.msra.mxu0 %v6706
        %6741 = vmatprep.subr.mxu0 0.0
        %6742 = vmatpush1.msra.mxu0 %v6707
        %6743 = vmatprep.subr.mxu0 0.0
        %6744 = vmatpush1.msra.mxu0 %v6708
        %6745 = vmatprep.subr.mxu0 0.0
        %6746 = vmatpush1.msra.mxu0 %v6709
        %6747 = vmatprep.subr.mxu0 0.0
        %6748 = vmatpush1.msra.mxu0 %v6710
        %6749 = vmatprep.subr.mxu0 0.0
        %6750 = vmatpush1.msra.mxu0 %v6711
        %6751 = vmatprep.subr.mxu0 0.0
        %6752 = vmatpush1.msra.mxu0 %v6712
        %6753 = vmatprep.subr.mxu0 0.0
        %6754 = vmatpush1.msra.mxu0 %v6713
        %6755 = vmatprep.subr.mxu0 0.0
        %6756 = vmatpush1.msra.mxu0 %v6714
        %6757 = vmatprep.subr.mxu0 0.0
        %6758 = vmatpush1.msra.mxu0 %v6715
        %6759 = vmatprep.subr.mxu0 0.0
        %6760 = vmatpush1.msra.mxu0 %v6716
        %6761 = vmatprep.subr.mxu0 0.0
        %6762 = vmatpush1.msra.mxu0 %v6717
        %6763 = vmatprep.subr.mxu0 0.0
        %6764 = vmatpush1.msra.mxu0 %v6718
        %6765 = vmatprep.subr.mxu0 0.0
        %6766 = vmatpush1.msra.mxu0 %v6719
        %6767 = vmatprep.subr.mxu0 0.0
        %6768 = vmatpush1.msra.mxu0 %v6720
        %6769 = vmatprep.subr.mxu0 0.0
        %6770 = vmatpush1.msra.mxu0 %v6721
        %6771 = vmatprep.subr.mxu0 0.0
        %6772 = vmatpush1.msra.mxu0 %v6722
        %6773 = vmatprep.subr.mxu0 0.0
        %6774 = vmatpush1.msra.mxu0 %v6723
        %6775 = vmatprep.subr.mxu0 0.0
        %6776 = vmatpush1.msra.mxu0 %v6724
        %6777 = vmatprep.subr.mxu0 0.0
        %6778 = vmatpush1.msra.mxu0 %v6725
        %6779 = vmatprep.subr.mxu0 0.0
        %6780 = vmatpush1.msra.mxu0 %v6726
        %6781 = vmatprep.subr.mxu0 0.0
        %6782 = vmatpush1.msra.mxu0 %v6727
        %6783 = vmatprep.subr.mxu0 0.0
        %6784 = vmatpush1.msra.mxu0 %v6728
        %6785 = vmatprep.subr.mxu0 0.0
        %6786 = vmatpush1.msra.mxu0 %v6729
        %6787 = vmatprep.subr.mxu0 0.0
        %6788 = vmatpush1.msra.mxu0 %v6730
        %6789 = vmatprep.subr.mxu0 0.0
        %6790 = vmatpush1.msra.mxu0 %v6731
        %6791 = vmatprep.subr.mxu0 0.0
        %6792 = vmatpush1.msra.mxu0 %v6732
        %6793 = vmatprep.subr.mxu0 0.0
        %6794 = vmatpush1.msra.mxu0 %v6733
        %6795 = vmatprep.subr.mxu0 0.0
        %6796 = vmatpush1.msra.mxu0 %v6734
        %6797 = vmatprep.subr.mxu0 0.0
        %6798 = vmatpush1.msra.mxu0 %v6735
        %6799 = vmatprep.subr.mxu0 0.0
        %6800 = vmatpush1.msra.mxu0 %v6736
        %6801 = vmatprep.mubr.f32.mxu0 %v6699
        %6802 = vmatmul.mubr.f32.gmra.mrb[0].mxu0 %v6698
        %v6803 = vpop.f32.mrb[0].mxu0
        %v6804 = vadd.f32 0.0, %v6803
        %v6805 = vpop.f32.mrb[0].mxu0
        %6806 = vmatprep.mubr.f32.mxu0 %v6701
        %6807 = vmatmul.mubr.f32.gmra.mrb[0].mxu0 %v6700
        %v6808 = vpop.f32.mrb[0].mxu0
        %v6809 = vadd.f32 0.0, %v6808
        %v6810 = vpop.f32.mrb[0].mxu0
        %6811 = vmatprep.mubr.f32.mxu0 %v6703
        %6812 = vmatmul.mubr.f32.gmra.mrb[0].mxu0 %v6702
        %v6813 = vpop.f32.mrb[0].mxu0
        %v6814 = vadd.f32 0.0, %v6813
        %v6815 = vpop.f32.mrb[0].mxu0
        %6816 = vdwg.mxu0
        %v6817 = vadd.f32 %v6364, %v6804
        %v6818 = vadd.f32 %v6365, %v6809
        %v6819 = vadd.f32 %v6366, %v6814
        %v6820 = vlaneseq
        %v6821 = vshrl.u32 %v6820, 7
        %v6822 = vsub.s32 1, %v6821
        %v6823 = vrot.slane %v6356, %v6822
        %v6824 = vadd.f32 %v6817, %v6823
        %v6825 = vadd.f32 %v6818, %v6823
        %v6826 = vadd.f32 %v6819, %v6823
        %v6827 = vld [vmem:[#allocation19] sm:$0x3]
        %v6828 = vsel %vm2513, %v6824, 0.0
        %6829 = vadd.xlane.f32.xlu0 %v6828
        %v6830 = vpop.xlane.xlu0 %6829
        %v6831 = vsel %vm2513, %v6825, 0.0
        %6832 = vadd.xlane.f32.xlu0 %v6831
        %v6833 = vpop.xlane.xlu0 %6832
        %v6834 = vsel %vm2894, %v6826, 0.0
        %6835 = vadd.xlane.f32.xlu0 %v6834
        %v6836 = vpop.xlane.xlu0 %6835
        %v6837 = vmul.f32 %v6830, %v2898
        %v6838 = vmul.f32 %v6833, %v2898
        %v6839 = vmul.f32 %v6836, %v2898
        %v6840 = vsub.f32 %v6824, %v6837
        %v6841 = vsub.f32 %v6825, %v6838
        %v6842 = vsub.f32 %v6826, %v6839
        %v6843 = vmul.f32 %v6840, %v6840
        %v6844 = vmul.f32 %v6841, %v6841
        %v6845 = vmul.f32 %v6842, %v6842
        %v6846 = vsel %vm2513, %v6843, 0.0
        %6847 = vadd.xlane.f32.xlu0 %v6846
        %v6848 = vpop.xlane.xlu0 %6847
        %v6849 = vsel %vm2513, %v6844, 0.0
        %6850 = vadd.xlane.f32.xlu0 %v6849
        %v6851 = vpop.xlane.xlu0 %6850
        %v6852 = vsel %vm2894, %v6845, 0.0
        %6853 = vadd.xlane.f32.xlu0 %v6852
        %v6854 = vpop.xlane.xlu0 %6853
        %v6855 = vmul.f32 %v6848, %v2898
        %v6856 = vmul.f32 %v6851, %v2898
        %v6857 = vmul.f32 %v6854, %v2898
        %v6858 = vadd.f32 %v6855, 1e-05
        %v6859 = vadd.f32 %v6856, 1e-05
        %v6860 = vadd.f32 %v6857, 1e-05
        %v6861 = vrsqrt.pop %v6858
        %v6862 = vrsqrt.pop %v6859
        %v6863 = vrsqrt.pop %v6860
        %v6864 = vmul.f32 %v6840, %v6861
        %v6865 = vmul.f32 %v6841, %v6862
        %v6866 = vmul.f32 %v6842, %v6863
        %v6867 = vlaneseq
        %v6868 = vshrl.u32 %v6867, 7
        %v6869 = vsub.s32 0, %v6868
        %v6870 = vrot.slane %v6827, %v6869
        %v6871 = vmul.f32 %v6864, %v6870
        %v6872 = vmul.f32 %v6865, %v6870
        %v6873 = vmul.f32 %v6866, %v6870
        %v6874 = vlaneseq
        %v6875 = vshrl.u32 %v6874, 7
        %v6876 = vsub.s32 1, %v6875
        %v6877 = vrot.slane %v6827, %v6876
        %v6878 = vadd.f32 %v6871, %v6877
        %v6879 = vadd.f32 %v6872, %v6877
        %v6880 = vadd.f32 %v6873, %v6877
        %s6881 = sld [smem:[#allocation3 + %s44]]
        %s6882 = scvt.s32.f32 %s6881
        %s6883 = smul.f32 %s6882, 0.003125
        %s6884 = scvt.f32.s32.to.zero.pseudo %s6883
        %v6885 = vlaneseq
        %v6886 = vand.u32 %v6885, 127
        %v6887 = vstv %s6884
        %vm6888 = vcmp.le.s32.totalorder %v6886, %v6887
        %v6889 = vsel %vm6888, 1, 0
        %v6890 = vcvt.s32.f32 %v6889
        %v6892 = vsel %vm3168, %v6890, 0
        %v6895 = vsel %vm3212, %v6880, 0
        %6897 = vmatprep.subr.mxu0 0.0
        %6898 = vmatpush1.msra.mxu0 %v6878
        %6899 = vmatprep.subr.mxu0 0.0
        %6900 = vmatpush1.msra.mxu0 %v6879
        %6901 = vmatprep.subr.mxu0 0.0
        %6902 = vmatpush1.msra.mxu0 %v6895
        %6903 = vmatprep.subr.mxu0 0.0
        %6904 = vmatpush1.msra.mxu0 0.0
        %6905 = vmatprep.subr.mxu0 0.0
        %6906 = vmatpush1.msra.mxu0 0.0
        %6907 = vmatprep.subr.mxu0 0.0
        %6908 = vmatpush1.msra.mxu0 0.0
        %6909 = vmatprep.subr.mxu0 0.0
        %6910 = vmatpush1.msra.mxu0 0.0
        %6911 = vmatprep.subr.mxu0 0.0
        %6912 = vmatpush1.msra.mxu0 0.0
        %6913 = vmatprep.subr.mxu0 0.0
        %6914 = vmatpush1.msra.mxu0 0.0
        %6915 = vmatprep.subr.mxu0 0.0
        %6916 = vmatpush1.msra.mxu0 0.0
        %6917 = vmatprep.subr.mxu0 0.0
        %6918 = vmatpush1.msra.mxu0 0.0
        %6919 = vmatprep.subr.mxu0 0.0
        %6920 = vmatpush1.msra.mxu0 0.0
        %6921 = vmatprep.subr.mxu0 0.0
        %6922 = vmatpush1.msra.mxu0 0.0
        %6923 = vmatprep.subr.mxu0 0.0
        %6924 = vmatpush1.msra.mxu0 0.0
        %6925 = vmatprep.subr.mxu0 0.0
        %6926 = vmatpush1.msra.mxu0 0.0
        %6927 = vmatprep.subr.mxu0 0.0
        %6928 = vmatpush1.msra.mxu0 0.0
        %6929 = vmatprep.subr.mxu0 0.0
        %6930 = vmatpush1.msra.mxu0 0.0
        %6931 = vmatprep.subr.mxu0 0.0
        %6932 = vmatpush1.msra.mxu0 0.0
        %6933 = vmatprep.subr.mxu0 0.0
        %6934 = vmatpush1.msra.mxu0 0.0
        %6935 = vmatprep.subr.mxu0 0.0
        %6936 = vmatpush1.msra.mxu0 0.0
        %6937 = vmatprep.subr.mxu0 0.0
        %6938 = vmatpush1.msra.mxu0 0.0
        %6939 = vmatprep.subr.mxu0 0.0
        %6940 = vmatpush1.msra.mxu0 0.0
        %6941 = vmatprep.subr.mxu0 0.0
        %6942 = vmatpush1.msra.mxu0 0.0
        %6943 = vmatprep.subr.mxu0 0.0
        %6944 = vmatpush1.msra.mxu0 0.0
        %6945 = vmatprep.subr.mxu0 0.0
        %6946 = vmatpush1.msra.mxu0 0.0
        %6947 = vmatprep.subr.mxu0 0.0
        %6948 = vmatpush1.msra.mxu0 0.0
        %6949 = vmatprep.subr.mxu0 0.0
        %6950 = vmatpush1.msra.mxu0 0.0
        %6951 = vmatprep.subr.mxu0 0.0
        %6952 = vmatpush1.msra.mxu0 0.0
        %6953 = vmatprep.subr.mxu0 0.0
        %6954 = vmatpush1.msra.mxu0 0.0
        %6955 = vmatprep.subr.mxu0 0.0
        %6956 = vmatpush1.msra.mxu0 0.0
        %6957 = vmatprep.subr.mxu0 0.0
        %6958 = vmatpush1.msra.mxu0 0.0
        %6959 = vmatprep.subr.mxu0 0.0
        %6960 = vmatpush1.msra.mxu0 0.0
        %6961 = vmatprep.mubr.f32.mxu0 0.0
        %6962 = vmatmul.mubr.f32.gmra.mrb[0].mxu0 %v6892
        %v6963 = vpop.f32.mrb[0].mxu0
        %v6964 = vadd.f32 0.0, %v6963
        %v6965 = vpop.f32.mrb[0].mxu0
        %6966 = vdwg.mxu0
        %vm6967 = vcmask 155648
        %v6968 = vsel %vm6967, %v6890, 0.0
        %6969 = vadd.xlane.f32.xlu0 %v6968
        %v6970 = vpop.xlane.xlu0 %6969
        %v6971 = vrot.slane %v6970, 4
        %v6972 = vadd.f32 %v6970, %v6971
        %v6973 = vrot.slane %v6972, 2
        %v6974 = vadd.f32 %v6972, %v6973
        %v6975 = vrot.slane %v6974, 1
        %v6976 = vadd.f32 %v6974, %v6975
        %s6977 = vtos %v6976
        %s6978 = smax.f32 %s6977, 1.0
        %v6979 = vstv %s6978
        %v6980 = vrcp.pop %v6979
        %v6981 = vmul.f32 %v6964, %v6980
        %vm6982 = vcmask 516096
        %6983 = vst.msk [vmem:[%s691] sm:$0x1] %vm6982, %v6981
        %s6984 = sand.u32 %s414, 1
        %s6985 = scalar_lea.sflag [#allocation6], %s6984
        %s6986 = sand.u32 %s414, 1
        %s6987 = scalar_lea.vmem [#allocation21], %s6986
        // Predicated region
        $region129: #{whisper_wrapper_forward.1} parent=87 // pred_check
          %p6988 = pneg %p424
        $region130: #{whisper_wrapper_forward.1} parent=87 // pred_check_branch
          %6990 = sbr.rel (%p6988) target = $region132
        $region131: #{whisper_wrapper_forward.1} parent=87 // pred_region
          %s6992 = ssub.s32 16, 16
          %6993 = vsyncadd %s6985, %s6992
          %s6994 = smul.addr %s44, 16
          %s6995 = scalar_lea.hbm %s18, %s6994
          %s6997 = sshll.u32 %s6987, 4
          %s6998 = int_to_ptr.vmem [resolvable:$true] %s6997
          %7000 = dma.vmem_to_hbm [thread:$0]  %s6998, 16, %s6995, %s6985
        $region132: #{whisper_wrapper_forward.1} parent=87 // pred_fallthru
          _
      $region88: #{whisper_wrapper_forward.1} parent=5 // pred_fallthru
        _
      %p7001 = scmp.le.s32.totalorder 2, %s39
      // Predicated region
      $region133: #{whisper_wrapper_forward.1} parent=5 // pred_check
        %p7002 = pneg %p7001
      $region134: #{whisper_wrapper_forward.1} parent=5 // pred_check_branch
        %7004 = sbr.rel (%p7002) target = $region136
      $region135: #{whisper_wrapper_forward.1} parent=5 // pred_region
        %s7005 = ssub.s32 %s39, 2
        // Predicated region
        $region137: #{whisper_wrapper_forward.1} parent=135 // pred_check
          %p7006 = pneg %p430
        $region138: #{whisper_wrapper_forward.1} parent=135 // pred_check_branch
          %7008 = sbr.rel (%p7006) target = $region140
        $region139: #{whisper_wrapper_forward.1} parent=135 // pred_region
          %s7009 = sand.u32 %s415, 1
          %s7010 = scalar_lea.sflag [#allocation6], %s7009
          %s7011 = sand.u32 %s415, 1
          %s7012 = scalar_lea.vmem [#allocation21], %s7011
          %7013 = dma.done %s7010, 16
        $region140: #{whisper_wrapper_forward.1} parent=135 // pred_fallthru
          _
      $region136: #{whisper_wrapper_forward.1} parent=5 // pred_fallthru
        _
    $region6: #{whisper_wrapper_forward.1} parent=1 // loop_footer
      %s43 = sadd.s32 1, %s39
    $region7: #{whisper_wrapper_forward.1} parent=1 // loop_footer_branch
      %38 = sbr.rel target = $region3
    $region8: #{whisper_wrapper_forward.1} parent=1 // loop_exit
      _
    %7014 = vsyncpa [#allocation5], 1
    %s7015 = scalar_lea.sflag [#allocation5], 1
    %7016 = vsyncpa %s7015, 1
    %7017 = vsyncpa [#allocation8], 1
    %7018 = vsyncpa [#allocation11], 1
    %7019 = vsyncpa [#allocation14], 1
    %7020 = vsyncpa [#allocation17], 1
    %7021 = vsyncpa [#allocation20], 1
    %7022 = vsyncpa [#allocation6], 1
    %s7023 = scalar_lea.sflag [#allocation6], 1
    %7024 = vsyncpa %s7023, 1

</llo_original>
